<compile_context>
chip_gen: v6e
topology: v6e:2x2x1
jax: 0.10.0
libtpu: 0.0.40
codegen_flags: <defaults>
</compile_context>

<pallas_src>
import functools

import jax
import jax.numpy as jnp
from jax import lax
from jax.experimental import pallas as pl
from jax.experimental.pallas import tpu as pltpu


PADL = 8  # left-halo width in staged buffers (multiple of 8 => aligned interior stores)


# ---------------------------------------------------------------------------
# Pallas kernel: fused conv3x3+BN+ReLU -> conv3x3+BN -> +identity -> ReLU
# ---------------------------------------------------------------------------
def _basic_block_kernel(x_ref, w1_ref, w2_ref, b1_ref, b2_ref, o_ref,
                        xpad_ref, h1pad_ref, acc1_ref, acc2_ref,
                        *, H, W, Cin, planes, TH):
    # x_ref   : (H, W, Cin)  f32, unpadded NHWC image (batch dim squeezed)
    # w1_ref  : (9, Cin, planes)    bf16, conv1 taps with BN1 scale folded in
    # w2_ref  : (9, planes, planes) bf16, conv2 taps with BN2 scale folded in
    # b1_ref  : (1, planes) f32 folded BN1 shift
    # b2_ref  : (1, planes) f32 folded BN2 shift
    # o_ref   : (TH*W, planes) f32 output rows of this row block
    # xpad_ref: (H+4, W+2*PADL, Cin)  bf16 zero-padded input (staged at hb==0)
    # h1pad_ref:(TH+2, W+2*PADL, planes) bf16 padded conv1 activation (per block)
    # acc1/acc2: f32 VMEM accumulators
    hb = pl.program_id(1)
    nhb = pl.num_programs(1)
    r0 = pl.multiple_of(hb * TH, TH)      # first output row of this row block
    RB1 = TH + 2                          # conv1 rows computed (1-row halo for conv2)
    WP = W + 2 * PADL

    # ---- once per batch element: stage zero-padded bf16 input in VMEM ----
    # Only the halo is zero-filled; the interior is a single aligned store.
    @pl.when(hb == 0)
    def _stage_input():
        zc = jnp.zeros((H + 4, PADL, Cin), jnp.bfloat16)
        xpad_ref[:, 0:PADL, :] = zc                              # left halo cols
        xpad_ref[:, PADL + W:WP, :] = zc                         # right halo cols
        zr = jnp.zeros((2, W, Cin), jnp.bfloat16)
        xpad_ref[0:2, PADL:PADL + W, :] = zr                     # top halo rows
        xpad_ref[H + 2:H + 4, PADL:PADL + W, :] = zr             # bottom halo rows
        xpad_ref[2:H + 2, PADL:PADL + W, :] = x_ref[...].astype(jnp.bfloat16)
        # conv1-activation halo columns: written once, never dirtied afterwards
        # (interior stores below are column-aligned and don't touch them).
        zh = jnp.zeros((RB1, PADL, planes), jnp.bfloat16)
        h1pad_ref[:, 0:PADL, :] = zh
        h1pad_ref[:, PADL + W:WP, :] = zh

    # ---- conv1 (+ folded BN1): 9 bf16 MXU matmuls, f32 VMEM accumulation ----
    # Computes conv1 activation rows r0-1 .. r0+TH (halo rows for conv2).
    for t in range(9):
        dh, dw = divmod(t, 3)
        patch = xpad_ref[pl.ds(r0 + dh, RB1),
                         PADL - 1 + dw:PADL - 1 + dw + W, :]
        patch = patch.reshape(RB1 * W, Cin)
        part = jnp.dot(patch, w1_ref[t], preferred_element_type=jnp.float32)
        if t == 0:
            acc1_ref[...] = part
        else:
            acc1_ref[...] += part

    h1 = jnp.maximum(acc1_ref[...] + b1_ref[...], 0.0)          # ReLU
    h1pad_ref[:, PADL:PADL + W, :] = (
        h1.reshape(RB1, W, planes).astype(jnp.bfloat16))

    # Conv1-activation rows outside the image are zero padding for conv2
    # (only the first / last row block touches them).
    @pl.when(hb == 0)
    def _zero_top_halo_row():
        h1pad_ref[0:1, PADL:PADL + W, :] = jnp.zeros((1, W, planes), jnp.bfloat16)

    @pl.when(hb == nhb - 1)
    def _zero_bottom_halo_row():
        h1pad_ref[RB1 - 1:RB1, PADL:PADL + W, :] = jnp.zeros((1, W, planes),
                                                             jnp.bfloat16)

    # ---- conv2 (+ folded BN2): same 9-tap scheme over the staged activation ----
    for t in range(9):
        dh, dw = divmod(t, 3)
        patch = h1pad_ref[dh:dh + TH, PADL - 1 + dw:PADL - 1 + dw + W, :]
        patch = patch.reshape(TH * W, planes)
        part = jnp.dot(patch, w2_ref[t], preferred_element_type=jnp.float32)
        if t == 0:
            acc2_ref[...] = part
        else:
            acc2_ref[...] += part

    # ---- residual add (stride=1, downsample=None => identity = x) + ReLU ----
    identity = x_ref[pl.ds(r0, TH), :, :].reshape(TH * W, Cin)   # f32, unpadded
    out = jnp.maximum(acc2_ref[...] + b2_ref[...] + identity, 0.0)
    o_ref[...] = out.astype(o_ref.dtype)


# ---------------------------------------------------------------------------
# wrapper: layout glue (NCHW <-> NHWC), BN folding, pallas_call
# ---------------------------------------------------------------------------
def basic_block(x, w1_hwio, w2_hwio, bn1, bn2, eps=1e-5, row_block=8):
    """BasicBlock.forward (inference). x: (N, C, H, W) NCHW; weights HWIO."""
    N, Cin, H, W = x.shape
    planes = w1_hwio.shape[-1]
    assert w1_hwio.shape == (3, 3, Cin, planes)
    assert w2_hwio.shape == (3, 3, planes, planes)
    # TODO(synk): stride>1 / downsample path not implemented (default config).
    assert Cin == planes, "identity residual requires inplanes == planes"
    assert W % 8 == 0, "W must be a multiple of 8 for sublane-aligned staging"

    TH = row_block if H % row_block == 0 else H
    grid = (N, H // TH)

    g1, beta1, m1, v1 = bn1
    g2, beta2, m2, v2 = bn2
    s1 = g1 / jnp.sqrt(v1 + eps)
    s2 = g2 / jnp.sqrt(v2 + eps)
    # Fold BN (eval mode) into conv weights/bias; weights -> bf16 MXU operands,
    # biases stay f32 (added to the f32 accumulator).
    w1f = (w1_hwio * s1).reshape(9, Cin, planes).astype(jnp.bfloat16)
    w2f = (w2_hwio * s2).reshape(9, planes, planes).astype(jnp.bfloat16)
    b1 = (beta1 - m1 * s1).reshape(1, planes).astype(jnp.float32)
    b2 = (beta2 - m2 * s2).reshape(1, planes).astype(jnp.float32)

    # NCHW -> NHWC (channels last on the lanes). NO wrapper-side padding.
    x_nhwc = jnp.transpose(x, (0, 2, 3, 1)).astype(jnp.float32)

    kernel = functools.partial(_basic_block_kernel, H=H, W=W, Cin=Cin,
                               planes=planes, TH=TH)
    WP = W + 2 * PADL

    out = pl.pallas_call(
        kernel,
        out_shape=jax.ShapeDtypeStruct((N, H * W, planes), jnp.float32),
        grid=grid,
        in_specs=[
            # Whole image per batch element; block index is constant along the
            # row-block axis so it is DMA'd once per n and reused across blocks.
            pl.BlockSpec((pl.Squeezed(), H, W, Cin), lambda n, hb: (n, 0, 0, 0)),
            # Grid-invariant weights / biases (constant index map -> fetched
            # once and kept resident; small enough that extra buffering is moot).
            pl.BlockSpec((9, Cin, planes), lambda n, hb: (0, 0, 0)),
            pl.BlockSpec((9, planes, planes), lambda n, hb: (0, 0, 0)),
            pl.BlockSpec((1, planes), lambda n, hb: (0, 0)),
            pl.BlockSpec((1, planes), lambda n, hb: (0, 0)),
        ],
        out_specs=pl.BlockSpec((pl.Squeezed(), TH * W, planes),
                               lambda n, hb: (n, hb, 0)),
        scratch_shapes=[
            pltpu.VMEM((H + 4, WP, Cin), jnp.bfloat16),       # padded bf16 input
            pltpu.VMEM((TH + 2, WP, planes), jnp.bfloat16),   # padded conv1 act
            pltpu.VMEM(((TH + 2) * W, planes), jnp.float32),  # conv1 f32 accum
            pltpu.VMEM((TH * W, planes), jnp.float32),        # conv2 f32 accum
        ],
        compiler_params=pltpu.CompilerParams(
            # Batch axis sharded across TensorCores; row-block axis kept
            # "arbitrary" (in-order) because the per-batch staged halo written
            # at hb == 0 is reused by later row blocks on the same core.
            # Per-step VMEM footprint is small, so no vmem_limit override.
            dimension_semantics=("parallel", "arbitrary")),
    )(x_nhwc, w1f, w2f, b1, b2)

    # (N, H*W, planes) -> (N, planes, H, W) NCHW, matching PyTorch.
    return jnp.transpose(out.reshape(N, H, W, planes), (0, 3, 1, 2))


# ---------------------------------------------------------------------------
# pure-JAX reference (unfused conv -> BN -> ReLU ..., NCHW) for validation
# ---------------------------------------------------------------------------
def _reference(x, w1_hwio, w2_hwio, bn1, bn2, eps=1e-5):
    def conv(inp, w_hwio):
        w_oihw = jnp.transpose(w_hwio, (3, 2, 0, 1))
        return lax.conv_general_dilated(
            inp, w_oihw, window_strides=(1, 1), padding=((1, 1), (1, 1)),
            dimension_numbers=("NCHW", "OIHW", "NCHW"),
            precision=lax.Precision.HIGHEST)

    def bn(y, p):
        g, b, m, v = p
        inv = g / jnp.sqrt(v + eps)
        return y * inv[None, :, None, None] + \
            (b - m * inv)[None, :, None, None]

    y = jnp.maximum(bn(conv(x, w1_hwio), bn1), 0.0)
    z = bn(conv(y, w2_hwio), bn2)
    return jnp.maximum(z + x, 0.0)


if __name__ == "__main__":
    key = jax.random.PRNGKey(0)
    ks = jax.random.split(key, 11)

    N, C, H, W = 2, 4, 16, 16
    planes = C

    x = jax.random.normal(ks[0], (N, C, H, W), dtype=jnp.float32)
    w1 = jax.random.normal(ks[1], (3, 3, C, planes), dtype=jnp.float32) * 0.2
    w2 = jax.random.normal(ks[2], (3, 3, planes, planes), dtype=jnp.float32) * 0.2
    bn1 = (1.0 + 0.1 * jax.random.normal(ks[3], (planes,), dtype=jnp.float32),
           0.1 * jax.random.normal(ks[4], (planes,), dtype=jnp.float32),
           0.1 * jax.random.normal(ks[5], (planes,), dtype=jnp.float32),
           jnp.abs(jax.random.normal(ks[6], (planes,), dtype=jnp.float32)) + 0.5)
    bn2 = (1.0 + 0.1 * jax.random.normal(ks[7], (planes,), dtype=jnp.float32),
           0.1 * jax.random.normal(ks[8], (planes,), dtype=jnp.float32),
           0.1 * jax.random.normal(ks[9], (planes,), dtype=jnp.float32),
           jnp.abs(jax.random.normal(ks[10], (planes,), dtype=jnp.float32)) + 0.5)

    out = jax.block_until_ready(basic_block(x, w1, w2, bn1, bn2))
    assert out.shape == (N, planes, H, W), out.shape

    ref = jax.block_until_ready(_reference(x, w1, w2, bn1, bn2))
    max_err = float(jnp.max(jnp.abs(out - ref)))
    # bf16 MXU operands (f32 accumulation) => bf16-appropriate tolerance vs the
    # full-f32 reference.
    if not jnp.allclose(out, ref, rtol=4e-2, atol=8e-2):
        raise AssertionError(
            f"Pallas BasicBlock mismatch vs reference (max abs err={max_err})")

    print("KERNEL_OK")
</pallas_src>

<mosaic_0001>
module attributes {stable_mosaic.version = 11 : i64} {
  func.func @_basic_block_kernel(%arg0: i32, %arg1: i32, %arg2: memref<1x16x16x4xf32, #tpu.memory_space<vmem>>, %arg3: memref<9x4x4xbf16, #tpu.memory_space<vmem>>, %arg4: memref<9x4x4xbf16, #tpu.memory_space<vmem>>, %arg5: memref<1x4xf32, #tpu.memory_space<vmem>>, %arg6: memref<1x4xf32, #tpu.memory_space<vmem>>, %arg7: memref<1x128x4xf32, #tpu.memory_space<vmem>>, %arg8: memref<20x32x4xbf16, #tpu.memory_space<vmem>>, %arg9: memref<10x32x4xbf16, #tpu.memory_space<vmem>>, %arg10: memref<160x4xf32, #tpu.memory_space<vmem>>, %arg11: memref<128x4xf32, #tpu.memory_space<vmem>>) attributes {dimension_semantics = [#tpu.dimension_semantics<parallel>, #tpu.dimension_semantics<arbitrary>], iteration_bounds = array<i64: 2, 2>, scalar_prefetch = 0 : i64, scratch_operands = 4 : i64, tpu.core_type = #tpu.core_type<tc>, window_params = [{transform_indices = @transform_0, window_bounds = array<i64: 1, 16, 16, 4>}, {pipeline_mode = #tpu.pipeline_mode<synchronous>, transform_indices = @transform_1, window_bounds = array<i64: 9, 4, 4>}, {pipeline_mode = #tpu.pipeline_mode<synchronous>, transform_indices = @transform_2, window_bounds = array<i64: 9, 4, 4>}, {pipeline_mode = #tpu.pipeline_mode<synchronous>, transform_indices = @transform_3, window_bounds = array<i64: 1, 4>}, {pipeline_mode = #tpu.pipeline_mode<synchronous>, transform_indices = @transform_4, window_bounds = array<i64: 1, 4>}, {transform_indices = @transform_5, window_bounds = array<i64: 1, 128, 4>}]} {
    %c8_i32 = arith.constant 8 : i32
    %0 = arith.muli %arg1, %c8_i32 : i32
    %1 = tpu.assume_multiple %0, 8 : i32
    %c0_i32 = arith.constant 0 : i32
    %2 = arith.cmpi eq, %arg1, %c0_i32 : i32
    %3 = arith.extui %2 : i1 to i32
    %c0_i32_0 = arith.constant 0 : i32
    %4 = arith.cmpi ne, %3, %c0_i32_0 : i32
    scf.if %4 {
      %cst_205 = arith.constant 0.000000e+00 : bf16
      %192 = vector.broadcast %cst_205 : bf16 to vector<20x8x4xbf16>
      %c0_206 = arith.constant 0 : index
      %c0_207 = arith.constant 0 : index
      %c0_208 = arith.constant 0 : index
      %193 = vector.load %arg8[%c0_206, %c0_207, %c0_208] : memref<20x32x4xbf16, #tpu.memory_space<vmem>>, vector<20x8x4xbf16>
      tpu.vector_store %arg8[%c0_206, %c0_207, %c0_208], %192 {strides = array<i32>} : memref<20x32x4xbf16, #tpu.memory_space<vmem>>, vector<20x8x4xbf16>,
      %c0_209 = arith.constant 0 : index
      %c24 = arith.constant 24 : index
      %c0_210 = arith.constant 0 : index
      %194 = vector.load %arg8[%c0_209, %c24, %c0_210] : memref<20x32x4xbf16, #tpu.memory_space<vmem>>, vector<20x8x4xbf16>
      tpu.vector_store %arg8[%c0_209, %c24, %c0_210], %192 {strides = array<i32>} : memref<20x32x4xbf16, #tpu.memory_space<vmem>>, vector<20x8x4xbf16>,
      %cst_211 = arith.constant 0.000000e+00 : bf16
      %195 = vector.broadcast %cst_211 : bf16 to vector<2x16x4xbf16>
      %c0_212 = arith.constant 0 : index
      %c8_213 = arith.constant 8 : index
      %c0_214 = arith.constant 0 : index
      %196 = vector.load %arg8[%c0_212, %c8_213, %c0_214] : memref<20x32x4xbf16, #tpu.memory_space<vmem>>, vector<2x16x4xbf16>
      tpu.vector_store %arg8[%c0_212, %c8_213, %c0_214], %195 {strides = array<i32>} : memref<20x32x4xbf16, #tpu.memory_space<vmem>>, vector<2x16x4xbf16>,
      %c18 = arith.constant 18 : index
      %c8_215 = arith.constant 8 : index
      %c0_216 = arith.constant 0 : index
      %197 = vector.load %arg8[%c18, %c8_215, %c0_216] : memref<20x32x4xbf16, #tpu.memory_space<vmem>>, vector<2x16x4xbf16>
      tpu.vector_store %arg8[%c18, %c8_215, %c0_216], %195 {strides = array<i32>} : memref<20x32x4xbf16, #tpu.memory_space<vmem>>, vector<2x16x4xbf16>,
      %c0_217 = arith.constant 0 : index
      %c0_218 = arith.constant 0 : index
      %c0_219 = arith.constant 0 : index
      %c0_220 = arith.constant 0 : index
      %198 = vector.load %arg2[%c0_217, %c0_218, %c0_219, %c0_220] : memref<1x16x16x4xf32, #tpu.memory_space<vmem>>, vector<1x16x16x4xf32>
      %199 = vector.shape_cast %198 : vector<1x16x16x4xf32> to vector<16x16x4xf32>
      %200 = arith.truncf %199 : vector<16x16x4xf32> to vector<16x16x4xbf16>
      %c2_221 = arith.constant 2 : index
      %c8_222 = arith.constant 8 : index
      %c0_223 = arith.constant 0 : index
      %201 = vector.load %arg8[%c2_221, %c8_222, %c0_223] : memref<20x32x4xbf16, #tpu.memory_space<vmem>>, vector<16x16x4xbf16>
      tpu.vector_store %arg8[%c2_221, %c8_222, %c0_223], %200 {strides = array<i32>} : memref<20x32x4xbf16, #tpu.memory_space<vmem>>, vector<16x16x4xbf16>,
      %cst_224 = arith.constant 0.000000e+00 : bf16
      %202 = vector.broadcast %cst_224 : bf16 to vector<10x8x4xbf16>
      %c0_225 = arith.constant 0 : index
      %c0_226 = arith.constant 0 : index
      %c0_227 = arith.constant 0 : index
      %203 = vector.load %arg9[%c0_225, %c0_226, %c0_227] : memref<10x32x4xbf16, #tpu.memory_space<vmem>>, vector<10x8x4xbf16>
      tpu.vector_store %arg9[%c0_225, %c0_226, %c0_227], %202 {strides = array<i32>} : memref<10x32x4xbf16, #tpu.memory_space<vmem>>, vector<10x8x4xbf16>,
      %c0_228 = arith.constant 0 : index
      %c24_229 = arith.constant 24 : index
      %c0_230 = arith.constant 0 : index
      %204 = vector.load %arg9[%c0_228, %c24_229, %c0_230] : memref<10x32x4xbf16, #tpu.memory_space<vmem>>, vector<10x8x4xbf16>
      tpu.vector_store %arg9[%c0_228, %c24_229, %c0_230], %202 {strides = array<i32>} : memref<10x32x4xbf16, #tpu.memory_space<vmem>>, vector<10x8x4xbf16>,
    } else {
    }
    %c0_i32_1 = arith.constant 0 : i32
    %5 = arith.addi %1, %c0_i32_1 : i32
    %6 = arith.index_cast %5 : i32 to index
    %c7 = arith.constant 7 : index
    %c0 = arith.constant 0 : index
    %7 = vector.load %arg8[%6, %c7, %c0] : memref<20x32x4xbf16, #tpu.memory_space<vmem>>, vector<10x16x4xbf16>
    %8 = vector.shape_cast %7 : vector<10x16x4xbf16> to vector<160x4xbf16>
    %c0_2 = arith.constant 0 : index
    %c0_3 = arith.constant 0 : index
    %c0_4 = arith.constant 0 : index
    %9 = vector.load %arg3[%c0_2, %c0_3, %c0_4] : memref<9x4x4xbf16, #tpu.memory_space<vmem>>, vector<1x4x4xbf16>
    %10 = vector.shape_cast %9 : vector<1x4x4xbf16> to vector<4x4xbf16>
    %cst = arith.constant dense<0.000000e+00> : vector<160x4xf32>
    %11 = tpu.matmul %8, %10, %cst {dimension_numbers = #tpu.dot_dimension_numbers<[1], [0], [0], [1], [0, 0, 1, 1], [], []>} : vector<160x4xbf16>, vector<4x4xbf16>, vector<160x4xf32> -> vector<160x4xf32>
    %c0_5 = arith.constant 0 : index
    %c0_6 = arith.constant 0 : index
    %12 = vector.load %arg10[%c0_5, %c0_6] : memref<160x4xf32, #tpu.memory_space<vmem>>, vector<160x4xf32>
    tpu.vector_store %arg10[%c0_5, %c0_6], %11 {strides = array<i32>} : memref<160x4xf32, #tpu.memory_space<vmem>>, vector<160x4xf32>,
    %c0_i32_7 = arith.constant 0 : i32
    %13 = arith.addi %1, %c0_i32_7 : i32
    %14 = arith.index_cast %13 : i32 to index
    %c8 = arith.constant 8 : index
    %c0_8 = arith.constant 0 : index
    %15 = vector.load %arg8[%14, %c8, %c0_8] : memref<20x32x4xbf16, #tpu.memory_space<vmem>>, vector<10x16x4xbf16>
    %16 = vector.shape_cast %15 : vector<10x16x4xbf16> to vector<160x4xbf16>
    %c1 = arith.constant 1 : index
    %c0_9 = arith.constant 0 : index
    %c0_10 = arith.constant 0 : index
    %17 = vector.load %arg3[%c1, %c0_9, %c0_10] : memref<9x4x4xbf16, #tpu.memory_space<vmem>>, vector<1x4x4xbf16>
    %18 = vector.shape_cast %17 : vector<1x4x4xbf16> to vector<4x4xbf16>
    %cst_11 = arith.constant dense<0.000000e+00> : vector<160x4xf32>
    %19 = tpu.matmul %16, %18, %cst_11 {dimension_numbers = #tpu.dot_dimension_numbers<[1], [0], [0], [1], [0, 0, 1, 1], [], []>} : vector<160x4xbf16>, vector<4x4xbf16>, vector<160x4xf32> -> vector<160x4xf32>
    %c0_12 = arith.constant 0 : index
    %c0_13 = arith.constant 0 : index
    %20 = vector.load %arg10[%c0_12, %c0_13] : memref<160x4xf32, #tpu.memory_space<vmem>>, vector<160x4xf32>
    %21 = arith.addf %20, %19 : vector<160x4xf32>
    %c0_14 = arith.constant 0 : index
    %c0_15 = arith.constant 0 : index
    %22 = vector.load %arg10[%c0_14, %c0_15] : memref<160x4xf32, #tpu.memory_space<vmem>>, vector<160x4xf32>
    tpu.vector_store %arg10[%c0_14, %c0_15], %21 {strides = array<i32>} : memref<160x4xf32, #tpu.memory_space<vmem>>, vector<160x4xf32>,
    %c0_i32_16 = arith.constant 0 : i32
    %23 = arith.addi %1, %c0_i32_16 : i32
    %24 = arith.index_cast %23 : i32 to index
    %c9 = arith.constant 9 : index
    %c0_17 = arith.constant 0 : index
    %25 = vector.load %arg8[%24, %c9, %c0_17] : memref<20x32x4xbf16, #tpu.memory_space<vmem>>, vector<10x16x4xbf16>
    %26 = vector.shape_cast %25 : vector<10x16x4xbf16> to vector<160x4xbf16>
    %c2 = arith.constant 2 : index
    %c0_18 = arith.constant 0 : index
    %c0_19 = arith.constant 0 : index
    %27 = vector.load %arg3[%c2, %c0_18, %c0_19] : memref<9x4x4xbf16, #tpu.memory_space<vmem>>, vector<1x4x4xbf16>
    %28 = vector.shape_cast %27 : vector<1x4x4xbf16> to vector<4x4xbf16>
    %cst_20 = arith.constant dense<0.000000e+00> : vector<160x4xf32>
    %29 = tpu.matmul %26, %28, %cst_20 {dimension_numbers = #tpu.dot_dimension_numbers<[1], [0], [0], [1], [0, 0, 1, 1], [], []>} : vector<160x4xbf16>, vector<4x4xbf16>, vector<160x4xf32> -> vector<160x4xf32>
    %c0_21 = arith.constant 0 : index
    %c0_22 = arith.constant 0 : index
    %30 = vector.load %arg10[%c0_21, %c0_22] : memref<160x4xf32, #tpu.memory_space<vmem>>, vector<160x4xf32>
    %31 = arith.addf %30, %29 : vector<160x4xf32>
    %c0_23 = arith.constant 0 : index
    %c0_24 = arith.constant 0 : index
    %32 = vector.load %arg10[%c0_23, %c0_24] : memref<160x4xf32, #tpu.memory_space<vmem>>, vector<160x4xf32>
    tpu.vector_store %arg10[%c0_23, %c0_24], %31 {strides = array<i32>} : memref<160x4xf32, #tpu.memory_space<vmem>>, vector<160x4xf32>,
    %c1_i32 = arith.constant 1 : i32
    %33 = arith.addi %1, %c1_i32 : i32
    %34 = arith.index_cast %33 : i32 to index
    %c7_25 = arith.constant 7 : index
    %c0_26 = arith.constant 0 : index
    %35 = vector.load %arg8[%34, %c7_25, %c0_26] : memref<20x32x4xbf16, #tpu.memory_space<vmem>>, vector<10x16x4xbf16>
    %36 = vector.shape_cast %35 : vector<10x16x4xbf16> to vector<160x4xbf16>
    %c3 = arith.constant 3 : index
    %c0_27 = arith.constant 0 : index
    %c0_28 = arith.constant 0 : index
    %37 = vector.load %arg3[%c3, %c0_27, %c0_28] : memref<9x4x4xbf16, #tpu.memory_space<vmem>>, vector<1x4x4xbf16>
    %38 = vector.shape_cast %37 : vector<1x4x4xbf16> to vector<4x4xbf16>
    %cst_29 = arith.constant dense<0.000000e+00> : vector<160x4xf32>
    %39 = tpu.matmul %36, %38, %cst_29 {dimension_numbers = #tpu.dot_dimension_numbers<[1], [0], [0], [1], [0, 0, 1, 1], [], []>} : vector<160x4xbf16>, vector<4x4xbf16>, vector<160x4xf32> -> vector<160x4xf32>
    %c0_30 = arith.constant 0 : index
    %c0_31 = arith.constant 0 : index
    %40 = vector.load %arg10[%c0_30, %c0_31] : memref<160x4xf32, #tpu.memory_space<vmem>>, vector<160x4xf32>
    %41 = arith.addf %40, %39 : vector<160x4xf32>
    %c0_32 = arith.constant 0 : index
    %c0_33 = arith.constant 0 : index
    %42 = vector.load %arg10[%c0_32, %c0_33] : memref<160x4xf32, #tpu.memory_space<vmem>>, vector<160x4xf32>
    tpu.vector_store %arg10[%c0_32, %c0_33], %41 {strides = array<i32>} : memref<160x4xf32, #tpu.memory_space<vmem>>, vector<160x4xf32>,
    %c1_i32_34 = arith.constant 1 : i32
    %43 = arith.addi %1, %c1_i32_34 : i32
    %44 = arith.index_cast %43 : i32 to index
    %c8_35 = arith.constant 8 : index
    %c0_36 = arith.constant 0 : index
    %45 = vector.load %arg8[%44, %c8_35, %c0_36] : memref<20x32x4xbf16, #tpu.memory_space<vmem>>, vector<10x16x4xbf16>
    %46 = vector.shape_cast %45 : vector<10x16x4xbf16> to vector<160x4xbf16>
    %c4 = arith.constant 4 : index
    %c0_37 = arith.constant 0 : index
    %c0_38 = arith.constant 0 : index
    %47 = vector.load %arg3[%c4, %c0_37, %c0_38] : memref<9x4x4xbf16, #tpu.memory_space<vmem>>, vector<1x4x4xbf16>
    %48 = vector.shape_cast %47 : vector<1x4x4xbf16> to vector<4x4xbf16>
    %cst_39 = arith.constant dense<0.000000e+00> : vector<160x4xf32>
    %49 = tpu.matmul %46, %48, %cst_39 {dimension_numbers = #tpu.dot_dimension_numbers<[1], [0], [0], [1], [0, 0, 1, 1], [], []>} : vector<160x4xbf16>, vector<4x4xbf16>, vector<160x4xf32> -> vector<160x4xf32>
    %c0_40 = arith.constant 0 : index
    %c0_41 = arith.constant 0 : index
    %50 = vector.load %arg10[%c0_40, %c0_41] : memref<160x4xf32, #tpu.memory_space<vmem>>, vector<160x4xf32>
    %51 = arith.addf %50, %49 : vector<160x4xf32>
    %c0_42 = arith.constant 0 : index
    %c0_43 = arith.constant 0 : index
    %52 = vector.load %arg10[%c0_42, %c0_43] : memref<160x4xf32, #tpu.memory_space<vmem>>, vector<160x4xf32>
    tpu.vector_store %arg10[%c0_42, %c0_43], %51 {strides = array<i32>} : memref<160x4xf32, #tpu.memory_space<vmem>>, vector<160x4xf32>,
    %c1_i32_44 = arith.constant 1 : i32
    %53 = arith.addi %1, %c1_i32_44 : i32
    %54 = arith.index_cast %53 : i32 to index
    %c9_45 = arith.constant 9 : index
    %c0_46 = arith.constant 0 : index
    %55 = vector.load %arg8[%54, %c9_45, %c0_46] : memref<20x32x4xbf16, #tpu.memory_space<vmem>>, vector<10x16x4xbf16>
    %56 = vector.shape_cast %55 : vector<10x16x4xbf16> to vector<160x4xbf16>
    %c5 = arith.constant 5 : index
    %c0_47 = arith.constant 0 : index
    %c0_48 = arith.constant 0 : index
    %57 = vector.load %arg3[%c5, %c0_47, %c0_48] : memref<9x4x4xbf16, #tpu.memory_space<vmem>>, vector<1x4x4xbf16>
    %58 = vector.shape_cast %57 : vector<1x4x4xbf16> to vector<4x4xbf16>
    %cst_49 = arith.constant dense<0.000000e+00> : vector<160x4xf32>
    %59 = tpu.matmul %56, %58, %cst_49 {dimension_numbers = #tpu.dot_dimension_numbers<[1], [0], [0], [1], [0, 0, 1, 1], [], []>} : vector<160x4xbf16>, vector<4x4xbf16>, vector<160x4xf32> -> vector<160x4xf32>
    %c0_50 = arith.constant 0 : index
    %c0_51 = arith.constant 0 : index
    %60 = vector.load %arg10[%c0_50, %c0_51] : memref<160x4xf32, #tpu.memory_space<vmem>>, vector<160x4xf32>
    %61 = arith.addf %60, %59 : vector<160x4xf32>
    %c0_52 = arith.constant 0 : index
    %c0_53 = arith.constant 0 : index
    %62 = vector.load %arg10[%c0_52, %c0_53] : memref<160x4xf32, #tpu.memory_space<vmem>>, vector<160x4xf32>
    tpu.vector_store %arg10[%c0_52, %c0_53], %61 {strides = array<i32>} : memref<160x4xf32, #tpu.memory_space<vmem>>, vector<160x4xf32>,
    %c2_i32 = arith.constant 2 : i32
    %63 = arith.addi %1, %c2_i32 : i32
    %64 = arith.index_cast %63 : i32 to index
    %c7_54 = arith.constant 7 : index
    %c0_55 = arith.constant 0 : index
    %65 = vector.load %arg8[%64, %c7_54, %c0_55] : memref<20x32x4xbf16, #tpu.memory_space<vmem>>, vector<10x16x4xbf16>
    %66 = vector.shape_cast %65 : vector<10x16x4xbf16> to vector<160x4xbf16>
    %c6 = arith.constant 6 : index
    %c0_56 = arith.constant 0 : index
    %c0_57 = arith.constant 0 : index
    %67 = vector.load %arg3[%c6, %c0_56, %c0_57] : memref<9x4x4xbf16, #tpu.memory_space<vmem>>, vector<1x4x4xbf16>
    %68 = vector.shape_cast %67 : vector<1x4x4xbf16> to vector<4x4xbf16>
    %cst_58 = arith.constant dense<0.000000e+00> : vector<160x4xf32>
    %69 = tpu.matmul %66, %68, %cst_58 {dimension_numbers = #tpu.dot_dimension_numbers<[1], [0], [0], [1], [0, 0, 1, 1], [], []>} : vector<160x4xbf16>, vector<4x4xbf16>, vector<160x4xf32> -> vector<160x4xf32>
    %c0_59 = arith.constant 0 : index
    %c0_60 = arith.constant 0 : index
    %70 = vector.load %arg10[%c0_59, %c0_60] : memref<160x4xf32, #tpu.memory_space<vmem>>, vector<160x4xf32>
    %71 = arith.addf %70, %69 : vector<160x4xf32>
    %c0_61 = arith.constant 0 : index
    %c0_62 = arith.constant 0 : index
    %72 = vector.load %arg10[%c0_61, %c0_62] : memref<160x4xf32, #tpu.memory_space<vmem>>, vector<160x4xf32>
    tpu.vector_store %arg10[%c0_61, %c0_62], %71 {strides = array<i32>} : memref<160x4xf32, #tpu.memory_space<vmem>>, vector<160x4xf32>,
    %c2_i32_63 = arith.constant 2 : i32
    %73 = arith.addi %1, %c2_i32_63 : i32
    %74 = arith.index_cast %73 : i32 to index
    %c8_64 = arith.constant 8 : index
    %c0_65 = arith.constant 0 : index
    %75 = vector.load %arg8[%74, %c8_64, %c0_65] : memref<20x32x4xbf16, #tpu.memory_space<vmem>>, vector<10x16x4xbf16>
    %76 = vector.shape_cast %75 : vector<10x16x4xbf16> to vector<160x4xbf16>
    %c7_66 = arith.constant 7 : index
    %c0_67 = arith.constant 0 : index
    %c0_68 = arith.constant 0 : index
    %77 = vector.load %arg3[%c7_66, %c0_67, %c0_68] : memref<9x4x4xbf16, #tpu.memory_space<vmem>>, vector<1x4x4xbf16>
    %78 = vector.shape_cast %77 : vector<1x4x4xbf16> to vector<4x4xbf16>
    %cst_69 = arith.constant dense<0.000000e+00> : vector<160x4xf32>
    %79 = tpu.matmul %76, %78, %cst_69 {dimension_numbers = #tpu.dot_dimension_numbers<[1], [0], [0], [1], [0, 0, 1, 1], [], []>} : vector<160x4xbf16>, vector<4x4xbf16>, vector<160x4xf32> -> vector<160x4xf32>
    %c0_70 = arith.constant 0 : index
    %c0_71 = arith.constant 0 : index
    %80 = vector.load %arg10[%c0_70, %c0_71] : memref<160x4xf32, #tpu.memory_space<vmem>>, vector<160x4xf32>
    %81 = arith.addf %80, %79 : vector<160x4xf32>
    %c0_72 = arith.constant 0 : index
    %c0_73 = arith.constant 0 : index
    %82 = vector.load %arg10[%c0_72, %c0_73] : memref<160x4xf32, #tpu.memory_space<vmem>>, vector<160x4xf32>
    tpu.vector_store %arg10[%c0_72, %c0_73], %81 {strides = array<i32>} : memref<160x4xf32, #tpu.memory_space<vmem>>, vector<160x4xf32>,
    %c2_i32_74 = arith.constant 2 : i32
    %83 = arith.addi %1, %c2_i32_74 : i32
    %84 = arith.index_cast %83 : i32 to index
    %c9_75 = arith.constant 9 : index
    %c0_76 = arith.constant 0 : index
    %85 = vector.load %arg8[%84, %c9_75, %c0_76] : memref<20x32x4xbf16, #tpu.memory_space<vmem>>, vector<10x16x4xbf16>
    %86 = vector.shape_cast %85 : vector<10x16x4xbf16> to vector<160x4xbf16>
    %c8_77 = arith.constant 8 : index
    %c0_78 = arith.constant 0 : index
    %c0_79 = arith.constant 0 : index
    %87 = vector.load %arg3[%c8_77, %c0_78, %c0_79] : memref<9x4x4xbf16, #tpu.memory_space<vmem>>, vector<1x4x4xbf16>
    %88 = vector.shape_cast %87 : vector<1x4x4xbf16> to vector<4x4xbf16>
    %cst_80 = arith.constant dense<0.000000e+00> : vector<160x4xf32>
    %89 = tpu.matmul %86, %88, %cst_80 {dimension_numbers = #tpu.dot_dimension_numbers<[1], [0], [0], [1], [0, 0, 1, 1], [], []>} : vector<160x4xbf16>, vector<4x4xbf16>, vector<160x4xf32> -> vector<160x4xf32>
    %c0_81 = arith.constant 0 : index
    %c0_82 = arith.constant 0 : index
    %90 = vector.load %arg10[%c0_81, %c0_82] : memref<160x4xf32, #tpu.memory_space<vmem>>, vector<160x4xf32>
    %91 = arith.addf %90, %89 : vector<160x4xf32>
    %c0_83 = arith.constant 0 : index
    %c0_84 = arith.constant 0 : index
    %92 = vector.load %arg10[%c0_83, %c0_84] : memref<160x4xf32, #tpu.memory_space<vmem>>, vector<160x4xf32>
    tpu.vector_store %arg10[%c0_83, %c0_84], %91 {strides = array<i32>} : memref<160x4xf32, #tpu.memory_space<vmem>>, vector<160x4xf32>,
    %c0_85 = arith.constant 0 : index
    %c0_86 = arith.constant 0 : index
    %93 = vector.load %arg10[%c0_85, %c0_86] : memref<160x4xf32, #tpu.memory_space<vmem>>, vector<160x4xf32>
    %c0_87 = arith.constant 0 : index
    %c0_88 = arith.constant 0 : index
    %94 = vector.load %arg5[%c0_87, %c0_88] : memref<1x4xf32, #tpu.memory_space<vmem>>, vector<1x4xf32>
    %95 = vector.broadcast %94 : vector<1x4xf32> to vector<160x4xf32>
    %96 = arith.addf %93, %95 : vector<160x4xf32>
    %cst_89 = arith.constant 0.000000e+00 : f32
    %97 = vector.broadcast %cst_89 : f32 to vector<160x4xf32>
    %98 = arith.maximumf %96, %97 : vector<160x4xf32>
    %99 = vector.shape_cast %98 : vector<160x4xf32> to vector<10x16x4xf32>
    %100 = arith.truncf %99 : vector<10x16x4xf32> to vector<10x16x4xbf16>
    %c0_90 = arith.constant 0 : index
    %c8_91 = arith.constant 8 : index
    %c0_92 = arith.constant 0 : index
    %101 = vector.load %arg9[%c0_90, %c8_91, %c0_92] : memref<10x32x4xbf16, #tpu.memory_space<vmem>>, vector<10x16x4xbf16>
    tpu.vector_store %arg9[%c0_90, %c8_91, %c0_92], %100 {strides = array<i32>} : memref<10x32x4xbf16, #tpu.memory_space<vmem>>, vector<10x16x4xbf16>,
    %c0_i32_93 = arith.constant 0 : i32
    %102 = arith.cmpi eq, %arg1, %c0_i32_93 : i32
    %103 = arith.extui %102 : i1 to i32
    %c0_i32_94 = arith.constant 0 : i32
    %104 = arith.cmpi ne, %103, %c0_i32_94 : i32
    scf.if %104 {
      %cst_205 = arith.constant 0.000000e+00 : bf16
      %192 = vector.broadcast %cst_205 : bf16 to vector<1x16x4xbf16>
      %c0_206 = arith.constant 0 : index
      %c8_207 = arith.constant 8 : index
      %c0_208 = arith.constant 0 : index
      %193 = vector.load %arg9[%c0_206, %c8_207, %c0_208] : memref<10x32x4xbf16, #tpu.memory_space<vmem>>, vector<1x16x4xbf16>
      tpu.vector_store %arg9[%c0_206, %c8_207, %c0_208], %192 {strides = array<i32>} : memref<10x32x4xbf16, #tpu.memory_space<vmem>>, vector<1x16x4xbf16>,
    } else {
    }
    %c1_i32_95 = arith.constant 1 : i32
    %105 = arith.cmpi eq, %arg1, %c1_i32_95 : i32
    %106 = arith.extui %105 : i1 to i32
    %c0_i32_96 = arith.constant 0 : i32
    %107 = arith.cmpi ne, %106, %c0_i32_96 : i32
    scf.if %107 {
      %cst_205 = arith.constant 0.000000e+00 : bf16
      %192 = vector.broadcast %cst_205 : bf16 to vector<1x16x4xbf16>
      %c9_206 = arith.constant 9 : index
      %c8_207 = arith.constant 8 : index
      %c0_208 = arith.constant 0 : index
      %193 = vector.load %arg9[%c9_206, %c8_207, %c0_208] : memref<10x32x4xbf16, #tpu.memory_space<vmem>>, vector<1x16x4xbf16>
      tpu.vector_store %arg9[%c9_206, %c8_207, %c0_208], %192 {strides = array<i32>} : memref<10x32x4xbf16, #tpu.memory_space<vmem>>, vector<1x16x4xbf16>,
    } else {
    }
    %c0_97 = arith.constant 0 : index
    %c7_98 = arith.constant 7 : index
    %c0_99 = arith.constant 0 : index
    %108 = vector.load %arg9[%c0_97, %c7_98, %c0_99] : memref<10x32x4xbf16, #tpu.memory_space<vmem>>, vector<8x16x4xbf16>
    %109 = vector.shape_cast %108 : vector<8x16x4xbf16> to vector<128x4xbf16>
    %c0_100 = arith.constant 0 : index
    %c0_101 = arith.constant 0 : index
    %c0_102 = arith.constant 0 : index
    %110 = vector.load %arg4[%c0_100, %c0_101, %c0_102] : memref<9x4x4xbf16, #tpu.memory_space<vmem>>, vector<1x4x4xbf16>
    %111 = vector.shape_cast %110 : vector<1x4x4xbf16> to vector<4x4xbf16>
    %cst_103 = arith.constant dense<0.000000e+00> : vector<128x4xf32>
    %112 = tpu.matmul %109, %111, %cst_103 {dimension_numbers = #tpu.dot_dimension_numbers<[1], [0], [0], [1], [0, 0, 1, 1], [], []>} : vector<128x4xbf16>, vector<4x4xbf16>, vector<128x4xf32> -> vector<128x4xf32>
    %c0_104 = arith.constant 0 : index
    %c0_105 = arith.constant 0 : index
    %113 = vector.load %arg11[%c0_104, %c0_105] : memref<128x4xf32, #tpu.memory_space<vmem>>, vector<128x4xf32>
    tpu.vector_store %arg11[%c0_104, %c0_105], %112 {strides = array<i32>} : memref<128x4xf32, #tpu.memory_space<vmem>>, vector<128x4xf32>,
    %c0_106 = arith.constant 0 : index
    %c8_107 = arith.constant 8 : index
    %c0_108 = arith.constant 0 : index
    %114 = vector.load %arg9[%c0_106, %c8_107, %c0_108] : memref<10x32x4xbf16, #tpu.memory_space<vmem>>, vector<8x16x4xbf16>
    %115 = vector.shape_cast %114 : vector<8x16x4xbf16> to vector<128x4xbf16>
    %c1_109 = arith.constant 1 : index
    %c0_110 = arith.constant 0 : index
    %c0_111 = arith.constant 0 : index
    %116 = vector.load %arg4[%c1_109, %c0_110, %c0_111] : memref<9x4x4xbf16, #tpu.memory_space<vmem>>, vector<1x4x4xbf16>
    %117 = vector.shape_cast %116 : vector<1x4x4xbf16> to vector<4x4xbf16>
    %cst_112 = arith.constant dense<0.000000e+00> : vector<128x4xf32>
    %118 = tpu.matmul %115, %117, %cst_112 {dimension_numbers = #tpu.dot_dimension_numbers<[1], [0], [0], [1], [0, 0, 1, 1], [], []>} : vector<128x4xbf16>, vector<4x4xbf16>, vector<128x4xf32> -> vector<128x4xf32>
    %c0_113 = arith.constant 0 : index
    %c0_114 = arith.constant 0 : index
    %119 = vector.load %arg11[%c0_113, %c0_114] : memref<128x4xf32, #tpu.memory_space<vmem>>, vector<128x4xf32>
    %120 = arith.addf %119, %118 : vector<128x4xf32>
    %c0_115 = arith.constant 0 : index
    %c0_116 = arith.constant 0 : index
    %121 = vector.load %arg11[%c0_115, %c0_116] : memref<128x4xf32, #tpu.memory_space<vmem>>, vector<128x4xf32>
    tpu.vector_store %arg11[%c0_115, %c0_116], %120 {strides = array<i32>} : memref<128x4xf32, #tpu.memory_space<vmem>>, vector<128x4xf32>,
    %c0_117 = arith.constant 0 : index
    %c9_118 = arith.constant 9 : index
    %c0_119 = arith.constant 0 : index
    %122 = vector.load %arg9[%c0_117, %c9_118, %c0_119] : memref<10x32x4xbf16, #tpu.memory_space<vmem>>, vector<8x16x4xbf16>
    %123 = vector.shape_cast %122 : vector<8x16x4xbf16> to vector<128x4xbf16>
    %c2_120 = arith.constant 2 : index
    %c0_121 = arith.constant 0 : index
    %c0_122 = arith.constant 0 : index
    %124 = vector.load %arg4[%c2_120, %c0_121, %c0_122] : memref<9x4x4xbf16, #tpu.memory_space<vmem>>, vector<1x4x4xbf16>
    %125 = vector.shape_cast %124 : vector<1x4x4xbf16> to vector<4x4xbf16>
    %cst_123 = arith.constant dense<0.000000e+00> : vector<128x4xf32>
    %126 = tpu.matmul %123, %125, %cst_123 {dimension_numbers = #tpu.dot_dimension_numbers<[1], [0], [0], [1], [0, 0, 1, 1], [], []>} : vector<128x4xbf16>, vector<4x4xbf16>, vector<128x4xf32> -> vector<128x4xf32>
    %c0_124 = arith.constant 0 : index
    %c0_125 = arith.constant 0 : index
    %127 = vector.load %arg11[%c0_124, %c0_125] : memref<128x4xf32, #tpu.memory_space<vmem>>, vector<128x4xf32>
    %128 = arith.addf %127, %126 : vector<128x4xf32>
    %c0_126 = arith.constant 0 : index
    %c0_127 = arith.constant 0 : index
    %129 = vector.load %arg11[%c0_126, %c0_127] : memref<128x4xf32, #tpu.memory_space<vmem>>, vector<128x4xf32>
    tpu.vector_store %arg11[%c0_126, %c0_127], %128 {strides = array<i32>} : memref<128x4xf32, #tpu.memory_space<vmem>>, vector<128x4xf32>,
    %c1_128 = arith.constant 1 : index
    %c7_129 = arith.constant 7 : index
    %c0_130 = arith.constant 0 : index
    %130 = vector.load %arg9[%c1_128, %c7_129, %c0_130] : memref<10x32x4xbf16, #tpu.memory_space<vmem>>, vector<8x16x4xbf16>
    %131 = vector.shape_cast %130 : vector<8x16x4xbf16> to vector<128x4xbf16>
    %c3_131 = arith.constant 3 : index
    %c0_132 = arith.constant 0 : index
    %c0_133 = arith.constant 0 : index
    %132 = vector.load %arg4[%c3_131, %c0_132, %c0_133] : memref<9x4x4xbf16, #tpu.memory_space<vmem>>, vector<1x4x4xbf16>
    %133 = vector.shape_cast %132 : vector<1x4x4xbf16> to vector<4x4xbf16>
    %cst_134 = arith.constant dense<0.000000e+00> : vector<128x4xf32>
    %134 = tpu.matmul %131, %133, %cst_134 {dimension_numbers = #tpu.dot_dimension_numbers<[1], [0], [0], [1], [0, 0, 1, 1], [], []>} : vector<128x4xbf16>, vector<4x4xbf16>, vector<128x4xf32> -> vector<128x4xf32>
    %c0_135 = arith.constant 0 : index
    %c0_136 = arith.constant 0 : index
    %135 = vector.load %arg11[%c0_135, %c0_136] : memref<128x4xf32, #tpu.memory_space<vmem>>, vector<128x4xf32>
    %136 = arith.addf %135, %134 : vector<128x4xf32>
    %c0_137 = arith.constant 0 : index
    %c0_138 = arith.constant 0 : index
    %137 = vector.load %arg11[%c0_137, %c0_138] : memref<128x4xf32, #tpu.memory_space<vmem>>, vector<128x4xf32>
    tpu.vector_store %arg11[%c0_137, %c0_138], %136 {strides = array<i32>} : memref<128x4xf32, #tpu.memory_space<vmem>>, vector<128x4xf32>,
    %c1_139 = arith.constant 1 : index
    %c8_140 = arith.constant 8 : index
    %c0_141 = arith.constant 0 : index
    %138 = vector.load %arg9[%c1_139, %c8_140, %c0_141] : memref<10x32x4xbf16, #tpu.memory_space<vmem>>, vector<8x16x4xbf16>
    %139 = vector.shape_cast %138 : vector<8x16x4xbf16> to vector<128x4xbf16>
    %c4_142 = arith.constant 4 : index
    %c0_143 = arith.constant 0 : index
    %c0_144 = arith.constant 0 : index
    %140 = vector.load %arg4[%c4_142, %c0_143, %c0_144] : memref<9x4x4xbf16, #tpu.memory_space<vmem>>, vector<1x4x4xbf16>
    %141 = vector.shape_cast %140 : vector<1x4x4xbf16> to vector<4x4xbf16>
    %cst_145 = arith.constant dense<0.000000e+00> : vector<128x4xf32>
    %142 = tpu.matmul %139, %141, %cst_145 {dimension_numbers = #tpu.dot_dimension_numbers<[1], [0], [0], [1], [0, 0, 1, 1], [], []>} : vector<128x4xbf16>, vector<4x4xbf16>, vector<128x4xf32> -> vector<128x4xf32>
    %c0_146 = arith.constant 0 : index
    %c0_147 = arith.constant 0 : index
    %143 = vector.load %arg11[%c0_146, %c0_147] : memref<128x4xf32, #tpu.memory_space<vmem>>, vector<128x4xf32>
    %144 = arith.addf %143, %142 : vector<128x4xf32>
    %c0_148 = arith.constant 0 : index
    %c0_149 = arith.constant 0 : index
    %145 = vector.load %arg11[%c0_148, %c0_149] : memref<128x4xf32, #tpu.memory_space<vmem>>, vector<128x4xf32>
    tpu.vector_store %arg11[%c0_148, %c0_149], %144 {strides = array<i32>} : memref<128x4xf32, #tpu.memory_space<vmem>>, vector<128x4xf32>,
    %c1_150 = arith.constant 1 : index
    %c9_151 = arith.constant 9 : index
    %c0_152 = arith.constant 0 : index
    %146 = vector.load %arg9[%c1_150, %c9_151, %c0_152] : memref<10x32x4xbf16, #tpu.memory_space<vmem>>, vector<8x16x4xbf16>
    %147 = vector.shape_cast %146 : vector<8x16x4xbf16> to vector<128x4xbf16>
    %c5_153 = arith.constant 5 : index
    %c0_154 = arith.constant 0 : index
    %c0_155 = arith.constant 0 : index
    %148 = vector.load %arg4[%c5_153, %c0_154, %c0_155] : memref<9x4x4xbf16, #tpu.memory_space<vmem>>, vector<1x4x4xbf16>
    %149 = vector.shape_cast %148 : vector<1x4x4xbf16> to vector<4x4xbf16>
    %cst_156 = arith.constant dense<0.000000e+00> : vector<128x4xf32>
    %150 = tpu.matmul %147, %149, %cst_156 {dimension_numbers = #tpu.dot_dimension_numbers<[1], [0], [0], [1], [0, 0, 1, 1], [], []>} : vector<128x4xbf16>, vector<4x4xbf16>, vector<128x4xf32> -> vector<128x4xf32>
    %c0_157 = arith.constant 0 : index
    %c0_158 = arith.constant 0 : index
    %151 = vector.load %arg11[%c0_157, %c0_158] : memref<128x4xf32, #tpu.memory_space<vmem>>, vector<128x4xf32>
    %152 = arith.addf %151, %150 : vector<128x4xf32>
    %c0_159 = arith.constant 0 : index
    %c0_160 = arith.constant 0 : index
    %153 = vector.load %arg11[%c0_159, %c0_160] : memref<128x4xf32, #tpu.memory_space<vmem>>, vector<128x4xf32>
    tpu.vector_store %arg11[%c0_159, %c0_160], %152 {strides = array<i32>} : memref<128x4xf32, #tpu.memory_space<vmem>>, vector<128x4xf32>,
    %c2_161 = arith.constant 2 : index
    %c7_162 = arith.constant 7 : index
    %c0_163 = arith.constant 0 : index
    %154 = vector.load %arg9[%c2_161, %c7_162, %c0_163] : memref<10x32x4xbf16, #tpu.memory_space<vmem>>, vector<8x16x4xbf16>
    %155 = vector.shape_cast %154 : vector<8x16x4xbf16> to vector<128x4xbf16>
    %c6_164 = arith.constant 6 : index
    %c0_165 = arith.constant 0 : index
    %c0_166 = arith.constant 0 : index
    %156 = vector.load %arg4[%c6_164, %c0_165, %c0_166] : memref<9x4x4xbf16, #tpu.memory_space<vmem>>, vector<1x4x4xbf16>
    %157 = vector.shape_cast %156 : vector<1x4x4xbf16> to vector<4x4xbf16>
    %cst_167 = arith.constant dense<0.000000e+00> : vector<128x4xf32>
    %158 = tpu.matmul %155, %157, %cst_167 {dimension_numbers = #tpu.dot_dimension_numbers<[1], [0], [0], [1], [0, 0, 1, 1], [], []>} : vector<128x4xbf16>, vector<4x4xbf16>, vector<128x4xf32> -> vector<128x4xf32>
    %c0_168 = arith.constant 0 : index
    %c0_169 = arith.constant 0 : index
    %159 = vector.load %arg11[%c0_168, %c0_169] : memref<128x4xf32, #tpu.memory_space<vmem>>, vector<128x4xf32>
    %160 = arith.addf %159, %158 : vector<128x4xf32>
    %c0_170 = arith.constant 0 : index
    %c0_171 = arith.constant 0 : index
    %161 = vector.load %arg11[%c0_170, %c0_171] : memref<128x4xf32, #tpu.memory_space<vmem>>, vector<128x4xf32>
    tpu.vector_store %arg11[%c0_170, %c0_171], %160 {strides = array<i32>} : memref<128x4xf32, #tpu.memory_space<vmem>>, vector<128x4xf32>,
    %c2_172 = arith.constant 2 : index
    %c8_173 = arith.constant 8 : index
    %c0_174 = arith.constant 0 : index
    %162 = vector.load %arg9[%c2_172, %c8_173, %c0_174] : memref<10x32x4xbf16, #tpu.memory_space<vmem>>, vector<8x16x4xbf16>
    %163 = vector.shape_cast %162 : vector<8x16x4xbf16> to vector<128x4xbf16>
    %c7_175 = arith.constant 7 : index
    %c0_176 = arith.constant 0 : index
    %c0_177 = arith.constant 0 : index
    %164 = vector.load %arg4[%c7_175, %c0_176, %c0_177] : memref<9x4x4xbf16, #tpu.memory_space<vmem>>, vector<1x4x4xbf16>
    %165 = vector.shape_cast %164 : vector<1x4x4xbf16> to vector<4x4xbf16>
    %cst_178 = arith.constant dense<0.000000e+00> : vector<128x4xf32>
    %166 = tpu.matmul %163, %165, %cst_178 {dimension_numbers = #tpu.dot_dimension_numbers<[1], [0], [0], [1], [0, 0, 1, 1], [], []>} : vector<128x4xbf16>, vector<4x4xbf16>, vector<128x4xf32> -> vector<128x4xf32>
    %c0_179 = arith.constant 0 : index
    %c0_180 = arith.constant 0 : index
    %167 = vector.load %arg11[%c0_179, %c0_180] : memref<128x4xf32, #tpu.memory_space<vmem>>, vector<128x4xf32>
    %168 = arith.addf %167, %166 : vector<128x4xf32>
    %c0_181 = arith.constant 0 : index
    %c0_182 = arith.constant 0 : index
    %169 = vector.load %arg11[%c0_181, %c0_182] : memref<128x4xf32, #tpu.memory_space<vmem>>, vector<128x4xf32>
    tpu.vector_store %arg11[%c0_181, %c0_182], %168 {strides = array<i32>} : memref<128x4xf32, #tpu.memory_space<vmem>>, vector<128x4xf32>,
    %c2_183 = arith.constant 2 : index
    %c9_184 = arith.constant 9 : index
    %c0_185 = arith.constant 0 : index
    %170 = vector.load %arg9[%c2_183, %c9_184, %c0_185] : memref<10x32x4xbf16, #tpu.memory_space<vmem>>, vector<8x16x4xbf16>
    %171 = vector.shape_cast %170 : vector<8x16x4xbf16> to vector<128x4xbf16>
    %c8_186 = arith.constant 8 : index
    %c0_187 = arith.constant 0 : index
    %c0_188 = arith.constant 0 : index
    %172 = vector.load %arg4[%c8_186, %c0_187, %c0_188] : memref<9x4x4xbf16, #tpu.memory_space<vmem>>, vector<1x4x4xbf16>
    %173 = vector.shape_cast %172 : vector<1x4x4xbf16> to vector<4x4xbf16>
    %cst_189 = arith.constant dense<0.000000e+00> : vector<128x4xf32>
    %174 = tpu.matmul %171, %173, %cst_189 {dimension_numbers = #tpu.dot_dimension_numbers<[1], [0], [0], [1], [0, 0, 1, 1], [], []>} : vector<128x4xbf16>, vector<4x4xbf16>, vector<128x4xf32> -> vector<128x4xf32>
    %c0_190 = arith.constant 0 : index
    %c0_191 = arith.constant 0 : index
    %175 = vector.load %arg11[%c0_190, %c0_191] : memref<128x4xf32, #tpu.memory_space<vmem>>, vector<128x4xf32>
    %176 = arith.addf %175, %174 : vector<128x4xf32>
    %c0_192 = arith.constant 0 : index
    %c0_193 = arith.constant 0 : index
    %177 = vector.load %arg11[%c0_192, %c0_193] : memref<128x4xf32, #tpu.memory_space<vmem>>, vector<128x4xf32>
    tpu.vector_store %arg11[%c0_192, %c0_193], %176 {strides = array<i32>} : memref<128x4xf32, #tpu.memory_space<vmem>>, vector<128x4xf32>,
    %c0_194 = arith.constant 0 : index
    %178 = arith.index_cast %1 : i32 to index
    %c0_195 = arith.constant 0 : index
    %c0_196 = arith.constant 0 : index
    %179 = vector.load %arg2[%c0_194, %178, %c0_195, %c0_196] : memref<1x16x16x4xf32, #tpu.memory_space<vmem>>, vector<1x8x16x4xf32>
    %180 = vector.shape_cast %179 : vector<1x8x16x4xf32> to vector<8x16x4xf32>
    %181 = vector.shape_cast %180 : vector<8x16x4xf32> to vector<128x4xf32>
    %c0_197 = arith.constant 0 : index
    %c0_198 = arith.constant 0 : index
    %182 = vector.load %arg11[%c0_197, %c0_198] : memref<128x4xf32, #tpu.memory_space<vmem>>, vector<128x4xf32>
    %c0_199 = arith.constant 0 : index
    %c0_200 = arith.constant 0 : index
    %183 = vector.load %arg6[%c0_199, %c0_200] : memref<1x4xf32, #tpu.memory_space<vmem>>, vector<1x4xf32>
    %184 = vector.broadcast %183 : vector<1x4xf32> to vector<128x4xf32>
    %185 = arith.addf %182, %184 : vector<128x4xf32>
    %186 = arith.addf %185, %181 : vector<128x4xf32>
    %cst_201 = arith.constant 0.000000e+00 : f32
    %187 = vector.broadcast %cst_201 : f32 to vector<128x4xf32>
    %188 = arith.maximumf %186, %187 : vector<128x4xf32>
    %c0_202 = arith.constant 0 : index
    %c0_203 = arith.constant 0 : index
    %c0_204 = arith.constant 0 : index
    %189 = vector.load %arg7[%c0_202, %c0_203, %c0_204] : memref<1x128x4xf32, #tpu.memory_space<vmem>>, vector<1x128x4xf32>
    %190 = vector.shape_cast %189 : vector<1x128x4xf32> to vector<128x4xf32>
    %191 = vector.shape_cast %188 : vector<128x4xf32> to vector<1x128x4xf32>
    tpu.vector_store %arg7[%c0_202, %c0_203, %c0_204], %191 {strides = array<i32>} : memref<1x128x4xf32, #tpu.memory_space<vmem>>, vector<1x128x4xf32>,
    return
  }
  func.func @transform_0(%arg0: i32, %arg1: i32) -> (i32, i32, i32, i32) {
    %c0_i32 = arith.constant 0 : i32
    %c0_i32_0 = arith.constant 0 : i32
    %c0_i32_1 = arith.constant 0 : i32
    %c0_i32_2 = arith.constant 0 : i32
    return %arg0, %c0_i32, %c0_i32_0, %c0_i32_1 : i32, i32, i32, i32
  }
  func.func @transform_1(%arg0: i32, %arg1: i32) -> (i32, i32, i32) {
    %c0_i32 = arith.constant 0 : i32
    %c0_i32_0 = arith.constant 0 : i32
    %c0_i32_1 = arith.constant 0 : i32
    %c0_i32_2 = arith.constant 0 : i32
    return %c0_i32, %c0_i32_0, %c0_i32_1 : i32, i32, i32
  }
  func.func @transform_2(%arg0: i32, %arg1: i32) -> (i32, i32, i32) {
    %c0_i32 = arith.constant 0 : i32
    %c0_i32_0 = arith.constant 0 : i32
    %c0_i32_1 = arith.constant 0 : i32
    %c0_i32_2 = arith.constant 0 : i32
    return %c0_i32, %c0_i32_0, %c0_i32_1 : i32, i32, i32
  }
  func.func @transform_3(%arg0: i32, %arg1: i32) -> (i32, i32) {
    %c0_i32 = arith.constant 0 : i32
    %c0_i32_0 = arith.constant 0 : i32
    %c0_i32_1 = arith.constant 0 : i32
    return %c0_i32, %c0_i32_0 : i32, i32
  }
  func.func @transform_4(%arg0: i32, %arg1: i32) -> (i32, i32) {
    %c0_i32 = arith.constant 0 : i32
    %c0_i32_0 = arith.constant 0 : i32
    %c0_i32_1 = arith.constant 0 : i32
    return %c0_i32, %c0_i32_0 : i32, i32
  }
  func.func @transform_5(%arg0: i32, %arg1: i32) -> (i32, i32, i32) {
    %c0_i32 = arith.constant 0 : i32
    %c0_i32_0 = arith.constant 0 : i32
    return %arg0, %arg1, %c0_i32 : i32, i32, i32
  }
}

</mosaic_0001>

<llo_original>
// kernel: tpu_custom_call.1
$region0: #{tpu_custom_call.1}
  #allocation0 [shape = 'u32[]', space=smem, size = 0x4, offset = 0x4, fixed_abs, tag = 'smem constant byte address 0x4 - core index']
  #allocation1 [shape = 'u32[144,128]{1,0:T(1,128)}', space=vmem, size = 0x12000, scoped, tag = 'internal scratch']
  #allocation2 [shape = 'bf16[20,32,4]{2,1,0:T(8,128)(2,1)}', space=vmem, size = 0x28000, scoped, tag = 'scratch operand']
  #allocation3 [shape = 'bf16[10,32,4]{2,1,0:T(8,128)(2,1)}', space=vmem, size = 0x14000, scoped, tag = 'scratch operand']
  #allocation4 [shape = 'f32[160,4]{1,0:T(8,128)}', space=vmem, size = 0x14000, scoped, tag = 'scratch operand']
  #allocation5 [shape = 'f32[128,4]{1,0:T(8,128)}', space=vmem, size = 0x10000, scoped, tag = 'scratch operand']
  %s0 = inlined_call_operand.vmem [shape: f32[2,16,16,4], index: 0, kind: input, shape index: {}]
  %s1 = inlined_call_operand.vmem [shape: bf16[9,4,4], index: 1, kind: input, shape index: {}]
  %s2 = inlined_call_operand.vmem [shape: bf16[9,4,4], index: 2, kind: input, shape index: {}]
  %s3 = inlined_call_operand.vmem [shape: f32[1,4], index: 3, kind: input, shape index: {}]
  %s4 = inlined_call_operand.vmem [shape: f32[1,4], index: 4, kind: input, shape index: {}]
  %s5 = inlined_call_operand.vmem [shape: f32[2,256,4], index: 5, kind: output, shape index: {}]
  %s6 = sld [smem:[#allocation0]]
  $region65: #{tpu_custom_call.1} parent=0
    _
  %s8 = ssub.s32 1, %s6
  %s9 = scalar_select 0, %s8, %s6
  loop: start=0, step=1, limit=6
  $region2: #{tpu_custom_call.1} parent=0 // loop_pre_header
    _
  $region3: #{tpu_custom_call.1} parent=0 // loop_header
    %s11 = sphi 0, %s15
    %p12 = scmp.ge.s32.totalorder %s11, 6
    %s18 = sphi 0, %s30
    %s19 = sphi 0, %s26
    %s20 = sphi 0, %s18
    %s21 = sphi 0, %s19
    %s22 = sphi 0, %s20
    %s23 = sphi 0, %s21
    %s33 = sphi 0, %s35
    %s36 = sphi 0, %s33
    %s37 = sphi 0, %s36
    %s53 = sphi 0, %s37
    %s57 = sphi 0, %s57
    %s59 = sphi 0, %s57
    %s60 = sphi 0, %s59
    %s74 = sphi 0, %s60
    %s78 = sphi 0, %s78
    %s80 = sphi 0, %s78
    %s81 = sphi 0, %s80
    %s95 = sphi 0, %s81
    %s99 = sphi 0, %s99
    %s101 = sphi 0, %s99
    %s102 = sphi 0, %s101
    %s116 = sphi 0, %s102
    %s120 = sphi 0, %s120
    %s122 = sphi 0, %s120
    %s123 = sphi 0, %s122
    %s137 = sphi 0, %s123
    %s145 = sphi 0, %s147
    %s148 = sphi 0, %s145
    %s149 = sphi 0, %s148
    %s165 = sphi 0, %s149
  $region4: #{tpu_custom_call.1} parent=0 // loop_header_branch
    %14 = sbr.rel (%p12) target = $region8
  $region5: #{tpu_custom_call.1} parent=0 // loop_body
    %s16 = ssub.s32 %s11, 1
    %s17 = ssub.s32 %s11, 2
    %s24 = sadd.s32 1, %s19
    %p25 = scmp.ge.s32.totalorder %s24, 2
    %s26 = scalar_select %p25, 0, %s24
    %s27 = sadd.s32 1, %s18
    %s28 = scalar_select %p25, %s27, %s18
    %p29 = scmp.ge.s32.totalorder %s28, 2
    %s30 = scalar_select %p29, 0, %s28
    %s31 = ssub.s32 %s18, %s30
    %p32 = scmp.eq.s32.totalorder %s31, 0
    %s34 = sadd.s32 %s33, 1
    %s35 = scalar_select %p32, %s33, %s34
    %p38 = pneg %p32
    %p39 = scmp.eq.s32.totalorder %s11, 3
    %p40 = por %p38, %p39
    %p41 = scmp.ne.s32.totalorder %s33, %s36
    %p42 = scmp.eq.s32.totalorder %s11, 0
    %p43 = por %p41, %p42
    %p44 = scmp.ne.s32.totalorder %s33, %s36
    %p45 = scmp.eq.s32.totalorder %s16, 3
    %p46 = por %p44, %p45
    %p47 = scmp.ne.s32.totalorder %s36, %s37
    %p48 = scmp.eq.s32.totalorder %s16, 0
    %p49 = por %p47, %p48
    %p50 = scmp.ne.s32.totalorder %s36, %s37
    %p51 = scmp.eq.s32.totalorder %s17, 3
    %p52 = por %p50, %p51
    %p54 = scmp.ne.s32.totalorder %s37, %s53
    %p55 = scmp.eq.s32.totalorder %s17, 0
    %p56 = por %p54, %p55
    %s58 = sadd.s32 %s57, 1
    %p61 = scmp.eq.s32.totalorder %s11, 3
    %p62 = scmp.ne.s32.totalorder %s57, %s59
    %p63 = scmp.eq.s32.totalorder %s11, 0
    %p64 = por %p62, %p63
    %p65 = scmp.ne.s32.totalorder %s57, %s59
    %p66 = scmp.eq.s32.totalorder %s16, 3
    %p67 = por %p65, %p66
    %p68 = scmp.ne.s32.totalorder %s59, %s60
    %p69 = scmp.eq.s32.totalorder %s16, 0
    %p70 = por %p68, %p69
    %p71 = scmp.ne.s32.totalorder %s59, %s60
    %p72 = scmp.eq.s32.totalorder %s17, 3
    %p73 = por %p71, %p72
    %p75 = scmp.ne.s32.totalorder %s60, %s74
    %p76 = scmp.eq.s32.totalorder %s17, 0
    %p77 = por %p75, %p76
    %s79 = sadd.s32 %s78, 1
    %p82 = scmp.eq.s32.totalorder %s11, 3
    %p83 = scmp.ne.s32.totalorder %s78, %s80
    %p84 = scmp.eq.s32.totalorder %s11, 0
    %p85 = por %p83, %p84
    %p86 = scmp.ne.s32.totalorder %s78, %s80
    %p87 = scmp.eq.s32.totalorder %s16, 3
    %p88 = por %p86, %p87
    %p89 = scmp.ne.s32.totalorder %s80, %s81
    %p90 = scmp.eq.s32.totalorder %s16, 0
    %p91 = por %p89, %p90
    %p92 = scmp.ne.s32.totalorder %s80, %s81
    %p93 = scmp.eq.s32.totalorder %s17, 3
    %p94 = por %p92, %p93
    %p96 = scmp.ne.s32.totalorder %s81, %s95
    %p97 = scmp.eq.s32.totalorder %s17, 0
    %p98 = por %p96, %p97
    %s100 = sadd.s32 %s99, 1
    %p103 = scmp.eq.s32.totalorder %s11, 3
    %p104 = scmp.ne.s32.totalorder %s99, %s101
    %p105 = scmp.eq.s32.totalorder %s11, 0
    %p106 = por %p104, %p105
    %p107 = scmp.ne.s32.totalorder %s99, %s101
    %p108 = scmp.eq.s32.totalorder %s16, 3
    %p109 = por %p107, %p108
    %p110 = scmp.ne.s32.totalorder %s101, %s102
    %p111 = scmp.eq.s32.totalorder %s16, 0
    %p112 = por %p110, %p111
    %p113 = scmp.ne.s32.totalorder %s101, %s102
    %p114 = scmp.eq.s32.totalorder %s17, 3
    %p115 = por %p113, %p114
    %p117 = scmp.ne.s32.totalorder %s102, %s116
    %p118 = scmp.eq.s32.totalorder %s17, 0
    %p119 = por %p117, %p118
    %s121 = sadd.s32 %s120, 1
    %p124 = scmp.eq.s32.totalorder %s11, 3
    %p125 = scmp.ne.s32.totalorder %s120, %s122
    %p126 = scmp.eq.s32.totalorder %s11, 0
    %p127 = por %p125, %p126
    %p128 = scmp.ne.s32.totalorder %s120, %s122
    %p129 = scmp.eq.s32.totalorder %s16, 3
    %p130 = por %p128, %p129
    %p131 = scmp.ne.s32.totalorder %s122, %s123
    %p132 = scmp.eq.s32.totalorder %s16, 0
    %p133 = por %p131, %p132
    %p134 = scmp.ne.s32.totalorder %s122, %s123
    %p135 = scmp.eq.s32.totalorder %s17, 3
    %p136 = por %p134, %p135
    %p138 = scmp.ne.s32.totalorder %s123, %s137
    %p139 = scmp.eq.s32.totalorder %s17, 0
    %p140 = por %p138, %p139
    %s141 = ssub.s32 %s18, %s30
    %s142 = ssub.s32 %s19, %s26
    %s143 = sor.u32 %s141, %s142
    %p144 = scmp.eq.s32.totalorder %s143, 0
    %s146 = sadd.s32 %s145, 1
    %s147 = scalar_select %p144, %s145, %s146
    %p150 = pneg %p144
    %p151 = scmp.eq.s32.totalorder %s11, 3
    %p152 = por %p150, %p151
    %p153 = scmp.ne.s32.totalorder %s145, %s148
    %p154 = scmp.eq.s32.totalorder %s11, 0
    %p155 = por %p153, %p154
    %p156 = scmp.ne.s32.totalorder %s145, %s148
    %p157 = scmp.eq.s32.totalorder %s16, 3
    %p158 = por %p156, %p157
    %p159 = scmp.ne.s32.totalorder %s148, %s149
    %p160 = scmp.eq.s32.totalorder %s16, 0
    %p161 = por %p159, %p160
    %p162 = scmp.ne.s32.totalorder %s148, %s149
    %p163 = scmp.eq.s32.totalorder %s17, 3
    %p164 = por %p162, %p163
    %p166 = scmp.ne.s32.totalorder %s149, %s165
    %p167 = scmp.eq.s32.totalorder %s17, 0
    %p168 = por %p166, %p167
    %p169 = scmp.le.s32.totalorder 1, %s11
    %p170 = scmp.lt.s32.totalorder %s11, 5
    %p171 = pnand %p169, %p170
    %p172 = pneg %p171
    // Predicated region
    $region9: #{tpu_custom_call.1} parent=5 // pred_check
      _
    $region10: #{tpu_custom_call.1} parent=5 // pred_check_branch
      %174 = sbr.rel (%p171) target = $region12
    $region11: #{tpu_custom_call.1} parent=5 // pred_region
      %s175 = ssub.s32 %s11, 1
      // Predicated region
      $region13: #{tpu_custom_call.1} parent=11 // pred_check
        %p176 = pneg %p70
      $region14: #{tpu_custom_call.1} parent=11 // pred_check_branch
        %178 = sbr.rel (%p176) target = $region16
      $region15: #{tpu_custom_call.1} parent=11 // pred_region
        _
      $region16: #{tpu_custom_call.1} parent=11 // pred_fallthru
        _
      // Predicated region
      $region17: #{tpu_custom_call.1} parent=11 // pred_check
        %p179 = pneg %p91
      $region18: #{tpu_custom_call.1} parent=11 // pred_check_branch
        %181 = sbr.rel (%p179) target = $region20
      $region19: #{tpu_custom_call.1} parent=11 // pred_region
        _
      $region20: #{tpu_custom_call.1} parent=11 // pred_fallthru
        _
      // Predicated region
      $region21: #{tpu_custom_call.1} parent=11 // pred_check
        %p182 = pneg %p112
      $region22: #{tpu_custom_call.1} parent=11 // pred_check_branch
        %184 = sbr.rel (%p182) target = $region24
      $region23: #{tpu_custom_call.1} parent=11 // pred_region
        _
      $region24: #{tpu_custom_call.1} parent=11 // pred_fallthru
        _
      // Predicated region
      $region25: #{tpu_custom_call.1} parent=11 // pred_check
        %p185 = pneg %p133
      $region26: #{tpu_custom_call.1} parent=11 // pred_check_branch
        %187 = sbr.rel (%p185) target = $region28
      $region27: #{tpu_custom_call.1} parent=11 // pred_region
        _
      $region28: #{tpu_custom_call.1} parent=11 // pred_fallthru
        _
    $region12: #{tpu_custom_call.1} parent=5 // pred_fallthru
      _
    %p188 = scmp.lt.s32.totalorder %s11, 4
    // Predicated region
    $region29: #{tpu_custom_call.1} parent=5 // pred_check
      %p189 = pneg %p188
    $region30: #{tpu_custom_call.1} parent=5 // pred_check_branch
      %191 = sbr.rel (%p189) target = $region32
    $region31: #{tpu_custom_call.1} parent=5 // pred_region
      // Predicated region
      $region33: #{tpu_custom_call.1} parent=31 // pred_check
        %p192 = pneg %p43
      $region34: #{tpu_custom_call.1} parent=31 // pred_check_branch
        %194 = sbr.rel (%p192) target = $region36
      $region35: #{tpu_custom_call.1} parent=31 // pred_region
        %p195 = scmp.lt.s32.totalorder %s18, 1
        %s196 = scalar_select %p195, %s18, 1
        %s197 = smul.addr %s196, 32
        %s198 = smul.addr %s197, 8
        %s199 = scalar_lea.vmem %s0, %s198
      $region36: #{tpu_custom_call.1} parent=31 // pred_fallthru
        _
    $region32: #{tpu_custom_call.1} parent=5 // pred_fallthru
      _
    %p200 = scmp.le.s32.totalorder 1, %s11
    %p201 = scmp.lt.s32.totalorder %s11, 5
    %p202 = pnand %p200, %p201
    %p203 = pneg %p202
    // Predicated region
    $region37: #{tpu_custom_call.1} parent=5 // pred_check
      _
    $region38: #{tpu_custom_call.1} parent=5 // pred_check_branch
      %205 = sbr.rel (%p202) target = $region40
    $region39: #{tpu_custom_call.1} parent=5 // pred_region
      %s206 = ssub.s32 %s11, 1
      %p207 = scmp.lt.s32.totalorder %s20, 1
      %s208 = scalar_select %p207, %s20, 1
      %s209 = smul.addr %s208, 32
      %s210 = smul.addr %s209, 8
      %s211 = scalar_lea.vmem %s0, %s210
      %p212 = pneg %p49
      %p213 = pneg %p46
      %p214 = pneg %p70
      %p215 = pneg %p67
      %p216 = pneg %p91
      %p217 = pneg %p88
      %p218 = pneg %p112
      %p219 = pneg %p109
      %p220 = pneg %p133
      %p221 = pneg %p130
      %p222 = pneg %p161
      %p223 = pneg %p158
      %s224 = smul.u32 16, %s21
      %p225 = scmp.lt.s32.totalorder %s20, 1
      %s226 = scalar_select %p225, %s20, 1
      %p227 = scmp.lt.s32.totalorder %s224, 31
      %s228 = scalar_select %p227, %s224, 31
      %s229 = smul.addr %s226, 32
      %s230 = sadd.s32 %s228, %s229
      %s231 = smul.addr %s230, 8
      %s232 = scalar_lea.vmem %s5, %s231
      %p233 = scmp.lt.s32.totalorder %s20, 1
      %s234 = scalar_select %p233, %s20, 1
      %s235 = smul.addr %s234, 32
      %s236 = smul.addr %s235, 8
      %s237 = scalar_lea.vmem %s0, %s236
      %s238 = smul.u32 16, %s21
      %p239 = scmp.lt.s32.totalorder %s20, 1
      %s240 = scalar_select %p239, %s20, 1
      %p241 = scmp.lt.s32.totalorder %s238, 31
      %s242 = scalar_select %p241, %s238, 31
      %s243 = smul.addr %s240, 32
      %s244 = sadd.s32 %s242, %s243
      %s245 = smul.addr %s244, 8
      %s246 = scalar_lea.vmem %s5, %s245
      %s247 = smul.u32 16, %s21
      %s249 = smul.u32 %s21, 8
      %p250 = scmp.eq.s32.totalorder %s21, 0
      // Predicated region
      $region41: #{tpu_custom_call.1} parent=39 // pred_check
        %p251 = pneg %p250
      $region42: #{tpu_custom_call.1} parent=39 // pred_check_branch
        %253 = sbr.rel (%p251) target = $region44
      $region43: #{tpu_custom_call.1} parent=39 // pred_region
        %vm254 = vcmask 27648
        %255 = vst.msk [vmem:[#allocation2] sm:$0xf] %vm254, 0
        %256 = vst.msk [vmem:[#allocation2 + $0x10] sm:$0xf] %vm254, 0
        %257 = vst.msk [vmem:[#allocation2 + $0x20] sm:$0xf] %vm254, 0
        %258 = vst.msk [vmem:[#allocation2 + $0x30] sm:$0xf] %vm254, 0
        %259 = vst.msk [vmem:[#allocation2 + $0x40] sm:$0xf] %vm254, 0
        %260 = vst.msk [vmem:[#allocation2 + $0x50] sm:$0xf] %vm254, 0
        %261 = vst.msk [vmem:[#allocation2 + $0x60] sm:$0xf] %vm254, 0
        %262 = vst.msk [vmem:[#allocation2 + $0x70] sm:$0xf] %vm254, 0
        %263 = vst.msk [vmem:[#allocation2 + $0x80] sm:$0xf] %vm254, 0
        %264 = vst.msk [vmem:[#allocation2 + $0x90] sm:$0xf] %vm254, 0
        %265 = vst.msk [vmem:[#allocation2 + $0xa0] sm:$0xf] %vm254, 0
        %266 = vst.msk [vmem:[#allocation2 + $0xb0] sm:$0xf] %vm254, 0
        %267 = vst.msk [vmem:[#allocation2 + $0xc0] sm:$0xf] %vm254, 0
        %268 = vst.msk [vmem:[#allocation2 + $0xd0] sm:$0xf] %vm254, 0
        %269 = vst.msk [vmem:[#allocation2 + $0xe0] sm:$0xf] %vm254, 0
        %270 = vst.msk [vmem:[#allocation2 + $0xf0] sm:$0xf] %vm254, 0
        %271 = vst.msk [vmem:[#allocation2 + $0x100] sm:$0xf] %vm254, 0
        %272 = vst.msk [vmem:[#allocation2 + $0x110] sm:$0xf] %vm254, 0
        %273 = vst.msk [vmem:[#allocation2 + $0x120] sm:$0xf] %vm254, 0
        %274 = vst.msk [vmem:[#allocation2 + $0x130] sm:$0xf] %vm254, 0
        %275 = vst.msk [vmem:[#allocation2 + $0xc] sm:$0xf] %vm254, 0
        %276 = vst.msk [vmem:[#allocation2 + $0x1c] sm:$0xf] %vm254, 0
        %277 = vst.msk [vmem:[#allocation2 + $0x2c] sm:$0xf] %vm254, 0
        %278 = vst.msk [vmem:[#allocation2 + $0x3c] sm:$0xf] %vm254, 0
        %279 = vst.msk [vmem:[#allocation2 + $0x4c] sm:$0xf] %vm254, 0
        %280 = vst.msk [vmem:[#allocation2 + $0x5c] sm:$0xf] %vm254, 0
        %281 = vst.msk [vmem:[#allocation2 + $0x6c] sm:$0xf] %vm254, 0
        %282 = vst.msk [vmem:[#allocation2 + $0x7c] sm:$0xf] %vm254, 0
        %283 = vst.msk [vmem:[#allocation2 + $0x8c] sm:$0xf] %vm254, 0
        %284 = vst.msk [vmem:[#allocation2 + $0x9c] sm:$0xf] %vm254, 0
        %285 = vst.msk [vmem:[#allocation2 + $0xac] sm:$0xf] %vm254, 0
        %286 = vst.msk [vmem:[#allocation2 + $0xbc] sm:$0xf] %vm254, 0
        %287 = vst.msk [vmem:[#allocation2 + $0xcc] sm:$0xf] %vm254, 0
        %288 = vst.msk [vmem:[#allocation2 + $0xdc] sm:$0xf] %vm254, 0
        %289 = vst.msk [vmem:[#allocation2 + $0xec] sm:$0xf] %vm254, 0
        %290 = vst.msk [vmem:[#allocation2 + $0xfc] sm:$0xf] %vm254, 0
        %291 = vst.msk [vmem:[#allocation2 + $0x10c] sm:$0xf] %vm254, 0
        %292 = vst.msk [vmem:[#allocation2 + $0x11c] sm:$0xf] %vm254, 0
        %293 = vst.msk [vmem:[#allocation2 + $0x12c] sm:$0xf] %vm254, 0
        %294 = vst.msk [vmem:[#allocation2 + $0x13c] sm:$0xf] %vm254, 0
        %295 = vst.msk [vmem:[#allocation2 + $0x4] sm:$0xf] %vm254, 0
        %296 = vst.msk [vmem:[#allocation2 + $0x8] sm:$0xf] %vm254, 0
        %297 = vst.msk [vmem:[#allocation2 + $0x14] sm:$0xf] %vm254, 0
        %298 = vst.msk [vmem:[#allocation2 + $0x18] sm:$0xf] %vm254, 0
        %s299 = scalar_lea.vmem [#allocation2], 288
        %300 = vst.msk [vmem:[%s299 + $0x4] sm:$0xf] %vm254, 0
        %301 = vst.msk [vmem:[%s299 + $0x8] sm:$0xf] %vm254, 0
        %302 = vst.msk [vmem:[%s299 + $0x14] sm:$0xf] %vm254, 0
        %303 = vst.msk [vmem:[%s299 + $0x18] sm:$0xf] %vm254, 0
        %v304 = vld [vmem:[%s237] sm:$0xff]
        %v305 = vld [vmem:[%s237 + $0x8] sm:$0xff]
        %v306 = vld [vmem:[%s237 + $0x10] sm:$0xff]
        %v307 = vld [vmem:[%s237 + $0x18] sm:$0xff]
        %v308 = vld [vmem:[%s237 + $0x20] sm:$0xff]
        %v309 = vld [vmem:[%s237 + $0x28] sm:$0xff]
        %v310 = vld [vmem:[%s237 + $0x30] sm:$0xff]
        %v311 = vld [vmem:[%s237 + $0x38] sm:$0xff]
        %v312 = vld [vmem:[%s237 + $0x40] sm:$0xff]
        %v313 = vld [vmem:[%s237 + $0x48] sm:$0xff]
        %v314 = vld [vmem:[%s237 + $0x50] sm:$0xff]
        %v315 = vld [vmem:[%s237 + $0x58] sm:$0xff]
        %v316 = vld [vmem:[%s237 + $0x60] sm:$0xff]
        %v317 = vld [vmem:[%s237 + $0x68] sm:$0xff]
        %v318 = vld [vmem:[%s237 + $0x70] sm:$0xff]
        %v319 = vld [vmem:[%s237 + $0x78] sm:$0xff]
        %v320 = vld [vmem:[%s237 + $0x80] sm:$0xff]
        %v321 = vld [vmem:[%s237 + $0x88] sm:$0xff]
        %v322 = vld [vmem:[%s237 + $0x90] sm:$0xff]
        %v323 = vld [vmem:[%s237 + $0x98] sm:$0xff]
        %v324 = vld [vmem:[%s237 + $0xa0] sm:$0xff]
        %v325 = vld [vmem:[%s237 + $0xa8] sm:$0xff]
        %v326 = vld [vmem:[%s237 + $0xb0] sm:$0xff]
        %v327 = vld [vmem:[%s237 + $0xb8] sm:$0xff]
        %v328 = vld [vmem:[%s237 + $0xc0] sm:$0xff]
        %v329 = vld [vmem:[%s237 + $0xc8] sm:$0xff]
        %v330 = vld [vmem:[%s237 + $0xd0] sm:$0xff]
        %v331 = vld [vmem:[%s237 + $0xd8] sm:$0xff]
        %v332 = vld [vmem:[%s237 + $0xe0] sm:$0xff]
        %v333 = vld [vmem:[%s237 + $0xe8] sm:$0xff]
        %v334 = vld [vmem:[%s237 + $0xf0] sm:$0xff]
        %v335 = vld [vmem:[%s237 + $0xf8] sm:$0xff]
        %v336 = vpack.c.bf16 %v305, %v304
        %v337 = vpack.c.bf16 %v307, %v306
        %v338 = vpack.c.bf16 %v309, %v308
        %v339 = vpack.c.bf16 %v311, %v310
        %v340 = vpack.c.bf16 %v313, %v312
        %v341 = vpack.c.bf16 %v315, %v314
        %v342 = vpack.c.bf16 %v317, %v316
        %v343 = vpack.c.bf16 %v319, %v318
        %v344 = vpack.c.bf16 %v321, %v320
        %v345 = vpack.c.bf16 %v323, %v322
        %v346 = vpack.c.bf16 %v325, %v324
        %v347 = vpack.c.bf16 %v327, %v326
        %v348 = vpack.c.bf16 %v329, %v328
        %v349 = vpack.c.bf16 %v331, %v330
        %v350 = vpack.c.bf16 %v333, %v332
        %v351 = vpack.c.bf16 %v335, %v334
        %v368 = vunpack.c.l.b16 %v336
        %v369 = vunpack.c.h.b16 %v336
        %v370 = vunpack.c.l.b16 %v337
        %v371 = vunpack.c.h.b16 %v337
        %v372 = vunpack.c.l.b16 %v338
        %v373 = vunpack.c.h.b16 %v338
        %v374 = vunpack.c.l.b16 %v339
        %v375 = vunpack.c.h.b16 %v339
        %v376 = vunpack.c.l.b16 %v340
        %v377 = vunpack.c.h.b16 %v340
        %v378 = vunpack.c.l.b16 %v341
        %v379 = vunpack.c.h.b16 %v341
        %v380 = vunpack.c.l.b16 %v342
        %v381 = vunpack.c.h.b16 %v342
        %v382 = vunpack.c.l.b16 %v343
        %v383 = vunpack.c.h.b16 %v343
        %v384 = vunpack.c.l.b16 %v344
        %v385 = vunpack.c.h.b16 %v344
        %v386 = vunpack.c.l.b16 %v345
        %v387 = vunpack.c.h.b16 %v345
        %v388 = vunpack.c.l.b16 %v346
        %v389 = vunpack.c.h.b16 %v346
        %v390 = vunpack.c.l.b16 %v347
        %v391 = vunpack.c.h.b16 %v347
        %v392 = vunpack.c.l.b16 %v348
        %v393 = vunpack.c.h.b16 %v348
        %v394 = vunpack.c.l.b16 %v349
        %v395 = vunpack.c.h.b16 %v349
        %v396 = vunpack.c.l.b16 %v350
        %v397 = vunpack.c.h.b16 %v350
        %v398 = vunpack.c.l.b16 %v351
        %v399 = vunpack.c.h.b16 %v351
        %v400 = vpack.c.b16 %v368, %v368
        %v401 = vpack.c.b16 %v369, %v369
        %v402 = vpack.c.b16 %v370, %v370
        %v403 = vpack.c.b16 %v371, %v371
        %v404 = vpack.c.b16 %v372, %v372
        %v405 = vpack.c.b16 %v373, %v373
        %v406 = vpack.c.b16 %v374, %v374
        %v407 = vpack.c.b16 %v375, %v375
        %v408 = vpack.c.b16 %v376, %v376
        %v409 = vpack.c.b16 %v377, %v377
        %v410 = vpack.c.b16 %v378, %v378
        %v411 = vpack.c.b16 %v379, %v379
        %v412 = vpack.c.b16 %v380, %v380
        %v413 = vpack.c.b16 %v381, %v381
        %v414 = vpack.c.b16 %v382, %v382
        %v415 = vpack.c.b16 %v383, %v383
        %v416 = vpack.c.b16 %v384, %v384
        %v417 = vpack.c.b16 %v385, %v385
        %v418 = vpack.c.b16 %v386, %v386
        %v419 = vpack.c.b16 %v387, %v387
        %v420 = vpack.c.b16 %v388, %v388
        %v421 = vpack.c.b16 %v389, %v389
        %v422 = vpack.c.b16 %v390, %v390
        %v423 = vpack.c.b16 %v391, %v391
        %v424 = vpack.c.b16 %v392, %v392
        %v425 = vpack.c.b16 %v393, %v393
        %v426 = vpack.c.b16 %v394, %v394
        %v427 = vpack.c.b16 %v395, %v395
        %v428 = vpack.c.b16 %v396, %v396
        %v429 = vpack.c.b16 %v397, %v397
        %v430 = vpack.c.b16 %v398, %v398
        %v431 = vpack.c.b16 %v399, %v399
        %s464 = scalar_lea.vmem [#allocation2], 32
        %465 = vst.msk [vmem:[%s464 + $0x4] sm:$0xf] %vm254, %v400
        %466 = vst.msk [vmem:[%s464 + $0x8] sm:$0xf] %vm254, %v401
        %467 = vst.msk [vmem:[%s464 + $0x14] sm:$0xf] %vm254, %v402
        %468 = vst.msk [vmem:[%s464 + $0x18] sm:$0xf] %vm254, %v403
        %469 = vst.msk [vmem:[%s464 + $0x24] sm:$0xf] %vm254, %v404
        %470 = vst.msk [vmem:[%s464 + $0x28] sm:$0xf] %vm254, %v405
        %471 = vst.msk [vmem:[%s464 + $0x34] sm:$0xf] %vm254, %v406
        %472 = vst.msk [vmem:[%s464 + $0x38] sm:$0xf] %vm254, %v407
        %473 = vst.msk [vmem:[%s464 + $0x44] sm:$0xf] %vm254, %v408
        %474 = vst.msk [vmem:[%s464 + $0x48] sm:$0xf] %vm254, %v409
        %475 = vst.msk [vmem:[%s464 + $0x54] sm:$0xf] %vm254, %v410
        %476 = vst.msk [vmem:[%s464 + $0x58] sm:$0xf] %vm254, %v411
        %477 = vst.msk [vmem:[%s464 + $0x64] sm:$0xf] %vm254, %v412
        %478 = vst.msk [vmem:[%s464 + $0x68] sm:$0xf] %vm254, %v413
        %479 = vst.msk [vmem:[%s464 + $0x74] sm:$0xf] %vm254, %v414
        %480 = vst.msk [vmem:[%s464 + $0x78] sm:$0xf] %vm254, %v415
        %481 = vst.msk [vmem:[%s464 + $0x84] sm:$0xf] %vm254, %v416
        %482 = vst.msk [vmem:[%s464 + $0x88] sm:$0xf] %vm254, %v417
        %483 = vst.msk [vmem:[%s464 + $0x94] sm:$0xf] %vm254, %v418
        %484 = vst.msk [vmem:[%s464 + $0x98] sm:$0xf] %vm254, %v419
        %485 = vst.msk [vmem:[%s464 + $0xa4] sm:$0xf] %vm254, %v420
        %486 = vst.msk [vmem:[%s464 + $0xa8] sm:$0xf] %vm254, %v421
        %487 = vst.msk [vmem:[%s464 + $0xb4] sm:$0xf] %vm254, %v422
        %488 = vst.msk [vmem:[%s464 + $0xb8] sm:$0xf] %vm254, %v423
        %489 = vst.msk [vmem:[%s464 + $0xc4] sm:$0xf] %vm254, %v424
        %490 = vst.msk [vmem:[%s464 + $0xc8] sm:$0xf] %vm254, %v425
        %491 = vst.msk [vmem:[%s464 + $0xd4] sm:$0xf] %vm254, %v426
        %492 = vst.msk [vmem:[%s464 + $0xd8] sm:$0xf] %vm254, %v427
        %493 = vst.msk [vmem:[%s464 + $0xe4] sm:$0xf] %vm254, %v428
        %494 = vst.msk [vmem:[%s464 + $0xe8] sm:$0xf] %vm254, %v429
        %495 = vst.msk [vmem:[%s464 + $0xf4] sm:$0xf] %vm254, %v430
        %496 = vst.msk [vmem:[%s464 + $0xf8] sm:$0xf] %vm254, %v431
        %497 = vst.msk [vmem:[#allocation3] sm:$0xf] %vm254, 0
        %498 = vst.msk [vmem:[#allocation3 + $0x10] sm:$0xf] %vm254, 0
        %499 = vst.msk [vmem:[#allocation3 + $0x20] sm:$0xf] %vm254, 0
        %500 = vst.msk [vmem:[#allocation3 + $0x30] sm:$0xf] %vm254, 0
        %501 = vst.msk [vmem:[#allocation3 + $0x40] sm:$0xf] %vm254, 0
        %502 = vst.msk [vmem:[#allocation3 + $0x50] sm:$0xf] %vm254, 0
        %503 = vst.msk [vmem:[#allocation3 + $0x60] sm:$0xf] %vm254, 0
        %504 = vst.msk [vmem:[#allocation3 + $0x70] sm:$0xf] %vm254, 0
        %505 = vst.msk [vmem:[#allocation3 + $0x80] sm:$0xf] %vm254, 0
        %506 = vst.msk [vmem:[#allocation3 + $0x90] sm:$0xf] %vm254, 0
        %507 = vst.msk [vmem:[#allocation3 + $0xc] sm:$0xf] %vm254, 0
        %508 = vst.msk [vmem:[#allocation3 + $0x1c] sm:$0xf] %vm254, 0
        %509 = vst.msk [vmem:[#allocation3 + $0x2c] sm:$0xf] %vm254, 0
        %510 = vst.msk [vmem:[#allocation3 + $0x3c] sm:$0xf] %vm254, 0
        %511 = vst.msk [vmem:[#allocation3 + $0x4c] sm:$0xf] %vm254, 0
        %512 = vst.msk [vmem:[#allocation3 + $0x5c] sm:$0xf] %vm254, 0
        %513 = vst.msk [vmem:[#allocation3 + $0x6c] sm:$0xf] %vm254, 0
        %514 = vst.msk [vmem:[#allocation3 + $0x7c] sm:$0xf] %vm254, 0
        %515 = vst.msk [vmem:[#allocation3 + $0x8c] sm:$0xf] %vm254, 0
        %516 = vst.msk [vmem:[#allocation3 + $0x9c] sm:$0xf] %vm254, 0
      $region44: #{tpu_custom_call.1} parent=39 // pred_fallthru
        _
      %s517 = smul.u32 %s249, 4
      %s518 = smul.addr %s517, 4
      %s519 = scalar_lea.vmem [#allocation2], %s518
      %v520 = vld [vmem:[%s519] sm:$0x8]
      %v521 = vld [vmem:[%s519 + $0x4] sm:$0xf]
      %v522 = vld [vmem:[%s519 + $0x8] sm:$0xf]
      %v523 = vld [vmem:[%s519 + $0x10] sm:$0x8]
      %v524 = vld [vmem:[%s519 + $0x14] sm:$0xf]
      %v525 = vld [vmem:[%s519 + $0x18] sm:$0xf]
      %v526 = vld [vmem:[%s519 + $0x20] sm:$0x8]
      %v527 = vld [vmem:[%s519 + $0x24] sm:$0xf]
      %v528 = vld [vmem:[%s519 + $0x28] sm:$0xf]
      %v529 = vld [vmem:[%s519 + $0x30] sm:$0x8]
      %v530 = vld [vmem:[%s519 + $0x34] sm:$0xf]
      %v531 = vld [vmem:[%s519 + $0x38] sm:$0xf]
      %v532 = vld [vmem:[%s519 + $0x40] sm:$0x8]
      %v533 = vld [vmem:[%s519 + $0x44] sm:$0xf]
      %v534 = vld [vmem:[%s519 + $0x48] sm:$0xf]
      %v535 = vld [vmem:[%s519 + $0x50] sm:$0x8]
      %v536 = vld [vmem:[%s519 + $0x54] sm:$0xf]
      %v537 = vld [vmem:[%s519 + $0x58] sm:$0xf]
      %v538 = vld [vmem:[%s519 + $0x60] sm:$0x8]
      %v539 = vld [vmem:[%s519 + $0x64] sm:$0xf]
      %v540 = vld [vmem:[%s519 + $0x68] sm:$0xf]
      %v541 = vld [vmem:[%s519 + $0x70] sm:$0x8]
      %v542 = vld [vmem:[%s519 + $0x74] sm:$0xf]
      %v543 = vld [vmem:[%s519 + $0x78] sm:$0xf]
      %v544 = vld [vmem:[%s519 + $0x80] sm:$0x8]
      %v545 = vld [vmem:[%s519 + $0x84] sm:$0xf]
      %v546 = vld [vmem:[%s519 + $0x88] sm:$0xf]
      %v547 = vld [vmem:[%s519 + $0x90] sm:$0x8]
      %v548 = vld [vmem:[%s519 + $0x94] sm:$0xf]
      %v549 = vld [vmem:[%s519 + $0x98] sm:$0xf]
      %vm550 = vsmask.f32 256
      %vm551 = vsmask.f32 4368
      %vm552 = vmor %vm550, %vm551
      %v554 = vshrl.u32 %v520, 16
      %v556 = vrot.slane %v554, 7
      %v557 = vrot.slane %v556, 4
      %v559 = vshrl.u32 %v521, 16
      %v561 = vrot.slane %v559, 7
      %v562 = vshll.u32 %v521, 16
      %v564 = vor.u32 %v561, %v562
      %v565 = vsel %vm552, %v557, %v564
      %v566 = vrot.slane %v561, 4
      %v568 = vshrl.u32 %v522, 16
      %v570 = vrot.slane %v568, 7
      %v571 = vshll.u32 %v522, 16
      %v573 = vor.u32 %v570, %v571
      %v574 = vsel %vm552, %v566, %v573
      %v576 = vshrl.u32 %v523, 16
      %v578 = vrot.slane %v576, 7
      %v579 = vrot.slane %v578, 4
      %v581 = vshrl.u32 %v524, 16
      %v583 = vrot.slane %v581, 7
      %v584 = vshll.u32 %v524, 16
      %v586 = vor.u32 %v583, %v584
      %v587 = vsel %vm552, %v579, %v586
      %v588 = vrot.slane %v583, 4
      %v590 = vshrl.u32 %v525, 16
      %v592 = vrot.slane %v590, 7
      %v593 = vshll.u32 %v525, 16
      %v595 = vor.u32 %v592, %v593
      %v596 = vsel %vm552, %v588, %v595
      %v598 = vshrl.u32 %v526, 16
      %v600 = vrot.slane %v598, 7
      %v601 = vrot.slane %v600, 4
      %v603 = vshrl.u32 %v527, 16
      %v605 = vrot.slane %v603, 7
      %v606 = vshll.u32 %v527, 16
      %v608 = vor.u32 %v605, %v606
      %v609 = vsel %vm552, %v601, %v608
      %v610 = vrot.slane %v605, 4
      %v612 = vshrl.u32 %v528, 16
      %v614 = vrot.slane %v612, 7
      %v615 = vshll.u32 %v528, 16
      %v617 = vor.u32 %v614, %v615
      %v618 = vsel %vm552, %v610, %v617
      %v620 = vshrl.u32 %v529, 16
      %v622 = vrot.slane %v620, 7
      %v623 = vrot.slane %v622, 4
      %v625 = vshrl.u32 %v530, 16
      %v627 = vrot.slane %v625, 7
      %v628 = vshll.u32 %v530, 16
      %v630 = vor.u32 %v627, %v628
      %v631 = vsel %vm552, %v623, %v630
      %v632 = vrot.slane %v627, 4
      %v634 = vshrl.u32 %v531, 16
      %v636 = vrot.slane %v634, 7
      %v637 = vshll.u32 %v531, 16
      %v639 = vor.u32 %v636, %v637
      %v640 = vsel %vm552, %v632, %v639
      %v642 = vshrl.u32 %v532, 16
      %v644 = vrot.slane %v642, 7
      %v645 = vrot.slane %v644, 4
      %v647 = vshrl.u32 %v533, 16
      %v649 = vrot.slane %v647, 7
      %v650 = vshll.u32 %v533, 16
      %v652 = vor.u32 %v649, %v650
      %v653 = vsel %vm552, %v645, %v652
      %v654 = vrot.slane %v649, 4
      %v656 = vshrl.u32 %v534, 16
      %v658 = vrot.slane %v656, 7
      %v659 = vshll.u32 %v534, 16
      %v661 = vor.u32 %v658, %v659
      %v662 = vsel %vm552, %v654, %v661
      %v664 = vshrl.u32 %v535, 16
      %v666 = vrot.slane %v664, 7
      %v667 = vrot.slane %v666, 4
      %v669 = vshrl.u32 %v536, 16
      %v671 = vrot.slane %v669, 7
      %v672 = vshll.u32 %v536, 16
      %v674 = vor.u32 %v671, %v672
      %v675 = vsel %vm552, %v667, %v674
      %v676 = vrot.slane %v671, 4
      %v678 = vshrl.u32 %v537, 16
      %v680 = vrot.slane %v678, 7
      %v681 = vshll.u32 %v537, 16
      %v683 = vor.u32 %v680, %v681
      %v684 = vsel %vm552, %v676, %v683
      %v686 = vshrl.u32 %v538, 16
      %v688 = vrot.slane %v686, 7
      %v689 = vrot.slane %v688, 4
      %v691 = vshrl.u32 %v539, 16
      %v693 = vrot.slane %v691, 7
      %v694 = vshll.u32 %v539, 16
      %v696 = vor.u32 %v693, %v694
      %v697 = vsel %vm552, %v689, %v696
      %v698 = vrot.slane %v693, 4
      %v700 = vshrl.u32 %v540, 16
      %v702 = vrot.slane %v700, 7
      %v703 = vshll.u32 %v540, 16
      %v705 = vor.u32 %v702, %v703
      %v706 = vsel %vm552, %v698, %v705
      %v708 = vshrl.u32 %v541, 16
      %v710 = vrot.slane %v708, 7
      %v711 = vrot.slane %v710, 4
      %v713 = vshrl.u32 %v542, 16
      %v715 = vrot.slane %v713, 7
      %v716 = vshll.u32 %v542, 16
      %v718 = vor.u32 %v715, %v716
      %v719 = vsel %vm552, %v711, %v718
      %v720 = vrot.slane %v715, 4
      %v722 = vshrl.u32 %v543, 16
      %v724 = vrot.slane %v722, 7
      %v725 = vshll.u32 %v543, 16
      %v727 = vor.u32 %v724, %v725
      %v728 = vsel %vm552, %v720, %v727
      %v730 = vshrl.u32 %v544, 16
      %v732 = vrot.slane %v730, 7
      %v733 = vrot.slane %v732, 4
      %v735 = vshrl.u32 %v545, 16
      %v737 = vrot.slane %v735, 7
      %v738 = vshll.u32 %v545, 16
      %v740 = vor.u32 %v737, %v738
      %v741 = vsel %vm552, %v733, %v740
      %v742 = vrot.slane %v737, 4
      %v744 = vshrl.u32 %v546, 16
      %v746 = vrot.slane %v744, 7
      %v747 = vshll.u32 %v546, 16
      %v749 = vor.u32 %v746, %v747
      %v750 = vsel %vm552, %v742, %v749
      %v752 = vshrl.u32 %v547, 16
      %v754 = vrot.slane %v752, 7
      %v755 = vrot.slane %v754, 4
      %v757 = vshrl.u32 %v548, 16
      %v759 = vrot.slane %v757, 7
      %v760 = vshll.u32 %v548, 16
      %v762 = vor.u32 %v759, %v760
      %v763 = vsel %vm552, %v755, %v762
      %v764 = vrot.slane %v759, 4
      %v766 = vshrl.u32 %v549, 16
      %v768 = vrot.slane %v766, 7
      %v769 = vshll.u32 %v549, 16
      %v771 = vor.u32 %v768, %v769
      %v772 = vsel %vm552, %v764, %v771
      %v773 = vld [vmem:[%s1] sm:$0x3]
      %v774 = vunpack.c.l.b16 %v565
      %v775 = vunpack.c.l.b16 %v574
      %v776 = vunpack.c.l.b16 %v587
      %v777 = vunpack.c.l.b16 %v596
      %v778 = vunpack.c.l.b16 %v609
      %v779 = vunpack.c.l.b16 %v618
      %v780 = vunpack.c.l.b16 %v631
      %v781 = vunpack.c.l.b16 %v640
      %v782 = vunpack.c.l.b16 %v653
      %v783 = vunpack.c.l.b16 %v662
      %v784 = vunpack.c.l.b16 %v675
      %v785 = vunpack.c.l.b16 %v684
      %v786 = vunpack.c.l.b16 %v697
      %v787 = vunpack.c.l.b16 %v706
      %v788 = vunpack.c.l.b16 %v719
      %v789 = vunpack.c.l.b16 %v728
      %v790 = vunpack.c.l.b16 %v741
      %v791 = vunpack.c.l.b16 %v750
      %v792 = vunpack.c.l.b16 %v763
      %v793 = vunpack.c.l.b16 %v772
      %v794 = vpack.c.b16 %v775, %v774
      %v795 = vpack.c.b16 %v777, %v776
      %v796 = vpack.c.b16 %v779, %v778
      %v797 = vpack.c.b16 %v781, %v780
      %v798 = vpack.c.b16 %v783, %v782
      %v799 = vpack.c.b16 %v785, %v784
      %v800 = vpack.c.b16 %v787, %v786
      %v801 = vpack.c.b16 %v789, %v788
      %v802 = vpack.c.b16 %v791, %v790
      %v803 = vpack.c.b16 %v793, %v792
      %vm804 = vcmask 31744
      %v806 = vsel %vm804, %v794, 0
      %v809 = vsel %vm804, %v795, 0
      %v812 = vsel %vm804, %v796, 0
      %v815 = vsel %vm804, %v797, 0
      %v818 = vsel %vm804, %v798, 0
      %v821 = vsel %vm804, %v799, 0
      %v824 = vsel %vm804, %v800, 0
      %v827 = vsel %vm804, %v801, 0
      %v830 = vsel %vm804, %v802, 0
      %v833 = vsel %vm804, %v803, 0
      %vm835 = vcmask 1041408
      %v837 = vsel %vm835, %v773, 0
      %839 = vmatprep.subr.bf16.mxu0 0
      %840 = vmatpush1.bf16.msra.mxu0 0
      %841 = vmatprep.subr.bf16.mxu0 0
      %842 = vmatpush1.bf16.msra.mxu0 0
      %843 = vmatprep.subr.bf16.mxu0 0
      %844 = vmatpush1.bf16.msra.mxu0 0
      %845 = vmatprep.subr.bf16.mxu0 0
      %846 = vmatpush1.bf16.msra.mxu0 0
      %847 = vmatprep.subr.bf16.mxu0 0
      %848 = vmatpush1.bf16.msra.mxu0 0
      %849 = vmatprep.subr.bf16.mxu0 0
      %850 = vmatpush1.bf16.msra.mxu0 0
      %851 = vmatprep.subr.bf16.mxu0 0
      %852 = vmatpush1.bf16.msra.mxu0 0
      %853 = vmatprep.subr.bf16.mxu0 0
      %854 = vmatpush1.bf16.msra.mxu0 %v837
      %855 = vmatprep.subr.bf16.mxu0 0
      %856 = vmatpush2.bf16.msra.mxu0 0
      %857 = vmatprep.subr.bf16.mxu0 0
      %858 = vmatpush2.bf16.msra.mxu0 0
      %859 = vmatprep.subr.bf16.mxu0 0
      %860 = vmatpush2.bf16.msra.mxu0 0
      %861 = vmatprep.subr.bf16.mxu0 0
      %862 = vmatpush2.bf16.msra.mxu0 0
      %863 = vmatprep.subr.bf16.mxu0 0
      %864 = vmatpush2.bf16.msra.mxu0 0
      %865 = vmatprep.subr.bf16.mxu0 0
      %866 = vmatpush2.bf16.msra.mxu0 0
      %867 = vmatprep.subr.bf16.mxu0 0
      %868 = vmatpush2.bf16.msra.mxu0 0
      %869 = vmatprep.subr.bf16.mxu0 0
      %870 = vmatpush2.bf16.msra.mxu0 0
      %871 = vmatprep.mubr.bf16.mxu0 0
      %872 = vmatmul.mubr.bf16.gmra.mxu0 %v806
      %v873 = vpop.f32.mrf.mxu0
      %v874 = vadd.f32 0.0, %v873
      %v875 = vpop.f32.mrf.mxu0
      %v876 = vpop.f32.mrf.mxu0
      %v877 = vadd.f32 0.0, %v876
      %v878 = vpop.f32.mrf.mxu0
      %879 = vmatprep.mubr.bf16.mxu0 0
      %880 = vmatmul.mubr.bf16.gmra.mxu0 %v809
      %v881 = vpop.f32.mrf.mxu0
      %v882 = vadd.f32 0.0, %v881
      %v883 = vpop.f32.mrf.mxu0
      %v884 = vpop.f32.mrf.mxu0
      %v885 = vadd.f32 0.0, %v884
      %v886 = vpop.f32.mrf.mxu0
      %887 = vmatprep.mubr.bf16.mxu0 0
      %888 = vmatmul.mubr.bf16.gmra.mxu0 %v812
      %v889 = vpop.f32.mrf.mxu0
      %v890 = vadd.f32 0.0, %v889
      %v891 = vpop.f32.mrf.mxu0
      %v892 = vpop.f32.mrf.mxu0
      %v893 = vadd.f32 0.0, %v892
      %v894 = vpop.f32.mrf.mxu0
      %895 = vmatprep.mubr.bf16.mxu0 0
      %896 = vmatmul.mubr.bf16.gmra.mxu0 %v815
      %v897 = vpop.f32.mrf.mxu0
      %v898 = vadd.f32 0.0, %v897
      %v899 = vpop.f32.mrf.mxu0
      %v900 = vpop.f32.mrf.mxu0
      %v901 = vadd.f32 0.0, %v900
      %v902 = vpop.f32.mrf.mxu0
      %903 = vmatprep.mubr.bf16.mxu0 0
      %904 = vmatmul.mubr.bf16.gmra.mxu0 %v818
      %v905 = vpop.f32.mrf.mxu0
      %v906 = vadd.f32 0.0, %v905
      %v907 = vpop.f32.mrf.mxu0
      %v908 = vpop.f32.mrf.mxu0
      %v909 = vadd.f32 0.0, %v908
      %v910 = vpop.f32.mrf.mxu0
      %911 = vmatprep.mubr.bf16.mxu0 0
      %912 = vmatmul.mubr.bf16.gmra.mxu0 %v821
      %v913 = vpop.f32.mrf.mxu0
      %v914 = vadd.f32 0.0, %v913
      %v915 = vpop.f32.mrf.mxu0
      %v916 = vpop.f32.mrf.mxu0
      %v917 = vadd.f32 0.0, %v916
      %v918 = vpop.f32.mrf.mxu0
      %919 = vmatprep.mubr.bf16.mxu0 0
      %920 = vmatmul.mubr.bf16.gmra.mxu0 %v824
      %v921 = vpop.f32.mrf.mxu0
      %v922 = vadd.f32 0.0, %v921
      %v923 = vpop.f32.mrf.mxu0
      %v924 = vpop.f32.mrf.mxu0
      %v925 = vadd.f32 0.0, %v924
      %v926 = vpop.f32.mrf.mxu0
      %927 = vmatprep.mubr.bf16.mxu0 0
      %928 = vmatmul.mubr.bf16.gmra.mxu0 %v827
      %v929 = vpop.f32.mrf.mxu0
      %v930 = vadd.f32 0.0, %v929
      %v931 = vpop.f32.mrf.mxu0
      %v932 = vpop.f32.mrf.mxu0
      %v933 = vadd.f32 0.0, %v932
      %v934 = vpop.f32.mrf.mxu0
      %935 = vmatprep.mubr.bf16.mxu0 0
      %936 = vmatmul.mubr.bf16.gmra.mxu0 %v830
      %v937 = vpop.f32.mrf.mxu0
      %v938 = vadd.f32 0.0, %v937
      %v939 = vpop.f32.mrf.mxu0
      %v940 = vpop.f32.mrf.mxu0
      %v941 = vadd.f32 0.0, %v940
      %v942 = vpop.f32.mrf.mxu0
      %943 = vmatprep.mubr.bf16.mxu0 0
      %944 = vmatmul.mubr.bf16.gmra.mxu0 %v833
      %v945 = vpop.f32.mrf.mxu0
      %v946 = vadd.f32 0.0, %v945
      %v947 = vpop.f32.mrf.mxu0
      %v948 = vpop.f32.mrf.mxu0
      %v949 = vadd.f32 0.0, %v948
      %v950 = vpop.f32.mrf.mxu0
      %951 = vdwg.mxu0
      %952 = vst.msk [vmem:[#allocation4] sm:$0xff] %vm804, %v874
      %953 = vst.msk [vmem:[#allocation4 + $0x8] sm:$0xff] %vm804, %v877
      %954 = vst.msk [vmem:[#allocation4 + $0x10] sm:$0xff] %vm804, %v882
      %955 = vst.msk [vmem:[#allocation4 + $0x18] sm:$0xff] %vm804, %v885
      %956 = vst.msk [vmem:[#allocation4 + $0x20] sm:$0xff] %vm804, %v890
      %957 = vst.msk [vmem:[#allocation4 + $0x28] sm:$0xff] %vm804, %v893
      %958 = vst.msk [vmem:[#allocation4 + $0x30] sm:$0xff] %vm804, %v898
      %959 = vst.msk [vmem:[#allocation4 + $0x38] sm:$0xff] %vm804, %v901
      %960 = vst.msk [vmem:[#allocation4 + $0x40] sm:$0xff] %vm804, %v906
      %961 = vst.msk [vmem:[#allocation4 + $0x48] sm:$0xff] %vm804, %v909
      %962 = vst.msk [vmem:[#allocation4 + $0x50] sm:$0xff] %vm804, %v914
      %963 = vst.msk [vmem:[#allocation4 + $0x58] sm:$0xff] %vm804, %v917
      %964 = vst.msk [vmem:[#allocation4 + $0x60] sm:$0xff] %vm804, %v922
      %965 = vst.msk [vmem:[#allocation4 + $0x68] sm:$0xff] %vm804, %v925
      %966 = vst.msk [vmem:[#allocation4 + $0x70] sm:$0xff] %vm804, %v930
      %967 = vst.msk [vmem:[#allocation4 + $0x78] sm:$0xff] %vm804, %v933
      %968 = vst.msk [vmem:[#allocation4 + $0x80] sm:$0xff] %vm804, %v938
      %969 = vst.msk [vmem:[#allocation4 + $0x88] sm:$0xff] %vm804, %v941
      %970 = vst.msk [vmem:[#allocation4 + $0x90] sm:$0xff] %vm804, %v946
      %971 = vst.msk [vmem:[#allocation4 + $0x98] sm:$0xff] %vm804, %v949
      %v972 = vld [vmem:[%s519 + $0x4] sm:$0xf]
      %v973 = vld [vmem:[%s519 + $0x8] sm:$0xf]
      %v974 = vld [vmem:[%s519 + $0x14] sm:$0xf]
      %v975 = vld [vmem:[%s519 + $0x18] sm:$0xf]
      %v976 = vld [vmem:[%s519 + $0x24] sm:$0xf]
      %v977 = vld [vmem:[%s519 + $0x28] sm:$0xf]
      %v978 = vld [vmem:[%s519 + $0x34] sm:$0xf]
      %v979 = vld [vmem:[%s519 + $0x38] sm:$0xf]
      %v980 = vld [vmem:[%s519 + $0x44] sm:$0xf]
      %v981 = vld [vmem:[%s519 + $0x48] sm:$0xf]
      %v982 = vld [vmem:[%s519 + $0x54] sm:$0xf]
      %v983 = vld [vmem:[%s519 + $0x58] sm:$0xf]
      %v984 = vld [vmem:[%s519 + $0x64] sm:$0xf]
      %v985 = vld [vmem:[%s519 + $0x68] sm:$0xf]
      %v986 = vld [vmem:[%s519 + $0x74] sm:$0xf]
      %v987 = vld [vmem:[%s519 + $0x78] sm:$0xf]
      %v988 = vld [vmem:[%s519 + $0x84] sm:$0xf]
      %v989 = vld [vmem:[%s519 + $0x88] sm:$0xf]
      %v990 = vld [vmem:[%s519 + $0x94] sm:$0xf]
      %v991 = vld [vmem:[%s519 + $0x98] sm:$0xf]
      %s992 = scalar_lea.vmem %s1, 2
      %v993 = vld [vmem:[%s992] sm:$0x3]
      %v1014 = vunpack.c.l.b16 %v972
      %v1015 = vunpack.c.l.b16 %v973
      %v1016 = vunpack.c.l.b16 %v974
      %v1017 = vunpack.c.l.b16 %v975
      %v1018 = vunpack.c.l.b16 %v976
      %v1019 = vunpack.c.l.b16 %v977
      %v1020 = vunpack.c.l.b16 %v978
      %v1021 = vunpack.c.l.b16 %v979
      %v1022 = vunpack.c.l.b16 %v980
      %v1023 = vunpack.c.l.b16 %v981
      %v1024 = vunpack.c.l.b16 %v982
      %v1025 = vunpack.c.l.b16 %v983
      %v1026 = vunpack.c.l.b16 %v984
      %v1027 = vunpack.c.l.b16 %v985
      %v1028 = vunpack.c.l.b16 %v986
      %v1029 = vunpack.c.l.b16 %v987
      %v1030 = vunpack.c.l.b16 %v988
      %v1031 = vunpack.c.l.b16 %v989
      %v1032 = vunpack.c.l.b16 %v990
      %v1033 = vunpack.c.l.b16 %v991
      %v1034 = vpack.c.b16 %v1015, %v1014
      %v1035 = vpack.c.b16 %v1017, %v1016
      %v1036 = vpack.c.b16 %v1019, %v1018
      %v1037 = vpack.c.b16 %v1021, %v1020
      %v1038 = vpack.c.b16 %v1023, %v1022
      %v1039 = vpack.c.b16 %v1025, %v1024
      %v1040 = vpack.c.b16 %v1027, %v1026
      %v1041 = vpack.c.b16 %v1029, %v1028
      %v1042 = vpack.c.b16 %v1031, %v1030
      %v1043 = vpack.c.b16 %v1033, %v1032
      %v1045 = vsel %vm804, %v1034, 0
      %v1048 = vsel %vm804, %v1035, 0
      %v1051 = vsel %vm804, %v1036, 0
      %v1054 = vsel %vm804, %v1037, 0
      %v1057 = vsel %vm804, %v1038, 0
      %v1060 = vsel %vm804, %v1039, 0
      %v1063 = vsel %vm804, %v1040, 0
      %v1066 = vsel %vm804, %v1041, 0
      %v1069 = vsel %vm804, %v1042, 0
      %v1072 = vsel %vm804, %v1043, 0
      %v1075 = vsel %vm835, %v993, 0
      %1077 = vmatprep.subr.bf16.mxu0 0
      %1078 = vmatpush1.bf16.msra.mxu0 0
      %1079 = vmatprep.subr.bf16.mxu0 0
      %1080 = vmatpush1.bf16.msra.mxu0 0
      %1081 = vmatprep.subr.bf16.mxu0 0
      %1082 = vmatpush1.bf16.msra.mxu0 0
      %1083 = vmatprep.subr.bf16.mxu0 0
      %1084 = vmatpush1.bf16.msra.mxu0 0
      %1085 = vmatprep.subr.bf16.mxu0 0
      %1086 = vmatpush1.bf16.msra.mxu0 0
      %1087 = vmatprep.subr.bf16.mxu0 0
      %1088 = vmatpush1.bf16.msra.mxu0 0
      %1089 = vmatprep.subr.bf16.mxu0 0
      %1090 = vmatpush1.bf16.msra.mxu0 0
      %1091 = vmatprep.subr.bf16.mxu0 0
      %1092 = vmatpush1.bf16.msra.mxu0 %v1075
      %1093 = vmatprep.subr.bf16.mxu0 0
      %1094 = vmatpush2.bf16.msra.mxu0 0
      %1095 = vmatprep.subr.bf16.mxu0 0
      %1096 = vmatpush2.bf16.msra.mxu0 0
      %1097 = vmatprep.subr.bf16.mxu0 0
      %1098 = vmatpush2.bf16.msra.mxu0 0
      %1099 = vmatprep.subr.bf16.mxu0 0
      %1100 = vmatpush2.bf16.msra.mxu0 0
      %1101 = vmatprep.subr.bf16.mxu0 0
      %1102 = vmatpush2.bf16.msra.mxu0 0
      %1103 = vmatprep.subr.bf16.mxu0 0
      %1104 = vmatpush2.bf16.msra.mxu0 0
      %1105 = vmatprep.subr.bf16.mxu0 0
      %1106 = vmatpush2.bf16.msra.mxu0 0
      %1107 = vmatprep.subr.bf16.mxu0 0
      %1108 = vmatpush2.bf16.msra.mxu0 0
      %1109 = vmatprep.mubr.bf16.mxu0 0
      %1110 = vmatmul.mubr.bf16.gmra.mxu0 %v1045
      %v1111 = vpop.f32.mrf.mxu0
      %v1112 = vadd.f32 0.0, %v1111
      %v1113 = vpop.f32.mrf.mxu0
      %v1114 = vpop.f32.mrf.mxu0
      %v1115 = vadd.f32 0.0, %v1114
      %v1116 = vpop.f32.mrf.mxu0
      %1117 = vmatprep.mubr.bf16.mxu0 0
      %1118 = vmatmul.mubr.bf16.gmra.mxu0 %v1048
      %v1119 = vpop.f32.mrf.mxu0
      %v1120 = vadd.f32 0.0, %v1119
      %v1121 = vpop.f32.mrf.mxu0
      %v1122 = vpop.f32.mrf.mxu0
      %v1123 = vadd.f32 0.0, %v1122
      %v1124 = vpop.f32.mrf.mxu0
      %1125 = vmatprep.mubr.bf16.mxu0 0
      %1126 = vmatmul.mubr.bf16.gmra.mxu0 %v1051
      %v1127 = vpop.f32.mrf.mxu0
      %v1128 = vadd.f32 0.0, %v1127
      %v1129 = vpop.f32.mrf.mxu0
      %v1130 = vpop.f32.mrf.mxu0
      %v1131 = vadd.f32 0.0, %v1130
      %v1132 = vpop.f32.mrf.mxu0
      %1133 = vmatprep.mubr.bf16.mxu0 0
      %1134 = vmatmul.mubr.bf16.gmra.mxu0 %v1054
      %v1135 = vpop.f32.mrf.mxu0
      %v1136 = vadd.f32 0.0, %v1135
      %v1137 = vpop.f32.mrf.mxu0
      %v1138 = vpop.f32.mrf.mxu0
      %v1139 = vadd.f32 0.0, %v1138
      %v1140 = vpop.f32.mrf.mxu0
      %1141 = vmatprep.mubr.bf16.mxu0 0
      %1142 = vmatmul.mubr.bf16.gmra.mxu0 %v1057
      %v1143 = vpop.f32.mrf.mxu0
      %v1144 = vadd.f32 0.0, %v1143
      %v1145 = vpop.f32.mrf.mxu0
      %v1146 = vpop.f32.mrf.mxu0
      %v1147 = vadd.f32 0.0, %v1146
      %v1148 = vpop.f32.mrf.mxu0
      %1149 = vmatprep.mubr.bf16.mxu0 0
      %1150 = vmatmul.mubr.bf16.gmra.mxu0 %v1060
      %v1151 = vpop.f32.mrf.mxu0
      %v1152 = vadd.f32 0.0, %v1151
      %v1153 = vpop.f32.mrf.mxu0
      %v1154 = vpop.f32.mrf.mxu0
      %v1155 = vadd.f32 0.0, %v1154
      %v1156 = vpop.f32.mrf.mxu0
      %1157 = vmatprep.mubr.bf16.mxu0 0
      %1158 = vmatmul.mubr.bf16.gmra.mxu0 %v1063
      %v1159 = vpop.f32.mrf.mxu0
      %v1160 = vadd.f32 0.0, %v1159
      %v1161 = vpop.f32.mrf.mxu0
      %v1162 = vpop.f32.mrf.mxu0
      %v1163 = vadd.f32 0.0, %v1162
      %v1164 = vpop.f32.mrf.mxu0
      %1165 = vmatprep.mubr.bf16.mxu0 0
      %1166 = vmatmul.mubr.bf16.gmra.mxu0 %v1066
      %v1167 = vpop.f32.mrf.mxu0
      %v1168 = vadd.f32 0.0, %v1167
      %v1169 = vpop.f32.mrf.mxu0
      %v1170 = vpop.f32.mrf.mxu0
      %v1171 = vadd.f32 0.0, %v1170
      %v1172 = vpop.f32.mrf.mxu0
      %1173 = vmatprep.mubr.bf16.mxu0 0
      %1174 = vmatmul.mubr.bf16.gmra.mxu0 %v1069
      %v1175 = vpop.f32.mrf.mxu0
      %v1176 = vadd.f32 0.0, %v1175
      %v1177 = vpop.f32.mrf.mxu0
      %v1178 = vpop.f32.mrf.mxu0
      %v1179 = vadd.f32 0.0, %v1178
      %v1180 = vpop.f32.mrf.mxu0
      %1181 = vmatprep.mubr.bf16.mxu0 0
      %1182 = vmatmul.mubr.bf16.gmra.mxu0 %v1072
      %v1183 = vpop.f32.mrf.mxu0
      %v1184 = vadd.f32 0.0, %v1183
      %v1185 = vpop.f32.mrf.mxu0
      %v1186 = vpop.f32.mrf.mxu0
      %v1187 = vadd.f32 0.0, %v1186
      %v1188 = vpop.f32.mrf.mxu0
      %1189 = vdwg.mxu0
      %v1190 = vld [vmem:[#allocation4] sm:$0xff]
      %v1191 = vld [vmem:[#allocation4 + $0x8] sm:$0xff]
      %v1192 = vld [vmem:[#allocation4 + $0x10] sm:$0xff]
      %v1193 = vld [vmem:[#allocation4 + $0x18] sm:$0xff]
      %v1194 = vld [vmem:[#allocation4 + $0x20] sm:$0xff]
      %v1195 = vld [vmem:[#allocation4 + $0x28] sm:$0xff]
      %v1196 = vld [vmem:[#allocation4 + $0x30] sm:$0xff]
      %v1197 = vld [vmem:[#allocation4 + $0x38] sm:$0xff]
      %v1198 = vld [vmem:[#allocation4 + $0x40] sm:$0xff]
      %v1199 = vld [vmem:[#allocation4 + $0x48] sm:$0xff]
      %v1200 = vld [vmem:[#allocation4 + $0x50] sm:$0xff]
      %v1201 = vld [vmem:[#allocation4 + $0x58] sm:$0xff]
      %v1202 = vld [vmem:[#allocation4 + $0x60] sm:$0xff]
      %v1203 = vld [vmem:[#allocation4 + $0x68] sm:$0xff]
      %v1204 = vld [vmem:[#allocation4 + $0x70] sm:$0xff]
      %v1205 = vld [vmem:[#allocation4 + $0x78] sm:$0xff]
      %v1206 = vld [vmem:[#allocation4 + $0x80] sm:$0xff]
      %v1207 = vld [vmem:[#allocation4 + $0x88] sm:$0xff]
      %v1208 = vld [vmem:[#allocation4 + $0x90] sm:$0xff]
      %v1209 = vld [vmem:[#allocation4 + $0x98] sm:$0xff]
      %v1210 = vadd.f32 %v1190, %v1112
      %v1211 = vadd.f32 %v1191, %v1115
      %v1212 = vadd.f32 %v1192, %v1120
      %v1213 = vadd.f32 %v1193, %v1123
      %v1214 = vadd.f32 %v1194, %v1128
      %v1215 = vadd.f32 %v1195, %v1131
      %v1216 = vadd.f32 %v1196, %v1136
      %v1217 = vadd.f32 %v1197, %v1139
      %v1218 = vadd.f32 %v1198, %v1144
      %v1219 = vadd.f32 %v1199, %v1147
      %v1220 = vadd.f32 %v1200, %v1152
      %v1221 = vadd.f32 %v1201, %v1155
      %v1222 = vadd.f32 %v1202, %v1160
      %v1223 = vadd.f32 %v1203, %v1163
      %v1224 = vadd.f32 %v1204, %v1168
      %v1225 = vadd.f32 %v1205, %v1171
      %v1226 = vadd.f32 %v1206, %v1176
      %v1227 = vadd.f32 %v1207, %v1179
      %v1228 = vadd.f32 %v1208, %v1184
      %v1229 = vadd.f32 %v1209, %v1187
      %1230 = vst.msk [vmem:[#allocation4] sm:$0xff] %vm804, %v1210
      %1231 = vst.msk [vmem:[#allocation4 + $0x8] sm:$0xff] %vm804, %v1211
      %1232 = vst.msk [vmem:[#allocation4 + $0x10] sm:$0xff] %vm804, %v1212
      %1233 = vst.msk [vmem:[#allocation4 + $0x18] sm:$0xff] %vm804, %v1213
      %1234 = vst.msk [vmem:[#allocation4 + $0x20] sm:$0xff] %vm804, %v1214
      %1235 = vst.msk [vmem:[#allocation4 + $0x28] sm:$0xff] %vm804, %v1215
      %1236 = vst.msk [vmem:[#allocation4 + $0x30] sm:$0xff] %vm804, %v1216
      %1237 = vst.msk [vmem:[#allocation4 + $0x38] sm:$0xff] %vm804, %v1217
      %1238 = vst.msk [vmem:[#allocation4 + $0x40] sm:$0xff] %vm804, %v1218
      %1239 = vst.msk [vmem:[#allocation4 + $0x48] sm:$0xff] %vm804, %v1219
      %1240 = vst.msk [vmem:[#allocation4 + $0x50] sm:$0xff] %vm804, %v1220
      %1241 = vst.msk [vmem:[#allocation4 + $0x58] sm:$0xff] %vm804, %v1221
      %1242 = vst.msk [vmem:[#allocation4 + $0x60] sm:$0xff] %vm804, %v1222
      %1243 = vst.msk [vmem:[#allocation4 + $0x68] sm:$0xff] %vm804, %v1223
      %1244 = vst.msk [vmem:[#allocation4 + $0x70] sm:$0xff] %vm804, %v1224
      %1245 = vst.msk [vmem:[#allocation4 + $0x78] sm:$0xff] %vm804, %v1225
      %1246 = vst.msk [vmem:[#allocation4 + $0x80] sm:$0xff] %vm804, %v1226
      %1247 = vst.msk [vmem:[#allocation4 + $0x88] sm:$0xff] %vm804, %v1227
      %1248 = vst.msk [vmem:[#allocation4 + $0x90] sm:$0xff] %vm804, %v1228
      %1249 = vst.msk [vmem:[#allocation4 + $0x98] sm:$0xff] %vm804, %v1229
      %v1250 = vld [vmem:[%s519 + $0x4] sm:$0xf]
      %v1251 = vld [vmem:[%s519 + $0x8] sm:$0xf]
      %v1252 = vld [vmem:[%s519 + $0xc] sm:$0x1]
      %v1253 = vld [vmem:[%s519 + $0x14] sm:$0xf]
      %v1254 = vld [vmem:[%s519 + $0x18] sm:$0xf]
      %v1255 = vld [vmem:[%s519 + $0x1c] sm:$0x1]
      %v1256 = vld [vmem:[%s519 + $0x24] sm:$0xf]
      %v1257 = vld [vmem:[%s519 + $0x28] sm:$0xf]
      %v1258 = vld [vmem:[%s519 + $0x2c] sm:$0x1]
      %v1259 = vld [vmem:[%s519 + $0x34] sm:$0xf]
      %v1260 = vld [vmem:[%s519 + $0x38] sm:$0xf]
      %v1261 = vld [vmem:[%s519 + $0x3c] sm:$0x1]
      %v1262 = vld [vmem:[%s519 + $0x44] sm:$0xf]
      %v1263 = vld [vmem:[%s519 + $0x48] sm:$0xf]
      %v1264 = vld [vmem:[%s519 + $0x4c] sm:$0x1]
      %v1265 = vld [vmem:[%s519 + $0x54] sm:$0xf]
      %v1266 = vld [vmem:[%s519 + $0x58] sm:$0xf]
      %v1267 = vld [vmem:[%s519 + $0x5c] sm:$0x1]
      %v1268 = vld [vmem:[%s519 + $0x64] sm:$0xf]
      %v1269 = vld [vmem:[%s519 + $0x68] sm:$0xf]
      %v1270 = vld [vmem:[%s519 + $0x6c] sm:$0x1]
      %v1271 = vld [vmem:[%s519 + $0x74] sm:$0xf]
      %v1272 = vld [vmem:[%s519 + $0x78] sm:$0xf]
      %v1273 = vld [vmem:[%s519 + $0x7c] sm:$0x1]
      %v1274 = vld [vmem:[%s519 + $0x84] sm:$0xf]
      %v1275 = vld [vmem:[%s519 + $0x88] sm:$0xf]
      %v1276 = vld [vmem:[%s519 + $0x8c] sm:$0x1]
      %v1277 = vld [vmem:[%s519 + $0x94] sm:$0xf]
      %v1278 = vld [vmem:[%s519 + $0x98] sm:$0xf]
      %v1279 = vld [vmem:[%s519 + $0x9c] sm:$0x1]
      %vm1280 = vsmask.f32 3328
      %vm1281 = vsmask.f32 7440
      %vm1282 = vmor %vm1280, %vm1281
      %v1284 = vshrl.u32 %v1250, 16
      %v1286 = vrot.slane %v1284, 4
      %v1287 = vshll.u32 %v1250, 16
      %v1289 = vrot.slane %v1287, 5
      %v1290 = vor.u32 %v1286, %v1289
      %v1291 = vrot.slane %v1290, 4
      %v1293 = vshll.u32 %v1251, 16
      %v1295 = vrot.slane %v1293, 5
      %v1296 = vsel %vm1282, %v1291, %v1295
      %v1297 = vshrl.u32 %v1251, 16
      %v1299 = vrot.slane %v1297, 4
      %v1300 = vor.u32 %v1299, %v1295
      %v1301 = vrot.slane %v1300, 4
      %v1303 = vshll.u32 %v1252, 16
      %v1305 = vrot.slane %v1303, 5
      %v1306 = vsel %vm1282, %v1301, %v1305
      %v1308 = vshrl.u32 %v1253, 16
      %v1310 = vrot.slane %v1308, 4
      %v1311 = vshll.u32 %v1253, 16
      %v1313 = vrot.slane %v1311, 5
      %v1314 = vor.u32 %v1310, %v1313
      %v1315 = vrot.slane %v1314, 4
      %v1317 = vshll.u32 %v1254, 16
      %v1319 = vrot.slane %v1317, 5
      %v1320 = vsel %vm1282, %v1315, %v1319
      %v1321 = vshrl.u32 %v1254, 16
      %v1323 = vrot.slane %v1321, 4
      %v1324 = vor.u32 %v1323, %v1319
      %v1325 = vrot.slane %v1324, 4
      %v1327 = vshll.u32 %v1255, 16
      %v1329 = vrot.slane %v1327, 5
      %v1330 = vsel %vm1282, %v1325, %v1329
      %v1332 = vshrl.u32 %v1256, 16
      %v1334 = vrot.slane %v1332, 4
      %v1335 = vshll.u32 %v1256, 16
      %v1337 = vrot.slane %v1335, 5
      %v1338 = vor.u32 %v1334, %v1337
      %v1339 = vrot.slane %v1338, 4
      %v1341 = vshll.u32 %v1257, 16
      %v1343 = vrot.slane %v1341, 5
      %v1344 = vsel %vm1282, %v1339, %v1343
      %v1345 = vshrl.u32 %v1257, 16
      %v1347 = vrot.slane %v1345, 4
      %v1348 = vor.u32 %v1347, %v1343
      %v1349 = vrot.slane %v1348, 4
      %v1351 = vshll.u32 %v1258, 16
      %v1353 = vrot.slane %v1351, 5
      %v1354 = vsel %vm1282, %v1349, %v1353
      %v1356 = vshrl.u32 %v1259, 16
      %v1358 = vrot.slane %v1356, 4
      %v1359 = vshll.u32 %v1259, 16
      %v1361 = vrot.slane %v1359, 5
      %v1362 = vor.u32 %v1358, %v1361
      %v1363 = vrot.slane %v1362, 4
      %v1365 = vshll.u32 %v1260, 16
      %v1367 = vrot.slane %v1365, 5
      %v1368 = vsel %vm1282, %v1363, %v1367
      %v1369 = vshrl.u32 %v1260, 16
      %v1371 = vrot.slane %v1369, 4
      %v1372 = vor.u32 %v1371, %v1367
      %v1373 = vrot.slane %v1372, 4
      %v1375 = vshll.u32 %v1261, 16
      %v1377 = vrot.slane %v1375, 5
      %v1378 = vsel %vm1282, %v1373, %v1377
      %v1380 = vshrl.u32 %v1262, 16
      %v1382 = vrot.slane %v1380, 4
      %v1383 = vshll.u32 %v1262, 16
      %v1385 = vrot.slane %v1383, 5
      %v1386 = vor.u32 %v1382, %v1385
      %v1387 = vrot.slane %v1386, 4
      %v1389 = vshll.u32 %v1263, 16
      %v1391 = vrot.slane %v1389, 5
      %v1392 = vsel %vm1282, %v1387, %v1391
      %v1393 = vshrl.u32 %v1263, 16
      %v1395 = vrot.slane %v1393, 4
      %v1396 = vor.u32 %v1395, %v1391
      %v1397 = vrot.slane %v1396, 4
      %v1399 = vshll.u32 %v1264, 16
      %v1401 = vrot.slane %v1399, 5
      %v1402 = vsel %vm1282, %v1397, %v1401
      %v1404 = vshrl.u32 %v1265, 16
      %v1406 = vrot.slane %v1404, 4
      %v1407 = vshll.u32 %v1265, 16
      %v1409 = vrot.slane %v1407, 5
      %v1410 = vor.u32 %v1406, %v1409
      %v1411 = vrot.slane %v1410, 4
      %v1413 = vshll.u32 %v1266, 16
      %v1415 = vrot.slane %v1413, 5
      %v1416 = vsel %vm1282, %v1411, %v1415
      %v1417 = vshrl.u32 %v1266, 16
      %v1419 = vrot.slane %v1417, 4
      %v1420 = vor.u32 %v1419, %v1415
      %v1421 = vrot.slane %v1420, 4
      %v1423 = vshll.u32 %v1267, 16
      %v1425 = vrot.slane %v1423, 5
      %v1426 = vsel %vm1282, %v1421, %v1425
      %v1428 = vshrl.u32 %v1268, 16
      %v1430 = vrot.slane %v1428, 4
      %v1431 = vshll.u32 %v1268, 16
      %v1433 = vrot.slane %v1431, 5
      %v1434 = vor.u32 %v1430, %v1433
      %v1435 = vrot.slane %v1434, 4
      %v1437 = vshll.u32 %v1269, 16
      %v1439 = vrot.slane %v1437, 5
      %v1440 = vsel %vm1282, %v1435, %v1439
      %v1441 = vshrl.u32 %v1269, 16
      %v1443 = vrot.slane %v1441, 4
      %v1444 = vor.u32 %v1443, %v1439
      %v1445 = vrot.slane %v1444, 4
      %v1447 = vshll.u32 %v1270, 16
      %v1449 = vrot.slane %v1447, 5
      %v1450 = vsel %vm1282, %v1445, %v1449
      %v1452 = vshrl.u32 %v1271, 16
      %v1454 = vrot.slane %v1452, 4
      %v1455 = vshll.u32 %v1271, 16
      %v1457 = vrot.slane %v1455, 5
      %v1458 = vor.u32 %v1454, %v1457
      %v1459 = vrot.slane %v1458, 4
      %v1461 = vshll.u32 %v1272, 16
      %v1463 = vrot.slane %v1461, 5
      %v1464 = vsel %vm1282, %v1459, %v1463
      %v1465 = vshrl.u32 %v1272, 16
      %v1467 = vrot.slane %v1465, 4
      %v1468 = vor.u32 %v1467, %v1463
      %v1469 = vrot.slane %v1468, 4
      %v1471 = vshll.u32 %v1273, 16
      %v1473 = vrot.slane %v1471, 5
      %v1474 = vsel %vm1282, %v1469, %v1473
      %v1476 = vshrl.u32 %v1274, 16
      %v1478 = vrot.slane %v1476, 4
      %v1479 = vshll.u32 %v1274, 16
      %v1481 = vrot.slane %v1479, 5
      %v1482 = vor.u32 %v1478, %v1481
      %v1483 = vrot.slane %v1482, 4
      %v1485 = vshll.u32 %v1275, 16
      %v1487 = vrot.slane %v1485, 5
      %v1488 = vsel %vm1282, %v1483, %v1487
      %v1489 = vshrl.u32 %v1275, 16
      %v1491 = vrot.slane %v1489, 4
      %v1492 = vor.u32 %v1491, %v1487
      %v1493 = vrot.slane %v1492, 4
      %v1495 = vshll.u32 %v1276, 16
      %v1497 = vrot.slane %v1495, 5
      %v1498 = vsel %vm1282, %v1493, %v1497
      %v1500 = vshrl.u32 %v1277, 16
      %v1502 = vrot.slane %v1500, 4
      %v1503 = vshll.u32 %v1277, 16
      %v1505 = vrot.slane %v1503, 5
      %v1506 = vor.u32 %v1502, %v1505
      %v1507 = vrot.slane %v1506, 4
      %v1509 = vshll.u32 %v1278, 16
      %v1511 = vrot.slane %v1509, 5
      %v1512 = vsel %vm1282, %v1507, %v1511
      %v1513 = vshrl.u32 %v1278, 16
      %v1515 = vrot.slane %v1513, 4
      %v1516 = vor.u32 %v1515, %v1511
      %v1517 = vrot.slane %v1516, 4
      %v1519 = vshll.u32 %v1279, 16
      %v1521 = vrot.slane %v1519, 5
      %v1522 = vsel %vm1282, %v1517, %v1521
      %s1523 = scalar_lea.vmem %s1, 4
      %v1524 = vld [vmem:[%s1523] sm:$0x3]
      %v1525 = vunpack.c.l.b16 %v1296
      %v1526 = vunpack.c.l.b16 %v1306
      %v1527 = vunpack.c.l.b16 %v1320
      %v1528 = vunpack.c.l.b16 %v1330
      %v1529 = vunpack.c.l.b16 %v1344
      %v1530 = vunpack.c.l.b16 %v1354
      %v1531 = vunpack.c.l.b16 %v1368
      %v1532 = vunpack.c.l.b16 %v1378
      %v1533 = vunpack.c.l.b16 %v1392
      %v1534 = vunpack.c.l.b16 %v1402
      %v1535 = vunpack.c.l.b16 %v1416
      %v1536 = vunpack.c.l.b16 %v1426
      %v1537 = vunpack.c.l.b16 %v1440
      %v1538 = vunpack.c.l.b16 %v1450
      %v1539 = vunpack.c.l.b16 %v1464
      %v1540 = vunpack.c.l.b16 %v1474
      %v1541 = vunpack.c.l.b16 %v1488
      %v1542 = vunpack.c.l.b16 %v1498
      %v1543 = vunpack.c.l.b16 %v1512
      %v1544 = vunpack.c.l.b16 %v1522
      %v1545 = vpack.c.b16 %v1526, %v1525
      %v1546 = vpack.c.b16 %v1528, %v1527
      %v1547 = vpack.c.b16 %v1530, %v1529
      %v1548 = vpack.c.b16 %v1532, %v1531
      %v1549 = vpack.c.b16 %v1534, %v1533
      %v1550 = vpack.c.b16 %v1536, %v1535
      %v1551 = vpack.c.b16 %v1538, %v1537
      %v1552 = vpack.c.b16 %v1540, %v1539
      %v1553 = vpack.c.b16 %v1542, %v1541
      %v1554 = vpack.c.b16 %v1544, %v1543
      %v1556 = vsel %vm804, %v1545, 0
      %v1559 = vsel %vm804, %v1546, 0
      %v1562 = vsel %vm804, %v1547, 0
      %v1565 = vsel %vm804, %v1548, 0
      %v1568 = vsel %vm804, %v1549, 0
      %v1571 = vsel %vm804, %v1550, 0
      %v1574 = vsel %vm804, %v1551, 0
      %v1577 = vsel %vm804, %v1552, 0
      %v1580 = vsel %vm804, %v1553, 0
      %v1583 = vsel %vm804, %v1554, 0
      %v1586 = vsel %vm835, %v1524, 0
      %1588 = vmatprep.subr.bf16.mxu0 0
      %1589 = vmatpush1.bf16.msra.mxu0 0
      %1590 = vmatprep.subr.bf16.mxu0 0
      %1591 = vmatpush1.bf16.msra.mxu0 0
      %1592 = vmatprep.subr.bf16.mxu0 0
      %1593 = vmatpush1.bf16.msra.mxu0 0
      %1594 = vmatprep.subr.bf16.mxu0 0
      %1595 = vmatpush1.bf16.msra.mxu0 0
      %1596 = vmatprep.subr.bf16.mxu0 0
      %1597 = vmatpush1.bf16.msra.mxu0 0
      %1598 = vmatprep.subr.bf16.mxu0 0
      %1599 = vmatpush1.bf16.msra.mxu0 0
      %1600 = vmatprep.subr.bf16.mxu0 0
      %1601 = vmatpush1.bf16.msra.mxu0 0
      %1602 = vmatprep.subr.bf16.mxu0 0
      %1603 = vmatpush1.bf16.msra.mxu0 %v1586
      %1604 = vmatprep.subr.bf16.mxu0 0
      %1605 = vmatpush2.bf16.msra.mxu0 0
      %1606 = vmatprep.subr.bf16.mxu0 0
      %1607 = vmatpush2.bf16.msra.mxu0 0
      %1608 = vmatprep.subr.bf16.mxu0 0
      %1609 = vmatpush2.bf16.msra.mxu0 0
      %1610 = vmatprep.subr.bf16.mxu0 0
      %1611 = vmatpush2.bf16.msra.mxu0 0
      %1612 = vmatprep.subr.bf16.mxu0 0
      %1613 = vmatpush2.bf16.msra.mxu0 0
      %1614 = vmatprep.subr.bf16.mxu0 0
      %1615 = vmatpush2.bf16.msra.mxu0 0
      %1616 = vmatprep.subr.bf16.mxu0 0
      %1617 = vmatpush2.bf16.msra.mxu0 0
      %1618 = vmatprep.subr.bf16.mxu0 0
      %1619 = vmatpush2.bf16.msra.mxu0 0
      %1620 = vmatprep.mubr.bf16.mxu0 0
      %1621 = vmatmul.mubr.bf16.gmra.mxu0 %v1556
      %v1622 = vpop.f32.mrf.mxu0
      %v1623 = vadd.f32 0.0, %v1622
      %v1624 = vpop.f32.mrf.mxu0
      %v1625 = vpop.f32.mrf.mxu0
      %v1626 = vadd.f32 0.0, %v1625
      %v1627 = vpop.f32.mrf.mxu0
      %1628 = vmatprep.mubr.bf16.mxu0 0
      %1629 = vmatmul.mubr.bf16.gmra.mxu0 %v1559
      %v1630 = vpop.f32.mrf.mxu0
      %v1631 = vadd.f32 0.0, %v1630
      %v1632 = vpop.f32.mrf.mxu0
      %v1633 = vpop.f32.mrf.mxu0
      %v1634 = vadd.f32 0.0, %v1633
      %v1635 = vpop.f32.mrf.mxu0
      %1636 = vmatprep.mubr.bf16.mxu0 0
      %1637 = vmatmul.mubr.bf16.gmra.mxu0 %v1562
      %v1638 = vpop.f32.mrf.mxu0
      %v1639 = vadd.f32 0.0, %v1638
      %v1640 = vpop.f32.mrf.mxu0
      %v1641 = vpop.f32.mrf.mxu0
      %v1642 = vadd.f32 0.0, %v1641
      %v1643 = vpop.f32.mrf.mxu0
      %1644 = vmatprep.mubr.bf16.mxu0 0
      %1645 = vmatmul.mubr.bf16.gmra.mxu0 %v1565
      %v1646 = vpop.f32.mrf.mxu0
      %v1647 = vadd.f32 0.0, %v1646
      %v1648 = vpop.f32.mrf.mxu0
      %v1649 = vpop.f32.mrf.mxu0
      %v1650 = vadd.f32 0.0, %v1649
      %v1651 = vpop.f32.mrf.mxu0
      %1652 = vmatprep.mubr.bf16.mxu0 0
      %1653 = vmatmul.mubr.bf16.gmra.mxu0 %v1568
      %v1654 = vpop.f32.mrf.mxu0
      %v1655 = vadd.f32 0.0, %v1654
      %v1656 = vpop.f32.mrf.mxu0
      %v1657 = vpop.f32.mrf.mxu0
      %v1658 = vadd.f32 0.0, %v1657
      %v1659 = vpop.f32.mrf.mxu0
      %1660 = vmatprep.mubr.bf16.mxu0 0
      %1661 = vmatmul.mubr.bf16.gmra.mxu0 %v1571
      %v1662 = vpop.f32.mrf.mxu0
      %v1663 = vadd.f32 0.0, %v1662
      %v1664 = vpop.f32.mrf.mxu0
      %v1665 = vpop.f32.mrf.mxu0
      %v1666 = vadd.f32 0.0, %v1665
      %v1667 = vpop.f32.mrf.mxu0
      %1668 = vmatprep.mubr.bf16.mxu0 0
      %1669 = vmatmul.mubr.bf16.gmra.mxu0 %v1574
      %v1670 = vpop.f32.mrf.mxu0
      %v1671 = vadd.f32 0.0, %v1670
      %v1672 = vpop.f32.mrf.mxu0
      %v1673 = vpop.f32.mrf.mxu0
      %v1674 = vadd.f32 0.0, %v1673
      %v1675 = vpop.f32.mrf.mxu0
      %1676 = vmatprep.mubr.bf16.mxu0 0
      %1677 = vmatmul.mubr.bf16.gmra.mxu0 %v1577
      %v1678 = vpop.f32.mrf.mxu0
      %v1679 = vadd.f32 0.0, %v1678
      %v1680 = vpop.f32.mrf.mxu0
      %v1681 = vpop.f32.mrf.mxu0
      %v1682 = vadd.f32 0.0, %v1681
      %v1683 = vpop.f32.mrf.mxu0
      %1684 = vmatprep.mubr.bf16.mxu0 0
      %1685 = vmatmul.mubr.bf16.gmra.mxu0 %v1580
      %v1686 = vpop.f32.mrf.mxu0
      %v1687 = vadd.f32 0.0, %v1686
      %v1688 = vpop.f32.mrf.mxu0
      %v1689 = vpop.f32.mrf.mxu0
      %v1690 = vadd.f32 0.0, %v1689
      %v1691 = vpop.f32.mrf.mxu0
      %1692 = vmatprep.mubr.bf16.mxu0 0
      %1693 = vmatmul.mubr.bf16.gmra.mxu0 %v1583
      %v1694 = vpop.f32.mrf.mxu0
      %v1695 = vadd.f32 0.0, %v1694
      %v1696 = vpop.f32.mrf.mxu0
      %v1697 = vpop.f32.mrf.mxu0
      %v1698 = vadd.f32 0.0, %v1697
      %v1699 = vpop.f32.mrf.mxu0
      %1700 = vdwg.mxu0
      %v1701 = vld [vmem:[#allocation4] sm:$0xff]
      %v1702 = vld [vmem:[#allocation4 + $0x8] sm:$0xff]
      %v1703 = vld [vmem:[#allocation4 + $0x10] sm:$0xff]
      %v1704 = vld [vmem:[#allocation4 + $0x18] sm:$0xff]
      %v1705 = vld [vmem:[#allocation4 + $0x20] sm:$0xff]
      %v1706 = vld [vmem:[#allocation4 + $0x28] sm:$0xff]
      %v1707 = vld [vmem:[#allocation4 + $0x30] sm:$0xff]
      %v1708 = vld [vmem:[#allocation4 + $0x38] sm:$0xff]
      %v1709 = vld [vmem:[#allocation4 + $0x40] sm:$0xff]
      %v1710 = vld [vmem:[#allocation4 + $0x48] sm:$0xff]
      %v1711 = vld [vmem:[#allocation4 + $0x50] sm:$0xff]
      %v1712 = vld [vmem:[#allocation4 + $0x58] sm:$0xff]
      %v1713 = vld [vmem:[#allocation4 + $0x60] sm:$0xff]
      %v1714 = vld [vmem:[#allocation4 + $0x68] sm:$0xff]
      %v1715 = vld [vmem:[#allocation4 + $0x70] sm:$0xff]
      %v1716 = vld [vmem:[#allocation4 + $0x78] sm:$0xff]
      %v1717 = vld [vmem:[#allocation4 + $0x80] sm:$0xff]
      %v1718 = vld [vmem:[#allocation4 + $0x88] sm:$0xff]
      %v1719 = vld [vmem:[#allocation4 + $0x90] sm:$0xff]
      %v1720 = vld [vmem:[#allocation4 + $0x98] sm:$0xff]
      %v1721 = vadd.f32 %v1701, %v1623
      %v1722 = vadd.f32 %v1702, %v1626
      %v1723 = vadd.f32 %v1703, %v1631
      %v1724 = vadd.f32 %v1704, %v1634
      %v1725 = vadd.f32 %v1705, %v1639
      %v1726 = vadd.f32 %v1706, %v1642
      %v1727 = vadd.f32 %v1707, %v1647
      %v1728 = vadd.f32 %v1708, %v1650
      %v1729 = vadd.f32 %v1709, %v1655
      %v1730 = vadd.f32 %v1710, %v1658
      %v1731 = vadd.f32 %v1711, %v1663
      %v1732 = vadd.f32 %v1712, %v1666
      %v1733 = vadd.f32 %v1713, %v1671
      %v1734 = vadd.f32 %v1714, %v1674
      %v1735 = vadd.f32 %v1715, %v1679
      %v1736 = vadd.f32 %v1716, %v1682
      %v1737 = vadd.f32 %v1717, %v1687
      %v1738 = vadd.f32 %v1718, %v1690
      %v1739 = vadd.f32 %v1719, %v1695
      %v1740 = vadd.f32 %v1720, %v1698
      %1741 = vst.msk [vmem:[#allocation4] sm:$0xff] %vm804, %v1721
      %1742 = vst.msk [vmem:[#allocation4 + $0x8] sm:$0xff] %vm804, %v1722
      %1743 = vst.msk [vmem:[#allocation4 + $0x10] sm:$0xff] %vm804, %v1723
      %1744 = vst.msk [vmem:[#allocation4 + $0x18] sm:$0xff] %vm804, %v1724
      %1745 = vst.msk [vmem:[#allocation4 + $0x20] sm:$0xff] %vm804, %v1725
      %1746 = vst.msk [vmem:[#allocation4 + $0x28] sm:$0xff] %vm804, %v1726
      %1747 = vst.msk [vmem:[#allocation4 + $0x30] sm:$0xff] %vm804, %v1727
      %1748 = vst.msk [vmem:[#allocation4 + $0x38] sm:$0xff] %vm804, %v1728
      %1749 = vst.msk [vmem:[#allocation4 + $0x40] sm:$0xff] %vm804, %v1729
      %1750 = vst.msk [vmem:[#allocation4 + $0x48] sm:$0xff] %vm804, %v1730
      %1751 = vst.msk [vmem:[#allocation4 + $0x50] sm:$0xff] %vm804, %v1731
      %1752 = vst.msk [vmem:[#allocation4 + $0x58] sm:$0xff] %vm804, %v1732
      %1753 = vst.msk [vmem:[#allocation4 + $0x60] sm:$0xff] %vm804, %v1733
      %1754 = vst.msk [vmem:[#allocation4 + $0x68] sm:$0xff] %vm804, %v1734
      %1755 = vst.msk [vmem:[#allocation4 + $0x70] sm:$0xff] %vm804, %v1735
      %1756 = vst.msk [vmem:[#allocation4 + $0x78] sm:$0xff] %vm804, %v1736
      %1757 = vst.msk [vmem:[#allocation4 + $0x80] sm:$0xff] %vm804, %v1737
      %1758 = vst.msk [vmem:[#allocation4 + $0x88] sm:$0xff] %vm804, %v1738
      %1759 = vst.msk [vmem:[#allocation4 + $0x90] sm:$0xff] %vm804, %v1739
      %1760 = vst.msk [vmem:[#allocation4 + $0x98] sm:$0xff] %vm804, %v1740
      %s1761 = sadd.s32 %s249, 1
      %s1762 = smul.u32 %s1761, 4
      %s1763 = smul.addr %s1762, 4
      %s1764 = scalar_lea.vmem [#allocation2], %s1763
      %v1765 = vld [vmem:[%s1764] sm:$0x8]
      %v1766 = vld [vmem:[%s1764 + $0x4] sm:$0xf]
      %v1767 = vld [vmem:[%s1764 + $0x8] sm:$0xf]
      %v1768 = vld [vmem:[%s1764 + $0x10] sm:$0x8]
      %v1769 = vld [vmem:[%s1764 + $0x14] sm:$0xf]
      %v1770 = vld [vmem:[%s1764 + $0x18] sm:$0xf]
      %v1771 = vld [vmem:[%s1764 + $0x20] sm:$0x8]
      %v1772 = vld [vmem:[%s1764 + $0x24] sm:$0xf]
      %v1773 = vld [vmem:[%s1764 + $0x28] sm:$0xf]
      %v1774 = vld [vmem:[%s1764 + $0x30] sm:$0x8]
      %v1775 = vld [vmem:[%s1764 + $0x34] sm:$0xf]
      %v1776 = vld [vmem:[%s1764 + $0x38] sm:$0xf]
      %v1777 = vld [vmem:[%s1764 + $0x40] sm:$0x8]
      %v1778 = vld [vmem:[%s1764 + $0x44] sm:$0xf]
      %v1779 = vld [vmem:[%s1764 + $0x48] sm:$0xf]
      %v1780 = vld [vmem:[%s1764 + $0x50] sm:$0x8]
      %v1781 = vld [vmem:[%s1764 + $0x54] sm:$0xf]
      %v1782 = vld [vmem:[%s1764 + $0x58] sm:$0xf]
      %v1783 = vld [vmem:[%s1764 + $0x60] sm:$0x8]
      %v1784 = vld [vmem:[%s1764 + $0x64] sm:$0xf]
      %v1785 = vld [vmem:[%s1764 + $0x68] sm:$0xf]
      %v1786 = vld [vmem:[%s1764 + $0x70] sm:$0x8]
      %v1787 = vld [vmem:[%s1764 + $0x74] sm:$0xf]
      %v1788 = vld [vmem:[%s1764 + $0x78] sm:$0xf]
      %v1789 = vld [vmem:[%s1764 + $0x80] sm:$0x8]
      %v1790 = vld [vmem:[%s1764 + $0x84] sm:$0xf]
      %v1791 = vld [vmem:[%s1764 + $0x88] sm:$0xf]
      %v1792 = vld [vmem:[%s1764 + $0x90] sm:$0x8]
      %v1793 = vld [vmem:[%s1764 + $0x94] sm:$0xf]
      %v1794 = vld [vmem:[%s1764 + $0x98] sm:$0xf]
      %v1796 = vshrl.u32 %v1765, 16
      %v1798 = vrot.slane %v1796, 7
      %v1799 = vrot.slane %v1798, 4
      %v1801 = vshrl.u32 %v1766, 16
      %v1803 = vrot.slane %v1801, 7
      %v1804 = vshll.u32 %v1766, 16
      %v1806 = vor.u32 %v1803, %v1804
      %v1807 = vsel %vm552, %v1799, %v1806
      %v1808 = vrot.slane %v1803, 4
      %v1810 = vshrl.u32 %v1767, 16
      %v1812 = vrot.slane %v1810, 7
      %v1813 = vshll.u32 %v1767, 16
      %v1815 = vor.u32 %v1812, %v1813
      %v1816 = vsel %vm552, %v1808, %v1815
      %v1818 = vshrl.u32 %v1768, 16
      %v1820 = vrot.slane %v1818, 7
      %v1821 = vrot.slane %v1820, 4
      %v1823 = vshrl.u32 %v1769, 16
      %v1825 = vrot.slane %v1823, 7
      %v1826 = vshll.u32 %v1769, 16
      %v1828 = vor.u32 %v1825, %v1826
      %v1829 = vsel %vm552, %v1821, %v1828
      %v1830 = vrot.slane %v1825, 4
      %v1832 = vshrl.u32 %v1770, 16
      %v1834 = vrot.slane %v1832, 7
      %v1835 = vshll.u32 %v1770, 16
      %v1837 = vor.u32 %v1834, %v1835
      %v1838 = vsel %vm552, %v1830, %v1837
      %v1840 = vshrl.u32 %v1771, 16
      %v1842 = vrot.slane %v1840, 7
      %v1843 = vrot.slane %v1842, 4
      %v1845 = vshrl.u32 %v1772, 16
      %v1847 = vrot.slane %v1845, 7
      %v1848 = vshll.u32 %v1772, 16
      %v1850 = vor.u32 %v1847, %v1848
      %v1851 = vsel %vm552, %v1843, %v1850
      %v1852 = vrot.slane %v1847, 4
      %v1854 = vshrl.u32 %v1773, 16
      %v1856 = vrot.slane %v1854, 7
      %v1857 = vshll.u32 %v1773, 16
      %v1859 = vor.u32 %v1856, %v1857
      %v1860 = vsel %vm552, %v1852, %v1859
      %v1862 = vshrl.u32 %v1774, 16
      %v1864 = vrot.slane %v1862, 7
      %v1865 = vrot.slane %v1864, 4
      %v1867 = vshrl.u32 %v1775, 16
      %v1869 = vrot.slane %v1867, 7
      %v1870 = vshll.u32 %v1775, 16
      %v1872 = vor.u32 %v1869, %v1870
      %v1873 = vsel %vm552, %v1865, %v1872
      %v1874 = vrot.slane %v1869, 4
      %v1876 = vshrl.u32 %v1776, 16
      %v1878 = vrot.slane %v1876, 7
      %v1879 = vshll.u32 %v1776, 16
      %v1881 = vor.u32 %v1878, %v1879
      %v1882 = vsel %vm552, %v1874, %v1881
      %v1884 = vshrl.u32 %v1777, 16
      %v1886 = vrot.slane %v1884, 7
      %v1887 = vrot.slane %v1886, 4
      %v1889 = vshrl.u32 %v1778, 16
      %v1891 = vrot.slane %v1889, 7
      %v1892 = vshll.u32 %v1778, 16
      %v1894 = vor.u32 %v1891, %v1892
      %v1895 = vsel %vm552, %v1887, %v1894
      %v1896 = vrot.slane %v1891, 4
      %v1898 = vshrl.u32 %v1779, 16
      %v1900 = vrot.slane %v1898, 7
      %v1901 = vshll.u32 %v1779, 16
      %v1903 = vor.u32 %v1900, %v1901
      %v1904 = vsel %vm552, %v1896, %v1903
      %v1906 = vshrl.u32 %v1780, 16
      %v1908 = vrot.slane %v1906, 7
      %v1909 = vrot.slane %v1908, 4
      %v1911 = vshrl.u32 %v1781, 16
      %v1913 = vrot.slane %v1911, 7
      %v1914 = vshll.u32 %v1781, 16
      %v1916 = vor.u32 %v1913, %v1914
      %v1917 = vsel %vm552, %v1909, %v1916
      %v1918 = vrot.slane %v1913, 4
      %v1920 = vshrl.u32 %v1782, 16
      %v1922 = vrot.slane %v1920, 7
      %v1923 = vshll.u32 %v1782, 16
      %v1925 = vor.u32 %v1922, %v1923
      %v1926 = vsel %vm552, %v1918, %v1925
      %v1928 = vshrl.u32 %v1783, 16
      %v1930 = vrot.slane %v1928, 7
      %v1931 = vrot.slane %v1930, 4
      %v1933 = vshrl.u32 %v1784, 16
      %v1935 = vrot.slane %v1933, 7
      %v1936 = vshll.u32 %v1784, 16
      %v1938 = vor.u32 %v1935, %v1936
      %v1939 = vsel %vm552, %v1931, %v1938
      %v1940 = vrot.slane %v1935, 4
      %v1942 = vshrl.u32 %v1785, 16
      %v1944 = vrot.slane %v1942, 7
      %v1945 = vshll.u32 %v1785, 16
      %v1947 = vor.u32 %v1944, %v1945
      %v1948 = vsel %vm552, %v1940, %v1947
      %v1950 = vshrl.u32 %v1786, 16
      %v1952 = vrot.slane %v1950, 7
      %v1953 = vrot.slane %v1952, 4
      %v1955 = vshrl.u32 %v1787, 16
      %v1957 = vrot.slane %v1955, 7
      %v1958 = vshll.u32 %v1787, 16
      %v1960 = vor.u32 %v1957, %v1958
      %v1961 = vsel %vm552, %v1953, %v1960
      %v1962 = vrot.slane %v1957, 4
      %v1964 = vshrl.u32 %v1788, 16
      %v1966 = vrot.slane %v1964, 7
      %v1967 = vshll.u32 %v1788, 16
      %v1969 = vor.u32 %v1966, %v1967
      %v1970 = vsel %vm552, %v1962, %v1969
      %v1972 = vshrl.u32 %v1789, 16
      %v1974 = vrot.slane %v1972, 7
      %v1975 = vrot.slane %v1974, 4
      %v1977 = vshrl.u32 %v1790, 16
      %v1979 = vrot.slane %v1977, 7
      %v1980 = vshll.u32 %v1790, 16
      %v1982 = vor.u32 %v1979, %v1980
      %v1983 = vsel %vm552, %v1975, %v1982
      %v1984 = vrot.slane %v1979, 4
      %v1986 = vshrl.u32 %v1791, 16
      %v1988 = vrot.slane %v1986, 7
      %v1989 = vshll.u32 %v1791, 16
      %v1991 = vor.u32 %v1988, %v1989
      %v1992 = vsel %vm552, %v1984, %v1991
      %v1994 = vshrl.u32 %v1792, 16
      %v1996 = vrot.slane %v1994, 7
      %v1997 = vrot.slane %v1996, 4
      %v1999 = vshrl.u32 %v1793, 16
      %v2001 = vrot.slane %v1999, 7
      %v2002 = vshll.u32 %v1793, 16
      %v2004 = vor.u32 %v2001, %v2002
      %v2005 = vsel %vm552, %v1997, %v2004
      %v2006 = vrot.slane %v2001, 4
      %v2008 = vshrl.u32 %v1794, 16
      %v2010 = vrot.slane %v2008, 7
      %v2011 = vshll.u32 %v1794, 16
      %v2013 = vor.u32 %v2010, %v2011
      %v2014 = vsel %vm552, %v2006, %v2013
      %s2015 = scalar_lea.vmem %s1, 6
      %v2016 = vld [vmem:[%s2015] sm:$0x3]
      %v2017 = vunpack.c.l.b16 %v1807
      %v2018 = vunpack.c.l.b16 %v1816
      %v2019 = vunpack.c.l.b16 %v1829
      %v2020 = vunpack.c.l.b16 %v1838
      %v2021 = vunpack.c.l.b16 %v1851
      %v2022 = vunpack.c.l.b16 %v1860
      %v2023 = vunpack.c.l.b16 %v1873
      %v2024 = vunpack.c.l.b16 %v1882
      %v2025 = vunpack.c.l.b16 %v1895
      %v2026 = vunpack.c.l.b16 %v1904
      %v2027 = vunpack.c.l.b16 %v1917
      %v2028 = vunpack.c.l.b16 %v1926
      %v2029 = vunpack.c.l.b16 %v1939
      %v2030 = vunpack.c.l.b16 %v1948
      %v2031 = vunpack.c.l.b16 %v1961
      %v2032 = vunpack.c.l.b16 %v1970
      %v2033 = vunpack.c.l.b16 %v1983
      %v2034 = vunpack.c.l.b16 %v1992
      %v2035 = vunpack.c.l.b16 %v2005
      %v2036 = vunpack.c.l.b16 %v2014
      %v2037 = vpack.c.b16 %v2018, %v2017
      %v2038 = vpack.c.b16 %v2020, %v2019
      %v2039 = vpack.c.b16 %v2022, %v2021
      %v2040 = vpack.c.b16 %v2024, %v2023
      %v2041 = vpack.c.b16 %v2026, %v2025
      %v2042 = vpack.c.b16 %v2028, %v2027
      %v2043 = vpack.c.b16 %v2030, %v2029
      %v2044 = vpack.c.b16 %v2032, %v2031
      %v2045 = vpack.c.b16 %v2034, %v2033
      %v2046 = vpack.c.b16 %v2036, %v2035
      %v2048 = vsel %vm804, %v2037, 0
      %v2051 = vsel %vm804, %v2038, 0
      %v2054 = vsel %vm804, %v2039, 0
      %v2057 = vsel %vm804, %v2040, 0
      %v2060 = vsel %vm804, %v2041, 0
      %v2063 = vsel %vm804, %v2042, 0
      %v2066 = vsel %vm804, %v2043, 0
      %v2069 = vsel %vm804, %v2044, 0
      %v2072 = vsel %vm804, %v2045, 0
      %v2075 = vsel %vm804, %v2046, 0
      %v2078 = vsel %vm835, %v2016, 0
      %2080 = vmatprep.subr.bf16.mxu0 0
      %2081 = vmatpush1.bf16.msra.mxu0 0
      %2082 = vmatprep.subr.bf16.mxu0 0
      %2083 = vmatpush1.bf16.msra.mxu0 0
      %2084 = vmatprep.subr.bf16.mxu0 0
      %2085 = vmatpush1.bf16.msra.mxu0 0
      %2086 = vmatprep.subr.bf16.mxu0 0
      %2087 = vmatpush1.bf16.msra.mxu0 0
      %2088 = vmatprep.subr.bf16.mxu0 0
      %2089 = vmatpush1.bf16.msra.mxu0 0
      %2090 = vmatprep.subr.bf16.mxu0 0
      %2091 = vmatpush1.bf16.msra.mxu0 0
      %2092 = vmatprep.subr.bf16.mxu0 0
      %2093 = vmatpush1.bf16.msra.mxu0 0
      %2094 = vmatprep.subr.bf16.mxu0 0
      %2095 = vmatpush1.bf16.msra.mxu0 %v2078
      %2096 = vmatprep.subr.bf16.mxu0 0
      %2097 = vmatpush2.bf16.msra.mxu0 0
      %2098 = vmatprep.subr.bf16.mxu0 0
      %2099 = vmatpush2.bf16.msra.mxu0 0
      %2100 = vmatprep.subr.bf16.mxu0 0
      %2101 = vmatpush2.bf16.msra.mxu0 0
      %2102 = vmatprep.subr.bf16.mxu0 0
      %2103 = vmatpush2.bf16.msra.mxu0 0
      %2104 = vmatprep.subr.bf16.mxu0 0
      %2105 = vmatpush2.bf16.msra.mxu0 0
      %2106 = vmatprep.subr.bf16.mxu0 0
      %2107 = vmatpush2.bf16.msra.mxu0 0
      %2108 = vmatprep.subr.bf16.mxu0 0
      %2109 = vmatpush2.bf16.msra.mxu0 0
      %2110 = vmatprep.subr.bf16.mxu0 0
      %2111 = vmatpush2.bf16.msra.mxu0 0
      %2112 = vmatprep.mubr.bf16.mxu0 0
      %2113 = vmatmul.mubr.bf16.gmra.mxu0 %v2048
      %v2114 = vpop.f32.mrf.mxu0
      %v2115 = vadd.f32 0.0, %v2114
      %v2116 = vpop.f32.mrf.mxu0
      %v2117 = vpop.f32.mrf.mxu0
      %v2118 = vadd.f32 0.0, %v2117
      %v2119 = vpop.f32.mrf.mxu0
      %2120 = vmatprep.mubr.bf16.mxu0 0
      %2121 = vmatmul.mubr.bf16.gmra.mxu0 %v2051
      %v2122 = vpop.f32.mrf.mxu0
      %v2123 = vadd.f32 0.0, %v2122
      %v2124 = vpop.f32.mrf.mxu0
      %v2125 = vpop.f32.mrf.mxu0
      %v2126 = vadd.f32 0.0, %v2125
      %v2127 = vpop.f32.mrf.mxu0
      %2128 = vmatprep.mubr.bf16.mxu0 0
      %2129 = vmatmul.mubr.bf16.gmra.mxu0 %v2054
      %v2130 = vpop.f32.mrf.mxu0
      %v2131 = vadd.f32 0.0, %v2130
      %v2132 = vpop.f32.mrf.mxu0
      %v2133 = vpop.f32.mrf.mxu0
      %v2134 = vadd.f32 0.0, %v2133
      %v2135 = vpop.f32.mrf.mxu0
      %2136 = vmatprep.mubr.bf16.mxu0 0
      %2137 = vmatmul.mubr.bf16.gmra.mxu0 %v2057
      %v2138 = vpop.f32.mrf.mxu0
      %v2139 = vadd.f32 0.0, %v2138
      %v2140 = vpop.f32.mrf.mxu0
      %v2141 = vpop.f32.mrf.mxu0
      %v2142 = vadd.f32 0.0, %v2141
      %v2143 = vpop.f32.mrf.mxu0
      %2144 = vmatprep.mubr.bf16.mxu0 0
      %2145 = vmatmul.mubr.bf16.gmra.mxu0 %v2060
      %v2146 = vpop.f32.mrf.mxu0
      %v2147 = vadd.f32 0.0, %v2146
      %v2148 = vpop.f32.mrf.mxu0
      %v2149 = vpop.f32.mrf.mxu0
      %v2150 = vadd.f32 0.0, %v2149
      %v2151 = vpop.f32.mrf.mxu0
      %2152 = vmatprep.mubr.bf16.mxu0 0
      %2153 = vmatmul.mubr.bf16.gmra.mxu0 %v2063
      %v2154 = vpop.f32.mrf.mxu0
      %v2155 = vadd.f32 0.0, %v2154
      %v2156 = vpop.f32.mrf.mxu0
      %v2157 = vpop.f32.mrf.mxu0
      %v2158 = vadd.f32 0.0, %v2157
      %v2159 = vpop.f32.mrf.mxu0
      %2160 = vmatprep.mubr.bf16.mxu0 0
      %2161 = vmatmul.mubr.bf16.gmra.mxu0 %v2066
      %v2162 = vpop.f32.mrf.mxu0
      %v2163 = vadd.f32 0.0, %v2162
      %v2164 = vpop.f32.mrf.mxu0
      %v2165 = vpop.f32.mrf.mxu0
      %v2166 = vadd.f32 0.0, %v2165
      %v2167 = vpop.f32.mrf.mxu0
      %2168 = vmatprep.mubr.bf16.mxu0 0
      %2169 = vmatmul.mubr.bf16.gmra.mxu0 %v2069
      %v2170 = vpop.f32.mrf.mxu0
      %v2171 = vadd.f32 0.0, %v2170
      %v2172 = vpop.f32.mrf.mxu0
      %v2173 = vpop.f32.mrf.mxu0
      %v2174 = vadd.f32 0.0, %v2173
      %v2175 = vpop.f32.mrf.mxu0
      %2176 = vmatprep.mubr.bf16.mxu0 0
      %2177 = vmatmul.mubr.bf16.gmra.mxu0 %v2072
      %v2178 = vpop.f32.mrf.mxu0
      %v2179 = vadd.f32 0.0, %v2178
      %v2180 = vpop.f32.mrf.mxu0
      %v2181 = vpop.f32.mrf.mxu0
      %v2182 = vadd.f32 0.0, %v2181
      %v2183 = vpop.f32.mrf.mxu0
      %2184 = vmatprep.mubr.bf16.mxu0 0
      %2185 = vmatmul.mubr.bf16.gmra.mxu0 %v2075
      %v2186 = vpop.f32.mrf.mxu0
      %v2187 = vadd.f32 0.0, %v2186
      %v2188 = vpop.f32.mrf.mxu0
      %v2189 = vpop.f32.mrf.mxu0
      %v2190 = vadd.f32 0.0, %v2189
      %v2191 = vpop.f32.mrf.mxu0
      %2192 = vdwg.mxu0
      %v2193 = vld [vmem:[#allocation4] sm:$0xff]
      %v2194 = vld [vmem:[#allocation4 + $0x8] sm:$0xff]
      %v2195 = vld [vmem:[#allocation4 + $0x10] sm:$0xff]
      %v2196 = vld [vmem:[#allocation4 + $0x18] sm:$0xff]
      %v2197 = vld [vmem:[#allocation4 + $0x20] sm:$0xff]
      %v2198 = vld [vmem:[#allocation4 + $0x28] sm:$0xff]
      %v2199 = vld [vmem:[#allocation4 + $0x30] sm:$0xff]
      %v2200 = vld [vmem:[#allocation4 + $0x38] sm:$0xff]
      %v2201 = vld [vmem:[#allocation4 + $0x40] sm:$0xff]
      %v2202 = vld [vmem:[#allocation4 + $0x48] sm:$0xff]
      %v2203 = vld [vmem:[#allocation4 + $0x50] sm:$0xff]
      %v2204 = vld [vmem:[#allocation4 + $0x58] sm:$0xff]
      %v2205 = vld [vmem:[#allocation4 + $0x60] sm:$0xff]
      %v2206 = vld [vmem:[#allocation4 + $0x68] sm:$0xff]
      %v2207 = vld [vmem:[#allocation4 + $0x70] sm:$0xff]
      %v2208 = vld [vmem:[#allocation4 + $0x78] sm:$0xff]
      %v2209 = vld [vmem:[#allocation4 + $0x80] sm:$0xff]
      %v2210 = vld [vmem:[#allocation4 + $0x88] sm:$0xff]
      %v2211 = vld [vmem:[#allocation4 + $0x90] sm:$0xff]
      %v2212 = vld [vmem:[#allocation4 + $0x98] sm:$0xff]
      %v2213 = vadd.f32 %v2193, %v2115
      %v2214 = vadd.f32 %v2194, %v2118
      %v2215 = vadd.f32 %v2195, %v2123
      %v2216 = vadd.f32 %v2196, %v2126
      %v2217 = vadd.f32 %v2197, %v2131
      %v2218 = vadd.f32 %v2198, %v2134
      %v2219 = vadd.f32 %v2199, %v2139
      %v2220 = vadd.f32 %v2200, %v2142
      %v2221 = vadd.f32 %v2201, %v2147
      %v2222 = vadd.f32 %v2202, %v2150
      %v2223 = vadd.f32 %v2203, %v2155
      %v2224 = vadd.f32 %v2204, %v2158
      %v2225 = vadd.f32 %v2205, %v2163
      %v2226 = vadd.f32 %v2206, %v2166
      %v2227 = vadd.f32 %v2207, %v2171
      %v2228 = vadd.f32 %v2208, %v2174
      %v2229 = vadd.f32 %v2209, %v2179
      %v2230 = vadd.f32 %v2210, %v2182
      %v2231 = vadd.f32 %v2211, %v2187
      %v2232 = vadd.f32 %v2212, %v2190
      %2233 = vst.msk [vmem:[#allocation4] sm:$0xff] %vm804, %v2213
      %2234 = vst.msk [vmem:[#allocation4 + $0x8] sm:$0xff] %vm804, %v2214
      %2235 = vst.msk [vmem:[#allocation4 + $0x10] sm:$0xff] %vm804, %v2215
      %2236 = vst.msk [vmem:[#allocation4 + $0x18] sm:$0xff] %vm804, %v2216
      %2237 = vst.msk [vmem:[#allocation4 + $0x20] sm:$0xff] %vm804, %v2217
      %2238 = vst.msk [vmem:[#allocation4 + $0x28] sm:$0xff] %vm804, %v2218
      %2239 = vst.msk [vmem:[#allocation4 + $0x30] sm:$0xff] %vm804, %v2219
      %2240 = vst.msk [vmem:[#allocation4 + $0x38] sm:$0xff] %vm804, %v2220
      %2241 = vst.msk [vmem:[#allocation4 + $0x40] sm:$0xff] %vm804, %v2221
      %2242 = vst.msk [vmem:[#allocation4 + $0x48] sm:$0xff] %vm804, %v2222
      %2243 = vst.msk [vmem:[#allocation4 + $0x50] sm:$0xff] %vm804, %v2223
      %2244 = vst.msk [vmem:[#allocation4 + $0x58] sm:$0xff] %vm804, %v2224
      %2245 = vst.msk [vmem:[#allocation4 + $0x60] sm:$0xff] %vm804, %v2225
      %2246 = vst.msk [vmem:[#allocation4 + $0x68] sm:$0xff] %vm804, %v2226
      %2247 = vst.msk [vmem:[#allocation4 + $0x70] sm:$0xff] %vm804, %v2227
      %2248 = vst.msk [vmem:[#allocation4 + $0x78] sm:$0xff] %vm804, %v2228
      %2249 = vst.msk [vmem:[#allocation4 + $0x80] sm:$0xff] %vm804, %v2229
      %2250 = vst.msk [vmem:[#allocation4 + $0x88] sm:$0xff] %vm804, %v2230
      %2251 = vst.msk [vmem:[#allocation4 + $0x90] sm:$0xff] %vm804, %v2231
      %2252 = vst.msk [vmem:[#allocation4 + $0x98] sm:$0xff] %vm804, %v2232
      %v2253 = vld [vmem:[%s1764 + $0x4] sm:$0xf]
      %v2254 = vld [vmem:[%s1764 + $0x8] sm:$0xf]
      %v2255 = vld [vmem:[%s1764 + $0x14] sm:$0xf]
      %v2256 = vld [vmem:[%s1764 + $0x18] sm:$0xf]
      %v2257 = vld [vmem:[%s1764 + $0x24] sm:$0xf]
      %v2258 = vld [vmem:[%s1764 + $0x28] sm:$0xf]
      %v2259 = vld [vmem:[%s1764 + $0x34] sm:$0xf]
      %v2260 = vld [vmem:[%s1764 + $0x38] sm:$0xf]
      %v2261 = vld [vmem:[%s1764 + $0x44] sm:$0xf]
      %v2262 = vld [vmem:[%s1764 + $0x48] sm:$0xf]
      %v2263 = vld [vmem:[%s1764 + $0x54] sm:$0xf]
      %v2264 = vld [vmem:[%s1764 + $0x58] sm:$0xf]
      %v2265 = vld [vmem:[%s1764 + $0x64] sm:$0xf]
      %v2266 = vld [vmem:[%s1764 + $0x68] sm:$0xf]
      %v2267 = vld [vmem:[%s1764 + $0x74] sm:$0xf]
      %v2268 = vld [vmem:[%s1764 + $0x78] sm:$0xf]
      %v2269 = vld [vmem:[%s1764 + $0x84] sm:$0xf]
      %v2270 = vld [vmem:[%s1764 + $0x88] sm:$0xf]
      %v2271 = vld [vmem:[%s1764 + $0x94] sm:$0xf]
      %v2272 = vld [vmem:[%s1764 + $0x98] sm:$0xf]
      %s2273 = scalar_lea.vmem %s1, 8
      %v2274 = vld [vmem:[%s2273] sm:$0x3]
      %v2295 = vunpack.c.l.b16 %v2253
      %v2296 = vunpack.c.l.b16 %v2254
      %v2297 = vunpack.c.l.b16 %v2255
      %v2298 = vunpack.c.l.b16 %v2256
      %v2299 = vunpack.c.l.b16 %v2257
      %v2300 = vunpack.c.l.b16 %v2258
      %v2301 = vunpack.c.l.b16 %v2259
      %v2302 = vunpack.c.l.b16 %v2260
      %v2303 = vunpack.c.l.b16 %v2261
      %v2304 = vunpack.c.l.b16 %v2262
      %v2305 = vunpack.c.l.b16 %v2263
      %v2306 = vunpack.c.l.b16 %v2264
      %v2307 = vunpack.c.l.b16 %v2265
      %v2308 = vunpack.c.l.b16 %v2266
      %v2309 = vunpack.c.l.b16 %v2267
      %v2310 = vunpack.c.l.b16 %v2268
      %v2311 = vunpack.c.l.b16 %v2269
      %v2312 = vunpack.c.l.b16 %v2270
      %v2313 = vunpack.c.l.b16 %v2271
      %v2314 = vunpack.c.l.b16 %v2272
      %v2315 = vpack.c.b16 %v2296, %v2295
      %v2316 = vpack.c.b16 %v2298, %v2297
      %v2317 = vpack.c.b16 %v2300, %v2299
      %v2318 = vpack.c.b16 %v2302, %v2301
      %v2319 = vpack.c.b16 %v2304, %v2303
      %v2320 = vpack.c.b16 %v2306, %v2305
      %v2321 = vpack.c.b16 %v2308, %v2307
      %v2322 = vpack.c.b16 %v2310, %v2309
      %v2323 = vpack.c.b16 %v2312, %v2311
      %v2324 = vpack.c.b16 %v2314, %v2313
      %v2326 = vsel %vm804, %v2315, 0
      %v2329 = vsel %vm804, %v2316, 0
      %v2332 = vsel %vm804, %v2317, 0
      %v2335 = vsel %vm804, %v2318, 0
      %v2338 = vsel %vm804, %v2319, 0
      %v2341 = vsel %vm804, %v2320, 0
      %v2344 = vsel %vm804, %v2321, 0
      %v2347 = vsel %vm804, %v2322, 0
      %v2350 = vsel %vm804, %v2323, 0
      %v2353 = vsel %vm804, %v2324, 0
      %v2356 = vsel %vm835, %v2274, 0
      %2358 = vmatprep.subr.bf16.mxu0 0
      %2359 = vmatpush1.bf16.msra.mxu0 0
      %2360 = vmatprep.subr.bf16.mxu0 0
      %2361 = vmatpush1.bf16.msra.mxu0 0
      %2362 = vmatprep.subr.bf16.mxu0 0
      %2363 = vmatpush1.bf16.msra.mxu0 0
      %2364 = vmatprep.subr.bf16.mxu0 0
      %2365 = vmatpush1.bf16.msra.mxu0 0
      %2366 = vmatprep.subr.bf16.mxu0 0
      %2367 = vmatpush1.bf16.msra.mxu0 0
      %2368 = vmatprep.subr.bf16.mxu0 0
      %2369 = vmatpush1.bf16.msra.mxu0 0
      %2370 = vmatprep.subr.bf16.mxu0 0
      %2371 = vmatpush1.bf16.msra.mxu0 0
      %2372 = vmatprep.subr.bf16.mxu0 0
      %2373 = vmatpush1.bf16.msra.mxu0 %v2356
      %2374 = vmatprep.subr.bf16.mxu0 0
      %2375 = vmatpush2.bf16.msra.mxu0 0
      %2376 = vmatprep.subr.bf16.mxu0 0
      %2377 = vmatpush2.bf16.msra.mxu0 0
      %2378 = vmatprep.subr.bf16.mxu0 0
      %2379 = vmatpush2.bf16.msra.mxu0 0
      %2380 = vmatprep.subr.bf16.mxu0 0
      %2381 = vmatpush2.bf16.msra.mxu0 0
      %2382 = vmatprep.subr.bf16.mxu0 0
      %2383 = vmatpush2.bf16.msra.mxu0 0
      %2384 = vmatprep.subr.bf16.mxu0 0
      %2385 = vmatpush2.bf16.msra.mxu0 0
      %2386 = vmatprep.subr.bf16.mxu0 0
      %2387 = vmatpush2.bf16.msra.mxu0 0
      %2388 = vmatprep.subr.bf16.mxu0 0
      %2389 = vmatpush2.bf16.msra.mxu0 0
      %2390 = vmatprep.mubr.bf16.mxu0 0
      %2391 = vmatmul.mubr.bf16.gmra.mxu0 %v2326
      %v2392 = vpop.f32.mrf.mxu0
      %v2393 = vadd.f32 0.0, %v2392
      %v2394 = vpop.f32.mrf.mxu0
      %v2395 = vpop.f32.mrf.mxu0
      %v2396 = vadd.f32 0.0, %v2395
      %v2397 = vpop.f32.mrf.mxu0
      %2398 = vmatprep.mubr.bf16.mxu0 0
      %2399 = vmatmul.mubr.bf16.gmra.mxu0 %v2329
      %v2400 = vpop.f32.mrf.mxu0
      %v2401 = vadd.f32 0.0, %v2400
      %v2402 = vpop.f32.mrf.mxu0
      %v2403 = vpop.f32.mrf.mxu0
      %v2404 = vadd.f32 0.0, %v2403
      %v2405 = vpop.f32.mrf.mxu0
      %2406 = vmatprep.mubr.bf16.mxu0 0
      %2407 = vmatmul.mubr.bf16.gmra.mxu0 %v2332
      %v2408 = vpop.f32.mrf.mxu0
      %v2409 = vadd.f32 0.0, %v2408
      %v2410 = vpop.f32.mrf.mxu0
      %v2411 = vpop.f32.mrf.mxu0
      %v2412 = vadd.f32 0.0, %v2411
      %v2413 = vpop.f32.mrf.mxu0
      %2414 = vmatprep.mubr.bf16.mxu0 0
      %2415 = vmatmul.mubr.bf16.gmra.mxu0 %v2335
      %v2416 = vpop.f32.mrf.mxu0
      %v2417 = vadd.f32 0.0, %v2416
      %v2418 = vpop.f32.mrf.mxu0
      %v2419 = vpop.f32.mrf.mxu0
      %v2420 = vadd.f32 0.0, %v2419
      %v2421 = vpop.f32.mrf.mxu0
      %2422 = vmatprep.mubr.bf16.mxu0 0
      %2423 = vmatmul.mubr.bf16.gmra.mxu0 %v2338
      %v2424 = vpop.f32.mrf.mxu0
      %v2425 = vadd.f32 0.0, %v2424
      %v2426 = vpop.f32.mrf.mxu0
      %v2427 = vpop.f32.mrf.mxu0
      %v2428 = vadd.f32 0.0, %v2427
      %v2429 = vpop.f32.mrf.mxu0
      %2430 = vmatprep.mubr.bf16.mxu0 0
      %2431 = vmatmul.mubr.bf16.gmra.mxu0 %v2341
      %v2432 = vpop.f32.mrf.mxu0
      %v2433 = vadd.f32 0.0, %v2432
      %v2434 = vpop.f32.mrf.mxu0
      %v2435 = vpop.f32.mrf.mxu0
      %v2436 = vadd.f32 0.0, %v2435
      %v2437 = vpop.f32.mrf.mxu0
      %2438 = vmatprep.mubr.bf16.mxu0 0
      %2439 = vmatmul.mubr.bf16.gmra.mxu0 %v2344
      %v2440 = vpop.f32.mrf.mxu0
      %v2441 = vadd.f32 0.0, %v2440
      %v2442 = vpop.f32.mrf.mxu0
      %v2443 = vpop.f32.mrf.mxu0
      %v2444 = vadd.f32 0.0, %v2443
      %v2445 = vpop.f32.mrf.mxu0
      %2446 = vmatprep.mubr.bf16.mxu0 0
      %2447 = vmatmul.mubr.bf16.gmra.mxu0 %v2347
      %v2448 = vpop.f32.mrf.mxu0
      %v2449 = vadd.f32 0.0, %v2448
      %v2450 = vpop.f32.mrf.mxu0
      %v2451 = vpop.f32.mrf.mxu0
      %v2452 = vadd.f32 0.0, %v2451
      %v2453 = vpop.f32.mrf.mxu0
      %2454 = vmatprep.mubr.bf16.mxu0 0
      %2455 = vmatmul.mubr.bf16.gmra.mxu0 %v2350
      %v2456 = vpop.f32.mrf.mxu0
      %v2457 = vadd.f32 0.0, %v2456
      %v2458 = vpop.f32.mrf.mxu0
      %v2459 = vpop.f32.mrf.mxu0
      %v2460 = vadd.f32 0.0, %v2459
      %v2461 = vpop.f32.mrf.mxu0
      %2462 = vmatprep.mubr.bf16.mxu0 0
      %2463 = vmatmul.mubr.bf16.gmra.mxu0 %v2353
      %v2464 = vpop.f32.mrf.mxu0
      %v2465 = vadd.f32 0.0, %v2464
      %v2466 = vpop.f32.mrf.mxu0
      %v2467 = vpop.f32.mrf.mxu0
      %v2468 = vadd.f32 0.0, %v2467
      %v2469 = vpop.f32.mrf.mxu0
      %2470 = vdwg.mxu0
      %v2471 = vld [vmem:[#allocation4] sm:$0xff]
      %v2472 = vld [vmem:[#allocation4 + $0x8] sm:$0xff]
      %v2473 = vld [vmem:[#allocation4 + $0x10] sm:$0xff]
      %v2474 = vld [vmem:[#allocation4 + $0x18] sm:$0xff]
      %v2475 = vld [vmem:[#allocation4 + $0x20] sm:$0xff]
      %v2476 = vld [vmem:[#allocation4 + $0x28] sm:$0xff]
      %v2477 = vld [vmem:[#allocation4 + $0x30] sm:$0xff]
      %v2478 = vld [vmem:[#allocation4 + $0x38] sm:$0xff]
      %v2479 = vld [vmem:[#allocation4 + $0x40] sm:$0xff]
      %v2480 = vld [vmem:[#allocation4 + $0x48] sm:$0xff]
      %v2481 = vld [vmem:[#allocation4 + $0x50] sm:$0xff]
      %v2482 = vld [vmem:[#allocation4 + $0x58] sm:$0xff]
      %v2483 = vld [vmem:[#allocation4 + $0x60] sm:$0xff]
      %v2484 = vld [vmem:[#allocation4 + $0x68] sm:$0xff]
      %v2485 = vld [vmem:[#allocation4 + $0x70] sm:$0xff]
      %v2486 = vld [vmem:[#allocation4 + $0x78] sm:$0xff]
      %v2487 = vld [vmem:[#allocation4 + $0x80] sm:$0xff]
      %v2488 = vld [vmem:[#allocation4 + $0x88] sm:$0xff]
      %v2489 = vld [vmem:[#allocation4 + $0x90] sm:$0xff]
      %v2490 = vld [vmem:[#allocation4 + $0x98] sm:$0xff]
      %v2491 = vadd.f32 %v2471, %v2393
      %v2492 = vadd.f32 %v2472, %v2396
      %v2493 = vadd.f32 %v2473, %v2401
      %v2494 = vadd.f32 %v2474, %v2404
      %v2495 = vadd.f32 %v2475, %v2409
      %v2496 = vadd.f32 %v2476, %v2412
      %v2497 = vadd.f32 %v2477, %v2417
      %v2498 = vadd.f32 %v2478, %v2420
      %v2499 = vadd.f32 %v2479, %v2425
      %v2500 = vadd.f32 %v2480, %v2428
      %v2501 = vadd.f32 %v2481, %v2433
      %v2502 = vadd.f32 %v2482, %v2436
      %v2503 = vadd.f32 %v2483, %v2441
      %v2504 = vadd.f32 %v2484, %v2444
      %v2505 = vadd.f32 %v2485, %v2449
      %v2506 = vadd.f32 %v2486, %v2452
      %v2507 = vadd.f32 %v2487, %v2457
      %v2508 = vadd.f32 %v2488, %v2460
      %v2509 = vadd.f32 %v2489, %v2465
      %v2510 = vadd.f32 %v2490, %v2468
      %2511 = vst.msk [vmem:[#allocation4] sm:$0xff] %vm804, %v2491
      %2512 = vst.msk [vmem:[#allocation4 + $0x8] sm:$0xff] %vm804, %v2492
      %2513 = vst.msk [vmem:[#allocation4 + $0x10] sm:$0xff] %vm804, %v2493
      %2514 = vst.msk [vmem:[#allocation4 + $0x18] sm:$0xff] %vm804, %v2494
      %2515 = vst.msk [vmem:[#allocation4 + $0x20] sm:$0xff] %vm804, %v2495
      %2516 = vst.msk [vmem:[#allocation4 + $0x28] sm:$0xff] %vm804, %v2496
      %2517 = vst.msk [vmem:[#allocation4 + $0x30] sm:$0xff] %vm804, %v2497
      %2518 = vst.msk [vmem:[#allocation4 + $0x38] sm:$0xff] %vm804, %v2498
      %2519 = vst.msk [vmem:[#allocation4 + $0x40] sm:$0xff] %vm804, %v2499
      %2520 = vst.msk [vmem:[#allocation4 + $0x48] sm:$0xff] %vm804, %v2500
      %2521 = vst.msk [vmem:[#allocation4 + $0x50] sm:$0xff] %vm804, %v2501
      %2522 = vst.msk [vmem:[#allocation4 + $0x58] sm:$0xff] %vm804, %v2502
      %2523 = vst.msk [vmem:[#allocation4 + $0x60] sm:$0xff] %vm804, %v2503
      %2524 = vst.msk [vmem:[#allocation4 + $0x68] sm:$0xff] %vm804, %v2504
      %2525 = vst.msk [vmem:[#allocation4 + $0x70] sm:$0xff] %vm804, %v2505
      %2526 = vst.msk [vmem:[#allocation4 + $0x78] sm:$0xff] %vm804, %v2506
      %2527 = vst.msk [vmem:[#allocation4 + $0x80] sm:$0xff] %vm804, %v2507
      %2528 = vst.msk [vmem:[#allocation4 + $0x88] sm:$0xff] %vm804, %v2508
      %2529 = vst.msk [vmem:[#allocation4 + $0x90] sm:$0xff] %vm804, %v2509
      %2530 = vst.msk [vmem:[#allocation4 + $0x98] sm:$0xff] %vm804, %v2510
      %v2531 = vld [vmem:[%s1764 + $0x4] sm:$0xf]
      %v2532 = vld [vmem:[%s1764 + $0x8] sm:$0xf]
      %v2533 = vld [vmem:[%s1764 + $0xc] sm:$0x1]
      %v2534 = vld [vmem:[%s1764 + $0x14] sm:$0xf]
      %v2535 = vld [vmem:[%s1764 + $0x18] sm:$0xf]
      %v2536 = vld [vmem:[%s1764 + $0x1c] sm:$0x1]
      %v2537 = vld [vmem:[%s1764 + $0x24] sm:$0xf]
      %v2538 = vld [vmem:[%s1764 + $0x28] sm:$0xf]
      %v2539 = vld [vmem:[%s1764 + $0x2c] sm:$0x1]
      %v2540 = vld [vmem:[%s1764 + $0x34] sm:$0xf]
      %v2541 = vld [vmem:[%s1764 + $0x38] sm:$0xf]
      %v2542 = vld [vmem:[%s1764 + $0x3c] sm:$0x1]
      %v2543 = vld [vmem:[%s1764 + $0x44] sm:$0xf]
      %v2544 = vld [vmem:[%s1764 + $0x48] sm:$0xf]
      %v2545 = vld [vmem:[%s1764 + $0x4c] sm:$0x1]
      %v2546 = vld [vmem:[%s1764 + $0x54] sm:$0xf]
      %v2547 = vld [vmem:[%s1764 + $0x58] sm:$0xf]
      %v2548 = vld [vmem:[%s1764 + $0x5c] sm:$0x1]
      %v2549 = vld [vmem:[%s1764 + $0x64] sm:$0xf]
      %v2550 = vld [vmem:[%s1764 + $0x68] sm:$0xf]
      %v2551 = vld [vmem:[%s1764 + $0x6c] sm:$0x1]
      %v2552 = vld [vmem:[%s1764 + $0x74] sm:$0xf]
      %v2553 = vld [vmem:[%s1764 + $0x78] sm:$0xf]
      %v2554 = vld [vmem:[%s1764 + $0x7c] sm:$0x1]
      %v2555 = vld [vmem:[%s1764 + $0x84] sm:$0xf]
      %v2556 = vld [vmem:[%s1764 + $0x88] sm:$0xf]
      %v2557 = vld [vmem:[%s1764 + $0x8c] sm:$0x1]
      %v2558 = vld [vmem:[%s1764 + $0x94] sm:$0xf]
      %v2559 = vld [vmem:[%s1764 + $0x98] sm:$0xf]
      %v2560 = vld [vmem:[%s1764 + $0x9c] sm:$0x1]
      %v2562 = vshrl.u32 %v2531, 16
      %v2564 = vrot.slane %v2562, 4
      %v2565 = vshll.u32 %v2531, 16
      %v2567 = vrot.slane %v2565, 5
      %v2568 = vor.u32 %v2564, %v2567
      %v2569 = vrot.slane %v2568, 4
      %v2571 = vshll.u32 %v2532, 16
      %v2573 = vrot.slane %v2571, 5
      %v2574 = vsel %vm1282, %v2569, %v2573
      %v2575 = vshrl.u32 %v2532, 16
      %v2577 = vrot.slane %v2575, 4
      %v2578 = vor.u32 %v2577, %v2573
      %v2579 = vrot.slane %v2578, 4
      %v2581 = vshll.u32 %v2533, 16
      %v2583 = vrot.slane %v2581, 5
      %v2584 = vsel %vm1282, %v2579, %v2583
      %v2586 = vshrl.u32 %v2534, 16
      %v2588 = vrot.slane %v2586, 4
      %v2589 = vshll.u32 %v2534, 16
      %v2591 = vrot.slane %v2589, 5
      %v2592 = vor.u32 %v2588, %v2591
      %v2593 = vrot.slane %v2592, 4
      %v2595 = vshll.u32 %v2535, 16
      %v2597 = vrot.slane %v2595, 5
      %v2598 = vsel %vm1282, %v2593, %v2597
      %v2599 = vshrl.u32 %v2535, 16
      %v2601 = vrot.slane %v2599, 4
      %v2602 = vor.u32 %v2601, %v2597
      %v2603 = vrot.slane %v2602, 4
      %v2605 = vshll.u32 %v2536, 16
      %v2607 = vrot.slane %v2605, 5
      %v2608 = vsel %vm1282, %v2603, %v2607
      %v2610 = vshrl.u32 %v2537, 16
      %v2612 = vrot.slane %v2610, 4
      %v2613 = vshll.u32 %v2537, 16
      %v2615 = vrot.slane %v2613, 5
      %v2616 = vor.u32 %v2612, %v2615
      %v2617 = vrot.slane %v2616, 4
      %v2619 = vshll.u32 %v2538, 16
      %v2621 = vrot.slane %v2619, 5
      %v2622 = vsel %vm1282, %v2617, %v2621
      %v2623 = vshrl.u32 %v2538, 16
      %v2625 = vrot.slane %v2623, 4
      %v2626 = vor.u32 %v2625, %v2621
      %v2627 = vrot.slane %v2626, 4
      %v2629 = vshll.u32 %v2539, 16
      %v2631 = vrot.slane %v2629, 5
      %v2632 = vsel %vm1282, %v2627, %v2631
      %v2634 = vshrl.u32 %v2540, 16
      %v2636 = vrot.slane %v2634, 4
      %v2637 = vshll.u32 %v2540, 16
      %v2639 = vrot.slane %v2637, 5
      %v2640 = vor.u32 %v2636, %v2639
      %v2641 = vrot.slane %v2640, 4
      %v2643 = vshll.u32 %v2541, 16
      %v2645 = vrot.slane %v2643, 5
      %v2646 = vsel %vm1282, %v2641, %v2645
      %v2647 = vshrl.u32 %v2541, 16
      %v2649 = vrot.slane %v2647, 4
      %v2650 = vor.u32 %v2649, %v2645
      %v2651 = vrot.slane %v2650, 4
      %v2653 = vshll.u32 %v2542, 16
      %v2655 = vrot.slane %v2653, 5
      %v2656 = vsel %vm1282, %v2651, %v2655
      %v2658 = vshrl.u32 %v2543, 16
      %v2660 = vrot.slane %v2658, 4
      %v2661 = vshll.u32 %v2543, 16
      %v2663 = vrot.slane %v2661, 5
      %v2664 = vor.u32 %v2660, %v2663
      %v2665 = vrot.slane %v2664, 4
      %v2667 = vshll.u32 %v2544, 16
      %v2669 = vrot.slane %v2667, 5
      %v2670 = vsel %vm1282, %v2665, %v2669
      %v2671 = vshrl.u32 %v2544, 16
      %v2673 = vrot.slane %v2671, 4
      %v2674 = vor.u32 %v2673, %v2669
      %v2675 = vrot.slane %v2674, 4
      %v2677 = vshll.u32 %v2545, 16
      %v2679 = vrot.slane %v2677, 5
      %v2680 = vsel %vm1282, %v2675, %v2679
      %v2682 = vshrl.u32 %v2546, 16
      %v2684 = vrot.slane %v2682, 4
      %v2685 = vshll.u32 %v2546, 16
      %v2687 = vrot.slane %v2685, 5
      %v2688 = vor.u32 %v2684, %v2687
      %v2689 = vrot.slane %v2688, 4
      %v2691 = vshll.u32 %v2547, 16
      %v2693 = vrot.slane %v2691, 5
      %v2694 = vsel %vm1282, %v2689, %v2693
      %v2695 = vshrl.u32 %v2547, 16
      %v2697 = vrot.slane %v2695, 4
      %v2698 = vor.u32 %v2697, %v2693
      %v2699 = vrot.slane %v2698, 4
      %v2701 = vshll.u32 %v2548, 16
      %v2703 = vrot.slane %v2701, 5
      %v2704 = vsel %vm1282, %v2699, %v2703
      %v2706 = vshrl.u32 %v2549, 16
      %v2708 = vrot.slane %v2706, 4
      %v2709 = vshll.u32 %v2549, 16
      %v2711 = vrot.slane %v2709, 5
      %v2712 = vor.u32 %v2708, %v2711
      %v2713 = vrot.slane %v2712, 4
      %v2715 = vshll.u32 %v2550, 16
      %v2717 = vrot.slane %v2715, 5
      %v2718 = vsel %vm1282, %v2713, %v2717
      %v2719 = vshrl.u32 %v2550, 16
      %v2721 = vrot.slane %v2719, 4
      %v2722 = vor.u32 %v2721, %v2717
      %v2723 = vrot.slane %v2722, 4
      %v2725 = vshll.u32 %v2551, 16
      %v2727 = vrot.slane %v2725, 5
      %v2728 = vsel %vm1282, %v2723, %v2727
      %v2730 = vshrl.u32 %v2552, 16
      %v2732 = vrot.slane %v2730, 4
      %v2733 = vshll.u32 %v2552, 16
      %v2735 = vrot.slane %v2733, 5
      %v2736 = vor.u32 %v2732, %v2735
      %v2737 = vrot.slane %v2736, 4
      %v2739 = vshll.u32 %v2553, 16
      %v2741 = vrot.slane %v2739, 5
      %v2742 = vsel %vm1282, %v2737, %v2741
      %v2743 = vshrl.u32 %v2553, 16
      %v2745 = vrot.slane %v2743, 4
      %v2746 = vor.u32 %v2745, %v2741
      %v2747 = vrot.slane %v2746, 4
      %v2749 = vshll.u32 %v2554, 16
      %v2751 = vrot.slane %v2749, 5
      %v2752 = vsel %vm1282, %v2747, %v2751
      %v2754 = vshrl.u32 %v2555, 16
      %v2756 = vrot.slane %v2754, 4
      %v2757 = vshll.u32 %v2555, 16
      %v2759 = vrot.slane %v2757, 5
      %v2760 = vor.u32 %v2756, %v2759
      %v2761 = vrot.slane %v2760, 4
      %v2763 = vshll.u32 %v2556, 16
      %v2765 = vrot.slane %v2763, 5
      %v2766 = vsel %vm1282, %v2761, %v2765
      %v2767 = vshrl.u32 %v2556, 16
      %v2769 = vrot.slane %v2767, 4
      %v2770 = vor.u32 %v2769, %v2765
      %v2771 = vrot.slane %v2770, 4
      %v2773 = vshll.u32 %v2557, 16
      %v2775 = vrot.slane %v2773, 5
      %v2776 = vsel %vm1282, %v2771, %v2775
      %v2778 = vshrl.u32 %v2558, 16
      %v2780 = vrot.slane %v2778, 4
      %v2781 = vshll.u32 %v2558, 16
      %v2783 = vrot.slane %v2781, 5
      %v2784 = vor.u32 %v2780, %v2783
      %v2785 = vrot.slane %v2784, 4
      %v2787 = vshll.u32 %v2559, 16
      %v2789 = vrot.slane %v2787, 5
      %v2790 = vsel %vm1282, %v2785, %v2789
      %v2791 = vshrl.u32 %v2559, 16
      %v2793 = vrot.slane %v2791, 4
      %v2794 = vor.u32 %v2793, %v2789
      %v2795 = vrot.slane %v2794, 4
      %v2797 = vshll.u32 %v2560, 16
      %v2799 = vrot.slane %v2797, 5
      %v2800 = vsel %vm1282, %v2795, %v2799
      %s2801 = scalar_lea.vmem %s1, 10
      %v2802 = vld [vmem:[%s2801] sm:$0x3]
      %v2803 = vunpack.c.l.b16 %v2574
      %v2804 = vunpack.c.l.b16 %v2584
      %v2805 = vunpack.c.l.b16 %v2598
      %v2806 = vunpack.c.l.b16 %v2608
      %v2807 = vunpack.c.l.b16 %v2622
      %v2808 = vunpack.c.l.b16 %v2632
      %v2809 = vunpack.c.l.b16 %v2646
      %v2810 = vunpack.c.l.b16 %v2656
      %v2811 = vunpack.c.l.b16 %v2670
      %v2812 = vunpack.c.l.b16 %v2680
      %v2813 = vunpack.c.l.b16 %v2694
      %v2814 = vunpack.c.l.b16 %v2704
      %v2815 = vunpack.c.l.b16 %v2718
      %v2816 = vunpack.c.l.b16 %v2728
      %v2817 = vunpack.c.l.b16 %v2742
      %v2818 = vunpack.c.l.b16 %v2752
      %v2819 = vunpack.c.l.b16 %v2766
      %v2820 = vunpack.c.l.b16 %v2776
      %v2821 = vunpack.c.l.b16 %v2790
      %v2822 = vunpack.c.l.b16 %v2800
      %v2823 = vpack.c.b16 %v2804, %v2803
      %v2824 = vpack.c.b16 %v2806, %v2805
      %v2825 = vpack.c.b16 %v2808, %v2807
      %v2826 = vpack.c.b16 %v2810, %v2809
      %v2827 = vpack.c.b16 %v2812, %v2811
      %v2828 = vpack.c.b16 %v2814, %v2813
      %v2829 = vpack.c.b16 %v2816, %v2815
      %v2830 = vpack.c.b16 %v2818, %v2817
      %v2831 = vpack.c.b16 %v2820, %v2819
      %v2832 = vpack.c.b16 %v2822, %v2821
      %v2834 = vsel %vm804, %v2823, 0
      %v2837 = vsel %vm804, %v2824, 0
      %v2840 = vsel %vm804, %v2825, 0
      %v2843 = vsel %vm804, %v2826, 0
      %v2846 = vsel %vm804, %v2827, 0
      %v2849 = vsel %vm804, %v2828, 0
      %v2852 = vsel %vm804, %v2829, 0
      %v2855 = vsel %vm804, %v2830, 0
      %v2858 = vsel %vm804, %v2831, 0
      %v2861 = vsel %vm804, %v2832, 0
      %v2864 = vsel %vm835, %v2802, 0
      %2866 = vmatprep.subr.bf16.mxu0 0
      %2867 = vmatpush1.bf16.msra.mxu0 0
      %2868 = vmatprep.subr.bf16.mxu0 0
      %2869 = vmatpush1.bf16.msra.mxu0 0
      %2870 = vmatprep.subr.bf16.mxu0 0
      %2871 = vmatpush1.bf16.msra.mxu0 0
      %2872 = vmatprep.subr.bf16.mxu0 0
      %2873 = vmatpush1.bf16.msra.mxu0 0
      %2874 = vmatprep.subr.bf16.mxu0 0
      %2875 = vmatpush1.bf16.msra.mxu0 0
      %2876 = vmatprep.subr.bf16.mxu0 0
      %2877 = vmatpush1.bf16.msra.mxu0 0
      %2878 = vmatprep.subr.bf16.mxu0 0
      %2879 = vmatpush1.bf16.msra.mxu0 0
      %2880 = vmatprep.subr.bf16.mxu0 0
      %2881 = vmatpush1.bf16.msra.mxu0 %v2864
      %2882 = vmatprep.subr.bf16.mxu0 0
      %2883 = vmatpush2.bf16.msra.mxu0 0
      %2884 = vmatprep.subr.bf16.mxu0 0
      %2885 = vmatpush2.bf16.msra.mxu0 0
      %2886 = vmatprep.subr.bf16.mxu0 0
      %2887 = vmatpush2.bf16.msra.mxu0 0
      %2888 = vmatprep.subr.bf16.mxu0 0
      %2889 = vmatpush2.bf16.msra.mxu0 0
      %2890 = vmatprep.subr.bf16.mxu0 0
      %2891 = vmatpush2.bf16.msra.mxu0 0
      %2892 = vmatprep.subr.bf16.mxu0 0
      %2893 = vmatpush2.bf16.msra.mxu0 0
      %2894 = vmatprep.subr.bf16.mxu0 0
      %2895 = vmatpush2.bf16.msra.mxu0 0
      %2896 = vmatprep.subr.bf16.mxu0 0
      %2897 = vmatpush2.bf16.msra.mxu0 0
      %2898 = vmatprep.mubr.bf16.mxu0 0
      %2899 = vmatmul.mubr.bf16.gmra.mxu0 %v2834
      %v2900 = vpop.f32.mrf.mxu0
      %v2901 = vadd.f32 0.0, %v2900
      %v2902 = vpop.f32.mrf.mxu0
      %v2903 = vpop.f32.mrf.mxu0
      %v2904 = vadd.f32 0.0, %v2903
      %v2905 = vpop.f32.mrf.mxu0
      %2906 = vmatprep.mubr.bf16.mxu0 0
      %2907 = vmatmul.mubr.bf16.gmra.mxu0 %v2837
      %v2908 = vpop.f32.mrf.mxu0
      %v2909 = vadd.f32 0.0, %v2908
      %v2910 = vpop.f32.mrf.mxu0
      %v2911 = vpop.f32.mrf.mxu0
      %v2912 = vadd.f32 0.0, %v2911
      %v2913 = vpop.f32.mrf.mxu0
      %2914 = vmatprep.mubr.bf16.mxu0 0
      %2915 = vmatmul.mubr.bf16.gmra.mxu0 %v2840
      %v2916 = vpop.f32.mrf.mxu0
      %v2917 = vadd.f32 0.0, %v2916
      %v2918 = vpop.f32.mrf.mxu0
      %v2919 = vpop.f32.mrf.mxu0
      %v2920 = vadd.f32 0.0, %v2919
      %v2921 = vpop.f32.mrf.mxu0
      %2922 = vmatprep.mubr.bf16.mxu0 0
      %2923 = vmatmul.mubr.bf16.gmra.mxu0 %v2843
      %v2924 = vpop.f32.mrf.mxu0
      %v2925 = vadd.f32 0.0, %v2924
      %v2926 = vpop.f32.mrf.mxu0
      %v2927 = vpop.f32.mrf.mxu0
      %v2928 = vadd.f32 0.0, %v2927
      %v2929 = vpop.f32.mrf.mxu0
      %2930 = vmatprep.mubr.bf16.mxu0 0
      %2931 = vmatmul.mubr.bf16.gmra.mxu0 %v2846
      %v2932 = vpop.f32.mrf.mxu0
      %v2933 = vadd.f32 0.0, %v2932
      %v2934 = vpop.f32.mrf.mxu0
      %v2935 = vpop.f32.mrf.mxu0
      %v2936 = vadd.f32 0.0, %v2935
      %v2937 = vpop.f32.mrf.mxu0
      %2938 = vmatprep.mubr.bf16.mxu0 0
      %2939 = vmatmul.mubr.bf16.gmra.mxu0 %v2849
      %v2940 = vpop.f32.mrf.mxu0
      %v2941 = vadd.f32 0.0, %v2940
      %v2942 = vpop.f32.mrf.mxu0
      %v2943 = vpop.f32.mrf.mxu0
      %v2944 = vadd.f32 0.0, %v2943
      %v2945 = vpop.f32.mrf.mxu0
      %2946 = vmatprep.mubr.bf16.mxu0 0
      %2947 = vmatmul.mubr.bf16.gmra.mxu0 %v2852
      %v2948 = vpop.f32.mrf.mxu0
      %v2949 = vadd.f32 0.0, %v2948
      %v2950 = vpop.f32.mrf.mxu0
      %v2951 = vpop.f32.mrf.mxu0
      %v2952 = vadd.f32 0.0, %v2951
      %v2953 = vpop.f32.mrf.mxu0
      %2954 = vmatprep.mubr.bf16.mxu0 0
      %2955 = vmatmul.mubr.bf16.gmra.mxu0 %v2855
      %v2956 = vpop.f32.mrf.mxu0
      %v2957 = vadd.f32 0.0, %v2956
      %v2958 = vpop.f32.mrf.mxu0
      %v2959 = vpop.f32.mrf.mxu0
      %v2960 = vadd.f32 0.0, %v2959
      %v2961 = vpop.f32.mrf.mxu0
      %2962 = vmatprep.mubr.bf16.mxu0 0
      %2963 = vmatmul.mubr.bf16.gmra.mxu0 %v2858
      %v2964 = vpop.f32.mrf.mxu0
      %v2965 = vadd.f32 0.0, %v2964
      %v2966 = vpop.f32.mrf.mxu0
      %v2967 = vpop.f32.mrf.mxu0
      %v2968 = vadd.f32 0.0, %v2967
      %v2969 = vpop.f32.mrf.mxu0
      %2970 = vmatprep.mubr.bf16.mxu0 0
      %2971 = vmatmul.mubr.bf16.gmra.mxu0 %v2861
      %v2972 = vpop.f32.mrf.mxu0
      %v2973 = vadd.f32 0.0, %v2972
      %v2974 = vpop.f32.mrf.mxu0
      %v2975 = vpop.f32.mrf.mxu0
      %v2976 = vadd.f32 0.0, %v2975
      %v2977 = vpop.f32.mrf.mxu0
      %2978 = vdwg.mxu0
      %v2979 = vld [vmem:[#allocation4] sm:$0xff]
      %v2980 = vld [vmem:[#allocation4 + $0x8] sm:$0xff]
      %v2981 = vld [vmem:[#allocation4 + $0x10] sm:$0xff]
      %v2982 = vld [vmem:[#allocation4 + $0x18] sm:$0xff]
      %v2983 = vld [vmem:[#allocation4 + $0x20] sm:$0xff]
      %v2984 = vld [vmem:[#allocation4 + $0x28] sm:$0xff]
      %v2985 = vld [vmem:[#allocation4 + $0x30] sm:$0xff]
      %v2986 = vld [vmem:[#allocation4 + $0x38] sm:$0xff]
      %v2987 = vld [vmem:[#allocation4 + $0x40] sm:$0xff]
      %v2988 = vld [vmem:[#allocation4 + $0x48] sm:$0xff]
      %v2989 = vld [vmem:[#allocation4 + $0x50] sm:$0xff]
      %v2990 = vld [vmem:[#allocation4 + $0x58] sm:$0xff]
      %v2991 = vld [vmem:[#allocation4 + $0x60] sm:$0xff]
      %v2992 = vld [vmem:[#allocation4 + $0x68] sm:$0xff]
      %v2993 = vld [vmem:[#allocation4 + $0x70] sm:$0xff]
      %v2994 = vld [vmem:[#allocation4 + $0x78] sm:$0xff]
      %v2995 = vld [vmem:[#allocation4 + $0x80] sm:$0xff]
      %v2996 = vld [vmem:[#allocation4 + $0x88] sm:$0xff]
      %v2997 = vld [vmem:[#allocation4 + $0x90] sm:$0xff]
      %v2998 = vld [vmem:[#allocation4 + $0x98] sm:$0xff]
      %v2999 = vadd.f32 %v2979, %v2901
      %v3000 = vadd.f32 %v2980, %v2904
      %v3001 = vadd.f32 %v2981, %v2909
      %v3002 = vadd.f32 %v2982, %v2912
      %v3003 = vadd.f32 %v2983, %v2917
      %v3004 = vadd.f32 %v2984, %v2920
      %v3005 = vadd.f32 %v2985, %v2925
      %v3006 = vadd.f32 %v2986, %v2928
      %v3007 = vadd.f32 %v2987, %v2933
      %v3008 = vadd.f32 %v2988, %v2936
      %v3009 = vadd.f32 %v2989, %v2941
      %v3010 = vadd.f32 %v2990, %v2944
      %v3011 = vadd.f32 %v2991, %v2949
      %v3012 = vadd.f32 %v2992, %v2952
      %v3013 = vadd.f32 %v2993, %v2957
      %v3014 = vadd.f32 %v2994, %v2960
      %v3015 = vadd.f32 %v2995, %v2965
      %v3016 = vadd.f32 %v2996, %v2968
      %v3017 = vadd.f32 %v2997, %v2973
      %v3018 = vadd.f32 %v2998, %v2976
      %3019 = vst.msk [vmem:[#allocation4] sm:$0xff] %vm804, %v2999
      %3020 = vst.msk [vmem:[#allocation4 + $0x8] sm:$0xff] %vm804, %v3000
      %3021 = vst.msk [vmem:[#allocation4 + $0x10] sm:$0xff] %vm804, %v3001
      %3022 = vst.msk [vmem:[#allocation4 + $0x18] sm:$0xff] %vm804, %v3002
      %3023 = vst.msk [vmem:[#allocation4 + $0x20] sm:$0xff] %vm804, %v3003
      %3024 = vst.msk [vmem:[#allocation4 + $0x28] sm:$0xff] %vm804, %v3004
      %3025 = vst.msk [vmem:[#allocation4 + $0x30] sm:$0xff] %vm804, %v3005
      %3026 = vst.msk [vmem:[#allocation4 + $0x38] sm:$0xff] %vm804, %v3006
      %3027 = vst.msk [vmem:[#allocation4 + $0x40] sm:$0xff] %vm804, %v3007
      %3028 = vst.msk [vmem:[#allocation4 + $0x48] sm:$0xff] %vm804, %v3008
      %3029 = vst.msk [vmem:[#allocation4 + $0x50] sm:$0xff] %vm804, %v3009
      %3030 = vst.msk [vmem:[#allocation4 + $0x58] sm:$0xff] %vm804, %v3010
      %3031 = vst.msk [vmem:[#allocation4 + $0x60] sm:$0xff] %vm804, %v3011
      %3032 = vst.msk [vmem:[#allocation4 + $0x68] sm:$0xff] %vm804, %v3012
      %3033 = vst.msk [vmem:[#allocation4 + $0x70] sm:$0xff] %vm804, %v3013
      %3034 = vst.msk [vmem:[#allocation4 + $0x78] sm:$0xff] %vm804, %v3014
      %3035 = vst.msk [vmem:[#allocation4 + $0x80] sm:$0xff] %vm804, %v3015
      %3036 = vst.msk [vmem:[#allocation4 + $0x88] sm:$0xff] %vm804, %v3016
      %3037 = vst.msk [vmem:[#allocation4 + $0x90] sm:$0xff] %vm804, %v3017
      %3038 = vst.msk [vmem:[#allocation4 + $0x98] sm:$0xff] %vm804, %v3018
      %s3039 = sadd.s32 %s249, 2
      %s3040 = smul.u32 %s3039, 4
      %s3041 = smul.addr %s3040, 4
      %s3042 = scalar_lea.vmem [#allocation2], %s3041
      %v3043 = vld [vmem:[%s3042] sm:$0x8]
      %v3044 = vld [vmem:[%s3042 + $0x4] sm:$0xf]
      %v3045 = vld [vmem:[%s3042 + $0x8] sm:$0xf]
      %v3046 = vld [vmem:[%s3042 + $0x10] sm:$0x8]
      %v3047 = vld [vmem:[%s3042 + $0x14] sm:$0xf]
      %v3048 = vld [vmem:[%s3042 + $0x18] sm:$0xf]
      %v3049 = vld [vmem:[%s3042 + $0x20] sm:$0x8]
      %v3050 = vld [vmem:[%s3042 + $0x24] sm:$0xf]
      %v3051 = vld [vmem:[%s3042 + $0x28] sm:$0xf]
      %v3052 = vld [vmem:[%s3042 + $0x30] sm:$0x8]
      %v3053 = vld [vmem:[%s3042 + $0x34] sm:$0xf]
      %v3054 = vld [vmem:[%s3042 + $0x38] sm:$0xf]
      %v3055 = vld [vmem:[%s3042 + $0x40] sm:$0x8]
      %v3056 = vld [vmem:[%s3042 + $0x44] sm:$0xf]
      %v3057 = vld [vmem:[%s3042 + $0x48] sm:$0xf]
      %v3058 = vld [vmem:[%s3042 + $0x50] sm:$0x8]
      %v3059 = vld [vmem:[%s3042 + $0x54] sm:$0xf]
      %v3060 = vld [vmem:[%s3042 + $0x58] sm:$0xf]
      %v3061 = vld [vmem:[%s3042 + $0x60] sm:$0x8]
      %v3062 = vld [vmem:[%s3042 + $0x64] sm:$0xf]
      %v3063 = vld [vmem:[%s3042 + $0x68] sm:$0xf]
      %v3064 = vld [vmem:[%s3042 + $0x70] sm:$0x8]
      %v3065 = vld [vmem:[%s3042 + $0x74] sm:$0xf]
      %v3066 = vld [vmem:[%s3042 + $0x78] sm:$0xf]
      %v3067 = vld [vmem:[%s3042 + $0x80] sm:$0x8]
      %v3068 = vld [vmem:[%s3042 + $0x84] sm:$0xf]
      %v3069 = vld [vmem:[%s3042 + $0x88] sm:$0xf]
      %v3070 = vld [vmem:[%s3042 + $0x90] sm:$0x8]
      %v3071 = vld [vmem:[%s3042 + $0x94] sm:$0xf]
      %v3072 = vld [vmem:[%s3042 + $0x98] sm:$0xf]
      %v3074 = vshrl.u32 %v3043, 16
      %v3076 = vrot.slane %v3074, 7
      %v3077 = vrot.slane %v3076, 4
      %v3079 = vshrl.u32 %v3044, 16
      %v3081 = vrot.slane %v3079, 7
      %v3082 = vshll.u32 %v3044, 16
      %v3084 = vor.u32 %v3081, %v3082
      %v3085 = vsel %vm552, %v3077, %v3084
      %v3086 = vrot.slane %v3081, 4
      %v3088 = vshrl.u32 %v3045, 16
      %v3090 = vrot.slane %v3088, 7
      %v3091 = vshll.u32 %v3045, 16
      %v3093 = vor.u32 %v3090, %v3091
      %v3094 = vsel %vm552, %v3086, %v3093
      %v3096 = vshrl.u32 %v3046, 16
      %v3098 = vrot.slane %v3096, 7
      %v3099 = vrot.slane %v3098, 4
      %v3101 = vshrl.u32 %v3047, 16
      %v3103 = vrot.slane %v3101, 7
      %v3104 = vshll.u32 %v3047, 16
      %v3106 = vor.u32 %v3103, %v3104
      %v3107 = vsel %vm552, %v3099, %v3106
      %v3108 = vrot.slane %v3103, 4
      %v3110 = vshrl.u32 %v3048, 16
      %v3112 = vrot.slane %v3110, 7
      %v3113 = vshll.u32 %v3048, 16
      %v3115 = vor.u32 %v3112, %v3113
      %v3116 = vsel %vm552, %v3108, %v3115
      %v3118 = vshrl.u32 %v3049, 16
      %v3120 = vrot.slane %v3118, 7
      %v3121 = vrot.slane %v3120, 4
      %v3123 = vshrl.u32 %v3050, 16
      %v3125 = vrot.slane %v3123, 7
      %v3126 = vshll.u32 %v3050, 16
      %v3128 = vor.u32 %v3125, %v3126
      %v3129 = vsel %vm552, %v3121, %v3128
      %v3130 = vrot.slane %v3125, 4
      %v3132 = vshrl.u32 %v3051, 16
      %v3134 = vrot.slane %v3132, 7
      %v3135 = vshll.u32 %v3051, 16
      %v3137 = vor.u32 %v3134, %v3135
      %v3138 = vsel %vm552, %v3130, %v3137
      %v3140 = vshrl.u32 %v3052, 16
      %v3142 = vrot.slane %v3140, 7
      %v3143 = vrot.slane %v3142, 4
      %v3145 = vshrl.u32 %v3053, 16
      %v3147 = vrot.slane %v3145, 7
      %v3148 = vshll.u32 %v3053, 16
      %v3150 = vor.u32 %v3147, %v3148
      %v3151 = vsel %vm552, %v3143, %v3150
      %v3152 = vrot.slane %v3147, 4
      %v3154 = vshrl.u32 %v3054, 16
      %v3156 = vrot.slane %v3154, 7
      %v3157 = vshll.u32 %v3054, 16
      %v3159 = vor.u32 %v3156, %v3157
      %v3160 = vsel %vm552, %v3152, %v3159
      %v3162 = vshrl.u32 %v3055, 16
      %v3164 = vrot.slane %v3162, 7
      %v3165 = vrot.slane %v3164, 4
      %v3167 = vshrl.u32 %v3056, 16
      %v3169 = vrot.slane %v3167, 7
      %v3170 = vshll.u32 %v3056, 16
      %v3172 = vor.u32 %v3169, %v3170
      %v3173 = vsel %vm552, %v3165, %v3172
      %v3174 = vrot.slane %v3169, 4
      %v3176 = vshrl.u32 %v3057, 16
      %v3178 = vrot.slane %v3176, 7
      %v3179 = vshll.u32 %v3057, 16
      %v3181 = vor.u32 %v3178, %v3179
      %v3182 = vsel %vm552, %v3174, %v3181
      %v3184 = vshrl.u32 %v3058, 16
      %v3186 = vrot.slane %v3184, 7
      %v3187 = vrot.slane %v3186, 4
      %v3189 = vshrl.u32 %v3059, 16
      %v3191 = vrot.slane %v3189, 7
      %v3192 = vshll.u32 %v3059, 16
      %v3194 = vor.u32 %v3191, %v3192
      %v3195 = vsel %vm552, %v3187, %v3194
      %v3196 = vrot.slane %v3191, 4
      %v3198 = vshrl.u32 %v3060, 16
      %v3200 = vrot.slane %v3198, 7
      %v3201 = vshll.u32 %v3060, 16
      %v3203 = vor.u32 %v3200, %v3201
      %v3204 = vsel %vm552, %v3196, %v3203
      %v3206 = vshrl.u32 %v3061, 16
      %v3208 = vrot.slane %v3206, 7
      %v3209 = vrot.slane %v3208, 4
      %v3211 = vshrl.u32 %v3062, 16
      %v3213 = vrot.slane %v3211, 7
      %v3214 = vshll.u32 %v3062, 16
      %v3216 = vor.u32 %v3213, %v3214
      %v3217 = vsel %vm552, %v3209, %v3216
      %v3218 = vrot.slane %v3213, 4
      %v3220 = vshrl.u32 %v3063, 16
      %v3222 = vrot.slane %v3220, 7
      %v3223 = vshll.u32 %v3063, 16
      %v3225 = vor.u32 %v3222, %v3223
      %v3226 = vsel %vm552, %v3218, %v3225
      %v3228 = vshrl.u32 %v3064, 16
      %v3230 = vrot.slane %v3228, 7
      %v3231 = vrot.slane %v3230, 4
      %v3233 = vshrl.u32 %v3065, 16
      %v3235 = vrot.slane %v3233, 7
      %v3236 = vshll.u32 %v3065, 16
      %v3238 = vor.u32 %v3235, %v3236
      %v3239 = vsel %vm552, %v3231, %v3238
      %v3240 = vrot.slane %v3235, 4
      %v3242 = vshrl.u32 %v3066, 16
      %v3244 = vrot.slane %v3242, 7
      %v3245 = vshll.u32 %v3066, 16
      %v3247 = vor.u32 %v3244, %v3245
      %v3248 = vsel %vm552, %v3240, %v3247
      %v3250 = vshrl.u32 %v3067, 16
      %v3252 = vrot.slane %v3250, 7
      %v3253 = vrot.slane %v3252, 4
      %v3255 = vshrl.u32 %v3068, 16
      %v3257 = vrot.slane %v3255, 7
      %v3258 = vshll.u32 %v3068, 16
      %v3260 = vor.u32 %v3257, %v3258
      %v3261 = vsel %vm552, %v3253, %v3260
      %v3262 = vrot.slane %v3257, 4
      %v3264 = vshrl.u32 %v3069, 16
      %v3266 = vrot.slane %v3264, 7
      %v3267 = vshll.u32 %v3069, 16
      %v3269 = vor.u32 %v3266, %v3267
      %v3270 = vsel %vm552, %v3262, %v3269
      %v3272 = vshrl.u32 %v3070, 16
      %v3274 = vrot.slane %v3272, 7
      %v3275 = vrot.slane %v3274, 4
      %v3277 = vshrl.u32 %v3071, 16
      %v3279 = vrot.slane %v3277, 7
      %v3280 = vshll.u32 %v3071, 16
      %v3282 = vor.u32 %v3279, %v3280
      %v3283 = vsel %vm552, %v3275, %v3282
      %v3284 = vrot.slane %v3279, 4
      %v3286 = vshrl.u32 %v3072, 16
      %v3288 = vrot.slane %v3286, 7
      %v3289 = vshll.u32 %v3072, 16
      %v3291 = vor.u32 %v3288, %v3289
      %v3292 = vsel %vm552, %v3284, %v3291
      %s3293 = scalar_lea.vmem %s1, 12
      %v3294 = vld [vmem:[%s3293] sm:$0x3]
      %v3295 = vunpack.c.l.b16 %v3085
      %v3296 = vunpack.c.l.b16 %v3094
      %v3297 = vunpack.c.l.b16 %v3107
      %v3298 = vunpack.c.l.b16 %v3116
      %v3299 = vunpack.c.l.b16 %v3129
      %v3300 = vunpack.c.l.b16 %v3138
      %v3301 = vunpack.c.l.b16 %v3151
      %v3302 = vunpack.c.l.b16 %v3160
      %v3303 = vunpack.c.l.b16 %v3173
      %v3304 = vunpack.c.l.b16 %v3182
      %v3305 = vunpack.c.l.b16 %v3195
      %v3306 = vunpack.c.l.b16 %v3204
      %v3307 = vunpack.c.l.b16 %v3217
      %v3308 = vunpack.c.l.b16 %v3226
      %v3309 = vunpack.c.l.b16 %v3239
      %v3310 = vunpack.c.l.b16 %v3248
      %v3311 = vunpack.c.l.b16 %v3261
      %v3312 = vunpack.c.l.b16 %v3270
      %v3313 = vunpack.c.l.b16 %v3283
      %v3314 = vunpack.c.l.b16 %v3292
      %v3315 = vpack.c.b16 %v3296, %v3295
      %v3316 = vpack.c.b16 %v3298, %v3297
      %v3317 = vpack.c.b16 %v3300, %v3299
      %v3318 = vpack.c.b16 %v3302, %v3301
      %v3319 = vpack.c.b16 %v3304, %v3303
      %v3320 = vpack.c.b16 %v3306, %v3305
      %v3321 = vpack.c.b16 %v3308, %v3307
      %v3322 = vpack.c.b16 %v3310, %v3309
      %v3323 = vpack.c.b16 %v3312, %v3311
      %v3324 = vpack.c.b16 %v3314, %v3313
      %v3326 = vsel %vm804, %v3315, 0
      %v3329 = vsel %vm804, %v3316, 0
      %v3332 = vsel %vm804, %v3317, 0
      %v3335 = vsel %vm804, %v3318, 0
      %v3338 = vsel %vm804, %v3319, 0
      %v3341 = vsel %vm804, %v3320, 0
      %v3344 = vsel %vm804, %v3321, 0
      %v3347 = vsel %vm804, %v3322, 0
      %v3350 = vsel %vm804, %v3323, 0
      %v3353 = vsel %vm804, %v3324, 0
      %v3356 = vsel %vm835, %v3294, 0
      %3358 = vmatprep.subr.bf16.mxu0 0
      %3359 = vmatpush1.bf16.msra.mxu0 0
      %3360 = vmatprep.subr.bf16.mxu0 0
      %3361 = vmatpush1.bf16.msra.mxu0 0
      %3362 = vmatprep.subr.bf16.mxu0 0
      %3363 = vmatpush1.bf16.msra.mxu0 0
      %3364 = vmatprep.subr.bf16.mxu0 0
      %3365 = vmatpush1.bf16.msra.mxu0 0
      %3366 = vmatprep.subr.bf16.mxu0 0
      %3367 = vmatpush1.bf16.msra.mxu0 0
      %3368 = vmatprep.subr.bf16.mxu0 0
      %3369 = vmatpush1.bf16.msra.mxu0 0
      %3370 = vmatprep.subr.bf16.mxu0 0
      %3371 = vmatpush1.bf16.msra.mxu0 0
      %3372 = vmatprep.subr.bf16.mxu0 0
      %3373 = vmatpush1.bf16.msra.mxu0 %v3356
      %3374 = vmatprep.subr.bf16.mxu0 0
      %3375 = vmatpush2.bf16.msra.mxu0 0
      %3376 = vmatprep.subr.bf16.mxu0 0
      %3377 = vmatpush2.bf16.msra.mxu0 0
      %3378 = vmatprep.subr.bf16.mxu0 0
      %3379 = vmatpush2.bf16.msra.mxu0 0
      %3380 = vmatprep.subr.bf16.mxu0 0
      %3381 = vmatpush2.bf16.msra.mxu0 0
      %3382 = vmatprep.subr.bf16.mxu0 0
      %3383 = vmatpush2.bf16.msra.mxu0 0
      %3384 = vmatprep.subr.bf16.mxu0 0
      %3385 = vmatpush2.bf16.msra.mxu0 0
      %3386 = vmatprep.subr.bf16.mxu0 0
      %3387 = vmatpush2.bf16.msra.mxu0 0
      %3388 = vmatprep.subr.bf16.mxu0 0
      %3389 = vmatpush2.bf16.msra.mxu0 0
      %3390 = vmatprep.mubr.bf16.mxu0 0
      %3391 = vmatmul.mubr.bf16.gmra.mxu0 %v3326
      %v3392 = vpop.f32.mrf.mxu0
      %v3393 = vadd.f32 0.0, %v3392
      %v3394 = vpop.f32.mrf.mxu0
      %v3395 = vpop.f32.mrf.mxu0
      %v3396 = vadd.f32 0.0, %v3395
      %v3397 = vpop.f32.mrf.mxu0
      %3398 = vmatprep.mubr.bf16.mxu0 0
      %3399 = vmatmul.mubr.bf16.gmra.mxu0 %v3329
      %v3400 = vpop.f32.mrf.mxu0
      %v3401 = vadd.f32 0.0, %v3400
      %v3402 = vpop.f32.mrf.mxu0
      %v3403 = vpop.f32.mrf.mxu0
      %v3404 = vadd.f32 0.0, %v3403
      %v3405 = vpop.f32.mrf.mxu0
      %3406 = vmatprep.mubr.bf16.mxu0 0
      %3407 = vmatmul.mubr.bf16.gmra.mxu0 %v3332
      %v3408 = vpop.f32.mrf.mxu0
      %v3409 = vadd.f32 0.0, %v3408
      %v3410 = vpop.f32.mrf.mxu0
      %v3411 = vpop.f32.mrf.mxu0
      %v3412 = vadd.f32 0.0, %v3411
      %v3413 = vpop.f32.mrf.mxu0
      %3414 = vmatprep.mubr.bf16.mxu0 0
      %3415 = vmatmul.mubr.bf16.gmra.mxu0 %v3335
      %v3416 = vpop.f32.mrf.mxu0
      %v3417 = vadd.f32 0.0, %v3416
      %v3418 = vpop.f32.mrf.mxu0
      %v3419 = vpop.f32.mrf.mxu0
      %v3420 = vadd.f32 0.0, %v3419
      %v3421 = vpop.f32.mrf.mxu0
      %3422 = vmatprep.mubr.bf16.mxu0 0
      %3423 = vmatmul.mubr.bf16.gmra.mxu0 %v3338
      %v3424 = vpop.f32.mrf.mxu0
      %v3425 = vadd.f32 0.0, %v3424
      %v3426 = vpop.f32.mrf.mxu0
      %v3427 = vpop.f32.mrf.mxu0
      %v3428 = vadd.f32 0.0, %v3427
      %v3429 = vpop.f32.mrf.mxu0
      %3430 = vmatprep.mubr.bf16.mxu0 0
      %3431 = vmatmul.mubr.bf16.gmra.mxu0 %v3341
      %v3432 = vpop.f32.mrf.mxu0
      %v3433 = vadd.f32 0.0, %v3432
      %v3434 = vpop.f32.mrf.mxu0
      %v3435 = vpop.f32.mrf.mxu0
      %v3436 = vadd.f32 0.0, %v3435
      %v3437 = vpop.f32.mrf.mxu0
      %3438 = vmatprep.mubr.bf16.mxu0 0
      %3439 = vmatmul.mubr.bf16.gmra.mxu0 %v3344
      %v3440 = vpop.f32.mrf.mxu0
      %v3441 = vadd.f32 0.0, %v3440
      %v3442 = vpop.f32.mrf.mxu0
      %v3443 = vpop.f32.mrf.mxu0
      %v3444 = vadd.f32 0.0, %v3443
      %v3445 = vpop.f32.mrf.mxu0
      %3446 = vmatprep.mubr.bf16.mxu0 0
      %3447 = vmatmul.mubr.bf16.gmra.mxu0 %v3347
      %v3448 = vpop.f32.mrf.mxu0
      %v3449 = vadd.f32 0.0, %v3448
      %v3450 = vpop.f32.mrf.mxu0
      %v3451 = vpop.f32.mrf.mxu0
      %v3452 = vadd.f32 0.0, %v3451
      %v3453 = vpop.f32.mrf.mxu0
      %3454 = vmatprep.mubr.bf16.mxu0 0
      %3455 = vmatmul.mubr.bf16.gmra.mxu0 %v3350
      %v3456 = vpop.f32.mrf.mxu0
      %v3457 = vadd.f32 0.0, %v3456
      %v3458 = vpop.f32.mrf.mxu0
      %v3459 = vpop.f32.mrf.mxu0
      %v3460 = vadd.f32 0.0, %v3459
      %v3461 = vpop.f32.mrf.mxu0
      %3462 = vmatprep.mubr.bf16.mxu0 0
      %3463 = vmatmul.mubr.bf16.gmra.mxu0 %v3353
      %v3464 = vpop.f32.mrf.mxu0
      %v3465 = vadd.f32 0.0, %v3464
      %v3466 = vpop.f32.mrf.mxu0
      %v3467 = vpop.f32.mrf.mxu0
      %v3468 = vadd.f32 0.0, %v3467
      %v3469 = vpop.f32.mrf.mxu0
      %3470 = vdwg.mxu0
      %v3471 = vld [vmem:[#allocation4] sm:$0xff]
      %v3472 = vld [vmem:[#allocation4 + $0x8] sm:$0xff]
      %v3473 = vld [vmem:[#allocation4 + $0x10] sm:$0xff]
      %v3474 = vld [vmem:[#allocation4 + $0x18] sm:$0xff]
      %v3475 = vld [vmem:[#allocation4 + $0x20] sm:$0xff]
      %v3476 = vld [vmem:[#allocation4 + $0x28] sm:$0xff]
      %v3477 = vld [vmem:[#allocation4 + $0x30] sm:$0xff]
      %v3478 = vld [vmem:[#allocation4 + $0x38] sm:$0xff]
      %v3479 = vld [vmem:[#allocation4 + $0x40] sm:$0xff]
      %v3480 = vld [vmem:[#allocation4 + $0x48] sm:$0xff]
      %v3481 = vld [vmem:[#allocation4 + $0x50] sm:$0xff]
      %v3482 = vld [vmem:[#allocation4 + $0x58] sm:$0xff]
      %v3483 = vld [vmem:[#allocation4 + $0x60] sm:$0xff]
      %v3484 = vld [vmem:[#allocation4 + $0x68] sm:$0xff]
      %v3485 = vld [vmem:[#allocation4 + $0x70] sm:$0xff]
      %v3486 = vld [vmem:[#allocation4 + $0x78] sm:$0xff]
      %v3487 = vld [vmem:[#allocation4 + $0x80] sm:$0xff]
      %v3488 = vld [vmem:[#allocation4 + $0x88] sm:$0xff]
      %v3489 = vld [vmem:[#allocation4 + $0x90] sm:$0xff]
      %v3490 = vld [vmem:[#allocation4 + $0x98] sm:$0xff]
      %v3491 = vadd.f32 %v3471, %v3393
      %v3492 = vadd.f32 %v3472, %v3396
      %v3493 = vadd.f32 %v3473, %v3401
      %v3494 = vadd.f32 %v3474, %v3404
      %v3495 = vadd.f32 %v3475, %v3409
      %v3496 = vadd.f32 %v3476, %v3412
      %v3497 = vadd.f32 %v3477, %v3417
      %v3498 = vadd.f32 %v3478, %v3420
      %v3499 = vadd.f32 %v3479, %v3425
      %v3500 = vadd.f32 %v3480, %v3428
      %v3501 = vadd.f32 %v3481, %v3433
      %v3502 = vadd.f32 %v3482, %v3436
      %v3503 = vadd.f32 %v3483, %v3441
      %v3504 = vadd.f32 %v3484, %v3444
      %v3505 = vadd.f32 %v3485, %v3449
      %v3506 = vadd.f32 %v3486, %v3452
      %v3507 = vadd.f32 %v3487, %v3457
      %v3508 = vadd.f32 %v3488, %v3460
      %v3509 = vadd.f32 %v3489, %v3465
      %v3510 = vadd.f32 %v3490, %v3468
      %3511 = vst.msk [vmem:[#allocation4] sm:$0xff] %vm804, %v3491
      %3512 = vst.msk [vmem:[#allocation4 + $0x8] sm:$0xff] %vm804, %v3492
      %3513 = vst.msk [vmem:[#allocation4 + $0x10] sm:$0xff] %vm804, %v3493
      %3514 = vst.msk [vmem:[#allocation4 + $0x18] sm:$0xff] %vm804, %v3494
      %3515 = vst.msk [vmem:[#allocation4 + $0x20] sm:$0xff] %vm804, %v3495
      %3516 = vst.msk [vmem:[#allocation4 + $0x28] sm:$0xff] %vm804, %v3496
      %3517 = vst.msk [vmem:[#allocation4 + $0x30] sm:$0xff] %vm804, %v3497
      %3518 = vst.msk [vmem:[#allocation4 + $0x38] sm:$0xff] %vm804, %v3498
      %3519 = vst.msk [vmem:[#allocation4 + $0x40] sm:$0xff] %vm804, %v3499
      %3520 = vst.msk [vmem:[#allocation4 + $0x48] sm:$0xff] %vm804, %v3500
      %3521 = vst.msk [vmem:[#allocation4 + $0x50] sm:$0xff] %vm804, %v3501
      %3522 = vst.msk [vmem:[#allocation4 + $0x58] sm:$0xff] %vm804, %v3502
      %3523 = vst.msk [vmem:[#allocation4 + $0x60] sm:$0xff] %vm804, %v3503
      %3524 = vst.msk [vmem:[#allocation4 + $0x68] sm:$0xff] %vm804, %v3504
      %3525 = vst.msk [vmem:[#allocation4 + $0x70] sm:$0xff] %vm804, %v3505
      %3526 = vst.msk [vmem:[#allocation4 + $0x78] sm:$0xff] %vm804, %v3506
      %3527 = vst.msk [vmem:[#allocation4 + $0x80] sm:$0xff] %vm804, %v3507
      %3528 = vst.msk [vmem:[#allocation4 + $0x88] sm:$0xff] %vm804, %v3508
      %3529 = vst.msk [vmem:[#allocation4 + $0x90] sm:$0xff] %vm804, %v3509
      %3530 = vst.msk [vmem:[#allocation4 + $0x98] sm:$0xff] %vm804, %v3510
      %v3531 = vld [vmem:[%s3042 + $0x4] sm:$0xf]
      %v3532 = vld [vmem:[%s3042 + $0x8] sm:$0xf]
      %v3533 = vld [vmem:[%s3042 + $0x14] sm:$0xf]
      %v3534 = vld [vmem:[%s3042 + $0x18] sm:$0xf]
      %v3535 = vld [vmem:[%s3042 + $0x24] sm:$0xf]
      %v3536 = vld [vmem:[%s3042 + $0x28] sm:$0xf]
      %v3537 = vld [vmem:[%s3042 + $0x34] sm:$0xf]
      %v3538 = vld [vmem:[%s3042 + $0x38] sm:$0xf]
      %v3539 = vld [vmem:[%s3042 + $0x44] sm:$0xf]
      %v3540 = vld [vmem:[%s3042 + $0x48] sm:$0xf]
      %v3541 = vld [vmem:[%s3042 + $0x54] sm:$0xf]
      %v3542 = vld [vmem:[%s3042 + $0x58] sm:$0xf]
      %v3543 = vld [vmem:[%s3042 + $0x64] sm:$0xf]
      %v3544 = vld [vmem:[%s3042 + $0x68] sm:$0xf]
      %v3545 = vld [vmem:[%s3042 + $0x74] sm:$0xf]
      %v3546 = vld [vmem:[%s3042 + $0x78] sm:$0xf]
      %v3547 = vld [vmem:[%s3042 + $0x84] sm:$0xf]
      %v3548 = vld [vmem:[%s3042 + $0x88] sm:$0xf]
      %v3549 = vld [vmem:[%s3042 + $0x94] sm:$0xf]
      %v3550 = vld [vmem:[%s3042 + $0x98] sm:$0xf]
      %s3551 = scalar_lea.vmem %s1, 14
      %v3552 = vld [vmem:[%s3551] sm:$0x3]
      %v3573 = vunpack.c.l.b16 %v3531
      %v3574 = vunpack.c.l.b16 %v3532
      %v3575 = vunpack.c.l.b16 %v3533
      %v3576 = vunpack.c.l.b16 %v3534
      %v3577 = vunpack.c.l.b16 %v3535
      %v3578 = vunpack.c.l.b16 %v3536
      %v3579 = vunpack.c.l.b16 %v3537
      %v3580 = vunpack.c.l.b16 %v3538
      %v3581 = vunpack.c.l.b16 %v3539
      %v3582 = vunpack.c.l.b16 %v3540
      %v3583 = vunpack.c.l.b16 %v3541
      %v3584 = vunpack.c.l.b16 %v3542
      %v3585 = vunpack.c.l.b16 %v3543
      %v3586 = vunpack.c.l.b16 %v3544
      %v3587 = vunpack.c.l.b16 %v3545
      %v3588 = vunpack.c.l.b16 %v3546
      %v3589 = vunpack.c.l.b16 %v3547
      %v3590 = vunpack.c.l.b16 %v3548
      %v3591 = vunpack.c.l.b16 %v3549
      %v3592 = vunpack.c.l.b16 %v3550
      %v3593 = vpack.c.b16 %v3574, %v3573
      %v3594 = vpack.c.b16 %v3576, %v3575
      %v3595 = vpack.c.b16 %v3578, %v3577
      %v3596 = vpack.c.b16 %v3580, %v3579
      %v3597 = vpack.c.b16 %v3582, %v3581
      %v3598 = vpack.c.b16 %v3584, %v3583
      %v3599 = vpack.c.b16 %v3586, %v3585
      %v3600 = vpack.c.b16 %v3588, %v3587
      %v3601 = vpack.c.b16 %v3590, %v3589
      %v3602 = vpack.c.b16 %v3592, %v3591
      %v3604 = vsel %vm804, %v3593, 0
      %v3607 = vsel %vm804, %v3594, 0
      %v3610 = vsel %vm804, %v3595, 0
      %v3613 = vsel %vm804, %v3596, 0
      %v3616 = vsel %vm804, %v3597, 0
      %v3619 = vsel %vm804, %v3598, 0
      %v3622 = vsel %vm804, %v3599, 0
      %v3625 = vsel %vm804, %v3600, 0
      %v3628 = vsel %vm804, %v3601, 0
      %v3631 = vsel %vm804, %v3602, 0
      %v3634 = vsel %vm835, %v3552, 0
      %3636 = vmatprep.subr.bf16.mxu0 0
      %3637 = vmatpush1.bf16.msra.mxu0 0
      %3638 = vmatprep.subr.bf16.mxu0 0
      %3639 = vmatpush1.bf16.msra.mxu0 0
      %3640 = vmatprep.subr.bf16.mxu0 0
      %3641 = vmatpush1.bf16.msra.mxu0 0
      %3642 = vmatprep.subr.bf16.mxu0 0
      %3643 = vmatpush1.bf16.msra.mxu0 0
      %3644 = vmatprep.subr.bf16.mxu0 0
      %3645 = vmatpush1.bf16.msra.mxu0 0
      %3646 = vmatprep.subr.bf16.mxu0 0
      %3647 = vmatpush1.bf16.msra.mxu0 0
      %3648 = vmatprep.subr.bf16.mxu0 0
      %3649 = vmatpush1.bf16.msra.mxu0 0
      %3650 = vmatprep.subr.bf16.mxu0 0
      %3651 = vmatpush1.bf16.msra.mxu0 %v3634
      %3652 = vmatprep.subr.bf16.mxu0 0
      %3653 = vmatpush2.bf16.msra.mxu0 0
      %3654 = vmatprep.subr.bf16.mxu0 0
      %3655 = vmatpush2.bf16.msra.mxu0 0
      %3656 = vmatprep.subr.bf16.mxu0 0
      %3657 = vmatpush2.bf16.msra.mxu0 0
      %3658 = vmatprep.subr.bf16.mxu0 0
      %3659 = vmatpush2.bf16.msra.mxu0 0
      %3660 = vmatprep.subr.bf16.mxu0 0
      %3661 = vmatpush2.bf16.msra.mxu0 0
      %3662 = vmatprep.subr.bf16.mxu0 0
      %3663 = vmatpush2.bf16.msra.mxu0 0
      %3664 = vmatprep.subr.bf16.mxu0 0
      %3665 = vmatpush2.bf16.msra.mxu0 0
      %3666 = vmatprep.subr.bf16.mxu0 0
      %3667 = vmatpush2.bf16.msra.mxu0 0
      %3668 = vmatprep.mubr.bf16.mxu0 0
      %3669 = vmatmul.mubr.bf16.gmra.mxu0 %v3604
      %v3670 = vpop.f32.mrf.mxu0
      %v3671 = vadd.f32 0.0, %v3670
      %v3672 = vpop.f32.mrf.mxu0
      %v3673 = vpop.f32.mrf.mxu0
      %v3674 = vadd.f32 0.0, %v3673
      %v3675 = vpop.f32.mrf.mxu0
      %3676 = vmatprep.mubr.bf16.mxu0 0
      %3677 = vmatmul.mubr.bf16.gmra.mxu0 %v3607
      %v3678 = vpop.f32.mrf.mxu0
      %v3679 = vadd.f32 0.0, %v3678
      %v3680 = vpop.f32.mrf.mxu0
      %v3681 = vpop.f32.mrf.mxu0
      %v3682 = vadd.f32 0.0, %v3681
      %v3683 = vpop.f32.mrf.mxu0
      %3684 = vmatprep.mubr.bf16.mxu0 0
      %3685 = vmatmul.mubr.bf16.gmra.mxu0 %v3610
      %v3686 = vpop.f32.mrf.mxu0
      %v3687 = vadd.f32 0.0, %v3686
      %v3688 = vpop.f32.mrf.mxu0
      %v3689 = vpop.f32.mrf.mxu0
      %v3690 = vadd.f32 0.0, %v3689
      %v3691 = vpop.f32.mrf.mxu0
      %3692 = vmatprep.mubr.bf16.mxu0 0
      %3693 = vmatmul.mubr.bf16.gmra.mxu0 %v3613
      %v3694 = vpop.f32.mrf.mxu0
      %v3695 = vadd.f32 0.0, %v3694
      %v3696 = vpop.f32.mrf.mxu0
      %v3697 = vpop.f32.mrf.mxu0
      %v3698 = vadd.f32 0.0, %v3697
      %v3699 = vpop.f32.mrf.mxu0
      %3700 = vmatprep.mubr.bf16.mxu0 0
      %3701 = vmatmul.mubr.bf16.gmra.mxu0 %v3616
      %v3702 = vpop.f32.mrf.mxu0
      %v3703 = vadd.f32 0.0, %v3702
      %v3704 = vpop.f32.mrf.mxu0
      %v3705 = vpop.f32.mrf.mxu0
      %v3706 = vadd.f32 0.0, %v3705
      %v3707 = vpop.f32.mrf.mxu0
      %3708 = vmatprep.mubr.bf16.mxu0 0
      %3709 = vmatmul.mubr.bf16.gmra.mxu0 %v3619
      %v3710 = vpop.f32.mrf.mxu0
      %v3711 = vadd.f32 0.0, %v3710
      %v3712 = vpop.f32.mrf.mxu0
      %v3713 = vpop.f32.mrf.mxu0
      %v3714 = vadd.f32 0.0, %v3713
      %v3715 = vpop.f32.mrf.mxu0
      %3716 = vmatprep.mubr.bf16.mxu0 0
      %3717 = vmatmul.mubr.bf16.gmra.mxu0 %v3622
      %v3718 = vpop.f32.mrf.mxu0
      %v3719 = vadd.f32 0.0, %v3718
      %v3720 = vpop.f32.mrf.mxu0
      %v3721 = vpop.f32.mrf.mxu0
      %v3722 = vadd.f32 0.0, %v3721
      %v3723 = vpop.f32.mrf.mxu0
      %3724 = vmatprep.mubr.bf16.mxu0 0
      %3725 = vmatmul.mubr.bf16.gmra.mxu0 %v3625
      %v3726 = vpop.f32.mrf.mxu0
      %v3727 = vadd.f32 0.0, %v3726
      %v3728 = vpop.f32.mrf.mxu0
      %v3729 = vpop.f32.mrf.mxu0
      %v3730 = vadd.f32 0.0, %v3729
      %v3731 = vpop.f32.mrf.mxu0
      %3732 = vmatprep.mubr.bf16.mxu0 0
      %3733 = vmatmul.mubr.bf16.gmra.mxu0 %v3628
      %v3734 = vpop.f32.mrf.mxu0
      %v3735 = vadd.f32 0.0, %v3734
      %v3736 = vpop.f32.mrf.mxu0
      %v3737 = vpop.f32.mrf.mxu0
      %v3738 = vadd.f32 0.0, %v3737
      %v3739 = vpop.f32.mrf.mxu0
      %3740 = vmatprep.mubr.bf16.mxu0 0
      %3741 = vmatmul.mubr.bf16.gmra.mxu0 %v3631
      %v3742 = vpop.f32.mrf.mxu0
      %v3743 = vadd.f32 0.0, %v3742
      %v3744 = vpop.f32.mrf.mxu0
      %v3745 = vpop.f32.mrf.mxu0
      %v3746 = vadd.f32 0.0, %v3745
      %v3747 = vpop.f32.mrf.mxu0
      %3748 = vdwg.mxu0
      %v3749 = vld [vmem:[#allocation4] sm:$0xff]
      %v3750 = vld [vmem:[#allocation4 + $0x8] sm:$0xff]
      %v3751 = vld [vmem:[#allocation4 + $0x10] sm:$0xff]
      %v3752 = vld [vmem:[#allocation4 + $0x18] sm:$0xff]
      %v3753 = vld [vmem:[#allocation4 + $0x20] sm:$0xff]
      %v3754 = vld [vmem:[#allocation4 + $0x28] sm:$0xff]
      %v3755 = vld [vmem:[#allocation4 + $0x30] sm:$0xff]
      %v3756 = vld [vmem:[#allocation4 + $0x38] sm:$0xff]
      %v3757 = vld [vmem:[#allocation4 + $0x40] sm:$0xff]
      %v3758 = vld [vmem:[#allocation4 + $0x48] sm:$0xff]
      %v3759 = vld [vmem:[#allocation4 + $0x50] sm:$0xff]
      %v3760 = vld [vmem:[#allocation4 + $0x58] sm:$0xff]
      %v3761 = vld [vmem:[#allocation4 + $0x60] sm:$0xff]
      %v3762 = vld [vmem:[#allocation4 + $0x68] sm:$0xff]
      %v3763 = vld [vmem:[#allocation4 + $0x70] sm:$0xff]
      %v3764 = vld [vmem:[#allocation4 + $0x78] sm:$0xff]
      %v3765 = vld [vmem:[#allocation4 + $0x80] sm:$0xff]
      %v3766 = vld [vmem:[#allocation4 + $0x88] sm:$0xff]
      %v3767 = vld [vmem:[#allocation4 + $0x90] sm:$0xff]
      %v3768 = vld [vmem:[#allocation4 + $0x98] sm:$0xff]
      %v3769 = vadd.f32 %v3749, %v3671
      %v3770 = vadd.f32 %v3750, %v3674
      %v3771 = vadd.f32 %v3751, %v3679
      %v3772 = vadd.f32 %v3752, %v3682
      %v3773 = vadd.f32 %v3753, %v3687
      %v3774 = vadd.f32 %v3754, %v3690
      %v3775 = vadd.f32 %v3755, %v3695
      %v3776 = vadd.f32 %v3756, %v3698
      %v3777 = vadd.f32 %v3757, %v3703
      %v3778 = vadd.f32 %v3758, %v3706
      %v3779 = vadd.f32 %v3759, %v3711
      %v3780 = vadd.f32 %v3760, %v3714
      %v3781 = vadd.f32 %v3761, %v3719
      %v3782 = vadd.f32 %v3762, %v3722
      %v3783 = vadd.f32 %v3763, %v3727
      %v3784 = vadd.f32 %v3764, %v3730
      %v3785 = vadd.f32 %v3765, %v3735
      %v3786 = vadd.f32 %v3766, %v3738
      %v3787 = vadd.f32 %v3767, %v3743
      %v3788 = vadd.f32 %v3768, %v3746
      %3789 = vst.msk [vmem:[#allocation4] sm:$0xff] %vm804, %v3769
      %3790 = vst.msk [vmem:[#allocation4 + $0x8] sm:$0xff] %vm804, %v3770
      %3791 = vst.msk [vmem:[#allocation4 + $0x10] sm:$0xff] %vm804, %v3771
      %3792 = vst.msk [vmem:[#allocation4 + $0x18] sm:$0xff] %vm804, %v3772
      %3793 = vst.msk [vmem:[#allocation4 + $0x20] sm:$0xff] %vm804, %v3773
      %3794 = vst.msk [vmem:[#allocation4 + $0x28] sm:$0xff] %vm804, %v3774
      %3795 = vst.msk [vmem:[#allocation4 + $0x30] sm:$0xff] %vm804, %v3775
      %3796 = vst.msk [vmem:[#allocation4 + $0x38] sm:$0xff] %vm804, %v3776
      %3797 = vst.msk [vmem:[#allocation4 + $0x40] sm:$0xff] %vm804, %v3777
      %3798 = vst.msk [vmem:[#allocation4 + $0x48] sm:$0xff] %vm804, %v3778
      %3799 = vst.msk [vmem:[#allocation4 + $0x50] sm:$0xff] %vm804, %v3779
      %3800 = vst.msk [vmem:[#allocation4 + $0x58] sm:$0xff] %vm804, %v3780
      %3801 = vst.msk [vmem:[#allocation4 + $0x60] sm:$0xff] %vm804, %v3781
      %3802 = vst.msk [vmem:[#allocation4 + $0x68] sm:$0xff] %vm804, %v3782
      %3803 = vst.msk [vmem:[#allocation4 + $0x70] sm:$0xff] %vm804, %v3783
      %3804 = vst.msk [vmem:[#allocation4 + $0x78] sm:$0xff] %vm804, %v3784
      %3805 = vst.msk [vmem:[#allocation4 + $0x80] sm:$0xff] %vm804, %v3785
      %3806 = vst.msk [vmem:[#allocation4 + $0x88] sm:$0xff] %vm804, %v3786
      %3807 = vst.msk [vmem:[#allocation4 + $0x90] sm:$0xff] %vm804, %v3787
      %3808 = vst.msk [vmem:[#allocation4 + $0x98] sm:$0xff] %vm804, %v3788
      %v3809 = vld [vmem:[%s3042 + $0x4] sm:$0xf]
      %v3810 = vld [vmem:[%s3042 + $0x8] sm:$0xf]
      %v3811 = vld [vmem:[%s3042 + $0xc] sm:$0x1]
      %v3812 = vld [vmem:[%s3042 + $0x14] sm:$0xf]
      %v3813 = vld [vmem:[%s3042 + $0x18] sm:$0xf]
      %v3814 = vld [vmem:[%s3042 + $0x1c] sm:$0x1]
      %v3815 = vld [vmem:[%s3042 + $0x24] sm:$0xf]
      %v3816 = vld [vmem:[%s3042 + $0x28] sm:$0xf]
      %v3817 = vld [vmem:[%s3042 + $0x2c] sm:$0x1]
      %v3818 = vld [vmem:[%s3042 + $0x34] sm:$0xf]
      %v3819 = vld [vmem:[%s3042 + $0x38] sm:$0xf]
      %v3820 = vld [vmem:[%s3042 + $0x3c] sm:$0x1]
      %v3821 = vld [vmem:[%s3042 + $0x44] sm:$0xf]
      %v3822 = vld [vmem:[%s3042 + $0x48] sm:$0xf]
      %v3823 = vld [vmem:[%s3042 + $0x4c] sm:$0x1]
      %v3824 = vld [vmem:[%s3042 + $0x54] sm:$0xf]
      %v3825 = vld [vmem:[%s3042 + $0x58] sm:$0xf]
      %v3826 = vld [vmem:[%s3042 + $0x5c] sm:$0x1]
      %v3827 = vld [vmem:[%s3042 + $0x64] sm:$0xf]
      %v3828 = vld [vmem:[%s3042 + $0x68] sm:$0xf]
      %v3829 = vld [vmem:[%s3042 + $0x6c] sm:$0x1]
      %v3830 = vld [vmem:[%s3042 + $0x74] sm:$0xf]
      %v3831 = vld [vmem:[%s3042 + $0x78] sm:$0xf]
      %v3832 = vld [vmem:[%s3042 + $0x7c] sm:$0x1]
      %v3833 = vld [vmem:[%s3042 + $0x84] sm:$0xf]
      %v3834 = vld [vmem:[%s3042 + $0x88] sm:$0xf]
      %v3835 = vld [vmem:[%s3042 + $0x8c] sm:$0x1]
      %v3836 = vld [vmem:[%s3042 + $0x94] sm:$0xf]
      %v3837 = vld [vmem:[%s3042 + $0x98] sm:$0xf]
      %v3838 = vld [vmem:[%s3042 + $0x9c] sm:$0x1]
      %v3840 = vshrl.u32 %v3809, 16
      %v3842 = vrot.slane %v3840, 4
      %v3843 = vshll.u32 %v3809, 16
      %v3845 = vrot.slane %v3843, 5
      %v3846 = vor.u32 %v3842, %v3845
      %v3847 = vrot.slane %v3846, 4
      %v3849 = vshll.u32 %v3810, 16
      %v3851 = vrot.slane %v3849, 5
      %v3852 = vsel %vm1282, %v3847, %v3851
      %v3853 = vshrl.u32 %v3810, 16
      %v3855 = vrot.slane %v3853, 4
      %v3856 = vor.u32 %v3855, %v3851
      %v3857 = vrot.slane %v3856, 4
      %v3859 = vshll.u32 %v3811, 16
      %v3861 = vrot.slane %v3859, 5
      %v3862 = vsel %vm1282, %v3857, %v3861
      %v3864 = vshrl.u32 %v3812, 16
      %v3866 = vrot.slane %v3864, 4
      %v3867 = vshll.u32 %v3812, 16
      %v3869 = vrot.slane %v3867, 5
      %v3870 = vor.u32 %v3866, %v3869
      %v3871 = vrot.slane %v3870, 4
      %v3873 = vshll.u32 %v3813, 16
      %v3875 = vrot.slane %v3873, 5
      %v3876 = vsel %vm1282, %v3871, %v3875
      %v3877 = vshrl.u32 %v3813, 16
      %v3879 = vrot.slane %v3877, 4
      %v3880 = vor.u32 %v3879, %v3875
      %v3881 = vrot.slane %v3880, 4
      %v3883 = vshll.u32 %v3814, 16
      %v3885 = vrot.slane %v3883, 5
      %v3886 = vsel %vm1282, %v3881, %v3885
      %v3888 = vshrl.u32 %v3815, 16
      %v3890 = vrot.slane %v3888, 4
      %v3891 = vshll.u32 %v3815, 16
      %v3893 = vrot.slane %v3891, 5
      %v3894 = vor.u32 %v3890, %v3893
      %v3895 = vrot.slane %v3894, 4
      %v3897 = vshll.u32 %v3816, 16
      %v3899 = vrot.slane %v3897, 5
      %v3900 = vsel %vm1282, %v3895, %v3899
      %v3901 = vshrl.u32 %v3816, 16
      %v3903 = vrot.slane %v3901, 4
      %v3904 = vor.u32 %v3903, %v3899
      %v3905 = vrot.slane %v3904, 4
      %v3907 = vshll.u32 %v3817, 16
      %v3909 = vrot.slane %v3907, 5
      %v3910 = vsel %vm1282, %v3905, %v3909
      %v3912 = vshrl.u32 %v3818, 16
      %v3914 = vrot.slane %v3912, 4
      %v3915 = vshll.u32 %v3818, 16
      %v3917 = vrot.slane %v3915, 5
      %v3918 = vor.u32 %v3914, %v3917
      %v3919 = vrot.slane %v3918, 4
      %v3921 = vshll.u32 %v3819, 16
      %v3923 = vrot.slane %v3921, 5
      %v3924 = vsel %vm1282, %v3919, %v3923
      %v3925 = vshrl.u32 %v3819, 16
      %v3927 = vrot.slane %v3925, 4
      %v3928 = vor.u32 %v3927, %v3923
      %v3929 = vrot.slane %v3928, 4
      %v3931 = vshll.u32 %v3820, 16
      %v3933 = vrot.slane %v3931, 5
      %v3934 = vsel %vm1282, %v3929, %v3933
      %v3936 = vshrl.u32 %v3821, 16
      %v3938 = vrot.slane %v3936, 4
      %v3939 = vshll.u32 %v3821, 16
      %v3941 = vrot.slane %v3939, 5
      %v3942 = vor.u32 %v3938, %v3941
      %v3943 = vrot.slane %v3942, 4
      %v3945 = vshll.u32 %v3822, 16
      %v3947 = vrot.slane %v3945, 5
      %v3948 = vsel %vm1282, %v3943, %v3947
      %v3949 = vshrl.u32 %v3822, 16
      %v3951 = vrot.slane %v3949, 4
      %v3952 = vor.u32 %v3951, %v3947
      %v3953 = vrot.slane %v3952, 4
      %v3955 = vshll.u32 %v3823, 16
      %v3957 = vrot.slane %v3955, 5
      %v3958 = vsel %vm1282, %v3953, %v3957
      %v3960 = vshrl.u32 %v3824, 16
      %v3962 = vrot.slane %v3960, 4
      %v3963 = vshll.u32 %v3824, 16
      %v3965 = vrot.slane %v3963, 5
      %v3966 = vor.u32 %v3962, %v3965
      %v3967 = vrot.slane %v3966, 4
      %v3969 = vshll.u32 %v3825, 16
      %v3971 = vrot.slane %v3969, 5
      %v3972 = vsel %vm1282, %v3967, %v3971
      %v3973 = vshrl.u32 %v3825, 16
      %v3975 = vrot.slane %v3973, 4
      %v3976 = vor.u32 %v3975, %v3971
      %v3977 = vrot.slane %v3976, 4
      %v3979 = vshll.u32 %v3826, 16
      %v3981 = vrot.slane %v3979, 5
      %v3982 = vsel %vm1282, %v3977, %v3981
      %v3984 = vshrl.u32 %v3827, 16
      %v3986 = vrot.slane %v3984, 4
      %v3987 = vshll.u32 %v3827, 16
      %v3989 = vrot.slane %v3987, 5
      %v3990 = vor.u32 %v3986, %v3989
      %v3991 = vrot.slane %v3990, 4
      %v3993 = vshll.u32 %v3828, 16
      %v3995 = vrot.slane %v3993, 5
      %v3996 = vsel %vm1282, %v3991, %v3995
      %v3997 = vshrl.u32 %v3828, 16
      %v3999 = vrot.slane %v3997, 4
      %v4000 = vor.u32 %v3999, %v3995
      %v4001 = vrot.slane %v4000, 4
      %v4003 = vshll.u32 %v3829, 16
      %v4005 = vrot.slane %v4003, 5
      %v4006 = vsel %vm1282, %v4001, %v4005
      %v4008 = vshrl.u32 %v3830, 16
      %v4010 = vrot.slane %v4008, 4
      %v4011 = vshll.u32 %v3830, 16
      %v4013 = vrot.slane %v4011, 5
      %v4014 = vor.u32 %v4010, %v4013
      %v4015 = vrot.slane %v4014, 4
      %v4017 = vshll.u32 %v3831, 16
      %v4019 = vrot.slane %v4017, 5
      %v4020 = vsel %vm1282, %v4015, %v4019
      %v4021 = vshrl.u32 %v3831, 16
      %v4023 = vrot.slane %v4021, 4
      %v4024 = vor.u32 %v4023, %v4019
      %v4025 = vrot.slane %v4024, 4
      %v4027 = vshll.u32 %v3832, 16
      %v4029 = vrot.slane %v4027, 5
      %v4030 = vsel %vm1282, %v4025, %v4029
      %v4032 = vshrl.u32 %v3833, 16
      %v4034 = vrot.slane %v4032, 4
      %v4035 = vshll.u32 %v3833, 16
      %v4037 = vrot.slane %v4035, 5
      %v4038 = vor.u32 %v4034, %v4037
      %v4039 = vrot.slane %v4038, 4
      %v4041 = vshll.u32 %v3834, 16
      %v4043 = vrot.slane %v4041, 5
      %v4044 = vsel %vm1282, %v4039, %v4043
      %v4045 = vshrl.u32 %v3834, 16
      %v4047 = vrot.slane %v4045, 4
      %v4048 = vor.u32 %v4047, %v4043
      %v4049 = vrot.slane %v4048, 4
      %v4051 = vshll.u32 %v3835, 16
      %v4053 = vrot.slane %v4051, 5
      %v4054 = vsel %vm1282, %v4049, %v4053
      %v4056 = vshrl.u32 %v3836, 16
      %v4058 = vrot.slane %v4056, 4
      %v4059 = vshll.u32 %v3836, 16
      %v4061 = vrot.slane %v4059, 5
      %v4062 = vor.u32 %v4058, %v4061
      %v4063 = vrot.slane %v4062, 4
      %v4065 = vshll.u32 %v3837, 16
      %v4067 = vrot.slane %v4065, 5
      %v4068 = vsel %vm1282, %v4063, %v4067
      %v4069 = vshrl.u32 %v3837, 16
      %v4071 = vrot.slane %v4069, 4
      %v4072 = vor.u32 %v4071, %v4067
      %v4073 = vrot.slane %v4072, 4
      %v4075 = vshll.u32 %v3838, 16
      %v4077 = vrot.slane %v4075, 5
      %v4078 = vsel %vm1282, %v4073, %v4077
      %s4079 = scalar_lea.vmem %s1, 16
      %v4080 = vld [vmem:[%s4079] sm:$0x3]
      %v4081 = vunpack.c.l.b16 %v3852
      %v4082 = vunpack.c.l.b16 %v3862
      %v4083 = vunpack.c.l.b16 %v3876
      %v4084 = vunpack.c.l.b16 %v3886
      %v4085 = vunpack.c.l.b16 %v3900
      %v4086 = vunpack.c.l.b16 %v3910
      %v4087 = vunpack.c.l.b16 %v3924
      %v4088 = vunpack.c.l.b16 %v3934
      %v4089 = vunpack.c.l.b16 %v3948
      %v4090 = vunpack.c.l.b16 %v3958
      %v4091 = vunpack.c.l.b16 %v3972
      %v4092 = vunpack.c.l.b16 %v3982
      %v4093 = vunpack.c.l.b16 %v3996
      %v4094 = vunpack.c.l.b16 %v4006
      %v4095 = vunpack.c.l.b16 %v4020
      %v4096 = vunpack.c.l.b16 %v4030
      %v4097 = vunpack.c.l.b16 %v4044
      %v4098 = vunpack.c.l.b16 %v4054
      %v4099 = vunpack.c.l.b16 %v4068
      %v4100 = vunpack.c.l.b16 %v4078
      %v4101 = vpack.c.b16 %v4082, %v4081
      %v4102 = vpack.c.b16 %v4084, %v4083
      %v4103 = vpack.c.b16 %v4086, %v4085
      %v4104 = vpack.c.b16 %v4088, %v4087
      %v4105 = vpack.c.b16 %v4090, %v4089
      %v4106 = vpack.c.b16 %v4092, %v4091
      %v4107 = vpack.c.b16 %v4094, %v4093
      %v4108 = vpack.c.b16 %v4096, %v4095
      %v4109 = vpack.c.b16 %v4098, %v4097
      %v4110 = vpack.c.b16 %v4100, %v4099
      %v4112 = vsel %vm804, %v4101, 0
      %v4115 = vsel %vm804, %v4102, 0
      %v4118 = vsel %vm804, %v4103, 0
      %v4121 = vsel %vm804, %v4104, 0
      %v4124 = vsel %vm804, %v4105, 0
      %v4127 = vsel %vm804, %v4106, 0
      %v4130 = vsel %vm804, %v4107, 0
      %v4133 = vsel %vm804, %v4108, 0
      %v4136 = vsel %vm804, %v4109, 0
      %v4139 = vsel %vm804, %v4110, 0
      %v4142 = vsel %vm835, %v4080, 0
      %4144 = vmatprep.subr.bf16.mxu0 0
      %4145 = vmatpush1.bf16.msra.mxu0 0
      %4146 = vmatprep.subr.bf16.mxu0 0
      %4147 = vmatpush1.bf16.msra.mxu0 0
      %4148 = vmatprep.subr.bf16.mxu0 0
      %4149 = vmatpush1.bf16.msra.mxu0 0
      %4150 = vmatprep.subr.bf16.mxu0 0
      %4151 = vmatpush1.bf16.msra.mxu0 0
      %4152 = vmatprep.subr.bf16.mxu0 0
      %4153 = vmatpush1.bf16.msra.mxu0 0
      %4154 = vmatprep.subr.bf16.mxu0 0
      %4155 = vmatpush1.bf16.msra.mxu0 0
      %4156 = vmatprep.subr.bf16.mxu0 0
      %4157 = vmatpush1.bf16.msra.mxu0 0
      %4158 = vmatprep.subr.bf16.mxu0 0
      %4159 = vmatpush1.bf16.msra.mxu0 %v4142
      %4160 = vmatprep.subr.bf16.mxu0 0
      %4161 = vmatpush2.bf16.msra.mxu0 0
      %4162 = vmatprep.subr.bf16.mxu0 0
      %4163 = vmatpush2.bf16.msra.mxu0 0
      %4164 = vmatprep.subr.bf16.mxu0 0
      %4165 = vmatpush2.bf16.msra.mxu0 0
      %4166 = vmatprep.subr.bf16.mxu0 0
      %4167 = vmatpush2.bf16.msra.mxu0 0
      %4168 = vmatprep.subr.bf16.mxu0 0
      %4169 = vmatpush2.bf16.msra.mxu0 0
      %4170 = vmatprep.subr.bf16.mxu0 0
      %4171 = vmatpush2.bf16.msra.mxu0 0
      %4172 = vmatprep.subr.bf16.mxu0 0
      %4173 = vmatpush2.bf16.msra.mxu0 0
      %4174 = vmatprep.subr.bf16.mxu0 0
      %4175 = vmatpush2.bf16.msra.mxu0 0
      %4176 = vmatprep.mubr.bf16.mxu0 0
      %4177 = vmatmul.mubr.bf16.gmra.mxu0 %v4112
      %v4178 = vpop.f32.mrf.mxu0
      %v4179 = vadd.f32 0.0, %v4178
      %v4180 = vpop.f32.mrf.mxu0
      %v4181 = vpop.f32.mrf.mxu0
      %v4182 = vadd.f32 0.0, %v4181
      %v4183 = vpop.f32.mrf.mxu0
      %4184 = vmatprep.mubr.bf16.mxu0 0
      %4185 = vmatmul.mubr.bf16.gmra.mxu0 %v4115
      %v4186 = vpop.f32.mrf.mxu0
      %v4187 = vadd.f32 0.0, %v4186
      %v4188 = vpop.f32.mrf.mxu0
      %v4189 = vpop.f32.mrf.mxu0
      %v4190 = vadd.f32 0.0, %v4189
      %v4191 = vpop.f32.mrf.mxu0
      %4192 = vmatprep.mubr.bf16.mxu0 0
      %4193 = vmatmul.mubr.bf16.gmra.mxu0 %v4118
      %v4194 = vpop.f32.mrf.mxu0
      %v4195 = vadd.f32 0.0, %v4194
      %v4196 = vpop.f32.mrf.mxu0
      %v4197 = vpop.f32.mrf.mxu0
      %v4198 = vadd.f32 0.0, %v4197
      %v4199 = vpop.f32.mrf.mxu0
      %4200 = vmatprep.mubr.bf16.mxu0 0
      %4201 = vmatmul.mubr.bf16.gmra.mxu0 %v4121
      %v4202 = vpop.f32.mrf.mxu0
      %v4203 = vadd.f32 0.0, %v4202
      %v4204 = vpop.f32.mrf.mxu0
      %v4205 = vpop.f32.mrf.mxu0
      %v4206 = vadd.f32 0.0, %v4205
      %v4207 = vpop.f32.mrf.mxu0
      %4208 = vmatprep.mubr.bf16.mxu0 0
      %4209 = vmatmul.mubr.bf16.gmra.mxu0 %v4124
      %v4210 = vpop.f32.mrf.mxu0
      %v4211 = vadd.f32 0.0, %v4210
      %v4212 = vpop.f32.mrf.mxu0
      %v4213 = vpop.f32.mrf.mxu0
      %v4214 = vadd.f32 0.0, %v4213
      %v4215 = vpop.f32.mrf.mxu0
      %4216 = vmatprep.mubr.bf16.mxu0 0
      %4217 = vmatmul.mubr.bf16.gmra.mxu0 %v4127
      %v4218 = vpop.f32.mrf.mxu0
      %v4219 = vadd.f32 0.0, %v4218
      %v4220 = vpop.f32.mrf.mxu0
      %v4221 = vpop.f32.mrf.mxu0
      %v4222 = vadd.f32 0.0, %v4221
      %v4223 = vpop.f32.mrf.mxu0
      %4224 = vmatprep.mubr.bf16.mxu0 0
      %4225 = vmatmul.mubr.bf16.gmra.mxu0 %v4130
      %v4226 = vpop.f32.mrf.mxu0
      %v4227 = vadd.f32 0.0, %v4226
      %v4228 = vpop.f32.mrf.mxu0
      %v4229 = vpop.f32.mrf.mxu0
      %v4230 = vadd.f32 0.0, %v4229
      %v4231 = vpop.f32.mrf.mxu0
      %4232 = vmatprep.mubr.bf16.mxu0 0
      %4233 = vmatmul.mubr.bf16.gmra.mxu0 %v4133
      %v4234 = vpop.f32.mrf.mxu0
      %v4235 = vadd.f32 0.0, %v4234
      %v4236 = vpop.f32.mrf.mxu0
      %v4237 = vpop.f32.mrf.mxu0
      %v4238 = vadd.f32 0.0, %v4237
      %v4239 = vpop.f32.mrf.mxu0
      %4240 = vmatprep.mubr.bf16.mxu0 0
      %4241 = vmatmul.mubr.bf16.gmra.mxu0 %v4136
      %v4242 = vpop.f32.mrf.mxu0
      %v4243 = vadd.f32 0.0, %v4242
      %v4244 = vpop.f32.mrf.mxu0
      %v4245 = vpop.f32.mrf.mxu0
      %v4246 = vadd.f32 0.0, %v4245
      %v4247 = vpop.f32.mrf.mxu0
      %4248 = vmatprep.mubr.bf16.mxu0 0
      %4249 = vmatmul.mubr.bf16.gmra.mxu0 %v4139
      %v4250 = vpop.f32.mrf.mxu0
      %v4251 = vadd.f32 0.0, %v4250
      %v4252 = vpop.f32.mrf.mxu0
      %v4253 = vpop.f32.mrf.mxu0
      %v4254 = vadd.f32 0.0, %v4253
      %v4255 = vpop.f32.mrf.mxu0
      %4256 = vdwg.mxu0
      %v4257 = vld [vmem:[#allocation4] sm:$0xff]
      %v4258 = vld [vmem:[#allocation4 + $0x8] sm:$0xff]
      %v4259 = vld [vmem:[#allocation4 + $0x10] sm:$0xff]
      %v4260 = vld [vmem:[#allocation4 + $0x18] sm:$0xff]
      %v4261 = vld [vmem:[#allocation4 + $0x20] sm:$0xff]
      %v4262 = vld [vmem:[#allocation4 + $0x28] sm:$0xff]
      %v4263 = vld [vmem:[#allocation4 + $0x30] sm:$0xff]
      %v4264 = vld [vmem:[#allocation4 + $0x38] sm:$0xff]
      %v4265 = vld [vmem:[#allocation4 + $0x40] sm:$0xff]
      %v4266 = vld [vmem:[#allocation4 + $0x48] sm:$0xff]
      %v4267 = vld [vmem:[#allocation4 + $0x50] sm:$0xff]
      %v4268 = vld [vmem:[#allocation4 + $0x58] sm:$0xff]
      %v4269 = vld [vmem:[#allocation4 + $0x60] sm:$0xff]
      %v4270 = vld [vmem:[#allocation4 + $0x68] sm:$0xff]
      %v4271 = vld [vmem:[#allocation4 + $0x70] sm:$0xff]
      %v4272 = vld [vmem:[#allocation4 + $0x78] sm:$0xff]
      %v4273 = vld [vmem:[#allocation4 + $0x80] sm:$0xff]
      %v4274 = vld [vmem:[#allocation4 + $0x88] sm:$0xff]
      %v4275 = vld [vmem:[#allocation4 + $0x90] sm:$0xff]
      %v4276 = vld [vmem:[#allocation4 + $0x98] sm:$0xff]
      %v4277 = vadd.f32 %v4257, %v4179
      %v4278 = vadd.f32 %v4258, %v4182
      %v4279 = vadd.f32 %v4259, %v4187
      %v4280 = vadd.f32 %v4260, %v4190
      %v4281 = vadd.f32 %v4261, %v4195
      %v4282 = vadd.f32 %v4262, %v4198
      %v4283 = vadd.f32 %v4263, %v4203
      %v4284 = vadd.f32 %v4264, %v4206
      %v4285 = vadd.f32 %v4265, %v4211
      %v4286 = vadd.f32 %v4266, %v4214
      %v4287 = vadd.f32 %v4267, %v4219
      %v4288 = vadd.f32 %v4268, %v4222
      %v4289 = vadd.f32 %v4269, %v4227
      %v4290 = vadd.f32 %v4270, %v4230
      %v4291 = vadd.f32 %v4271, %v4235
      %v4292 = vadd.f32 %v4272, %v4238
      %v4293 = vadd.f32 %v4273, %v4243
      %v4294 = vadd.f32 %v4274, %v4246
      %v4295 = vadd.f32 %v4275, %v4251
      %v4296 = vadd.f32 %v4276, %v4254
      %4297 = vst.msk [vmem:[#allocation4] sm:$0xff] %vm804, %v4277
      %4298 = vst.msk [vmem:[#allocation4 + $0x8] sm:$0xff] %vm804, %v4278
      %4299 = vst.msk [vmem:[#allocation4 + $0x10] sm:$0xff] %vm804, %v4279
      %4300 = vst.msk [vmem:[#allocation4 + $0x18] sm:$0xff] %vm804, %v4280
      %4301 = vst.msk [vmem:[#allocation4 + $0x20] sm:$0xff] %vm804, %v4281
      %4302 = vst.msk [vmem:[#allocation4 + $0x28] sm:$0xff] %vm804, %v4282
      %4303 = vst.msk [vmem:[#allocation4 + $0x30] sm:$0xff] %vm804, %v4283
      %4304 = vst.msk [vmem:[#allocation4 + $0x38] sm:$0xff] %vm804, %v4284
      %4305 = vst.msk [vmem:[#allocation4 + $0x40] sm:$0xff] %vm804, %v4285
      %4306 = vst.msk [vmem:[#allocation4 + $0x48] sm:$0xff] %vm804, %v4286
      %4307 = vst.msk [vmem:[#allocation4 + $0x50] sm:$0xff] %vm804, %v4287
      %4308 = vst.msk [vmem:[#allocation4 + $0x58] sm:$0xff] %vm804, %v4288
      %4309 = vst.msk [vmem:[#allocation4 + $0x60] sm:$0xff] %vm804, %v4289
      %4310 = vst.msk [vmem:[#allocation4 + $0x68] sm:$0xff] %vm804, %v4290
      %4311 = vst.msk [vmem:[#allocation4 + $0x70] sm:$0xff] %vm804, %v4291
      %4312 = vst.msk [vmem:[#allocation4 + $0x78] sm:$0xff] %vm804, %v4292
      %4313 = vst.msk [vmem:[#allocation4 + $0x80] sm:$0xff] %vm804, %v4293
      %4314 = vst.msk [vmem:[#allocation4 + $0x88] sm:$0xff] %vm804, %v4294
      %4315 = vst.msk [vmem:[#allocation4 + $0x90] sm:$0xff] %vm804, %v4295
      %4316 = vst.msk [vmem:[#allocation4 + $0x98] sm:$0xff] %vm804, %v4296
      %v4317 = vld [vmem:[#allocation4] sm:$0xff]
      %v4318 = vld [vmem:[#allocation4 + $0x8] sm:$0xff]
      %v4319 = vld [vmem:[#allocation4 + $0x10] sm:$0xff]
      %v4320 = vld [vmem:[#allocation4 + $0x18] sm:$0xff]
      %v4321 = vld [vmem:[#allocation4 + $0x20] sm:$0xff]
      %v4322 = vld [vmem:[#allocation4 + $0x28] sm:$0xff]
      %v4323 = vld [vmem:[#allocation4 + $0x30] sm:$0xff]
      %v4324 = vld [vmem:[#allocation4 + $0x38] sm:$0xff]
      %v4325 = vld [vmem:[#allocation4 + $0x40] sm:$0xff]
      %v4326 = vld [vmem:[#allocation4 + $0x48] sm:$0xff]
      %v4327 = vld [vmem:[#allocation4 + $0x50] sm:$0xff]
      %v4328 = vld [vmem:[#allocation4 + $0x58] sm:$0xff]
      %v4329 = vld [vmem:[#allocation4 + $0x60] sm:$0xff]
      %v4330 = vld [vmem:[#allocation4 + $0x68] sm:$0xff]
      %v4331 = vld [vmem:[#allocation4 + $0x70] sm:$0xff]
      %v4332 = vld [vmem:[#allocation4 + $0x78] sm:$0xff]
      %v4333 = vld [vmem:[#allocation4 + $0x80] sm:$0xff]
      %v4334 = vld [vmem:[#allocation4 + $0x88] sm:$0xff]
      %v4335 = vld [vmem:[#allocation4 + $0x90] sm:$0xff]
      %v4336 = vld [vmem:[#allocation4 + $0x98] sm:$0xff]
      %v4337 = vld [vmem:[%s3] sm:$0x1]
      %v4339 = vlaneseq
      %v4340 = vshrl.u32 %v4339, 7
      %v4341 = vsub.s32 0, %v4340
      %v4342 = vrot.slane %v4337, %v4341
      %v4344 = vadd.f32 %v4317, %v4342
      %v4345 = vadd.f32 %v4318, %v4342
      %v4346 = vadd.f32 %v4319, %v4342
      %v4347 = vadd.f32 %v4320, %v4342
      %v4348 = vadd.f32 %v4321, %v4342
      %v4349 = vadd.f32 %v4322, %v4342
      %v4350 = vadd.f32 %v4323, %v4342
      %v4351 = vadd.f32 %v4324, %v4342
      %v4352 = vadd.f32 %v4325, %v4342
      %v4353 = vadd.f32 %v4326, %v4342
      %v4354 = vadd.f32 %v4327, %v4342
      %v4355 = vadd.f32 %v4328, %v4342
      %v4356 = vadd.f32 %v4329, %v4342
      %v4357 = vadd.f32 %v4330, %v4342
      %v4358 = vadd.f32 %v4331, %v4342
      %v4359 = vadd.f32 %v4332, %v4342
      %v4360 = vadd.f32 %v4333, %v4342
      %v4361 = vadd.f32 %v4334, %v4342
      %v4362 = vadd.f32 %v4335, %v4342
      %v4363 = vadd.f32 %v4336, %v4342
      %v4364 = vmax.f32 %v4344, 0.0
      %v4365 = vmax.f32 %v4345, 0.0
      %v4366 = vmax.f32 %v4346, 0.0
      %v4367 = vmax.f32 %v4347, 0.0
      %v4368 = vmax.f32 %v4348, 0.0
      %v4369 = vmax.f32 %v4349, 0.0
      %v4370 = vmax.f32 %v4350, 0.0
      %v4371 = vmax.f32 %v4351, 0.0
      %v4372 = vmax.f32 %v4352, 0.0
      %v4373 = vmax.f32 %v4353, 0.0
      %v4374 = vmax.f32 %v4354, 0.0
      %v4375 = vmax.f32 %v4355, 0.0
      %v4376 = vmax.f32 %v4356, 0.0
      %v4377 = vmax.f32 %v4357, 0.0
      %v4378 = vmax.f32 %v4358, 0.0
      %v4379 = vmax.f32 %v4359, 0.0
      %v4380 = vmax.f32 %v4360, 0.0
      %v4381 = vmax.f32 %v4361, 0.0
      %v4382 = vmax.f32 %v4362, 0.0
      %v4383 = vmax.f32 %v4363, 0.0
      %v4384 = vpack.c.bf16 %v4365, %v4364
      %v4385 = vpack.c.bf16 %v4367, %v4366
      %v4386 = vpack.c.bf16 %v4369, %v4368
      %v4387 = vpack.c.bf16 %v4371, %v4370
      %v4388 = vpack.c.bf16 %v4373, %v4372
      %v4389 = vpack.c.bf16 %v4375, %v4374
      %v4390 = vpack.c.bf16 %v4377, %v4376
      %v4391 = vpack.c.bf16 %v4379, %v4378
      %v4392 = vpack.c.bf16 %v4381, %v4380
      %v4393 = vpack.c.bf16 %v4383, %v4382
      %v4404 = vunpack.c.l.b16 %v4384
      %v4405 = vunpack.c.h.b16 %v4384
      %v4406 = vunpack.c.l.b16 %v4385
      %v4407 = vunpack.c.h.b16 %v4385
      %v4408 = vunpack.c.l.b16 %v4386
      %v4409 = vunpack.c.h.b16 %v4386
      %v4410 = vunpack.c.l.b16 %v4387
      %v4411 = vunpack.c.h.b16 %v4387
      %v4412 = vunpack.c.l.b16 %v4388
      %v4413 = vunpack.c.h.b16 %v4388
      %v4414 = vunpack.c.l.b16 %v4389
      %v4415 = vunpack.c.h.b16 %v4389
      %v4416 = vunpack.c.l.b16 %v4390
      %v4417 = vunpack.c.h.b16 %v4390
      %v4418 = vunpack.c.l.b16 %v4391
      %v4419 = vunpack.c.h.b16 %v4391
      %v4420 = vunpack.c.l.b16 %v4392
      %v4421 = vunpack.c.h.b16 %v4392
      %v4422 = vunpack.c.l.b16 %v4393
      %v4423 = vunpack.c.h.b16 %v4393
      %v4424 = vpack.c.b16 %v4404, %v4404
      %v4425 = vpack.c.b16 %v4405, %v4405
      %v4426 = vpack.c.b16 %v4406, %v4406
      %v4427 = vpack.c.b16 %v4407, %v4407
      %v4428 = vpack.c.b16 %v4408, %v4408
      %v4429 = vpack.c.b16 %v4409, %v4409
      %v4430 = vpack.c.b16 %v4410, %v4410
      %v4431 = vpack.c.b16 %v4411, %v4411
      %v4432 = vpack.c.b16 %v4412, %v4412
      %v4433 = vpack.c.b16 %v4413, %v4413
      %v4434 = vpack.c.b16 %v4414, %v4414
      %v4435 = vpack.c.b16 %v4415, %v4415
      %v4436 = vpack.c.b16 %v4416, %v4416
      %v4437 = vpack.c.b16 %v4417, %v4417
      %v4438 = vpack.c.b16 %v4418, %v4418
      %v4439 = vpack.c.b16 %v4419, %v4419
      %v4440 = vpack.c.b16 %v4420, %v4420
      %v4441 = vpack.c.b16 %v4421, %v4421
      %v4442 = vpack.c.b16 %v4422, %v4422
      %v4443 = vpack.c.b16 %v4423, %v4423
      %vm4464 = vcmask 27648
      %4465 = vst.msk [vmem:[#allocation3 + $0x4] sm:$0xf] %vm4464, %v4424
      %4466 = vst.msk [vmem:[#allocation3 + $0x8] sm:$0xf] %vm4464, %v4425
      %4467 = vst.msk [vmem:[#allocation3 + $0x14] sm:$0xf] %vm4464, %v4426
      %4468 = vst.msk [vmem:[#allocation3 + $0x18] sm:$0xf] %vm4464, %v4427
      %4469 = vst.msk [vmem:[#allocation3 + $0x24] sm:$0xf] %vm4464, %v4428
      %4470 = vst.msk [vmem:[#allocation3 + $0x28] sm:$0xf] %vm4464, %v4429
      %4471 = vst.msk [vmem:[#allocation3 + $0x34] sm:$0xf] %vm4464, %v4430
      %4472 = vst.msk [vmem:[#allocation3 + $0x38] sm:$0xf] %vm4464, %v4431
      %4473 = vst.msk [vmem:[#allocation3 + $0x44] sm:$0xf] %vm4464, %v4432
      %4474 = vst.msk [vmem:[#allocation3 + $0x48] sm:$0xf] %vm4464, %v4433
      %4475 = vst.msk [vmem:[#allocation3 + $0x54] sm:$0xf] %vm4464, %v4434
      %4476 = vst.msk [vmem:[#allocation3 + $0x58] sm:$0xf] %vm4464, %v4435
      %4477 = vst.msk [vmem:[#allocation3 + $0x64] sm:$0xf] %vm4464, %v4436
      %4478 = vst.msk [vmem:[#allocation3 + $0x68] sm:$0xf] %vm4464, %v4437
      %4479 = vst.msk [vmem:[#allocation3 + $0x74] sm:$0xf] %vm4464, %v4438
      %4480 = vst.msk [vmem:[#allocation3 + $0x78] sm:$0xf] %vm4464, %v4439
      %4481 = vst.msk [vmem:[#allocation3 + $0x84] sm:$0xf] %vm4464, %v4440
      %4482 = vst.msk [vmem:[#allocation3 + $0x88] sm:$0xf] %vm4464, %v4441
      %4483 = vst.msk [vmem:[#allocation3 + $0x94] sm:$0xf] %vm4464, %v4442
      %4484 = vst.msk [vmem:[#allocation3 + $0x98] sm:$0xf] %vm4464, %v4443
      // Predicated region
      $region45: #{tpu_custom_call.1} parent=39 // pred_check
        %p4485 = pneg %p250
      $region46: #{tpu_custom_call.1} parent=39 // pred_check_branch
        %4487 = sbr.rel (%p4485) target = $region48
      $region47: #{tpu_custom_call.1} parent=39 // pred_region
        %4488 = vst.msk [vmem:[#allocation3 + $0x4] sm:$0xf] %vm4464, 0
        %4489 = vst.msk [vmem:[#allocation3 + $0x8] sm:$0xf] %vm4464, 0
      $region48: #{tpu_custom_call.1} parent=39 // pred_fallthru
        _
      %p4490 = scmp.eq.s32.totalorder %s21, 1
      // Predicated region
      $region49: #{tpu_custom_call.1} parent=39 // pred_check
        %p4491 = pneg %p4490
      $region50: #{tpu_custom_call.1} parent=39 // pred_check_branch
        %4493 = sbr.rel (%p4491) target = $region52
      $region51: #{tpu_custom_call.1} parent=39 // pred_region
        %s4494 = scalar_lea.vmem [#allocation3], 144
        %4495 = vst.msk [vmem:[%s4494 + $0x4] sm:$0xf] %vm4464, 0
        %4496 = vst.msk [vmem:[%s4494 + $0x8] sm:$0xf] %vm4464, 0
      $region52: #{tpu_custom_call.1} parent=39 // pred_fallthru
        _
      %v4497 = vld [vmem:[#allocation3] sm:$0x8]
      %v4498 = vld [vmem:[#allocation3 + $0x4] sm:$0xf]
      %v4499 = vld [vmem:[#allocation3 + $0x8] sm:$0xf]
      %v4500 = vld [vmem:[#allocation3 + $0x10] sm:$0x8]
      %v4501 = vld [vmem:[#allocation3 + $0x14] sm:$0xf]
      %v4502 = vld [vmem:[#allocation3 + $0x18] sm:$0xf]
      %v4503 = vld [vmem:[#allocation3 + $0x20] sm:$0x8]
      %v4504 = vld [vmem:[#allocation3 + $0x24] sm:$0xf]
      %v4505 = vld [vmem:[#allocation3 + $0x28] sm:$0xf]
      %v4506 = vld [vmem:[#allocation3 + $0x30] sm:$0x8]
      %v4507 = vld [vmem:[#allocation3 + $0x34] sm:$0xf]
      %v4508 = vld [vmem:[#allocation3 + $0x38] sm:$0xf]
      %v4509 = vld [vmem:[#allocation3 + $0x40] sm:$0x8]
      %v4510 = vld [vmem:[#allocation3 + $0x44] sm:$0xf]
      %v4511 = vld [vmem:[#allocation3 + $0x48] sm:$0xf]
      %v4512 = vld [vmem:[#allocation3 + $0x50] sm:$0x8]
      %v4513 = vld [vmem:[#allocation3 + $0x54] sm:$0xf]
      %v4514 = vld [vmem:[#allocation3 + $0x58] sm:$0xf]
      %v4515 = vld [vmem:[#allocation3 + $0x60] sm:$0x8]
      %v4516 = vld [vmem:[#allocation3 + $0x64] sm:$0xf]
      %v4517 = vld [vmem:[#allocation3 + $0x68] sm:$0xf]
      %v4518 = vld [vmem:[#allocation3 + $0x70] sm:$0x8]
      %v4519 = vld [vmem:[#allocation3 + $0x74] sm:$0xf]
      %v4520 = vld [vmem:[#allocation3 + $0x78] sm:$0xf]
      %v4522 = vshrl.u32 %v4497, 16
      %v4524 = vrot.slane %v4522, 7
      %v4525 = vrot.slane %v4524, 4
      %v4527 = vshrl.u32 %v4498, 16
      %v4529 = vrot.slane %v4527, 7
      %v4530 = vshll.u32 %v4498, 16
      %v4532 = vor.u32 %v4529, %v4530
      %v4533 = vsel %vm552, %v4525, %v4532
      %v4534 = vrot.slane %v4529, 4
      %v4536 = vshrl.u32 %v4499, 16
      %v4538 = vrot.slane %v4536, 7
      %v4539 = vshll.u32 %v4499, 16
      %v4541 = vor.u32 %v4538, %v4539
      %v4542 = vsel %vm552, %v4534, %v4541
      %v4544 = vshrl.u32 %v4500, 16
      %v4546 = vrot.slane %v4544, 7
      %v4547 = vrot.slane %v4546, 4
      %v4549 = vshrl.u32 %v4501, 16
      %v4551 = vrot.slane %v4549, 7
      %v4552 = vshll.u32 %v4501, 16
      %v4554 = vor.u32 %v4551, %v4552
      %v4555 = vsel %vm552, %v4547, %v4554
      %v4556 = vrot.slane %v4551, 4
      %v4558 = vshrl.u32 %v4502, 16
      %v4560 = vrot.slane %v4558, 7
      %v4561 = vshll.u32 %v4502, 16
      %v4563 = vor.u32 %v4560, %v4561
      %v4564 = vsel %vm552, %v4556, %v4563
      %v4566 = vshrl.u32 %v4503, 16
      %v4568 = vrot.slane %v4566, 7
      %v4569 = vrot.slane %v4568, 4
      %v4571 = vshrl.u32 %v4504, 16
      %v4573 = vrot.slane %v4571, 7
      %v4574 = vshll.u32 %v4504, 16
      %v4576 = vor.u32 %v4573, %v4574
      %v4577 = vsel %vm552, %v4569, %v4576
      %v4578 = vrot.slane %v4573, 4
      %v4580 = vshrl.u32 %v4505, 16
      %v4582 = vrot.slane %v4580, 7
      %v4583 = vshll.u32 %v4505, 16
      %v4585 = vor.u32 %v4582, %v4583
      %v4586 = vsel %vm552, %v4578, %v4585
      %v4588 = vshrl.u32 %v4506, 16
      %v4590 = vrot.slane %v4588, 7
      %v4591 = vrot.slane %v4590, 4
      %v4593 = vshrl.u32 %v4507, 16
      %v4595 = vrot.slane %v4593, 7
      %v4596 = vshll.u32 %v4507, 16
      %v4598 = vor.u32 %v4595, %v4596
      %v4599 = vsel %vm552, %v4591, %v4598
      %v4600 = vrot.slane %v4595, 4
      %v4602 = vshrl.u32 %v4508, 16
      %v4604 = vrot.slane %v4602, 7
      %v4605 = vshll.u32 %v4508, 16
      %v4607 = vor.u32 %v4604, %v4605
      %v4608 = vsel %vm552, %v4600, %v4607
      %v4610 = vshrl.u32 %v4509, 16
      %v4612 = vrot.slane %v4610, 7
      %v4613 = vrot.slane %v4612, 4
      %v4615 = vshrl.u32 %v4510, 16
      %v4617 = vrot.slane %v4615, 7
      %v4618 = vshll.u32 %v4510, 16
      %v4620 = vor.u32 %v4617, %v4618
      %v4621 = vsel %vm552, %v4613, %v4620
      %v4622 = vrot.slane %v4617, 4
      %v4624 = vshrl.u32 %v4511, 16
      %v4626 = vrot.slane %v4624, 7
      %v4627 = vshll.u32 %v4511, 16
      %v4629 = vor.u32 %v4626, %v4627
      %v4630 = vsel %vm552, %v4622, %v4629
      %v4632 = vshrl.u32 %v4512, 16
      %v4634 = vrot.slane %v4632, 7
      %v4635 = vrot.slane %v4634, 4
      %v4637 = vshrl.u32 %v4513, 16
      %v4639 = vrot.slane %v4637, 7
      %v4640 = vshll.u32 %v4513, 16
      %v4642 = vor.u32 %v4639, %v4640
      %v4643 = vsel %vm552, %v4635, %v4642
      %v4644 = vrot.slane %v4639, 4
      %v4646 = vshrl.u32 %v4514, 16
      %v4648 = vrot.slane %v4646, 7
      %v4649 = vshll.u32 %v4514, 16
      %v4651 = vor.u32 %v4648, %v4649
      %v4652 = vsel %vm552, %v4644, %v4651
      %v4654 = vshrl.u32 %v4515, 16
      %v4656 = vrot.slane %v4654, 7
      %v4657 = vrot.slane %v4656, 4
      %v4659 = vshrl.u32 %v4516, 16
      %v4661 = vrot.slane %v4659, 7
      %v4662 = vshll.u32 %v4516, 16
      %v4664 = vor.u32 %v4661, %v4662
      %v4665 = vsel %vm552, %v4657, %v4664
      %v4666 = vrot.slane %v4661, 4
      %v4668 = vshrl.u32 %v4517, 16
      %v4670 = vrot.slane %v4668, 7
      %v4671 = vshll.u32 %v4517, 16
      %v4673 = vor.u32 %v4670, %v4671
      %v4674 = vsel %vm552, %v4666, %v4673
      %v4676 = vshrl.u32 %v4518, 16
      %v4678 = vrot.slane %v4676, 7
      %v4679 = vrot.slane %v4678, 4
      %v4681 = vshrl.u32 %v4519, 16
      %v4683 = vrot.slane %v4681, 7
      %v4684 = vshll.u32 %v4519, 16
      %v4686 = vor.u32 %v4683, %v4684
      %v4687 = vsel %vm552, %v4679, %v4686
      %v4688 = vrot.slane %v4683, 4
      %v4690 = vshrl.u32 %v4520, 16
      %v4692 = vrot.slane %v4690, 7
      %v4693 = vshll.u32 %v4520, 16
      %v4695 = vor.u32 %v4692, %v4693
      %v4696 = vsel %vm552, %v4688, %v4695
      %v4697 = vld [vmem:[%s2] sm:$0x3]
      %v4698 = vunpack.c.l.b16 %v4533
      %v4699 = vunpack.c.l.b16 %v4542
      %v4700 = vunpack.c.l.b16 %v4555
      %v4701 = vunpack.c.l.b16 %v4564
      %v4702 = vunpack.c.l.b16 %v4577
      %v4703 = vunpack.c.l.b16 %v4586
      %v4704 = vunpack.c.l.b16 %v4599
      %v4705 = vunpack.c.l.b16 %v4608
      %v4706 = vunpack.c.l.b16 %v4621
      %v4707 = vunpack.c.l.b16 %v4630
      %v4708 = vunpack.c.l.b16 %v4643
      %v4709 = vunpack.c.l.b16 %v4652
      %v4710 = vunpack.c.l.b16 %v4665
      %v4711 = vunpack.c.l.b16 %v4674
      %v4712 = vunpack.c.l.b16 %v4687
      %v4713 = vunpack.c.l.b16 %v4696
      %v4714 = vpack.c.b16 %v4699, %v4698
      %v4715 = vpack.c.b16 %v4701, %v4700
      %v4716 = vpack.c.b16 %v4703, %v4702
      %v4717 = vpack.c.b16 %v4705, %v4704
      %v4718 = vpack.c.b16 %v4707, %v4706
      %v4719 = vpack.c.b16 %v4709, %v4708
      %v4720 = vpack.c.b16 %v4711, %v4710
      %v4721 = vpack.c.b16 %v4713, %v4712
      %v4723 = vsel %vm804, %v4714, 0
      %v4726 = vsel %vm804, %v4715, 0
      %v4729 = vsel %vm804, %v4716, 0
      %v4732 = vsel %vm804, %v4717, 0
      %v4735 = vsel %vm804, %v4718, 0
      %v4738 = vsel %vm804, %v4719, 0
      %v4741 = vsel %vm804, %v4720, 0
      %v4744 = vsel %vm804, %v4721, 0
      %v4747 = vsel %vm835, %v4697, 0
      %4749 = vmatprep.subr.bf16.mxu0 0
      %4750 = vmatpush1.bf16.msra.mxu0 0
      %4751 = vmatprep.subr.bf16.mxu0 0
      %4752 = vmatpush1.bf16.msra.mxu0 0
      %4753 = vmatprep.subr.bf16.mxu0 0
      %4754 = vmatpush1.bf16.msra.mxu0 0
      %4755 = vmatprep.subr.bf16.mxu0 0
      %4756 = vmatpush1.bf16.msra.mxu0 0
      %4757 = vmatprep.subr.bf16.mxu0 0
      %4758 = vmatpush1.bf16.msra.mxu0 0
      %4759 = vmatprep.subr.bf16.mxu0 0
      %4760 = vmatpush1.bf16.msra.mxu0 0
      %4761 = vmatprep.subr.bf16.mxu0 0
      %4762 = vmatpush1.bf16.msra.mxu0 0
      %4763 = vmatprep.subr.bf16.mxu0 0
      %4764 = vmatpush1.bf16.msra.mxu0 %v4747
      %4765 = vmatprep.subr.bf16.mxu0 0
      %4766 = vmatpush2.bf16.msra.mxu0 0
      %4767 = vmatprep.subr.bf16.mxu0 0
      %4768 = vmatpush2.bf16.msra.mxu0 0
      %4769 = vmatprep.subr.bf16.mxu0 0
      %4770 = vmatpush2.bf16.msra.mxu0 0
      %4771 = vmatprep.subr.bf16.mxu0 0
      %4772 = vmatpush2.bf16.msra.mxu0 0
      %4773 = vmatprep.subr.bf16.mxu0 0
      %4774 = vmatpush2.bf16.msra.mxu0 0
      %4775 = vmatprep.subr.bf16.mxu0 0
      %4776 = vmatpush2.bf16.msra.mxu0 0
      %4777 = vmatprep.subr.bf16.mxu0 0
      %4778 = vmatpush2.bf16.msra.mxu0 0
      %4779 = vmatprep.subr.bf16.mxu0 0
      %4780 = vmatpush2.bf16.msra.mxu0 0
      %4781 = vmatprep.mubr.bf16.mxu0 0
      %4782 = vmatmul.mubr.bf16.gmra.mxu0 %v4723
      %v4783 = vpop.f32.mrf.mxu0
      %v4784 = vadd.f32 0.0, %v4783
      %v4785 = vpop.f32.mrf.mxu0
      %v4786 = vpop.f32.mrf.mxu0
      %v4787 = vadd.f32 0.0, %v4786
      %v4788 = vpop.f32.mrf.mxu0
      %4789 = vmatprep.mubr.bf16.mxu0 0
      %4790 = vmatmul.mubr.bf16.gmra.mxu0 %v4726
      %v4791 = vpop.f32.mrf.mxu0
      %v4792 = vadd.f32 0.0, %v4791
      %v4793 = vpop.f32.mrf.mxu0
      %v4794 = vpop.f32.mrf.mxu0
      %v4795 = vadd.f32 0.0, %v4794
      %v4796 = vpop.f32.mrf.mxu0
      %4797 = vmatprep.mubr.bf16.mxu0 0
      %4798 = vmatmul.mubr.bf16.gmra.mxu0 %v4729
      %v4799 = vpop.f32.mrf.mxu0
      %v4800 = vadd.f32 0.0, %v4799
      %v4801 = vpop.f32.mrf.mxu0
      %v4802 = vpop.f32.mrf.mxu0
      %v4803 = vadd.f32 0.0, %v4802
      %v4804 = vpop.f32.mrf.mxu0
      %4805 = vmatprep.mubr.bf16.mxu0 0
      %4806 = vmatmul.mubr.bf16.gmra.mxu0 %v4732
      %v4807 = vpop.f32.mrf.mxu0
      %v4808 = vadd.f32 0.0, %v4807
      %v4809 = vpop.f32.mrf.mxu0
      %v4810 = vpop.f32.mrf.mxu0
      %v4811 = vadd.f32 0.0, %v4810
      %v4812 = vpop.f32.mrf.mxu0
      %4813 = vmatprep.mubr.bf16.mxu0 0
      %4814 = vmatmul.mubr.bf16.gmra.mxu0 %v4735
      %v4815 = vpop.f32.mrf.mxu0
      %v4816 = vadd.f32 0.0, %v4815
      %v4817 = vpop.f32.mrf.mxu0
      %v4818 = vpop.f32.mrf.mxu0
      %v4819 = vadd.f32 0.0, %v4818
      %v4820 = vpop.f32.mrf.mxu0
      %4821 = vmatprep.mubr.bf16.mxu0 0
      %4822 = vmatmul.mubr.bf16.gmra.mxu0 %v4738
      %v4823 = vpop.f32.mrf.mxu0
      %v4824 = vadd.f32 0.0, %v4823
      %v4825 = vpop.f32.mrf.mxu0
      %v4826 = vpop.f32.mrf.mxu0
      %v4827 = vadd.f32 0.0, %v4826
      %v4828 = vpop.f32.mrf.mxu0
      %4829 = vmatprep.mubr.bf16.mxu0 0
      %4830 = vmatmul.mubr.bf16.gmra.mxu0 %v4741
      %v4831 = vpop.f32.mrf.mxu0
      %v4832 = vadd.f32 0.0, %v4831
      %v4833 = vpop.f32.mrf.mxu0
      %v4834 = vpop.f32.mrf.mxu0
      %v4835 = vadd.f32 0.0, %v4834
      %v4836 = vpop.f32.mrf.mxu0
      %4837 = vmatprep.mubr.bf16.mxu0 0
      %4838 = vmatmul.mubr.bf16.gmra.mxu0 %v4744
      %v4839 = vpop.f32.mrf.mxu0
      %v4840 = vadd.f32 0.0, %v4839
      %v4841 = vpop.f32.mrf.mxu0
      %v4842 = vpop.f32.mrf.mxu0
      %v4843 = vadd.f32 0.0, %v4842
      %v4844 = vpop.f32.mrf.mxu0
      %4845 = vdwg.mxu0
      %4846 = vst.msk [vmem:[#allocation5] sm:$0xff] %vm804, %v4784
      %4847 = vst.msk [vmem:[#allocation5 + $0x8] sm:$0xff] %vm804, %v4787
      %4848 = vst.msk [vmem:[#allocation5 + $0x10] sm:$0xff] %vm804, %v4792
      %4849 = vst.msk [vmem:[#allocation5 + $0x18] sm:$0xff] %vm804, %v4795
      %4850 = vst.msk [vmem:[#allocation5 + $0x20] sm:$0xff] %vm804, %v4800
      %4851 = vst.msk [vmem:[#allocation5 + $0x28] sm:$0xff] %vm804, %v4803
      %4852 = vst.msk [vmem:[#allocation5 + $0x30] sm:$0xff] %vm804, %v4808
      %4853 = vst.msk [vmem:[#allocation5 + $0x38] sm:$0xff] %vm804, %v4811
      %4854 = vst.msk [vmem:[#allocation5 + $0x40] sm:$0xff] %vm804, %v4816
      %4855 = vst.msk [vmem:[#allocation5 + $0x48] sm:$0xff] %vm804, %v4819
      %4856 = vst.msk [vmem:[#allocation5 + $0x50] sm:$0xff] %vm804, %v4824
      %4857 = vst.msk [vmem:[#allocation5 + $0x58] sm:$0xff] %vm804, %v4827
      %4858 = vst.msk [vmem:[#allocation5 + $0x60] sm:$0xff] %vm804, %v4832
      %4859 = vst.msk [vmem:[#allocation5 + $0x68] sm:$0xff] %vm804, %v4835
      %4860 = vst.msk [vmem:[#allocation5 + $0x70] sm:$0xff] %vm804, %v4840
      %4861 = vst.msk [vmem:[#allocation5 + $0x78] sm:$0xff] %vm804, %v4843
      %v4862 = vld [vmem:[#allocation3 + $0x4] sm:$0xf]
      %v4863 = vld [vmem:[#allocation3 + $0x8] sm:$0xf]
      %v4864 = vld [vmem:[#allocation3 + $0x14] sm:$0xf]
      %v4865 = vld [vmem:[#allocation3 + $0x18] sm:$0xf]
      %v4866 = vld [vmem:[#allocation3 + $0x24] sm:$0xf]
      %v4867 = vld [vmem:[#allocation3 + $0x28] sm:$0xf]
      %v4868 = vld [vmem:[#allocation3 + $0x34] sm:$0xf]
      %v4869 = vld [vmem:[#allocation3 + $0x38] sm:$0xf]
      %v4870 = vld [vmem:[#allocation3 + $0x44] sm:$0xf]
      %v4871 = vld [vmem:[#allocation3 + $0x48] sm:$0xf]
      %v4872 = vld [vmem:[#allocation3 + $0x54] sm:$0xf]
      %v4873 = vld [vmem:[#allocation3 + $0x58] sm:$0xf]
      %v4874 = vld [vmem:[#allocation3 + $0x64] sm:$0xf]
      %v4875 = vld [vmem:[#allocation3 + $0x68] sm:$0xf]
      %v4876 = vld [vmem:[#allocation3 + $0x74] sm:$0xf]
      %v4877 = vld [vmem:[#allocation3 + $0x78] sm:$0xf]
      %s4878 = scalar_lea.vmem %s2, 2
      %v4879 = vld [vmem:[%s4878] sm:$0x3]
      %v4896 = vunpack.c.l.b16 %v4862
      %v4897 = vunpack.c.l.b16 %v4863
      %v4898 = vunpack.c.l.b16 %v4864
      %v4899 = vunpack.c.l.b16 %v4865
      %v4900 = vunpack.c.l.b16 %v4866
      %v4901 = vunpack.c.l.b16 %v4867
      %v4902 = vunpack.c.l.b16 %v4868
      %v4903 = vunpack.c.l.b16 %v4869
      %v4904 = vunpack.c.l.b16 %v4870
      %v4905 = vunpack.c.l.b16 %v4871
      %v4906 = vunpack.c.l.b16 %v4872
      %v4907 = vunpack.c.l.b16 %v4873
      %v4908 = vunpack.c.l.b16 %v4874
      %v4909 = vunpack.c.l.b16 %v4875
      %v4910 = vunpack.c.l.b16 %v4876
      %v4911 = vunpack.c.l.b16 %v4877
      %v4912 = vpack.c.b16 %v4897, %v4896
      %v4913 = vpack.c.b16 %v4899, %v4898
      %v4914 = vpack.c.b16 %v4901, %v4900
      %v4915 = vpack.c.b16 %v4903, %v4902
      %v4916 = vpack.c.b16 %v4905, %v4904
      %v4917 = vpack.c.b16 %v4907, %v4906
      %v4918 = vpack.c.b16 %v4909, %v4908
      %v4919 = vpack.c.b16 %v4911, %v4910
      %v4921 = vsel %vm804, %v4912, 0
      %v4924 = vsel %vm804, %v4913, 0
      %v4927 = vsel %vm804, %v4914, 0
      %v4930 = vsel %vm804, %v4915, 0
      %v4933 = vsel %vm804, %v4916, 0
      %v4936 = vsel %vm804, %v4917, 0
      %v4939 = vsel %vm804, %v4918, 0
      %v4942 = vsel %vm804, %v4919, 0
      %v4945 = vsel %vm835, %v4879, 0
      %4947 = vmatprep.subr.bf16.mxu0 0
      %4948 = vmatpush1.bf16.msra.mxu0 0
      %4949 = vmatprep.subr.bf16.mxu0 0
      %4950 = vmatpush1.bf16.msra.mxu0 0
      %4951 = vmatprep.subr.bf16.mxu0 0
      %4952 = vmatpush1.bf16.msra.mxu0 0
      %4953 = vmatprep.subr.bf16.mxu0 0
      %4954 = vmatpush1.bf16.msra.mxu0 0
      %4955 = vmatprep.subr.bf16.mxu0 0
      %4956 = vmatpush1.bf16.msra.mxu0 0
      %4957 = vmatprep.subr.bf16.mxu0 0
      %4958 = vmatpush1.bf16.msra.mxu0 0
      %4959 = vmatprep.subr.bf16.mxu0 0
      %4960 = vmatpush1.bf16.msra.mxu0 0
      %4961 = vmatprep.subr.bf16.mxu0 0
      %4962 = vmatpush1.bf16.msra.mxu0 %v4945
      %4963 = vmatprep.subr.bf16.mxu0 0
      %4964 = vmatpush2.bf16.msra.mxu0 0
      %4965 = vmatprep.subr.bf16.mxu0 0
      %4966 = vmatpush2.bf16.msra.mxu0 0
      %4967 = vmatprep.subr.bf16.mxu0 0
      %4968 = vmatpush2.bf16.msra.mxu0 0
      %4969 = vmatprep.subr.bf16.mxu0 0
      %4970 = vmatpush2.bf16.msra.mxu0 0
      %4971 = vmatprep.subr.bf16.mxu0 0
      %4972 = vmatpush2.bf16.msra.mxu0 0
      %4973 = vmatprep.subr.bf16.mxu0 0
      %4974 = vmatpush2.bf16.msra.mxu0 0
      %4975 = vmatprep.subr.bf16.mxu0 0
      %4976 = vmatpush2.bf16.msra.mxu0 0
      %4977 = vmatprep.subr.bf16.mxu0 0
      %4978 = vmatpush2.bf16.msra.mxu0 0
      %4979 = vmatprep.mubr.bf16.mxu0 0
      %4980 = vmatmul.mubr.bf16.gmra.mxu0 %v4921
      %v4981 = vpop.f32.mrf.mxu0
      %v4982 = vadd.f32 0.0, %v4981
      %v4983 = vpop.f32.mrf.mxu0
      %v4984 = vpop.f32.mrf.mxu0
      %v4985 = vadd.f32 0.0, %v4984
      %v4986 = vpop.f32.mrf.mxu0
      %4987 = vmatprep.mubr.bf16.mxu0 0
      %4988 = vmatmul.mubr.bf16.gmra.mxu0 %v4924
      %v4989 = vpop.f32.mrf.mxu0
      %v4990 = vadd.f32 0.0, %v4989
      %v4991 = vpop.f32.mrf.mxu0
      %v4992 = vpop.f32.mrf.mxu0
      %v4993 = vadd.f32 0.0, %v4992
      %v4994 = vpop.f32.mrf.mxu0
      %4995 = vmatprep.mubr.bf16.mxu0 0
      %4996 = vmatmul.mubr.bf16.gmra.mxu0 %v4927
      %v4997 = vpop.f32.mrf.mxu0
      %v4998 = vadd.f32 0.0, %v4997
      %v4999 = vpop.f32.mrf.mxu0
      %v5000 = vpop.f32.mrf.mxu0
      %v5001 = vadd.f32 0.0, %v5000
      %v5002 = vpop.f32.mrf.mxu0
      %5003 = vmatprep.mubr.bf16.mxu0 0
      %5004 = vmatmul.mubr.bf16.gmra.mxu0 %v4930
      %v5005 = vpop.f32.mrf.mxu0
      %v5006 = vadd.f32 0.0, %v5005
      %v5007 = vpop.f32.mrf.mxu0
      %v5008 = vpop.f32.mrf.mxu0
      %v5009 = vadd.f32 0.0, %v5008
      %v5010 = vpop.f32.mrf.mxu0
      %5011 = vmatprep.mubr.bf16.mxu0 0
      %5012 = vmatmul.mubr.bf16.gmra.mxu0 %v4933
      %v5013 = vpop.f32.mrf.mxu0
      %v5014 = vadd.f32 0.0, %v5013
      %v5015 = vpop.f32.mrf.mxu0
      %v5016 = vpop.f32.mrf.mxu0
      %v5017 = vadd.f32 0.0, %v5016
      %v5018 = vpop.f32.mrf.mxu0
      %5019 = vmatprep.mubr.bf16.mxu0 0
      %5020 = vmatmul.mubr.bf16.gmra.mxu0 %v4936
      %v5021 = vpop.f32.mrf.mxu0
      %v5022 = vadd.f32 0.0, %v5021
      %v5023 = vpop.f32.mrf.mxu0
      %v5024 = vpop.f32.mrf.mxu0
      %v5025 = vadd.f32 0.0, %v5024
      %v5026 = vpop.f32.mrf.mxu0
      %5027 = vmatprep.mubr.bf16.mxu0 0
      %5028 = vmatmul.mubr.bf16.gmra.mxu0 %v4939
      %v5029 = vpop.f32.mrf.mxu0
      %v5030 = vadd.f32 0.0, %v5029
      %v5031 = vpop.f32.mrf.mxu0
      %v5032 = vpop.f32.mrf.mxu0
      %v5033 = vadd.f32 0.0, %v5032
      %v5034 = vpop.f32.mrf.mxu0
      %5035 = vmatprep.mubr.bf16.mxu0 0
      %5036 = vmatmul.mubr.bf16.gmra.mxu0 %v4942
      %v5037 = vpop.f32.mrf.mxu0
      %v5038 = vadd.f32 0.0, %v5037
      %v5039 = vpop.f32.mrf.mxu0
      %v5040 = vpop.f32.mrf.mxu0
      %v5041 = vadd.f32 0.0, %v5040
      %v5042 = vpop.f32.mrf.mxu0
      %5043 = vdwg.mxu0
      %v5044 = vld [vmem:[#allocation5] sm:$0xff]
      %v5045 = vld [vmem:[#allocation5 + $0x8] sm:$0xff]
      %v5046 = vld [vmem:[#allocation5 + $0x10] sm:$0xff]
      %v5047 = vld [vmem:[#allocation5 + $0x18] sm:$0xff]
      %v5048 = vld [vmem:[#allocation5 + $0x20] sm:$0xff]
      %v5049 = vld [vmem:[#allocation5 + $0x28] sm:$0xff]
      %v5050 = vld [vmem:[#allocation5 + $0x30] sm:$0xff]
      %v5051 = vld [vmem:[#allocation5 + $0x38] sm:$0xff]
      %v5052 = vld [vmem:[#allocation5 + $0x40] sm:$0xff]
      %v5053 = vld [vmem:[#allocation5 + $0x48] sm:$0xff]
      %v5054 = vld [vmem:[#allocation5 + $0x50] sm:$0xff]
      %v5055 = vld [vmem:[#allocation5 + $0x58] sm:$0xff]
      %v5056 = vld [vmem:[#allocation5 + $0x60] sm:$0xff]
      %v5057 = vld [vmem:[#allocation5 + $0x68] sm:$0xff]
      %v5058 = vld [vmem:[#allocation5 + $0x70] sm:$0xff]
      %v5059 = vld [vmem:[#allocation5 + $0x78] sm:$0xff]
      %v5060 = vadd.f32 %v5044, %v4982
      %v5061 = vadd.f32 %v5045, %v4985
      %v5062 = vadd.f32 %v5046, %v4990
      %v5063 = vadd.f32 %v5047, %v4993
      %v5064 = vadd.f32 %v5048, %v4998
      %v5065 = vadd.f32 %v5049, %v5001
      %v5066 = vadd.f32 %v5050, %v5006
      %v5067 = vadd.f32 %v5051, %v5009
      %v5068 = vadd.f32 %v5052, %v5014
      %v5069 = vadd.f32 %v5053, %v5017
      %v5070 = vadd.f32 %v5054, %v5022
      %v5071 = vadd.f32 %v5055, %v5025
      %v5072 = vadd.f32 %v5056, %v5030
      %v5073 = vadd.f32 %v5057, %v5033
      %v5074 = vadd.f32 %v5058, %v5038
      %v5075 = vadd.f32 %v5059, %v5041
      %5076 = vst.msk [vmem:[#allocation5] sm:$0xff] %vm804, %v5060
      %5077 = vst.msk [vmem:[#allocation5 + $0x8] sm:$0xff] %vm804, %v5061
      %5078 = vst.msk [vmem:[#allocation5 + $0x10] sm:$0xff] %vm804, %v5062
      %5079 = vst.msk [vmem:[#allocation5 + $0x18] sm:$0xff] %vm804, %v5063
      %5080 = vst.msk [vmem:[#allocation5 + $0x20] sm:$0xff] %vm804, %v5064
      %5081 = vst.msk [vmem:[#allocation5 + $0x28] sm:$0xff] %vm804, %v5065
      %5082 = vst.msk [vmem:[#allocation5 + $0x30] sm:$0xff] %vm804, %v5066
      %5083 = vst.msk [vmem:[#allocation5 + $0x38] sm:$0xff] %vm804, %v5067
      %5084 = vst.msk [vmem:[#allocation5 + $0x40] sm:$0xff] %vm804, %v5068
      %5085 = vst.msk [vmem:[#allocation5 + $0x48] sm:$0xff] %vm804, %v5069
      %5086 = vst.msk [vmem:[#allocation5 + $0x50] sm:$0xff] %vm804, %v5070
      %5087 = vst.msk [vmem:[#allocation5 + $0x58] sm:$0xff] %vm804, %v5071
      %5088 = vst.msk [vmem:[#allocation5 + $0x60] sm:$0xff] %vm804, %v5072
      %5089 = vst.msk [vmem:[#allocation5 + $0x68] sm:$0xff] %vm804, %v5073
      %5090 = vst.msk [vmem:[#allocation5 + $0x70] sm:$0xff] %vm804, %v5074
      %5091 = vst.msk [vmem:[#allocation5 + $0x78] sm:$0xff] %vm804, %v5075
      %v5092 = vld [vmem:[#allocation3 + $0x4] sm:$0xf]
      %v5093 = vld [vmem:[#allocation3 + $0x8] sm:$0xf]
      %v5094 = vld [vmem:[#allocation3 + $0xc] sm:$0x1]
      %v5095 = vld [vmem:[#allocation3 + $0x14] sm:$0xf]
      %v5096 = vld [vmem:[#allocation3 + $0x18] sm:$0xf]
      %v5097 = vld [vmem:[#allocation3 + $0x1c] sm:$0x1]
      %v5098 = vld [vmem:[#allocation3 + $0x24] sm:$0xf]
      %v5099 = vld [vmem:[#allocation3 + $0x28] sm:$0xf]
      %v5100 = vld [vmem:[#allocation3 + $0x2c] sm:$0x1]
      %v5101 = vld [vmem:[#allocation3 + $0x34] sm:$0xf]
      %v5102 = vld [vmem:[#allocation3 + $0x38] sm:$0xf]
      %v5103 = vld [vmem:[#allocation3 + $0x3c] sm:$0x1]
      %v5104 = vld [vmem:[#allocation3 + $0x44] sm:$0xf]
      %v5105 = vld [vmem:[#allocation3 + $0x48] sm:$0xf]
      %v5106 = vld [vmem:[#allocation3 + $0x4c] sm:$0x1]
      %v5107 = vld [vmem:[#allocation3 + $0x54] sm:$0xf]
      %v5108 = vld [vmem:[#allocation3 + $0x58] sm:$0xf]
      %v5109 = vld [vmem:[#allocation3 + $0x5c] sm:$0x1]
      %v5110 = vld [vmem:[#allocation3 + $0x64] sm:$0xf]
      %v5111 = vld [vmem:[#allocation3 + $0x68] sm:$0xf]
      %v5112 = vld [vmem:[#allocation3 + $0x6c] sm:$0x1]
      %v5113 = vld [vmem:[#allocation3 + $0x74] sm:$0xf]
      %v5114 = vld [vmem:[#allocation3 + $0x78] sm:$0xf]
      %v5115 = vld [vmem:[#allocation3 + $0x7c] sm:$0x1]
      %v5117 = vshrl.u32 %v5092, 16
      %v5119 = vrot.slane %v5117, 4
      %v5120 = vshll.u32 %v5092, 16
      %v5122 = vrot.slane %v5120, 5
      %v5123 = vor.u32 %v5119, %v5122
      %v5124 = vrot.slane %v5123, 4
      %v5126 = vshll.u32 %v5093, 16
      %v5128 = vrot.slane %v5126, 5
      %v5129 = vsel %vm1282, %v5124, %v5128
      %v5130 = vshrl.u32 %v5093, 16
      %v5132 = vrot.slane %v5130, 4
      %v5133 = vor.u32 %v5132, %v5128
      %v5134 = vrot.slane %v5133, 4
      %v5136 = vshll.u32 %v5094, 16
      %v5138 = vrot.slane %v5136, 5
      %v5139 = vsel %vm1282, %v5134, %v5138
      %v5141 = vshrl.u32 %v5095, 16
      %v5143 = vrot.slane %v5141, 4
      %v5144 = vshll.u32 %v5095, 16
      %v5146 = vrot.slane %v5144, 5
      %v5147 = vor.u32 %v5143, %v5146
      %v5148 = vrot.slane %v5147, 4
      %v5150 = vshll.u32 %v5096, 16
      %v5152 = vrot.slane %v5150, 5
      %v5153 = vsel %vm1282, %v5148, %v5152
      %v5154 = vshrl.u32 %v5096, 16
      %v5156 = vrot.slane %v5154, 4
      %v5157 = vor.u32 %v5156, %v5152
      %v5158 = vrot.slane %v5157, 4
      %v5160 = vshll.u32 %v5097, 16
      %v5162 = vrot.slane %v5160, 5
      %v5163 = vsel %vm1282, %v5158, %v5162
      %v5165 = vshrl.u32 %v5098, 16
      %v5167 = vrot.slane %v5165, 4
      %v5168 = vshll.u32 %v5098, 16
      %v5170 = vrot.slane %v5168, 5
      %v5171 = vor.u32 %v5167, %v5170
      %v5172 = vrot.slane %v5171, 4
      %v5174 = vshll.u32 %v5099, 16
      %v5176 = vrot.slane %v5174, 5
      %v5177 = vsel %vm1282, %v5172, %v5176
      %v5178 = vshrl.u32 %v5099, 16
      %v5180 = vrot.slane %v5178, 4
      %v5181 = vor.u32 %v5180, %v5176
      %v5182 = vrot.slane %v5181, 4
      %v5184 = vshll.u32 %v5100, 16
      %v5186 = vrot.slane %v5184, 5
      %v5187 = vsel %vm1282, %v5182, %v5186
      %v5189 = vshrl.u32 %v5101, 16
      %v5191 = vrot.slane %v5189, 4
      %v5192 = vshll.u32 %v5101, 16
      %v5194 = vrot.slane %v5192, 5
      %v5195 = vor.u32 %v5191, %v5194
      %v5196 = vrot.slane %v5195, 4
      %v5198 = vshll.u32 %v5102, 16
      %v5200 = vrot.slane %v5198, 5
      %v5201 = vsel %vm1282, %v5196, %v5200
      %v5202 = vshrl.u32 %v5102, 16
      %v5204 = vrot.slane %v5202, 4
      %v5205 = vor.u32 %v5204, %v5200
      %v5206 = vrot.slane %v5205, 4
      %v5208 = vshll.u32 %v5103, 16
      %v5210 = vrot.slane %v5208, 5
      %v5211 = vsel %vm1282, %v5206, %v5210
      %v5213 = vshrl.u32 %v5104, 16
      %v5215 = vrot.slane %v5213, 4
      %v5216 = vshll.u32 %v5104, 16
      %v5218 = vrot.slane %v5216, 5
      %v5219 = vor.u32 %v5215, %v5218
      %v5220 = vrot.slane %v5219, 4
      %v5222 = vshll.u32 %v5105, 16
      %v5224 = vrot.slane %v5222, 5
      %v5225 = vsel %vm1282, %v5220, %v5224
      %v5226 = vshrl.u32 %v5105, 16
      %v5228 = vrot.slane %v5226, 4
      %v5229 = vor.u32 %v5228, %v5224
      %v5230 = vrot.slane %v5229, 4
      %v5232 = vshll.u32 %v5106, 16
      %v5234 = vrot.slane %v5232, 5
      %v5235 = vsel %vm1282, %v5230, %v5234
      %v5237 = vshrl.u32 %v5107, 16
      %v5239 = vrot.slane %v5237, 4
      %v5240 = vshll.u32 %v5107, 16
      %v5242 = vrot.slane %v5240, 5
      %v5243 = vor.u32 %v5239, %v5242
      %v5244 = vrot.slane %v5243, 4
      %v5246 = vshll.u32 %v5108, 16
      %v5248 = vrot.slane %v5246, 5
      %v5249 = vsel %vm1282, %v5244, %v5248
      %v5250 = vshrl.u32 %v5108, 16
      %v5252 = vrot.slane %v5250, 4
      %v5253 = vor.u32 %v5252, %v5248
      %v5254 = vrot.slane %v5253, 4
      %v5256 = vshll.u32 %v5109, 16
      %v5258 = vrot.slane %v5256, 5
      %v5259 = vsel %vm1282, %v5254, %v5258
      %v5261 = vshrl.u32 %v5110, 16
      %v5263 = vrot.slane %v5261, 4
      %v5264 = vshll.u32 %v5110, 16
      %v5266 = vrot.slane %v5264, 5
      %v5267 = vor.u32 %v5263, %v5266
      %v5268 = vrot.slane %v5267, 4
      %v5270 = vshll.u32 %v5111, 16
      %v5272 = vrot.slane %v5270, 5
      %v5273 = vsel %vm1282, %v5268, %v5272
      %v5274 = vshrl.u32 %v5111, 16
      %v5276 = vrot.slane %v5274, 4
      %v5277 = vor.u32 %v5276, %v5272
      %v5278 = vrot.slane %v5277, 4
      %v5280 = vshll.u32 %v5112, 16
      %v5282 = vrot.slane %v5280, 5
      %v5283 = vsel %vm1282, %v5278, %v5282
      %v5285 = vshrl.u32 %v5113, 16
      %v5287 = vrot.slane %v5285, 4
      %v5288 = vshll.u32 %v5113, 16
      %v5290 = vrot.slane %v5288, 5
      %v5291 = vor.u32 %v5287, %v5290
      %v5292 = vrot.slane %v5291, 4
      %v5294 = vshll.u32 %v5114, 16
      %v5296 = vrot.slane %v5294, 5
      %v5297 = vsel %vm1282, %v5292, %v5296
      %v5298 = vshrl.u32 %v5114, 16
      %v5300 = vrot.slane %v5298, 4
      %v5301 = vor.u32 %v5300, %v5296
      %v5302 = vrot.slane %v5301, 4
      %v5304 = vshll.u32 %v5115, 16
      %v5306 = vrot.slane %v5304, 5
      %v5307 = vsel %vm1282, %v5302, %v5306
      %s5308 = scalar_lea.vmem %s2, 4
      %v5309 = vld [vmem:[%s5308] sm:$0x3]
      %v5310 = vunpack.c.l.b16 %v5129
      %v5311 = vunpack.c.l.b16 %v5139
      %v5312 = vunpack.c.l.b16 %v5153
      %v5313 = vunpack.c.l.b16 %v5163
      %v5314 = vunpack.c.l.b16 %v5177
      %v5315 = vunpack.c.l.b16 %v5187
      %v5316 = vunpack.c.l.b16 %v5201
      %v5317 = vunpack.c.l.b16 %v5211
      %v5318 = vunpack.c.l.b16 %v5225
      %v5319 = vunpack.c.l.b16 %v5235
      %v5320 = vunpack.c.l.b16 %v5249
      %v5321 = vunpack.c.l.b16 %v5259
      %v5322 = vunpack.c.l.b16 %v5273
      %v5323 = vunpack.c.l.b16 %v5283
      %v5324 = vunpack.c.l.b16 %v5297
      %v5325 = vunpack.c.l.b16 %v5307
      %v5326 = vpack.c.b16 %v5311, %v5310
      %v5327 = vpack.c.b16 %v5313, %v5312
      %v5328 = vpack.c.b16 %v5315, %v5314
      %v5329 = vpack.c.b16 %v5317, %v5316
      %v5330 = vpack.c.b16 %v5319, %v5318
      %v5331 = vpack.c.b16 %v5321, %v5320
      %v5332 = vpack.c.b16 %v5323, %v5322
      %v5333 = vpack.c.b16 %v5325, %v5324
      %v5335 = vsel %vm804, %v5326, 0
      %v5338 = vsel %vm804, %v5327, 0
      %v5341 = vsel %vm804, %v5328, 0
      %v5344 = vsel %vm804, %v5329, 0
      %v5347 = vsel %vm804, %v5330, 0
      %v5350 = vsel %vm804, %v5331, 0
      %v5353 = vsel %vm804, %v5332, 0
      %v5356 = vsel %vm804, %v5333, 0
      %v5359 = vsel %vm835, %v5309, 0
      %5361 = vmatprep.subr.bf16.mxu0 0
      %5362 = vmatpush1.bf16.msra.mxu0 0
      %5363 = vmatprep.subr.bf16.mxu0 0
      %5364 = vmatpush1.bf16.msra.mxu0 0
      %5365 = vmatprep.subr.bf16.mxu0 0
      %5366 = vmatpush1.bf16.msra.mxu0 0
      %5367 = vmatprep.subr.bf16.mxu0 0
      %5368 = vmatpush1.bf16.msra.mxu0 0
      %5369 = vmatprep.subr.bf16.mxu0 0
      %5370 = vmatpush1.bf16.msra.mxu0 0
      %5371 = vmatprep.subr.bf16.mxu0 0
      %5372 = vmatpush1.bf16.msra.mxu0 0
      %5373 = vmatprep.subr.bf16.mxu0 0
      %5374 = vmatpush1.bf16.msra.mxu0 0
      %5375 = vmatprep.subr.bf16.mxu0 0
      %5376 = vmatpush1.bf16.msra.mxu0 %v5359
      %5377 = vmatprep.subr.bf16.mxu0 0
      %5378 = vmatpush2.bf16.msra.mxu0 0
      %5379 = vmatprep.subr.bf16.mxu0 0
      %5380 = vmatpush2.bf16.msra.mxu0 0
      %5381 = vmatprep.subr.bf16.mxu0 0
      %5382 = vmatpush2.bf16.msra.mxu0 0
      %5383 = vmatprep.subr.bf16.mxu0 0
      %5384 = vmatpush2.bf16.msra.mxu0 0
      %5385 = vmatprep.subr.bf16.mxu0 0
      %5386 = vmatpush2.bf16.msra.mxu0 0
      %5387 = vmatprep.subr.bf16.mxu0 0
      %5388 = vmatpush2.bf16.msra.mxu0 0
      %5389 = vmatprep.subr.bf16.mxu0 0
      %5390 = vmatpush2.bf16.msra.mxu0 0
      %5391 = vmatprep.subr.bf16.mxu0 0
      %5392 = vmatpush2.bf16.msra.mxu0 0
      %5393 = vmatprep.mubr.bf16.mxu0 0
      %5394 = vmatmul.mubr.bf16.gmra.mxu0 %v5335
      %v5395 = vpop.f32.mrf.mxu0
      %v5396 = vadd.f32 0.0, %v5395
      %v5397 = vpop.f32.mrf.mxu0
      %v5398 = vpop.f32.mrf.mxu0
      %v5399 = vadd.f32 0.0, %v5398
      %v5400 = vpop.f32.mrf.mxu0
      %5401 = vmatprep.mubr.bf16.mxu0 0
      %5402 = vmatmul.mubr.bf16.gmra.mxu0 %v5338
      %v5403 = vpop.f32.mrf.mxu0
      %v5404 = vadd.f32 0.0, %v5403
      %v5405 = vpop.f32.mrf.mxu0
      %v5406 = vpop.f32.mrf.mxu0
      %v5407 = vadd.f32 0.0, %v5406
      %v5408 = vpop.f32.mrf.mxu0
      %5409 = vmatprep.mubr.bf16.mxu0 0
      %5410 = vmatmul.mubr.bf16.gmra.mxu0 %v5341
      %v5411 = vpop.f32.mrf.mxu0
      %v5412 = vadd.f32 0.0, %v5411
      %v5413 = vpop.f32.mrf.mxu0
      %v5414 = vpop.f32.mrf.mxu0
      %v5415 = vadd.f32 0.0, %v5414
      %v5416 = vpop.f32.mrf.mxu0
      %5417 = vmatprep.mubr.bf16.mxu0 0
      %5418 = vmatmul.mubr.bf16.gmra.mxu0 %v5344
      %v5419 = vpop.f32.mrf.mxu0
      %v5420 = vadd.f32 0.0, %v5419
      %v5421 = vpop.f32.mrf.mxu0
      %v5422 = vpop.f32.mrf.mxu0
      %v5423 = vadd.f32 0.0, %v5422
      %v5424 = vpop.f32.mrf.mxu0
      %5425 = vmatprep.mubr.bf16.mxu0 0
      %5426 = vmatmul.mubr.bf16.gmra.mxu0 %v5347
      %v5427 = vpop.f32.mrf.mxu0
      %v5428 = vadd.f32 0.0, %v5427
      %v5429 = vpop.f32.mrf.mxu0
      %v5430 = vpop.f32.mrf.mxu0
      %v5431 = vadd.f32 0.0, %v5430
      %v5432 = vpop.f32.mrf.mxu0
      %5433 = vmatprep.mubr.bf16.mxu0 0
      %5434 = vmatmul.mubr.bf16.gmra.mxu0 %v5350
      %v5435 = vpop.f32.mrf.mxu0
      %v5436 = vadd.f32 0.0, %v5435
      %v5437 = vpop.f32.mrf.mxu0
      %v5438 = vpop.f32.mrf.mxu0
      %v5439 = vadd.f32 0.0, %v5438
      %v5440 = vpop.f32.mrf.mxu0
      %5441 = vmatprep.mubr.bf16.mxu0 0
      %5442 = vmatmul.mubr.bf16.gmra.mxu0 %v5353
      %v5443 = vpop.f32.mrf.mxu0
      %v5444 = vadd.f32 0.0, %v5443
      %v5445 = vpop.f32.mrf.mxu0
      %v5446 = vpop.f32.mrf.mxu0
      %v5447 = vadd.f32 0.0, %v5446
      %v5448 = vpop.f32.mrf.mxu0
      %5449 = vmatprep.mubr.bf16.mxu0 0
      %5450 = vmatmul.mubr.bf16.gmra.mxu0 %v5356
      %v5451 = vpop.f32.mrf.mxu0
      %v5452 = vadd.f32 0.0, %v5451
      %v5453 = vpop.f32.mrf.mxu0
      %v5454 = vpop.f32.mrf.mxu0
      %v5455 = vadd.f32 0.0, %v5454
      %v5456 = vpop.f32.mrf.mxu0
      %5457 = vdwg.mxu0
      %v5458 = vld [vmem:[#allocation5] sm:$0xff]
      %v5459 = vld [vmem:[#allocation5 + $0x8] sm:$0xff]
      %v5460 = vld [vmem:[#allocation5 + $0x10] sm:$0xff]
      %v5461 = vld [vmem:[#allocation5 + $0x18] sm:$0xff]
      %v5462 = vld [vmem:[#allocation5 + $0x20] sm:$0xff]
      %v5463 = vld [vmem:[#allocation5 + $0x28] sm:$0xff]
      %v5464 = vld [vmem:[#allocation5 + $0x30] sm:$0xff]
      %v5465 = vld [vmem:[#allocation5 + $0x38] sm:$0xff]
      %v5466 = vld [vmem:[#allocation5 + $0x40] sm:$0xff]
      %v5467 = vld [vmem:[#allocation5 + $0x48] sm:$0xff]
      %v5468 = vld [vmem:[#allocation5 + $0x50] sm:$0xff]
      %v5469 = vld [vmem:[#allocation5 + $0x58] sm:$0xff]
      %v5470 = vld [vmem:[#allocation5 + $0x60] sm:$0xff]
      %v5471 = vld [vmem:[#allocation5 + $0x68] sm:$0xff]
      %v5472 = vld [vmem:[#allocation5 + $0x70] sm:$0xff]
      %v5473 = vld [vmem:[#allocation5 + $0x78] sm:$0xff]
      %v5474 = vadd.f32 %v5458, %v5396
      %v5475 = vadd.f32 %v5459, %v5399
      %v5476 = vadd.f32 %v5460, %v5404
      %v5477 = vadd.f32 %v5461, %v5407
      %v5478 = vadd.f32 %v5462, %v5412
      %v5479 = vadd.f32 %v5463, %v5415
      %v5480 = vadd.f32 %v5464, %v5420
      %v5481 = vadd.f32 %v5465, %v5423
      %v5482 = vadd.f32 %v5466, %v5428
      %v5483 = vadd.f32 %v5467, %v5431
      %v5484 = vadd.f32 %v5468, %v5436
      %v5485 = vadd.f32 %v5469, %v5439
      %v5486 = vadd.f32 %v5470, %v5444
      %v5487 = vadd.f32 %v5471, %v5447
      %v5488 = vadd.f32 %v5472, %v5452
      %v5489 = vadd.f32 %v5473, %v5455
      %5490 = vst.msk [vmem:[#allocation5] sm:$0xff] %vm804, %v5474
      %5491 = vst.msk [vmem:[#allocation5 + $0x8] sm:$0xff] %vm804, %v5475
      %5492 = vst.msk [vmem:[#allocation5 + $0x10] sm:$0xff] %vm804, %v5476
      %5493 = vst.msk [vmem:[#allocation5 + $0x18] sm:$0xff] %vm804, %v5477
      %5494 = vst.msk [vmem:[#allocation5 + $0x20] sm:$0xff] %vm804, %v5478
      %5495 = vst.msk [vmem:[#allocation5 + $0x28] sm:$0xff] %vm804, %v5479
      %5496 = vst.msk [vmem:[#allocation5 + $0x30] sm:$0xff] %vm804, %v5480
      %5497 = vst.msk [vmem:[#allocation5 + $0x38] sm:$0xff] %vm804, %v5481
      %5498 = vst.msk [vmem:[#allocation5 + $0x40] sm:$0xff] %vm804, %v5482
      %5499 = vst.msk [vmem:[#allocation5 + $0x48] sm:$0xff] %vm804, %v5483
      %5500 = vst.msk [vmem:[#allocation5 + $0x50] sm:$0xff] %vm804, %v5484
      %5501 = vst.msk [vmem:[#allocation5 + $0x58] sm:$0xff] %vm804, %v5485
      %5502 = vst.msk [vmem:[#allocation5 + $0x60] sm:$0xff] %vm804, %v5486
      %5503 = vst.msk [vmem:[#allocation5 + $0x68] sm:$0xff] %vm804, %v5487
      %5504 = vst.msk [vmem:[#allocation5 + $0x70] sm:$0xff] %vm804, %v5488
      %5505 = vst.msk [vmem:[#allocation5 + $0x78] sm:$0xff] %vm804, %v5489
      %s5506 = scalar_lea.vmem [#allocation3], 16
      %v5507 = vld [vmem:[%s5506] sm:$0x8]
      %v5508 = vld [vmem:[%s5506 + $0x4] sm:$0xf]
      %v5509 = vld [vmem:[%s5506 + $0x8] sm:$0xf]
      %v5510 = vld [vmem:[%s5506 + $0x10] sm:$0x8]
      %v5511 = vld [vmem:[%s5506 + $0x14] sm:$0xf]
      %v5512 = vld [vmem:[%s5506 + $0x18] sm:$0xf]
      %v5513 = vld [vmem:[%s5506 + $0x20] sm:$0x8]
      %v5514 = vld [vmem:[%s5506 + $0x24] sm:$0xf]
      %v5515 = vld [vmem:[%s5506 + $0x28] sm:$0xf]
      %v5516 = vld [vmem:[%s5506 + $0x30] sm:$0x8]
      %v5517 = vld [vmem:[%s5506 + $0x34] sm:$0xf]
      %v5518 = vld [vmem:[%s5506 + $0x38] sm:$0xf]
      %v5519 = vld [vmem:[%s5506 + $0x40] sm:$0x8]
      %v5520 = vld [vmem:[%s5506 + $0x44] sm:$0xf]
      %v5521 = vld [vmem:[%s5506 + $0x48] sm:$0xf]
      %v5522 = vld [vmem:[%s5506 + $0x50] sm:$0x8]
      %v5523 = vld [vmem:[%s5506 + $0x54] sm:$0xf]
      %v5524 = vld [vmem:[%s5506 + $0x58] sm:$0xf]
      %v5525 = vld [vmem:[%s5506 + $0x60] sm:$0x8]
      %v5526 = vld [vmem:[%s5506 + $0x64] sm:$0xf]
      %v5527 = vld [vmem:[%s5506 + $0x68] sm:$0xf]
      %v5528 = vld [vmem:[%s5506 + $0x70] sm:$0x8]
      %v5529 = vld [vmem:[%s5506 + $0x74] sm:$0xf]
      %v5530 = vld [vmem:[%s5506 + $0x78] sm:$0xf]
      %v5532 = vshrl.u32 %v5507, 16
      %v5534 = vrot.slane %v5532, 7
      %v5535 = vrot.slane %v5534, 4
      %v5537 = vshrl.u32 %v5508, 16
      %v5539 = vrot.slane %v5537, 7
      %v5540 = vshll.u32 %v5508, 16
      %v5542 = vor.u32 %v5539, %v5540
      %v5543 = vsel %vm552, %v5535, %v5542
      %v5544 = vrot.slane %v5539, 4
      %v5546 = vshrl.u32 %v5509, 16
      %v5548 = vrot.slane %v5546, 7
      %v5549 = vshll.u32 %v5509, 16
      %v5551 = vor.u32 %v5548, %v5549
      %v5552 = vsel %vm552, %v5544, %v5551
      %v5554 = vshrl.u32 %v5510, 16
      %v5556 = vrot.slane %v5554, 7
      %v5557 = vrot.slane %v5556, 4
      %v5559 = vshrl.u32 %v5511, 16
      %v5561 = vrot.slane %v5559, 7
      %v5562 = vshll.u32 %v5511, 16
      %v5564 = vor.u32 %v5561, %v5562
      %v5565 = vsel %vm552, %v5557, %v5564
      %v5566 = vrot.slane %v5561, 4
      %v5568 = vshrl.u32 %v5512, 16
      %v5570 = vrot.slane %v5568, 7
      %v5571 = vshll.u32 %v5512, 16
      %v5573 = vor.u32 %v5570, %v5571
      %v5574 = vsel %vm552, %v5566, %v5573
      %v5576 = vshrl.u32 %v5513, 16
      %v5578 = vrot.slane %v5576, 7
      %v5579 = vrot.slane %v5578, 4
      %v5581 = vshrl.u32 %v5514, 16
      %v5583 = vrot.slane %v5581, 7
      %v5584 = vshll.u32 %v5514, 16
      %v5586 = vor.u32 %v5583, %v5584
      %v5587 = vsel %vm552, %v5579, %v5586
      %v5588 = vrot.slane %v5583, 4
      %v5590 = vshrl.u32 %v5515, 16
      %v5592 = vrot.slane %v5590, 7
      %v5593 = vshll.u32 %v5515, 16
      %v5595 = vor.u32 %v5592, %v5593
      %v5596 = vsel %vm552, %v5588, %v5595
      %v5598 = vshrl.u32 %v5516, 16
      %v5600 = vrot.slane %v5598, 7
      %v5601 = vrot.slane %v5600, 4
      %v5603 = vshrl.u32 %v5517, 16
      %v5605 = vrot.slane %v5603, 7
      %v5606 = vshll.u32 %v5517, 16
      %v5608 = vor.u32 %v5605, %v5606
      %v5609 = vsel %vm552, %v5601, %v5608
      %v5610 = vrot.slane %v5605, 4
      %v5612 = vshrl.u32 %v5518, 16
      %v5614 = vrot.slane %v5612, 7
      %v5615 = vshll.u32 %v5518, 16
      %v5617 = vor.u32 %v5614, %v5615
      %v5618 = vsel %vm552, %v5610, %v5617
      %v5620 = vshrl.u32 %v5519, 16
      %v5622 = vrot.slane %v5620, 7
      %v5623 = vrot.slane %v5622, 4
      %v5625 = vshrl.u32 %v5520, 16
      %v5627 = vrot.slane %v5625, 7
      %v5628 = vshll.u32 %v5520, 16
      %v5630 = vor.u32 %v5627, %v5628
      %v5631 = vsel %vm552, %v5623, %v5630
      %v5632 = vrot.slane %v5627, 4
      %v5634 = vshrl.u32 %v5521, 16
      %v5636 = vrot.slane %v5634, 7
      %v5637 = vshll.u32 %v5521, 16
      %v5639 = vor.u32 %v5636, %v5637
      %v5640 = vsel %vm552, %v5632, %v5639
      %v5642 = vshrl.u32 %v5522, 16
      %v5644 = vrot.slane %v5642, 7
      %v5645 = vrot.slane %v5644, 4
      %v5647 = vshrl.u32 %v5523, 16
      %v5649 = vrot.slane %v5647, 7
      %v5650 = vshll.u32 %v5523, 16
      %v5652 = vor.u32 %v5649, %v5650
      %v5653 = vsel %vm552, %v5645, %v5652
      %v5654 = vrot.slane %v5649, 4
      %v5656 = vshrl.u32 %v5524, 16
      %v5658 = vrot.slane %v5656, 7
      %v5659 = vshll.u32 %v5524, 16
      %v5661 = vor.u32 %v5658, %v5659
      %v5662 = vsel %vm552, %v5654, %v5661
      %v5664 = vshrl.u32 %v5525, 16
      %v5666 = vrot.slane %v5664, 7
      %v5667 = vrot.slane %v5666, 4
      %v5669 = vshrl.u32 %v5526, 16
      %v5671 = vrot.slane %v5669, 7
      %v5672 = vshll.u32 %v5526, 16
      %v5674 = vor.u32 %v5671, %v5672
      %v5675 = vsel %vm552, %v5667, %v5674
      %v5676 = vrot.slane %v5671, 4
      %v5678 = vshrl.u32 %v5527, 16
      %v5680 = vrot.slane %v5678, 7
      %v5681 = vshll.u32 %v5527, 16
      %v5683 = vor.u32 %v5680, %v5681
      %v5684 = vsel %vm552, %v5676, %v5683
      %v5686 = vshrl.u32 %v5528, 16
      %v5688 = vrot.slane %v5686, 7
      %v5689 = vrot.slane %v5688, 4
      %v5691 = vshrl.u32 %v5529, 16
      %v5693 = vrot.slane %v5691, 7
      %v5694 = vshll.u32 %v5529, 16
      %v5696 = vor.u32 %v5693, %v5694
      %v5697 = vsel %vm552, %v5689, %v5696
      %v5698 = vrot.slane %v5693, 4
      %v5700 = vshrl.u32 %v5530, 16
      %v5702 = vrot.slane %v5700, 7
      %v5703 = vshll.u32 %v5530, 16
      %v5705 = vor.u32 %v5702, %v5703
      %v5706 = vsel %vm552, %v5698, %v5705
      %s5707 = scalar_lea.vmem %s2, 6
      %v5708 = vld [vmem:[%s5707] sm:$0x3]
      %v5709 = vunpack.c.l.b16 %v5543
      %v5710 = vunpack.c.l.b16 %v5552
      %v5711 = vunpack.c.l.b16 %v5565
      %v5712 = vunpack.c.l.b16 %v5574
      %v5713 = vunpack.c.l.b16 %v5587
      %v5714 = vunpack.c.l.b16 %v5596
      %v5715 = vunpack.c.l.b16 %v5609
      %v5716 = vunpack.c.l.b16 %v5618
      %v5717 = vunpack.c.l.b16 %v5631
      %v5718 = vunpack.c.l.b16 %v5640
      %v5719 = vunpack.c.l.b16 %v5653
      %v5720 = vunpack.c.l.b16 %v5662
      %v5721 = vunpack.c.l.b16 %v5675
      %v5722 = vunpack.c.l.b16 %v5684
      %v5723 = vunpack.c.l.b16 %v5697
      %v5724 = vunpack.c.l.b16 %v5706
      %v5725 = vpack.c.b16 %v5710, %v5709
      %v5726 = vpack.c.b16 %v5712, %v5711
      %v5727 = vpack.c.b16 %v5714, %v5713
      %v5728 = vpack.c.b16 %v5716, %v5715
      %v5729 = vpack.c.b16 %v5718, %v5717
      %v5730 = vpack.c.b16 %v5720, %v5719
      %v5731 = vpack.c.b16 %v5722, %v5721
      %v5732 = vpack.c.b16 %v5724, %v5723
      %v5734 = vsel %vm804, %v5725, 0
      %v5737 = vsel %vm804, %v5726, 0
      %v5740 = vsel %vm804, %v5727, 0
      %v5743 = vsel %vm804, %v5728, 0
      %v5746 = vsel %vm804, %v5729, 0
      %v5749 = vsel %vm804, %v5730, 0
      %v5752 = vsel %vm804, %v5731, 0
      %v5755 = vsel %vm804, %v5732, 0
      %v5758 = vsel %vm835, %v5708, 0
      %5760 = vmatprep.subr.bf16.mxu0 0
      %5761 = vmatpush1.bf16.msra.mxu0 0
      %5762 = vmatprep.subr.bf16.mxu0 0
      %5763 = vmatpush1.bf16.msra.mxu0 0
      %5764 = vmatprep.subr.bf16.mxu0 0
      %5765 = vmatpush1.bf16.msra.mxu0 0
      %5766 = vmatprep.subr.bf16.mxu0 0
      %5767 = vmatpush1.bf16.msra.mxu0 0
      %5768 = vmatprep.subr.bf16.mxu0 0
      %5769 = vmatpush1.bf16.msra.mxu0 0
      %5770 = vmatprep.subr.bf16.mxu0 0
      %5771 = vmatpush1.bf16.msra.mxu0 0
      %5772 = vmatprep.subr.bf16.mxu0 0
      %5773 = vmatpush1.bf16.msra.mxu0 0
      %5774 = vmatprep.subr.bf16.mxu0 0
      %5775 = vmatpush1.bf16.msra.mxu0 %v5758
      %5776 = vmatprep.subr.bf16.mxu0 0
      %5777 = vmatpush2.bf16.msra.mxu0 0
      %5778 = vmatprep.subr.bf16.mxu0 0
      %5779 = vmatpush2.bf16.msra.mxu0 0
      %5780 = vmatprep.subr.bf16.mxu0 0
      %5781 = vmatpush2.bf16.msra.mxu0 0
      %5782 = vmatprep.subr.bf16.mxu0 0
      %5783 = vmatpush2.bf16.msra.mxu0 0
      %5784 = vmatprep.subr.bf16.mxu0 0
      %5785 = vmatpush2.bf16.msra.mxu0 0
      %5786 = vmatprep.subr.bf16.mxu0 0
      %5787 = vmatpush2.bf16.msra.mxu0 0
      %5788 = vmatprep.subr.bf16.mxu0 0
      %5789 = vmatpush2.bf16.msra.mxu0 0
      %5790 = vmatprep.subr.bf16.mxu0 0
      %5791 = vmatpush2.bf16.msra.mxu0 0
      %5792 = vmatprep.mubr.bf16.mxu0 0
      %5793 = vmatmul.mubr.bf16.gmra.mxu0 %v5734
      %v5794 = vpop.f32.mrf.mxu0
      %v5795 = vadd.f32 0.0, %v5794
      %v5796 = vpop.f32.mrf.mxu0
      %v5797 = vpop.f32.mrf.mxu0
      %v5798 = vadd.f32 0.0, %v5797
      %v5799 = vpop.f32.mrf.mxu0
      %5800 = vmatprep.mubr.bf16.mxu0 0
      %5801 = vmatmul.mubr.bf16.gmra.mxu0 %v5737
      %v5802 = vpop.f32.mrf.mxu0
      %v5803 = vadd.f32 0.0, %v5802
      %v5804 = vpop.f32.mrf.mxu0
      %v5805 = vpop.f32.mrf.mxu0
      %v5806 = vadd.f32 0.0, %v5805
      %v5807 = vpop.f32.mrf.mxu0
      %5808 = vmatprep.mubr.bf16.mxu0 0
      %5809 = vmatmul.mubr.bf16.gmra.mxu0 %v5740
      %v5810 = vpop.f32.mrf.mxu0
      %v5811 = vadd.f32 0.0, %v5810
      %v5812 = vpop.f32.mrf.mxu0
      %v5813 = vpop.f32.mrf.mxu0
      %v5814 = vadd.f32 0.0, %v5813
      %v5815 = vpop.f32.mrf.mxu0
      %5816 = vmatprep.mubr.bf16.mxu0 0
      %5817 = vmatmul.mubr.bf16.gmra.mxu0 %v5743
      %v5818 = vpop.f32.mrf.mxu0
      %v5819 = vadd.f32 0.0, %v5818
      %v5820 = vpop.f32.mrf.mxu0
      %v5821 = vpop.f32.mrf.mxu0
      %v5822 = vadd.f32 0.0, %v5821
      %v5823 = vpop.f32.mrf.mxu0
      %5824 = vmatprep.mubr.bf16.mxu0 0
      %5825 = vmatmul.mubr.bf16.gmra.mxu0 %v5746
      %v5826 = vpop.f32.mrf.mxu0
      %v5827 = vadd.f32 0.0, %v5826
      %v5828 = vpop.f32.mrf.mxu0
      %v5829 = vpop.f32.mrf.mxu0
      %v5830 = vadd.f32 0.0, %v5829
      %v5831 = vpop.f32.mrf.mxu0
      %5832 = vmatprep.mubr.bf16.mxu0 0
      %5833 = vmatmul.mubr.bf16.gmra.mxu0 %v5749
      %v5834 = vpop.f32.mrf.mxu0
      %v5835 = vadd.f32 0.0, %v5834
      %v5836 = vpop.f32.mrf.mxu0
      %v5837 = vpop.f32.mrf.mxu0
      %v5838 = vadd.f32 0.0, %v5837
      %v5839 = vpop.f32.mrf.mxu0
      %5840 = vmatprep.mubr.bf16.mxu0 0
      %5841 = vmatmul.mubr.bf16.gmra.mxu0 %v5752
      %v5842 = vpop.f32.mrf.mxu0
      %v5843 = vadd.f32 0.0, %v5842
      %v5844 = vpop.f32.mrf.mxu0
      %v5845 = vpop.f32.mrf.mxu0
      %v5846 = vadd.f32 0.0, %v5845
      %v5847 = vpop.f32.mrf.mxu0
      %5848 = vmatprep.mubr.bf16.mxu0 0
      %5849 = vmatmul.mubr.bf16.gmra.mxu0 %v5755
      %v5850 = vpop.f32.mrf.mxu0
      %v5851 = vadd.f32 0.0, %v5850
      %v5852 = vpop.f32.mrf.mxu0
      %v5853 = vpop.f32.mrf.mxu0
      %v5854 = vadd.f32 0.0, %v5853
      %v5855 = vpop.f32.mrf.mxu0
      %5856 = vdwg.mxu0
      %v5857 = vld [vmem:[#allocation5] sm:$0xff]
      %v5858 = vld [vmem:[#allocation5 + $0x8] sm:$0xff]
      %v5859 = vld [vmem:[#allocation5 + $0x10] sm:$0xff]
      %v5860 = vld [vmem:[#allocation5 + $0x18] sm:$0xff]
      %v5861 = vld [vmem:[#allocation5 + $0x20] sm:$0xff]
      %v5862 = vld [vmem:[#allocation5 + $0x28] sm:$0xff]
      %v5863 = vld [vmem:[#allocation5 + $0x30] sm:$0xff]
      %v5864 = vld [vmem:[#allocation5 + $0x38] sm:$0xff]
      %v5865 = vld [vmem:[#allocation5 + $0x40] sm:$0xff]
      %v5866 = vld [vmem:[#allocation5 + $0x48] sm:$0xff]
      %v5867 = vld [vmem:[#allocation5 + $0x50] sm:$0xff]
      %v5868 = vld [vmem:[#allocation5 + $0x58] sm:$0xff]
      %v5869 = vld [vmem:[#allocation5 + $0x60] sm:$0xff]
      %v5870 = vld [vmem:[#allocation5 + $0x68] sm:$0xff]
      %v5871 = vld [vmem:[#allocation5 + $0x70] sm:$0xff]
      %v5872 = vld [vmem:[#allocation5 + $0x78] sm:$0xff]
      %v5873 = vadd.f32 %v5857, %v5795
      %v5874 = vadd.f32 %v5858, %v5798
      %v5875 = vadd.f32 %v5859, %v5803
      %v5876 = vadd.f32 %v5860, %v5806
      %v5877 = vadd.f32 %v5861, %v5811
      %v5878 = vadd.f32 %v5862, %v5814
      %v5879 = vadd.f32 %v5863, %v5819
      %v5880 = vadd.f32 %v5864, %v5822
      %v5881 = vadd.f32 %v5865, %v5827
      %v5882 = vadd.f32 %v5866, %v5830
      %v5883 = vadd.f32 %v5867, %v5835
      %v5884 = vadd.f32 %v5868, %v5838
      %v5885 = vadd.f32 %v5869, %v5843
      %v5886 = vadd.f32 %v5870, %v5846
      %v5887 = vadd.f32 %v5871, %v5851
      %v5888 = vadd.f32 %v5872, %v5854
      %5889 = vst.msk [vmem:[#allocation5] sm:$0xff] %vm804, %v5873
      %5890 = vst.msk [vmem:[#allocation5 + $0x8] sm:$0xff] %vm804, %v5874
      %5891 = vst.msk [vmem:[#allocation5 + $0x10] sm:$0xff] %vm804, %v5875
      %5892 = vst.msk [vmem:[#allocation5 + $0x18] sm:$0xff] %vm804, %v5876
      %5893 = vst.msk [vmem:[#allocation5 + $0x20] sm:$0xff] %vm804, %v5877
      %5894 = vst.msk [vmem:[#allocation5 + $0x28] sm:$0xff] %vm804, %v5878
      %5895 = vst.msk [vmem:[#allocation5 + $0x30] sm:$0xff] %vm804, %v5879
      %5896 = vst.msk [vmem:[#allocation5 + $0x38] sm:$0xff] %vm804, %v5880
      %5897 = vst.msk [vmem:[#allocation5 + $0x40] sm:$0xff] %vm804, %v5881
      %5898 = vst.msk [vmem:[#allocation5 + $0x48] sm:$0xff] %vm804, %v5882
      %5899 = vst.msk [vmem:[#allocation5 + $0x50] sm:$0xff] %vm804, %v5883
      %5900 = vst.msk [vmem:[#allocation5 + $0x58] sm:$0xff] %vm804, %v5884
      %5901 = vst.msk [vmem:[#allocation5 + $0x60] sm:$0xff] %vm804, %v5885
      %5902 = vst.msk [vmem:[#allocation5 + $0x68] sm:$0xff] %vm804, %v5886
      %5903 = vst.msk [vmem:[#allocation5 + $0x70] sm:$0xff] %vm804, %v5887
      %5904 = vst.msk [vmem:[#allocation5 + $0x78] sm:$0xff] %vm804, %v5888
      %v5905 = vld [vmem:[%s5506 + $0x4] sm:$0xf]
      %v5906 = vld [vmem:[%s5506 + $0x8] sm:$0xf]
      %v5907 = vld [vmem:[%s5506 + $0x14] sm:$0xf]
      %v5908 = vld [vmem:[%s5506 + $0x18] sm:$0xf]
      %v5909 = vld [vmem:[%s5506 + $0x24] sm:$0xf]
      %v5910 = vld [vmem:[%s5506 + $0x28] sm:$0xf]
      %v5911 = vld [vmem:[%s5506 + $0x34] sm:$0xf]
      %v5912 = vld [vmem:[%s5506 + $0x38] sm:$0xf]
      %v5913 = vld [vmem:[%s5506 + $0x44] sm:$0xf]
      %v5914 = vld [vmem:[%s5506 + $0x48] sm:$0xf]
      %v5915 = vld [vmem:[%s5506 + $0x54] sm:$0xf]
      %v5916 = vld [vmem:[%s5506 + $0x58] sm:$0xf]
      %v5917 = vld [vmem:[%s5506 + $0x64] sm:$0xf]
      %v5918 = vld [vmem:[%s5506 + $0x68] sm:$0xf]
      %v5919 = vld [vmem:[%s5506 + $0x74] sm:$0xf]
      %v5920 = vld [vmem:[%s5506 + $0x78] sm:$0xf]
      %s5921 = scalar_lea.vmem %s2, 8
      %v5922 = vld [vmem:[%s5921] sm:$0x3]
      %v5939 = vunpack.c.l.b16 %v5905
      %v5940 = vunpack.c.l.b16 %v5906
      %v5941 = vunpack.c.l.b16 %v5907
      %v5942 = vunpack.c.l.b16 %v5908
      %v5943 = vunpack.c.l.b16 %v5909
      %v5944 = vunpack.c.l.b16 %v5910
      %v5945 = vunpack.c.l.b16 %v5911
      %v5946 = vunpack.c.l.b16 %v5912
      %v5947 = vunpack.c.l.b16 %v5913
      %v5948 = vunpack.c.l.b16 %v5914
      %v5949 = vunpack.c.l.b16 %v5915
      %v5950 = vunpack.c.l.b16 %v5916
      %v5951 = vunpack.c.l.b16 %v5917
      %v5952 = vunpack.c.l.b16 %v5918
      %v5953 = vunpack.c.l.b16 %v5919
      %v5954 = vunpack.c.l.b16 %v5920
      %v5955 = vpack.c.b16 %v5940, %v5939
      %v5956 = vpack.c.b16 %v5942, %v5941
      %v5957 = vpack.c.b16 %v5944, %v5943
      %v5958 = vpack.c.b16 %v5946, %v5945
      %v5959 = vpack.c.b16 %v5948, %v5947
      %v5960 = vpack.c.b16 %v5950, %v5949
      %v5961 = vpack.c.b16 %v5952, %v5951
      %v5962 = vpack.c.b16 %v5954, %v5953
      %v5964 = vsel %vm804, %v5955, 0
      %v5967 = vsel %vm804, %v5956, 0
      %v5970 = vsel %vm804, %v5957, 0
      %v5973 = vsel %vm804, %v5958, 0
      %v5976 = vsel %vm804, %v5959, 0
      %v5979 = vsel %vm804, %v5960, 0
      %v5982 = vsel %vm804, %v5961, 0
      %v5985 = vsel %vm804, %v5962, 0
      %v5988 = vsel %vm835, %v5922, 0
      %5990 = vmatprep.subr.bf16.mxu0 0
      %5991 = vmatpush1.bf16.msra.mxu0 0
      %5992 = vmatprep.subr.bf16.mxu0 0
      %5993 = vmatpush1.bf16.msra.mxu0 0
      %5994 = vmatprep.subr.bf16.mxu0 0
      %5995 = vmatpush1.bf16.msra.mxu0 0
      %5996 = vmatprep.subr.bf16.mxu0 0
      %5997 = vmatpush1.bf16.msra.mxu0 0
      %5998 = vmatprep.subr.bf16.mxu0 0
      %5999 = vmatpush1.bf16.msra.mxu0 0
      %6000 = vmatprep.subr.bf16.mxu0 0
      %6001 = vmatpush1.bf16.msra.mxu0 0
      %6002 = vmatprep.subr.bf16.mxu0 0
      %6003 = vmatpush1.bf16.msra.mxu0 0
      %6004 = vmatprep.subr.bf16.mxu0 0
      %6005 = vmatpush1.bf16.msra.mxu0 %v5988
      %6006 = vmatprep.subr.bf16.mxu0 0
      %6007 = vmatpush2.bf16.msra.mxu0 0
      %6008 = vmatprep.subr.bf16.mxu0 0
      %6009 = vmatpush2.bf16.msra.mxu0 0
      %6010 = vmatprep.subr.bf16.mxu0 0
      %6011 = vmatpush2.bf16.msra.mxu0 0
      %6012 = vmatprep.subr.bf16.mxu0 0
      %6013 = vmatpush2.bf16.msra.mxu0 0
      %6014 = vmatprep.subr.bf16.mxu0 0
      %6015 = vmatpush2.bf16.msra.mxu0 0
      %6016 = vmatprep.subr.bf16.mxu0 0
      %6017 = vmatpush2.bf16.msra.mxu0 0
      %6018 = vmatprep.subr.bf16.mxu0 0
      %6019 = vmatpush2.bf16.msra.mxu0 0
      %6020 = vmatprep.subr.bf16.mxu0 0
      %6021 = vmatpush2.bf16.msra.mxu0 0
      %6022 = vmatprep.mubr.bf16.mxu0 0
      %6023 = vmatmul.mubr.bf16.gmra.mxu0 %v5964
      %v6024 = vpop.f32.mrf.mxu0
      %v6025 = vadd.f32 0.0, %v6024
      %v6026 = vpop.f32.mrf.mxu0
      %v6027 = vpop.f32.mrf.mxu0
      %v6028 = vadd.f32 0.0, %v6027
      %v6029 = vpop.f32.mrf.mxu0
      %6030 = vmatprep.mubr.bf16.mxu0 0
      %6031 = vmatmul.mubr.bf16.gmra.mxu0 %v5967
      %v6032 = vpop.f32.mrf.mxu0
      %v6033 = vadd.f32 0.0, %v6032
      %v6034 = vpop.f32.mrf.mxu0
      %v6035 = vpop.f32.mrf.mxu0
      %v6036 = vadd.f32 0.0, %v6035
      %v6037 = vpop.f32.mrf.mxu0
      %6038 = vmatprep.mubr.bf16.mxu0 0
      %6039 = vmatmul.mubr.bf16.gmra.mxu0 %v5970
      %v6040 = vpop.f32.mrf.mxu0
      %v6041 = vadd.f32 0.0, %v6040
      %v6042 = vpop.f32.mrf.mxu0
      %v6043 = vpop.f32.mrf.mxu0
      %v6044 = vadd.f32 0.0, %v6043
      %v6045 = vpop.f32.mrf.mxu0
      %6046 = vmatprep.mubr.bf16.mxu0 0
      %6047 = vmatmul.mubr.bf16.gmra.mxu0 %v5973
      %v6048 = vpop.f32.mrf.mxu0
      %v6049 = vadd.f32 0.0, %v6048
      %v6050 = vpop.f32.mrf.mxu0
      %v6051 = vpop.f32.mrf.mxu0
      %v6052 = vadd.f32 0.0, %v6051
      %v6053 = vpop.f32.mrf.mxu0
      %6054 = vmatprep.mubr.bf16.mxu0 0
      %6055 = vmatmul.mubr.bf16.gmra.mxu0 %v5976
      %v6056 = vpop.f32.mrf.mxu0
      %v6057 = vadd.f32 0.0, %v6056
      %v6058 = vpop.f32.mrf.mxu0
      %v6059 = vpop.f32.mrf.mxu0
      %v6060 = vadd.f32 0.0, %v6059
      %v6061 = vpop.f32.mrf.mxu0
      %6062 = vmatprep.mubr.bf16.mxu0 0
      %6063 = vmatmul.mubr.bf16.gmra.mxu0 %v5979
      %v6064 = vpop.f32.mrf.mxu0
      %v6065 = vadd.f32 0.0, %v6064
      %v6066 = vpop.f32.mrf.mxu0
      %v6067 = vpop.f32.mrf.mxu0
      %v6068 = vadd.f32 0.0, %v6067
      %v6069 = vpop.f32.mrf.mxu0
      %6070 = vmatprep.mubr.bf16.mxu0 0
      %6071 = vmatmul.mubr.bf16.gmra.mxu0 %v5982
      %v6072 = vpop.f32.mrf.mxu0
      %v6073 = vadd.f32 0.0, %v6072
      %v6074 = vpop.f32.mrf.mxu0
      %v6075 = vpop.f32.mrf.mxu0
      %v6076 = vadd.f32 0.0, %v6075
      %v6077 = vpop.f32.mrf.mxu0
      %6078 = vmatprep.mubr.bf16.mxu0 0
      %6079 = vmatmul.mubr.bf16.gmra.mxu0 %v5985
      %v6080 = vpop.f32.mrf.mxu0
      %v6081 = vadd.f32 0.0, %v6080
      %v6082 = vpop.f32.mrf.mxu0
      %v6083 = vpop.f32.mrf.mxu0
      %v6084 = vadd.f32 0.0, %v6083
      %v6085 = vpop.f32.mrf.mxu0
      %6086 = vdwg.mxu0
      %v6087 = vld [vmem:[#allocation5] sm:$0xff]
      %v6088 = vld [vmem:[#allocation5 + $0x8] sm:$0xff]
      %v6089 = vld [vmem:[#allocation5 + $0x10] sm:$0xff]
      %v6090 = vld [vmem:[#allocation5 + $0x18] sm:$0xff]
      %v6091 = vld [vmem:[#allocation5 + $0x20] sm:$0xff]
      %v6092 = vld [vmem:[#allocation5 + $0x28] sm:$0xff]
      %v6093 = vld [vmem:[#allocation5 + $0x30] sm:$0xff]
      %v6094 = vld [vmem:[#allocation5 + $0x38] sm:$0xff]
      %v6095 = vld [vmem:[#allocation5 + $0x40] sm:$0xff]
      %v6096 = vld [vmem:[#allocation5 + $0x48] sm:$0xff]
      %v6097 = vld [vmem:[#allocation5 + $0x50] sm:$0xff]
      %v6098 = vld [vmem:[#allocation5 + $0x58] sm:$0xff]
      %v6099 = vld [vmem:[#allocation5 + $0x60] sm:$0xff]
      %v6100 = vld [vmem:[#allocation5 + $0x68] sm:$0xff]
      %v6101 = vld [vmem:[#allocation5 + $0x70] sm:$0xff]
      %v6102 = vld [vmem:[#allocation5 + $0x78] sm:$0xff]
      %v6103 = vadd.f32 %v6087, %v6025
      %v6104 = vadd.f32 %v6088, %v6028
      %v6105 = vadd.f32 %v6089, %v6033
      %v6106 = vadd.f32 %v6090, %v6036
      %v6107 = vadd.f32 %v6091, %v6041
      %v6108 = vadd.f32 %v6092, %v6044
      %v6109 = vadd.f32 %v6093, %v6049
      %v6110 = vadd.f32 %v6094, %v6052
      %v6111 = vadd.f32 %v6095, %v6057
      %v6112 = vadd.f32 %v6096, %v6060
      %v6113 = vadd.f32 %v6097, %v6065
      %v6114 = vadd.f32 %v6098, %v6068
      %v6115 = vadd.f32 %v6099, %v6073
      %v6116 = vadd.f32 %v6100, %v6076
      %v6117 = vadd.f32 %v6101, %v6081
      %v6118 = vadd.f32 %v6102, %v6084
      %6119 = vst.msk [vmem:[#allocation5] sm:$0xff] %vm804, %v6103
      %6120 = vst.msk [vmem:[#allocation5 + $0x8] sm:$0xff] %vm804, %v6104
      %6121 = vst.msk [vmem:[#allocation5 + $0x10] sm:$0xff] %vm804, %v6105
      %6122 = vst.msk [vmem:[#allocation5 + $0x18] sm:$0xff] %vm804, %v6106
      %6123 = vst.msk [vmem:[#allocation5 + $0x20] sm:$0xff] %vm804, %v6107
      %6124 = vst.msk [vmem:[#allocation5 + $0x28] sm:$0xff] %vm804, %v6108
      %6125 = vst.msk [vmem:[#allocation5 + $0x30] sm:$0xff] %vm804, %v6109
      %6126 = vst.msk [vmem:[#allocation5 + $0x38] sm:$0xff] %vm804, %v6110
      %6127 = vst.msk [vmem:[#allocation5 + $0x40] sm:$0xff] %vm804, %v6111
      %6128 = vst.msk [vmem:[#allocation5 + $0x48] sm:$0xff] %vm804, %v6112
      %6129 = vst.msk [vmem:[#allocation5 + $0x50] sm:$0xff] %vm804, %v6113
      %6130 = vst.msk [vmem:[#allocation5 + $0x58] sm:$0xff] %vm804, %v6114
      %6131 = vst.msk [vmem:[#allocation5 + $0x60] sm:$0xff] %vm804, %v6115
      %6132 = vst.msk [vmem:[#allocation5 + $0x68] sm:$0xff] %vm804, %v6116
      %6133 = vst.msk [vmem:[#allocation5 + $0x70] sm:$0xff] %vm804, %v6117
      %6134 = vst.msk [vmem:[#allocation5 + $0x78] sm:$0xff] %vm804, %v6118
      %v6135 = vld [vmem:[%s5506 + $0x4] sm:$0xf]
      %v6136 = vld [vmem:[%s5506 + $0x8] sm:$0xf]
      %v6137 = vld [vmem:[%s5506 + $0xc] sm:$0x1]
      %v6138 = vld [vmem:[%s5506 + $0x14] sm:$0xf]
      %v6139 = vld [vmem:[%s5506 + $0x18] sm:$0xf]
      %v6140 = vld [vmem:[%s5506 + $0x1c] sm:$0x1]
      %v6141 = vld [vmem:[%s5506 + $0x24] sm:$0xf]
      %v6142 = vld [vmem:[%s5506 + $0x28] sm:$0xf]
      %v6143 = vld [vmem:[%s5506 + $0x2c] sm:$0x1]
      %v6144 = vld [vmem:[%s5506 + $0x34] sm:$0xf]
      %v6145 = vld [vmem:[%s5506 + $0x38] sm:$0xf]
      %v6146 = vld [vmem:[%s5506 + $0x3c] sm:$0x1]
      %v6147 = vld [vmem:[%s5506 + $0x44] sm:$0xf]
      %v6148 = vld [vmem:[%s5506 + $0x48] sm:$0xf]
      %v6149 = vld [vmem:[%s5506 + $0x4c] sm:$0x1]
      %v6150 = vld [vmem:[%s5506 + $0x54] sm:$0xf]
      %v6151 = vld [vmem:[%s5506 + $0x58] sm:$0xf]
      %v6152 = vld [vmem:[%s5506 + $0x5c] sm:$0x1]
      %v6153 = vld [vmem:[%s5506 + $0x64] sm:$0xf]
      %v6154 = vld [vmem:[%s5506 + $0x68] sm:$0xf]
      %v6155 = vld [vmem:[%s5506 + $0x6c] sm:$0x1]
      %v6156 = vld [vmem:[%s5506 + $0x74] sm:$0xf]
      %v6157 = vld [vmem:[%s5506 + $0x78] sm:$0xf]
      %v6158 = vld [vmem:[%s5506 + $0x7c] sm:$0x1]
      %v6160 = vshrl.u32 %v6135, 16
      %v6162 = vrot.slane %v6160, 4
      %v6163 = vshll.u32 %v6135, 16
      %v6165 = vrot.slane %v6163, 5
      %v6166 = vor.u32 %v6162, %v6165
      %v6167 = vrot.slane %v6166, 4
      %v6169 = vshll.u32 %v6136, 16
      %v6171 = vrot.slane %v6169, 5
      %v6172 = vsel %vm1282, %v6167, %v6171
      %v6173 = vshrl.u32 %v6136, 16
      %v6175 = vrot.slane %v6173, 4
      %v6176 = vor.u32 %v6175, %v6171
      %v6177 = vrot.slane %v6176, 4
      %v6179 = vshll.u32 %v6137, 16
      %v6181 = vrot.slane %v6179, 5
      %v6182 = vsel %vm1282, %v6177, %v6181
      %v6184 = vshrl.u32 %v6138, 16
      %v6186 = vrot.slane %v6184, 4
      %v6187 = vshll.u32 %v6138, 16
      %v6189 = vrot.slane %v6187, 5
      %v6190 = vor.u32 %v6186, %v6189
      %v6191 = vrot.slane %v6190, 4
      %v6193 = vshll.u32 %v6139, 16
      %v6195 = vrot.slane %v6193, 5
      %v6196 = vsel %vm1282, %v6191, %v6195
      %v6197 = vshrl.u32 %v6139, 16
      %v6199 = vrot.slane %v6197, 4
      %v6200 = vor.u32 %v6199, %v6195
      %v6201 = vrot.slane %v6200, 4
      %v6203 = vshll.u32 %v6140, 16
      %v6205 = vrot.slane %v6203, 5
      %v6206 = vsel %vm1282, %v6201, %v6205
      %v6208 = vshrl.u32 %v6141, 16
      %v6210 = vrot.slane %v6208, 4
      %v6211 = vshll.u32 %v6141, 16
      %v6213 = vrot.slane %v6211, 5
      %v6214 = vor.u32 %v6210, %v6213
      %v6215 = vrot.slane %v6214, 4
      %v6217 = vshll.u32 %v6142, 16
      %v6219 = vrot.slane %v6217, 5
      %v6220 = vsel %vm1282, %v6215, %v6219
      %v6221 = vshrl.u32 %v6142, 16
      %v6223 = vrot.slane %v6221, 4
      %v6224 = vor.u32 %v6223, %v6219
      %v6225 = vrot.slane %v6224, 4
      %v6227 = vshll.u32 %v6143, 16
      %v6229 = vrot.slane %v6227, 5
      %v6230 = vsel %vm1282, %v6225, %v6229
      %v6232 = vshrl.u32 %v6144, 16
      %v6234 = vrot.slane %v6232, 4
      %v6235 = vshll.u32 %v6144, 16
      %v6237 = vrot.slane %v6235, 5
      %v6238 = vor.u32 %v6234, %v6237
      %v6239 = vrot.slane %v6238, 4
      %v6241 = vshll.u32 %v6145, 16
      %v6243 = vrot.slane %v6241, 5
      %v6244 = vsel %vm1282, %v6239, %v6243
      %v6245 = vshrl.u32 %v6145, 16
      %v6247 = vrot.slane %v6245, 4
      %v6248 = vor.u32 %v6247, %v6243
      %v6249 = vrot.slane %v6248, 4
      %v6251 = vshll.u32 %v6146, 16
      %v6253 = vrot.slane %v6251, 5
      %v6254 = vsel %vm1282, %v6249, %v6253
      %v6256 = vshrl.u32 %v6147, 16
      %v6258 = vrot.slane %v6256, 4
      %v6259 = vshll.u32 %v6147, 16
      %v6261 = vrot.slane %v6259, 5
      %v6262 = vor.u32 %v6258, %v6261
      %v6263 = vrot.slane %v6262, 4
      %v6265 = vshll.u32 %v6148, 16
      %v6267 = vrot.slane %v6265, 5
      %v6268 = vsel %vm1282, %v6263, %v6267
      %v6269 = vshrl.u32 %v6148, 16
      %v6271 = vrot.slane %v6269, 4
      %v6272 = vor.u32 %v6271, %v6267
      %v6273 = vrot.slane %v6272, 4
      %v6275 = vshll.u32 %v6149, 16
      %v6277 = vrot.slane %v6275, 5
      %v6278 = vsel %vm1282, %v6273, %v6277
      %v6280 = vshrl.u32 %v6150, 16
      %v6282 = vrot.slane %v6280, 4
      %v6283 = vshll.u32 %v6150, 16
      %v6285 = vrot.slane %v6283, 5
      %v6286 = vor.u32 %v6282, %v6285
      %v6287 = vrot.slane %v6286, 4
      %v6289 = vshll.u32 %v6151, 16
      %v6291 = vrot.slane %v6289, 5
      %v6292 = vsel %vm1282, %v6287, %v6291
      %v6293 = vshrl.u32 %v6151, 16
      %v6295 = vrot.slane %v6293, 4
      %v6296 = vor.u32 %v6295, %v6291
      %v6297 = vrot.slane %v6296, 4
      %v6299 = vshll.u32 %v6152, 16
      %v6301 = vrot.slane %v6299, 5
      %v6302 = vsel %vm1282, %v6297, %v6301
      %v6304 = vshrl.u32 %v6153, 16
      %v6306 = vrot.slane %v6304, 4
      %v6307 = vshll.u32 %v6153, 16
      %v6309 = vrot.slane %v6307, 5
      %v6310 = vor.u32 %v6306, %v6309
      %v6311 = vrot.slane %v6310, 4
      %v6313 = vshll.u32 %v6154, 16
      %v6315 = vrot.slane %v6313, 5
      %v6316 = vsel %vm1282, %v6311, %v6315
      %v6317 = vshrl.u32 %v6154, 16
      %v6319 = vrot.slane %v6317, 4
      %v6320 = vor.u32 %v6319, %v6315
      %v6321 = vrot.slane %v6320, 4
      %v6323 = vshll.u32 %v6155, 16
      %v6325 = vrot.slane %v6323, 5
      %v6326 = vsel %vm1282, %v6321, %v6325
      %v6328 = vshrl.u32 %v6156, 16
      %v6330 = vrot.slane %v6328, 4
      %v6331 = vshll.u32 %v6156, 16
      %v6333 = vrot.slane %v6331, 5
      %v6334 = vor.u32 %v6330, %v6333
      %v6335 = vrot.slane %v6334, 4
      %v6337 = vshll.u32 %v6157, 16
      %v6339 = vrot.slane %v6337, 5
      %v6340 = vsel %vm1282, %v6335, %v6339
      %v6341 = vshrl.u32 %v6157, 16
      %v6343 = vrot.slane %v6341, 4
      %v6344 = vor.u32 %v6343, %v6339
      %v6345 = vrot.slane %v6344, 4
      %v6347 = vshll.u32 %v6158, 16
      %v6349 = vrot.slane %v6347, 5
      %v6350 = vsel %vm1282, %v6345, %v6349
      %s6351 = scalar_lea.vmem %s2, 10
      %v6352 = vld [vmem:[%s6351] sm:$0x3]
      %v6353 = vunpack.c.l.b16 %v6172
      %v6354 = vunpack.c.l.b16 %v6182
      %v6355 = vunpack.c.l.b16 %v6196
      %v6356 = vunpack.c.l.b16 %v6206
      %v6357 = vunpack.c.l.b16 %v6220
      %v6358 = vunpack.c.l.b16 %v6230
      %v6359 = vunpack.c.l.b16 %v6244
      %v6360 = vunpack.c.l.b16 %v6254
      %v6361 = vunpack.c.l.b16 %v6268
      %v6362 = vunpack.c.l.b16 %v6278
      %v6363 = vunpack.c.l.b16 %v6292
      %v6364 = vunpack.c.l.b16 %v6302
      %v6365 = vunpack.c.l.b16 %v6316
      %v6366 = vunpack.c.l.b16 %v6326
      %v6367 = vunpack.c.l.b16 %v6340
      %v6368 = vunpack.c.l.b16 %v6350
      %v6369 = vpack.c.b16 %v6354, %v6353
      %v6370 = vpack.c.b16 %v6356, %v6355
      %v6371 = vpack.c.b16 %v6358, %v6357
      %v6372 = vpack.c.b16 %v6360, %v6359
      %v6373 = vpack.c.b16 %v6362, %v6361
      %v6374 = vpack.c.b16 %v6364, %v6363
      %v6375 = vpack.c.b16 %v6366, %v6365
      %v6376 = vpack.c.b16 %v6368, %v6367
      %v6378 = vsel %vm804, %v6369, 0
      %v6381 = vsel %vm804, %v6370, 0
      %v6384 = vsel %vm804, %v6371, 0
      %v6387 = vsel %vm804, %v6372, 0
      %v6390 = vsel %vm804, %v6373, 0
      %v6393 = vsel %vm804, %v6374, 0
      %v6396 = vsel %vm804, %v6375, 0
      %v6399 = vsel %vm804, %v6376, 0
      %v6402 = vsel %vm835, %v6352, 0
      %6404 = vmatprep.subr.bf16.mxu0 0
      %6405 = vmatpush1.bf16.msra.mxu0 0
      %6406 = vmatprep.subr.bf16.mxu0 0
      %6407 = vmatpush1.bf16.msra.mxu0 0
      %6408 = vmatprep.subr.bf16.mxu0 0
      %6409 = vmatpush1.bf16.msra.mxu0 0
      %6410 = vmatprep.subr.bf16.mxu0 0
      %6411 = vmatpush1.bf16.msra.mxu0 0
      %6412 = vmatprep.subr.bf16.mxu0 0
      %6413 = vmatpush1.bf16.msra.mxu0 0
      %6414 = vmatprep.subr.bf16.mxu0 0
      %6415 = vmatpush1.bf16.msra.mxu0 0
      %6416 = vmatprep.subr.bf16.mxu0 0
      %6417 = vmatpush1.bf16.msra.mxu0 0
      %6418 = vmatprep.subr.bf16.mxu0 0
      %6419 = vmatpush1.bf16.msra.mxu0 %v6402
      %6420 = vmatprep.subr.bf16.mxu0 0
      %6421 = vmatpush2.bf16.msra.mxu0 0
      %6422 = vmatprep.subr.bf16.mxu0 0
      %6423 = vmatpush2.bf16.msra.mxu0 0
      %6424 = vmatprep.subr.bf16.mxu0 0
      %6425 = vmatpush2.bf16.msra.mxu0 0
      %6426 = vmatprep.subr.bf16.mxu0 0
      %6427 = vmatpush2.bf16.msra.mxu0 0
      %6428 = vmatprep.subr.bf16.mxu0 0
      %6429 = vmatpush2.bf16.msra.mxu0 0
      %6430 = vmatprep.subr.bf16.mxu0 0
      %6431 = vmatpush2.bf16.msra.mxu0 0
      %6432 = vmatprep.subr.bf16.mxu0 0
      %6433 = vmatpush2.bf16.msra.mxu0 0
      %6434 = vmatprep.subr.bf16.mxu0 0
      %6435 = vmatpush2.bf16.msra.mxu0 0
      %6436 = vmatprep.mubr.bf16.mxu0 0
      %6437 = vmatmul.mubr.bf16.gmra.mxu0 %v6378
      %v6438 = vpop.f32.mrf.mxu0
      %v6439 = vadd.f32 0.0, %v6438
      %v6440 = vpop.f32.mrf.mxu0
      %v6441 = vpop.f32.mrf.mxu0
      %v6442 = vadd.f32 0.0, %v6441
      %v6443 = vpop.f32.mrf.mxu0
      %6444 = vmatprep.mubr.bf16.mxu0 0
      %6445 = vmatmul.mubr.bf16.gmra.mxu0 %v6381
      %v6446 = vpop.f32.mrf.mxu0
      %v6447 = vadd.f32 0.0, %v6446
      %v6448 = vpop.f32.mrf.mxu0
      %v6449 = vpop.f32.mrf.mxu0
      %v6450 = vadd.f32 0.0, %v6449
      %v6451 = vpop.f32.mrf.mxu0
      %6452 = vmatprep.mubr.bf16.mxu0 0
      %6453 = vmatmul.mubr.bf16.gmra.mxu0 %v6384
      %v6454 = vpop.f32.mrf.mxu0
      %v6455 = vadd.f32 0.0, %v6454
      %v6456 = vpop.f32.mrf.mxu0
      %v6457 = vpop.f32.mrf.mxu0
      %v6458 = vadd.f32 0.0, %v6457
      %v6459 = vpop.f32.mrf.mxu0
      %6460 = vmatprep.mubr.bf16.mxu0 0
      %6461 = vmatmul.mubr.bf16.gmra.mxu0 %v6387
      %v6462 = vpop.f32.mrf.mxu0
      %v6463 = vadd.f32 0.0, %v6462
      %v6464 = vpop.f32.mrf.mxu0
      %v6465 = vpop.f32.mrf.mxu0
      %v6466 = vadd.f32 0.0, %v6465
      %v6467 = vpop.f32.mrf.mxu0
      %6468 = vmatprep.mubr.bf16.mxu0 0
      %6469 = vmatmul.mubr.bf16.gmra.mxu0 %v6390
      %v6470 = vpop.f32.mrf.mxu0
      %v6471 = vadd.f32 0.0, %v6470
      %v6472 = vpop.f32.mrf.mxu0
      %v6473 = vpop.f32.mrf.mxu0
      %v6474 = vadd.f32 0.0, %v6473
      %v6475 = vpop.f32.mrf.mxu0
      %6476 = vmatprep.mubr.bf16.mxu0 0
      %6477 = vmatmul.mubr.bf16.gmra.mxu0 %v6393
      %v6478 = vpop.f32.mrf.mxu0
      %v6479 = vadd.f32 0.0, %v6478
      %v6480 = vpop.f32.mrf.mxu0
      %v6481 = vpop.f32.mrf.mxu0
      %v6482 = vadd.f32 0.0, %v6481
      %v6483 = vpop.f32.mrf.mxu0
      %6484 = vmatprep.mubr.bf16.mxu0 0
      %6485 = vmatmul.mubr.bf16.gmra.mxu0 %v6396
      %v6486 = vpop.f32.mrf.mxu0
      %v6487 = vadd.f32 0.0, %v6486
      %v6488 = vpop.f32.mrf.mxu0
      %v6489 = vpop.f32.mrf.mxu0
      %v6490 = vadd.f32 0.0, %v6489
      %v6491 = vpop.f32.mrf.mxu0
      %6492 = vmatprep.mubr.bf16.mxu0 0
      %6493 = vmatmul.mubr.bf16.gmra.mxu0 %v6399
      %v6494 = vpop.f32.mrf.mxu0
      %v6495 = vadd.f32 0.0, %v6494
      %v6496 = vpop.f32.mrf.mxu0
      %v6497 = vpop.f32.mrf.mxu0
      %v6498 = vadd.f32 0.0, %v6497
      %v6499 = vpop.f32.mrf.mxu0
      %6500 = vdwg.mxu0
      %v6501 = vld [vmem:[#allocation5] sm:$0xff]
      %v6502 = vld [vmem:[#allocation5 + $0x8] sm:$0xff]
      %v6503 = vld [vmem:[#allocation5 + $0x10] sm:$0xff]
      %v6504 = vld [vmem:[#allocation5 + $0x18] sm:$0xff]
      %v6505 = vld [vmem:[#allocation5 + $0x20] sm:$0xff]
      %v6506 = vld [vmem:[#allocation5 + $0x28] sm:$0xff]
      %v6507 = vld [vmem:[#allocation5 + $0x30] sm:$0xff]
      %v6508 = vld [vmem:[#allocation5 + $0x38] sm:$0xff]
      %v6509 = vld [vmem:[#allocation5 + $0x40] sm:$0xff]
      %v6510 = vld [vmem:[#allocation5 + $0x48] sm:$0xff]
      %v6511 = vld [vmem:[#allocation5 + $0x50] sm:$0xff]
      %v6512 = vld [vmem:[#allocation5 + $0x58] sm:$0xff]
      %v6513 = vld [vmem:[#allocation5 + $0x60] sm:$0xff]
      %v6514 = vld [vmem:[#allocation5 + $0x68] sm:$0xff]
      %v6515 = vld [vmem:[#allocation5 + $0x70] sm:$0xff]
      %v6516 = vld [vmem:[#allocation5 + $0x78] sm:$0xff]
      %v6517 = vadd.f32 %v6501, %v6439
      %v6518 = vadd.f32 %v6502, %v6442
      %v6519 = vadd.f32 %v6503, %v6447
      %v6520 = vadd.f32 %v6504, %v6450
      %v6521 = vadd.f32 %v6505, %v6455
      %v6522 = vadd.f32 %v6506, %v6458
      %v6523 = vadd.f32 %v6507, %v6463
      %v6524 = vadd.f32 %v6508, %v6466
      %v6525 = vadd.f32 %v6509, %v6471
      %v6526 = vadd.f32 %v6510, %v6474
      %v6527 = vadd.f32 %v6511, %v6479
      %v6528 = vadd.f32 %v6512, %v6482
      %v6529 = vadd.f32 %v6513, %v6487
      %v6530 = vadd.f32 %v6514, %v6490
      %v6531 = vadd.f32 %v6515, %v6495
      %v6532 = vadd.f32 %v6516, %v6498
      %6533 = vst.msk [vmem:[#allocation5] sm:$0xff] %vm804, %v6517
      %6534 = vst.msk [vmem:[#allocation5 + $0x8] sm:$0xff] %vm804, %v6518
      %6535 = vst.msk [vmem:[#allocation5 + $0x10] sm:$0xff] %vm804, %v6519
      %6536 = vst.msk [vmem:[#allocation5 + $0x18] sm:$0xff] %vm804, %v6520
      %6537 = vst.msk [vmem:[#allocation5 + $0x20] sm:$0xff] %vm804, %v6521
      %6538 = vst.msk [vmem:[#allocation5 + $0x28] sm:$0xff] %vm804, %v6522
      %6539 = vst.msk [vmem:[#allocation5 + $0x30] sm:$0xff] %vm804, %v6523
      %6540 = vst.msk [vmem:[#allocation5 + $0x38] sm:$0xff] %vm804, %v6524
      %6541 = vst.msk [vmem:[#allocation5 + $0x40] sm:$0xff] %vm804, %v6525
      %6542 = vst.msk [vmem:[#allocation5 + $0x48] sm:$0xff] %vm804, %v6526
      %6543 = vst.msk [vmem:[#allocation5 + $0x50] sm:$0xff] %vm804, %v6527
      %6544 = vst.msk [vmem:[#allocation5 + $0x58] sm:$0xff] %vm804, %v6528
      %6545 = vst.msk [vmem:[#allocation5 + $0x60] sm:$0xff] %vm804, %v6529
      %6546 = vst.msk [vmem:[#allocation5 + $0x68] sm:$0xff] %vm804, %v6530
      %6547 = vst.msk [vmem:[#allocation5 + $0x70] sm:$0xff] %vm804, %v6531
      %6548 = vst.msk [vmem:[#allocation5 + $0x78] sm:$0xff] %vm804, %v6532
      %s6549 = scalar_lea.vmem [#allocation3], 32
      %v6550 = vld [vmem:[%s6549] sm:$0x8]
      %v6551 = vld [vmem:[%s6549 + $0x4] sm:$0xf]
      %v6552 = vld [vmem:[%s6549 + $0x8] sm:$0xf]
      %v6553 = vld [vmem:[%s6549 + $0x10] sm:$0x8]
      %v6554 = vld [vmem:[%s6549 + $0x14] sm:$0xf]
      %v6555 = vld [vmem:[%s6549 + $0x18] sm:$0xf]
      %v6556 = vld [vmem:[%s6549 + $0x20] sm:$0x8]
      %v6557 = vld [vmem:[%s6549 + $0x24] sm:$0xf]
      %v6558 = vld [vmem:[%s6549 + $0x28] sm:$0xf]
      %v6559 = vld [vmem:[%s6549 + $0x30] sm:$0x8]
      %v6560 = vld [vmem:[%s6549 + $0x34] sm:$0xf]
      %v6561 = vld [vmem:[%s6549 + $0x38] sm:$0xf]
      %v6562 = vld [vmem:[%s6549 + $0x40] sm:$0x8]
      %v6563 = vld [vmem:[%s6549 + $0x44] sm:$0xf]
      %v6564 = vld [vmem:[%s6549 + $0x48] sm:$0xf]
      %v6565 = vld [vmem:[%s6549 + $0x50] sm:$0x8]
      %v6566 = vld [vmem:[%s6549 + $0x54] sm:$0xf]
      %v6567 = vld [vmem:[%s6549 + $0x58] sm:$0xf]
      %v6568 = vld [vmem:[%s6549 + $0x60] sm:$0x8]
      %v6569 = vld [vmem:[%s6549 + $0x64] sm:$0xf]
      %v6570 = vld [vmem:[%s6549 + $0x68] sm:$0xf]
      %v6571 = vld [vmem:[%s6549 + $0x70] sm:$0x8]
      %v6572 = vld [vmem:[%s6549 + $0x74] sm:$0xf]
      %v6573 = vld [vmem:[%s6549 + $0x78] sm:$0xf]
      %v6575 = vshrl.u32 %v6550, 16
      %v6577 = vrot.slane %v6575, 7
      %v6578 = vrot.slane %v6577, 4
      %v6580 = vshrl.u32 %v6551, 16
      %v6582 = vrot.slane %v6580, 7
      %v6583 = vshll.u32 %v6551, 16
      %v6585 = vor.u32 %v6582, %v6583
      %v6586 = vsel %vm552, %v6578, %v6585
      %v6587 = vrot.slane %v6582, 4
      %v6589 = vshrl.u32 %v6552, 16
      %v6591 = vrot.slane %v6589, 7
      %v6592 = vshll.u32 %v6552, 16
      %v6594 = vor.u32 %v6591, %v6592
      %v6595 = vsel %vm552, %v6587, %v6594
      %v6597 = vshrl.u32 %v6553, 16
      %v6599 = vrot.slane %v6597, 7
      %v6600 = vrot.slane %v6599, 4
      %v6602 = vshrl.u32 %v6554, 16
      %v6604 = vrot.slane %v6602, 7
      %v6605 = vshll.u32 %v6554, 16
      %v6607 = vor.u32 %v6604, %v6605
      %v6608 = vsel %vm552, %v6600, %v6607
      %v6609 = vrot.slane %v6604, 4
      %v6611 = vshrl.u32 %v6555, 16
      %v6613 = vrot.slane %v6611, 7
      %v6614 = vshll.u32 %v6555, 16
      %v6616 = vor.u32 %v6613, %v6614
      %v6617 = vsel %vm552, %v6609, %v6616
      %v6619 = vshrl.u32 %v6556, 16
      %v6621 = vrot.slane %v6619, 7
      %v6622 = vrot.slane %v6621, 4
      %v6624 = vshrl.u32 %v6557, 16
      %v6626 = vrot.slane %v6624, 7
      %v6627 = vshll.u32 %v6557, 16
      %v6629 = vor.u32 %v6626, %v6627
      %v6630 = vsel %vm552, %v6622, %v6629
      %v6631 = vrot.slane %v6626, 4
      %v6633 = vshrl.u32 %v6558, 16
      %v6635 = vrot.slane %v6633, 7
      %v6636 = vshll.u32 %v6558, 16
      %v6638 = vor.u32 %v6635, %v6636
      %v6639 = vsel %vm552, %v6631, %v6638
      %v6641 = vshrl.u32 %v6559, 16
      %v6643 = vrot.slane %v6641, 7
      %v6644 = vrot.slane %v6643, 4
      %v6646 = vshrl.u32 %v6560, 16
      %v6648 = vrot.slane %v6646, 7
      %v6649 = vshll.u32 %v6560, 16
      %v6651 = vor.u32 %v6648, %v6649
      %v6652 = vsel %vm552, %v6644, %v6651
      %v6653 = vrot.slane %v6648, 4
      %v6655 = vshrl.u32 %v6561, 16
      %v6657 = vrot.slane %v6655, 7
      %v6658 = vshll.u32 %v6561, 16
      %v6660 = vor.u32 %v6657, %v6658
      %v6661 = vsel %vm552, %v6653, %v6660
      %v6663 = vshrl.u32 %v6562, 16
      %v6665 = vrot.slane %v6663, 7
      %v6666 = vrot.slane %v6665, 4
      %v6668 = vshrl.u32 %v6563, 16
      %v6670 = vrot.slane %v6668, 7
      %v6671 = vshll.u32 %v6563, 16
      %v6673 = vor.u32 %v6670, %v6671
      %v6674 = vsel %vm552, %v6666, %v6673
      %v6675 = vrot.slane %v6670, 4
      %v6677 = vshrl.u32 %v6564, 16
      %v6679 = vrot.slane %v6677, 7
      %v6680 = vshll.u32 %v6564, 16
      %v6682 = vor.u32 %v6679, %v6680
      %v6683 = vsel %vm552, %v6675, %v6682
      %v6685 = vshrl.u32 %v6565, 16
      %v6687 = vrot.slane %v6685, 7
      %v6688 = vrot.slane %v6687, 4
      %v6690 = vshrl.u32 %v6566, 16
      %v6692 = vrot.slane %v6690, 7
      %v6693 = vshll.u32 %v6566, 16
      %v6695 = vor.u32 %v6692, %v6693
      %v6696 = vsel %vm552, %v6688, %v6695
      %v6697 = vrot.slane %v6692, 4
      %v6699 = vshrl.u32 %v6567, 16
      %v6701 = vrot.slane %v6699, 7
      %v6702 = vshll.u32 %v6567, 16
      %v6704 = vor.u32 %v6701, %v6702
      %v6705 = vsel %vm552, %v6697, %v6704
      %v6707 = vshrl.u32 %v6568, 16
      %v6709 = vrot.slane %v6707, 7
      %v6710 = vrot.slane %v6709, 4
      %v6712 = vshrl.u32 %v6569, 16
      %v6714 = vrot.slane %v6712, 7
      %v6715 = vshll.u32 %v6569, 16
      %v6717 = vor.u32 %v6714, %v6715
      %v6718 = vsel %vm552, %v6710, %v6717
      %v6719 = vrot.slane %v6714, 4
      %v6721 = vshrl.u32 %v6570, 16
      %v6723 = vrot.slane %v6721, 7
      %v6724 = vshll.u32 %v6570, 16
      %v6726 = vor.u32 %v6723, %v6724
      %v6727 = vsel %vm552, %v6719, %v6726
      %v6729 = vshrl.u32 %v6571, 16
      %v6731 = vrot.slane %v6729, 7
      %v6732 = vrot.slane %v6731, 4
      %v6734 = vshrl.u32 %v6572, 16
      %v6736 = vrot.slane %v6734, 7
      %v6737 = vshll.u32 %v6572, 16
      %v6739 = vor.u32 %v6736, %v6737
      %v6740 = vsel %vm552, %v6732, %v6739
      %v6741 = vrot.slane %v6736, 4
      %v6743 = vshrl.u32 %v6573, 16
      %v6745 = vrot.slane %v6743, 7
      %v6746 = vshll.u32 %v6573, 16
      %v6748 = vor.u32 %v6745, %v6746
      %v6749 = vsel %vm552, %v6741, %v6748
      %s6750 = scalar_lea.vmem %s2, 12
      %v6751 = vld [vmem:[%s6750] sm:$0x3]
      %v6752 = vunpack.c.l.b16 %v6586
      %v6753 = vunpack.c.l.b16 %v6595
      %v6754 = vunpack.c.l.b16 %v6608
      %v6755 = vunpack.c.l.b16 %v6617
      %v6756 = vunpack.c.l.b16 %v6630
      %v6757 = vunpack.c.l.b16 %v6639
      %v6758 = vunpack.c.l.b16 %v6652
      %v6759 = vunpack.c.l.b16 %v6661
      %v6760 = vunpack.c.l.b16 %v6674
      %v6761 = vunpack.c.l.b16 %v6683
      %v6762 = vunpack.c.l.b16 %v6696
      %v6763 = vunpack.c.l.b16 %v6705
      %v6764 = vunpack.c.l.b16 %v6718
      %v6765 = vunpack.c.l.b16 %v6727
      %v6766 = vunpack.c.l.b16 %v6740
      %v6767 = vunpack.c.l.b16 %v6749
      %v6768 = vpack.c.b16 %v6753, %v6752
      %v6769 = vpack.c.b16 %v6755, %v6754
      %v6770 = vpack.c.b16 %v6757, %v6756
      %v6771 = vpack.c.b16 %v6759, %v6758
      %v6772 = vpack.c.b16 %v6761, %v6760
      %v6773 = vpack.c.b16 %v6763, %v6762
      %v6774 = vpack.c.b16 %v6765, %v6764
      %v6775 = vpack.c.b16 %v6767, %v6766
      %v6777 = vsel %vm804, %v6768, 0
      %v6780 = vsel %vm804, %v6769, 0
      %v6783 = vsel %vm804, %v6770, 0
      %v6786 = vsel %vm804, %v6771, 0
      %v6789 = vsel %vm804, %v6772, 0
      %v6792 = vsel %vm804, %v6773, 0
      %v6795 = vsel %vm804, %v6774, 0
      %v6798 = vsel %vm804, %v6775, 0
      %v6801 = vsel %vm835, %v6751, 0
      %6803 = vmatprep.subr.bf16.mxu0 0
      %6804 = vmatpush1.bf16.msra.mxu0 0
      %6805 = vmatprep.subr.bf16.mxu0 0
      %6806 = vmatpush1.bf16.msra.mxu0 0
      %6807 = vmatprep.subr.bf16.mxu0 0
      %6808 = vmatpush1.bf16.msra.mxu0 0
      %6809 = vmatprep.subr.bf16.mxu0 0
      %6810 = vmatpush1.bf16.msra.mxu0 0
      %6811 = vmatprep.subr.bf16.mxu0 0
      %6812 = vmatpush1.bf16.msra.mxu0 0
      %6813 = vmatprep.subr.bf16.mxu0 0
      %6814 = vmatpush1.bf16.msra.mxu0 0
      %6815 = vmatprep.subr.bf16.mxu0 0
      %6816 = vmatpush1.bf16.msra.mxu0 0
      %6817 = vmatprep.subr.bf16.mxu0 0
      %6818 = vmatpush1.bf16.msra.mxu0 %v6801
      %6819 = vmatprep.subr.bf16.mxu0 0
      %6820 = vmatpush2.bf16.msra.mxu0 0
      %6821 = vmatprep.subr.bf16.mxu0 0
      %6822 = vmatpush2.bf16.msra.mxu0 0
      %6823 = vmatprep.subr.bf16.mxu0 0
      %6824 = vmatpush2.bf16.msra.mxu0 0
      %6825 = vmatprep.subr.bf16.mxu0 0
      %6826 = vmatpush2.bf16.msra.mxu0 0
      %6827 = vmatprep.subr.bf16.mxu0 0
      %6828 = vmatpush2.bf16.msra.mxu0 0
      %6829 = vmatprep.subr.bf16.mxu0 0
      %6830 = vmatpush2.bf16.msra.mxu0 0
      %6831 = vmatprep.subr.bf16.mxu0 0
      %6832 = vmatpush2.bf16.msra.mxu0 0
      %6833 = vmatprep.subr.bf16.mxu0 0
      %6834 = vmatpush2.bf16.msra.mxu0 0
      %6835 = vmatprep.mubr.bf16.mxu0 0
      %6836 = vmatmul.mubr.bf16.gmra.mxu0 %v6777
      %v6837 = vpop.f32.mrf.mxu0
      %v6838 = vadd.f32 0.0, %v6837
      %v6839 = vpop.f32.mrf.mxu0
      %v6840 = vpop.f32.mrf.mxu0
      %v6841 = vadd.f32 0.0, %v6840
      %v6842 = vpop.f32.mrf.mxu0
      %6843 = vmatprep.mubr.bf16.mxu0 0
      %6844 = vmatmul.mubr.bf16.gmra.mxu0 %v6780
      %v6845 = vpop.f32.mrf.mxu0
      %v6846 = vadd.f32 0.0, %v6845
      %v6847 = vpop.f32.mrf.mxu0
      %v6848 = vpop.f32.mrf.mxu0
      %v6849 = vadd.f32 0.0, %v6848
      %v6850 = vpop.f32.mrf.mxu0
      %6851 = vmatprep.mubr.bf16.mxu0 0
      %6852 = vmatmul.mubr.bf16.gmra.mxu0 %v6783
      %v6853 = vpop.f32.mrf.mxu0
      %v6854 = vadd.f32 0.0, %v6853
      %v6855 = vpop.f32.mrf.mxu0
      %v6856 = vpop.f32.mrf.mxu0
      %v6857 = vadd.f32 0.0, %v6856
      %v6858 = vpop.f32.mrf.mxu0
      %6859 = vmatprep.mubr.bf16.mxu0 0
      %6860 = vmatmul.mubr.bf16.gmra.mxu0 %v6786
      %v6861 = vpop.f32.mrf.mxu0
      %v6862 = vadd.f32 0.0, %v6861
      %v6863 = vpop.f32.mrf.mxu0
      %v6864 = vpop.f32.mrf.mxu0
      %v6865 = vadd.f32 0.0, %v6864
      %v6866 = vpop.f32.mrf.mxu0
      %6867 = vmatprep.mubr.bf16.mxu0 0
      %6868 = vmatmul.mubr.bf16.gmra.mxu0 %v6789
      %v6869 = vpop.f32.mrf.mxu0
      %v6870 = vadd.f32 0.0, %v6869
      %v6871 = vpop.f32.mrf.mxu0
      %v6872 = vpop.f32.mrf.mxu0
      %v6873 = vadd.f32 0.0, %v6872
      %v6874 = vpop.f32.mrf.mxu0
      %6875 = vmatprep.mubr.bf16.mxu0 0
      %6876 = vmatmul.mubr.bf16.gmra.mxu0 %v6792
      %v6877 = vpop.f32.mrf.mxu0
      %v6878 = vadd.f32 0.0, %v6877
      %v6879 = vpop.f32.mrf.mxu0
      %v6880 = vpop.f32.mrf.mxu0
      %v6881 = vadd.f32 0.0, %v6880
      %v6882 = vpop.f32.mrf.mxu0
      %6883 = vmatprep.mubr.bf16.mxu0 0
      %6884 = vmatmul.mubr.bf16.gmra.mxu0 %v6795
      %v6885 = vpop.f32.mrf.mxu0
      %v6886 = vadd.f32 0.0, %v6885
      %v6887 = vpop.f32.mrf.mxu0
      %v6888 = vpop.f32.mrf.mxu0
      %v6889 = vadd.f32 0.0, %v6888
      %v6890 = vpop.f32.mrf.mxu0
      %6891 = vmatprep.mubr.bf16.mxu0 0
      %6892 = vmatmul.mubr.bf16.gmra.mxu0 %v6798
      %v6893 = vpop.f32.mrf.mxu0
      %v6894 = vadd.f32 0.0, %v6893
      %v6895 = vpop.f32.mrf.mxu0
      %v6896 = vpop.f32.mrf.mxu0
      %v6897 = vadd.f32 0.0, %v6896
      %v6898 = vpop.f32.mrf.mxu0
      %6899 = vdwg.mxu0
      %v6900 = vld [vmem:[#allocation5] sm:$0xff]
      %v6901 = vld [vmem:[#allocation5 + $0x8] sm:$0xff]
      %v6902 = vld [vmem:[#allocation5 + $0x10] sm:$0xff]
      %v6903 = vld [vmem:[#allocation5 + $0x18] sm:$0xff]
      %v6904 = vld [vmem:[#allocation5 + $0x20] sm:$0xff]
      %v6905 = vld [vmem:[#allocation5 + $0x28] sm:$0xff]
      %v6906 = vld [vmem:[#allocation5 + $0x30] sm:$0xff]
      %v6907 = vld [vmem:[#allocation5 + $0x38] sm:$0xff]
      %v6908 = vld [vmem:[#allocation5 + $0x40] sm:$0xff]
      %v6909 = vld [vmem:[#allocation5 + $0x48] sm:$0xff]
      %v6910 = vld [vmem:[#allocation5 + $0x50] sm:$0xff]
      %v6911 = vld [vmem:[#allocation5 + $0x58] sm:$0xff]
      %v6912 = vld [vmem:[#allocation5 + $0x60] sm:$0xff]
      %v6913 = vld [vmem:[#allocation5 + $0x68] sm:$0xff]
      %v6914 = vld [vmem:[#allocation5 + $0x70] sm:$0xff]
      %v6915 = vld [vmem:[#allocation5 + $0x78] sm:$0xff]
      %v6916 = vadd.f32 %v6900, %v6838
      %v6917 = vadd.f32 %v6901, %v6841
      %v6918 = vadd.f32 %v6902, %v6846
      %v6919 = vadd.f32 %v6903, %v6849
      %v6920 = vadd.f32 %v6904, %v6854
      %v6921 = vadd.f32 %v6905, %v6857
      %v6922 = vadd.f32 %v6906, %v6862
      %v6923 = vadd.f32 %v6907, %v6865
      %v6924 = vadd.f32 %v6908, %v6870
      %v6925 = vadd.f32 %v6909, %v6873
      %v6926 = vadd.f32 %v6910, %v6878
      %v6927 = vadd.f32 %v6911, %v6881
      %v6928 = vadd.f32 %v6912, %v6886
      %v6929 = vadd.f32 %v6913, %v6889
      %v6930 = vadd.f32 %v6914, %v6894
      %v6931 = vadd.f32 %v6915, %v6897
      %6932 = vst.msk [vmem:[#allocation5] sm:$0xff] %vm804, %v6916
      %6933 = vst.msk [vmem:[#allocation5 + $0x8] sm:$0xff] %vm804, %v6917
      %6934 = vst.msk [vmem:[#allocation5 + $0x10] sm:$0xff] %vm804, %v6918
      %6935 = vst.msk [vmem:[#allocation5 + $0x18] sm:$0xff] %vm804, %v6919
      %6936 = vst.msk [vmem:[#allocation5 + $0x20] sm:$0xff] %vm804, %v6920
      %6937 = vst.msk [vmem:[#allocation5 + $0x28] sm:$0xff] %vm804, %v6921
      %6938 = vst.msk [vmem:[#allocation5 + $0x30] sm:$0xff] %vm804, %v6922
      %6939 = vst.msk [vmem:[#allocation5 + $0x38] sm:$0xff] %vm804, %v6923
      %6940 = vst.msk [vmem:[#allocation5 + $0x40] sm:$0xff] %vm804, %v6924
      %6941 = vst.msk [vmem:[#allocation5 + $0x48] sm:$0xff] %vm804, %v6925
      %6942 = vst.msk [vmem:[#allocation5 + $0x50] sm:$0xff] %vm804, %v6926
      %6943 = vst.msk [vmem:[#allocation5 + $0x58] sm:$0xff] %vm804, %v6927
      %6944 = vst.msk [vmem:[#allocation5 + $0x60] sm:$0xff] %vm804, %v6928
      %6945 = vst.msk [vmem:[#allocation5 + $0x68] sm:$0xff] %vm804, %v6929
      %6946 = vst.msk [vmem:[#allocation5 + $0x70] sm:$0xff] %vm804, %v6930
      %6947 = vst.msk [vmem:[#allocation5 + $0x78] sm:$0xff] %vm804, %v6931
      %v6948 = vld [vmem:[%s6549 + $0x4] sm:$0xf]
      %v6949 = vld [vmem:[%s6549 + $0x8] sm:$0xf]
      %v6950 = vld [vmem:[%s6549 + $0x14] sm:$0xf]
      %v6951 = vld [vmem:[%s6549 + $0x18] sm:$0xf]
      %v6952 = vld [vmem:[%s6549 + $0x24] sm:$0xf]
      %v6953 = vld [vmem:[%s6549 + $0x28] sm:$0xf]
      %v6954 = vld [vmem:[%s6549 + $0x34] sm:$0xf]
      %v6955 = vld [vmem:[%s6549 + $0x38] sm:$0xf]
      %v6956 = vld [vmem:[%s6549 + $0x44] sm:$0xf]
      %v6957 = vld [vmem:[%s6549 + $0x48] sm:$0xf]
      %v6958 = vld [vmem:[%s6549 + $0x54] sm:$0xf]
      %v6959 = vld [vmem:[%s6549 + $0x58] sm:$0xf]
      %v6960 = vld [vmem:[%s6549 + $0x64] sm:$0xf]
      %v6961 = vld [vmem:[%s6549 + $0x68] sm:$0xf]
      %v6962 = vld [vmem:[%s6549 + $0x74] sm:$0xf]
      %v6963 = vld [vmem:[%s6549 + $0x78] sm:$0xf]
      %s6964 = scalar_lea.vmem %s2, 14
      %v6965 = vld [vmem:[%s6964] sm:$0x3]
      %v6982 = vunpack.c.l.b16 %v6948
      %v6983 = vunpack.c.l.b16 %v6949
      %v6984 = vunpack.c.l.b16 %v6950
      %v6985 = vunpack.c.l.b16 %v6951
      %v6986 = vunpack.c.l.b16 %v6952
      %v6987 = vunpack.c.l.b16 %v6953
      %v6988 = vunpack.c.l.b16 %v6954
      %v6989 = vunpack.c.l.b16 %v6955
      %v6990 = vunpack.c.l.b16 %v6956
      %v6991 = vunpack.c.l.b16 %v6957
      %v6992 = vunpack.c.l.b16 %v6958
      %v6993 = vunpack.c.l.b16 %v6959
      %v6994 = vunpack.c.l.b16 %v6960
      %v6995 = vunpack.c.l.b16 %v6961
      %v6996 = vunpack.c.l.b16 %v6962
      %v6997 = vunpack.c.l.b16 %v6963
      %v6998 = vpack.c.b16 %v6983, %v6982
      %v6999 = vpack.c.b16 %v6985, %v6984
      %v7000 = vpack.c.b16 %v6987, %v6986
      %v7001 = vpack.c.b16 %v6989, %v6988
      %v7002 = vpack.c.b16 %v6991, %v6990
      %v7003 = vpack.c.b16 %v6993, %v6992
      %v7004 = vpack.c.b16 %v6995, %v6994
      %v7005 = vpack.c.b16 %v6997, %v6996
      %v7007 = vsel %vm804, %v6998, 0
      %v7010 = vsel %vm804, %v6999, 0
      %v7013 = vsel %vm804, %v7000, 0
      %v7016 = vsel %vm804, %v7001, 0
      %v7019 = vsel %vm804, %v7002, 0
      %v7022 = vsel %vm804, %v7003, 0
      %v7025 = vsel %vm804, %v7004, 0
      %v7028 = vsel %vm804, %v7005, 0
      %v7031 = vsel %vm835, %v6965, 0
      %7033 = vmatprep.subr.bf16.mxu0 0
      %7034 = vmatpush1.bf16.msra.mxu0 0
      %7035 = vmatprep.subr.bf16.mxu0 0
      %7036 = vmatpush1.bf16.msra.mxu0 0
      %7037 = vmatprep.subr.bf16.mxu0 0
      %7038 = vmatpush1.bf16.msra.mxu0 0
      %7039 = vmatprep.subr.bf16.mxu0 0
      %7040 = vmatpush1.bf16.msra.mxu0 0
      %7041 = vmatprep.subr.bf16.mxu0 0
      %7042 = vmatpush1.bf16.msra.mxu0 0
      %7043 = vmatprep.subr.bf16.mxu0 0
      %7044 = vmatpush1.bf16.msra.mxu0 0
      %7045 = vmatprep.subr.bf16.mxu0 0
      %7046 = vmatpush1.bf16.msra.mxu0 0
      %7047 = vmatprep.subr.bf16.mxu0 0
      %7048 = vmatpush1.bf16.msra.mxu0 %v7031
      %7049 = vmatprep.subr.bf16.mxu0 0
      %7050 = vmatpush2.bf16.msra.mxu0 0
      %7051 = vmatprep.subr.bf16.mxu0 0
      %7052 = vmatpush2.bf16.msra.mxu0 0
      %7053 = vmatprep.subr.bf16.mxu0 0
      %7054 = vmatpush2.bf16.msra.mxu0 0
      %7055 = vmatprep.subr.bf16.mxu0 0
      %7056 = vmatpush2.bf16.msra.mxu0 0
      %7057 = vmatprep.subr.bf16.mxu0 0
      %7058 = vmatpush2.bf16.msra.mxu0 0
      %7059 = vmatprep.subr.bf16.mxu0 0
      %7060 = vmatpush2.bf16.msra.mxu0 0
      %7061 = vmatprep.subr.bf16.mxu0 0
      %7062 = vmatpush2.bf16.msra.mxu0 0
      %7063 = vmatprep.subr.bf16.mxu0 0
      %7064 = vmatpush2.bf16.msra.mxu0 0
      %7065 = vmatprep.mubr.bf16.mxu0 0
      %7066 = vmatmul.mubr.bf16.gmra.mxu0 %v7007
      %v7067 = vpop.f32.mrf.mxu0
      %v7068 = vadd.f32 0.0, %v7067
      %v7069 = vpop.f32.mrf.mxu0
      %v7070 = vpop.f32.mrf.mxu0
      %v7071 = vadd.f32 0.0, %v7070
      %v7072 = vpop.f32.mrf.mxu0
      %7073 = vmatprep.mubr.bf16.mxu0 0
      %7074 = vmatmul.mubr.bf16.gmra.mxu0 %v7010
      %v7075 = vpop.f32.mrf.mxu0
      %v7076 = vadd.f32 0.0, %v7075
      %v7077 = vpop.f32.mrf.mxu0
      %v7078 = vpop.f32.mrf.mxu0
      %v7079 = vadd.f32 0.0, %v7078
      %v7080 = vpop.f32.mrf.mxu0
      %7081 = vmatprep.mubr.bf16.mxu0 0
      %7082 = vmatmul.mubr.bf16.gmra.mxu0 %v7013
      %v7083 = vpop.f32.mrf.mxu0
      %v7084 = vadd.f32 0.0, %v7083
      %v7085 = vpop.f32.mrf.mxu0
      %v7086 = vpop.f32.mrf.mxu0
      %v7087 = vadd.f32 0.0, %v7086
      %v7088 = vpop.f32.mrf.mxu0
      %7089 = vmatprep.mubr.bf16.mxu0 0
      %7090 = vmatmul.mubr.bf16.gmra.mxu0 %v7016
      %v7091 = vpop.f32.mrf.mxu0
      %v7092 = vadd.f32 0.0, %v7091
      %v7093 = vpop.f32.mrf.mxu0
      %v7094 = vpop.f32.mrf.mxu0
      %v7095 = vadd.f32 0.0, %v7094
      %v7096 = vpop.f32.mrf.mxu0
      %7097 = vmatprep.mubr.bf16.mxu0 0
      %7098 = vmatmul.mubr.bf16.gmra.mxu0 %v7019
      %v7099 = vpop.f32.mrf.mxu0
      %v7100 = vadd.f32 0.0, %v7099
      %v7101 = vpop.f32.mrf.mxu0
      %v7102 = vpop.f32.mrf.mxu0
      %v7103 = vadd.f32 0.0, %v7102
      %v7104 = vpop.f32.mrf.mxu0
      %7105 = vmatprep.mubr.bf16.mxu0 0
      %7106 = vmatmul.mubr.bf16.gmra.mxu0 %v7022
      %v7107 = vpop.f32.mrf.mxu0
      %v7108 = vadd.f32 0.0, %v7107
      %v7109 = vpop.f32.mrf.mxu0
      %v7110 = vpop.f32.mrf.mxu0
      %v7111 = vadd.f32 0.0, %v7110
      %v7112 = vpop.f32.mrf.mxu0
      %7113 = vmatprep.mubr.bf16.mxu0 0
      %7114 = vmatmul.mubr.bf16.gmra.mxu0 %v7025
      %v7115 = vpop.f32.mrf.mxu0
      %v7116 = vadd.f32 0.0, %v7115
      %v7117 = vpop.f32.mrf.mxu0
      %v7118 = vpop.f32.mrf.mxu0
      %v7119 = vadd.f32 0.0, %v7118
      %v7120 = vpop.f32.mrf.mxu0
      %7121 = vmatprep.mubr.bf16.mxu0 0
      %7122 = vmatmul.mubr.bf16.gmra.mxu0 %v7028
      %v7123 = vpop.f32.mrf.mxu0
      %v7124 = vadd.f32 0.0, %v7123
      %v7125 = vpop.f32.mrf.mxu0
      %v7126 = vpop.f32.mrf.mxu0
      %v7127 = vadd.f32 0.0, %v7126
      %v7128 = vpop.f32.mrf.mxu0
      %7129 = vdwg.mxu0
      %v7130 = vld [vmem:[#allocation5] sm:$0xff]
      %v7131 = vld [vmem:[#allocation5 + $0x8] sm:$0xff]
      %v7132 = vld [vmem:[#allocation5 + $0x10] sm:$0xff]
      %v7133 = vld [vmem:[#allocation5 + $0x18] sm:$0xff]
      %v7134 = vld [vmem:[#allocation5 + $0x20] sm:$0xff]
      %v7135 = vld [vmem:[#allocation5 + $0x28] sm:$0xff]
      %v7136 = vld [vmem:[#allocation5 + $0x30] sm:$0xff]
      %v7137 = vld [vmem:[#allocation5 + $0x38] sm:$0xff]
      %v7138 = vld [vmem:[#allocation5 + $0x40] sm:$0xff]
      %v7139 = vld [vmem:[#allocation5 + $0x48] sm:$0xff]
      %v7140 = vld [vmem:[#allocation5 + $0x50] sm:$0xff]
      %v7141 = vld [vmem:[#allocation5 + $0x58] sm:$0xff]
      %v7142 = vld [vmem:[#allocation5 + $0x60] sm:$0xff]
      %v7143 = vld [vmem:[#allocation5 + $0x68] sm:$0xff]
      %v7144 = vld [vmem:[#allocation5 + $0x70] sm:$0xff]
      %v7145 = vld [vmem:[#allocation5 + $0x78] sm:$0xff]
      %v7146 = vadd.f32 %v7130, %v7068
      %v7147 = vadd.f32 %v7131, %v7071
      %v7148 = vadd.f32 %v7132, %v7076
      %v7149 = vadd.f32 %v7133, %v7079
      %v7150 = vadd.f32 %v7134, %v7084
      %v7151 = vadd.f32 %v7135, %v7087
      %v7152 = vadd.f32 %v7136, %v7092
      %v7153 = vadd.f32 %v7137, %v7095
      %v7154 = vadd.f32 %v7138, %v7100
      %v7155 = vadd.f32 %v7139, %v7103
      %v7156 = vadd.f32 %v7140, %v7108
      %v7157 = vadd.f32 %v7141, %v7111
      %v7158 = vadd.f32 %v7142, %v7116
      %v7159 = vadd.f32 %v7143, %v7119
      %v7160 = vadd.f32 %v7144, %v7124
      %v7161 = vadd.f32 %v7145, %v7127
      %7162 = vst.msk [vmem:[#allocation5] sm:$0xff] %vm804, %v7146
      %7163 = vst.msk [vmem:[#allocation5 + $0x8] sm:$0xff] %vm804, %v7147
      %7164 = vst.msk [vmem:[#allocation5 + $0x10] sm:$0xff] %vm804, %v7148
      %7165 = vst.msk [vmem:[#allocation5 + $0x18] sm:$0xff] %vm804, %v7149
      %7166 = vst.msk [vmem:[#allocation5 + $0x20] sm:$0xff] %vm804, %v7150
      %7167 = vst.msk [vmem:[#allocation5 + $0x28] sm:$0xff] %vm804, %v7151
      %7168 = vst.msk [vmem:[#allocation5 + $0x30] sm:$0xff] %vm804, %v7152
      %7169 = vst.msk [vmem:[#allocation5 + $0x38] sm:$0xff] %vm804, %v7153
      %7170 = vst.msk [vmem:[#allocation5 + $0x40] sm:$0xff] %vm804, %v7154
      %7171 = vst.msk [vmem:[#allocation5 + $0x48] sm:$0xff] %vm804, %v7155
      %7172 = vst.msk [vmem:[#allocation5 + $0x50] sm:$0xff] %vm804, %v7156
      %7173 = vst.msk [vmem:[#allocation5 + $0x58] sm:$0xff] %vm804, %v7157
      %7174 = vst.msk [vmem:[#allocation5 + $0x60] sm:$0xff] %vm804, %v7158
      %7175 = vst.msk [vmem:[#allocation5 + $0x68] sm:$0xff] %vm804, %v7159
      %7176 = vst.msk [vmem:[#allocation5 + $0x70] sm:$0xff] %vm804, %v7160
      %7177 = vst.msk [vmem:[#allocation5 + $0x78] sm:$0xff] %vm804, %v7161
      %v7178 = vld [vmem:[%s6549 + $0x4] sm:$0xf]
      %v7179 = vld [vmem:[%s6549 + $0x8] sm:$0xf]
      %v7180 = vld [vmem:[%s6549 + $0xc] sm:$0x1]
      %v7181 = vld [vmem:[%s6549 + $0x14] sm:$0xf]
      %v7182 = vld [vmem:[%s6549 + $0x18] sm:$0xf]
      %v7183 = vld [vmem:[%s6549 + $0x1c] sm:$0x1]
      %v7184 = vld [vmem:[%s6549 + $0x24] sm:$0xf]
      %v7185 = vld [vmem:[%s6549 + $0x28] sm:$0xf]
      %v7186 = vld [vmem:[%s6549 + $0x2c] sm:$0x1]
      %v7187 = vld [vmem:[%s6549 + $0x34] sm:$0xf]
      %v7188 = vld [vmem:[%s6549 + $0x38] sm:$0xf]
      %v7189 = vld [vmem:[%s6549 + $0x3c] sm:$0x1]
      %v7190 = vld [vmem:[%s6549 + $0x44] sm:$0xf]
      %v7191 = vld [vmem:[%s6549 + $0x48] sm:$0xf]
      %v7192 = vld [vmem:[%s6549 + $0x4c] sm:$0x1]
      %v7193 = vld [vmem:[%s6549 + $0x54] sm:$0xf]
      %v7194 = vld [vmem:[%s6549 + $0x58] sm:$0xf]
      %v7195 = vld [vmem:[%s6549 + $0x5c] sm:$0x1]
      %v7196 = vld [vmem:[%s6549 + $0x64] sm:$0xf]
      %v7197 = vld [vmem:[%s6549 + $0x68] sm:$0xf]
      %v7198 = vld [vmem:[%s6549 + $0x6c] sm:$0x1]
      %v7199 = vld [vmem:[%s6549 + $0x74] sm:$0xf]
      %v7200 = vld [vmem:[%s6549 + $0x78] sm:$0xf]
      %v7201 = vld [vmem:[%s6549 + $0x7c] sm:$0x1]
      %v7203 = vshrl.u32 %v7178, 16
      %v7205 = vrot.slane %v7203, 4
      %v7206 = vshll.u32 %v7178, 16
      %v7208 = vrot.slane %v7206, 5
      %v7209 = vor.u32 %v7205, %v7208
      %v7210 = vrot.slane %v7209, 4
      %v7212 = vshll.u32 %v7179, 16
      %v7214 = vrot.slane %v7212, 5
      %v7215 = vsel %vm1282, %v7210, %v7214
      %v7216 = vshrl.u32 %v7179, 16
      %v7218 = vrot.slane %v7216, 4
      %v7219 = vor.u32 %v7218, %v7214
      %v7220 = vrot.slane %v7219, 4
      %v7222 = vshll.u32 %v7180, 16
      %v7224 = vrot.slane %v7222, 5
      %v7225 = vsel %vm1282, %v7220, %v7224
      %v7227 = vshrl.u32 %v7181, 16
      %v7229 = vrot.slane %v7227, 4
      %v7230 = vshll.u32 %v7181, 16
      %v7232 = vrot.slane %v7230, 5
      %v7233 = vor.u32 %v7229, %v7232
      %v7234 = vrot.slane %v7233, 4
      %v7236 = vshll.u32 %v7182, 16
      %v7238 = vrot.slane %v7236, 5
      %v7239 = vsel %vm1282, %v7234, %v7238
      %v7240 = vshrl.u32 %v7182, 16
      %v7242 = vrot.slane %v7240, 4
      %v7243 = vor.u32 %v7242, %v7238
      %v7244 = vrot.slane %v7243, 4
      %v7246 = vshll.u32 %v7183, 16
      %v7248 = vrot.slane %v7246, 5
      %v7249 = vsel %vm1282, %v7244, %v7248
      %v7251 = vshrl.u32 %v7184, 16
      %v7253 = vrot.slane %v7251, 4
      %v7254 = vshll.u32 %v7184, 16
      %v7256 = vrot.slane %v7254, 5
      %v7257 = vor.u32 %v7253, %v7256
      %v7258 = vrot.slane %v7257, 4
      %v7260 = vshll.u32 %v7185, 16
      %v7262 = vrot.slane %v7260, 5
      %v7263 = vsel %vm1282, %v7258, %v7262
      %v7264 = vshrl.u32 %v7185, 16
      %v7266 = vrot.slane %v7264, 4
      %v7267 = vor.u32 %v7266, %v7262
      %v7268 = vrot.slane %v7267, 4
      %v7270 = vshll.u32 %v7186, 16
      %v7272 = vrot.slane %v7270, 5
      %v7273 = vsel %vm1282, %v7268, %v7272
      %v7275 = vshrl.u32 %v7187, 16
      %v7277 = vrot.slane %v7275, 4
      %v7278 = vshll.u32 %v7187, 16
      %v7280 = vrot.slane %v7278, 5
      %v7281 = vor.u32 %v7277, %v7280
      %v7282 = vrot.slane %v7281, 4
      %v7284 = vshll.u32 %v7188, 16
      %v7286 = vrot.slane %v7284, 5
      %v7287 = vsel %vm1282, %v7282, %v7286
      %v7288 = vshrl.u32 %v7188, 16
      %v7290 = vrot.slane %v7288, 4
      %v7291 = vor.u32 %v7290, %v7286
      %v7292 = vrot.slane %v7291, 4
      %v7294 = vshll.u32 %v7189, 16
      %v7296 = vrot.slane %v7294, 5
      %v7297 = vsel %vm1282, %v7292, %v7296
      %v7299 = vshrl.u32 %v7190, 16
      %v7301 = vrot.slane %v7299, 4
      %v7302 = vshll.u32 %v7190, 16
      %v7304 = vrot.slane %v7302, 5
      %v7305 = vor.u32 %v7301, %v7304
      %v7306 = vrot.slane %v7305, 4
      %v7308 = vshll.u32 %v7191, 16
      %v7310 = vrot.slane %v7308, 5
      %v7311 = vsel %vm1282, %v7306, %v7310
      %v7312 = vshrl.u32 %v7191, 16
      %v7314 = vrot.slane %v7312, 4
      %v7315 = vor.u32 %v7314, %v7310
      %v7316 = vrot.slane %v7315, 4
      %v7318 = vshll.u32 %v7192, 16
      %v7320 = vrot.slane %v7318, 5
      %v7321 = vsel %vm1282, %v7316, %v7320
      %v7323 = vshrl.u32 %v7193, 16
      %v7325 = vrot.slane %v7323, 4
      %v7326 = vshll.u32 %v7193, 16
      %v7328 = vrot.slane %v7326, 5
      %v7329 = vor.u32 %v7325, %v7328
      %v7330 = vrot.slane %v7329, 4
      %v7332 = vshll.u32 %v7194, 16
      %v7334 = vrot.slane %v7332, 5
      %v7335 = vsel %vm1282, %v7330, %v7334
      %v7336 = vshrl.u32 %v7194, 16
      %v7338 = vrot.slane %v7336, 4
      %v7339 = vor.u32 %v7338, %v7334
      %v7340 = vrot.slane %v7339, 4
      %v7342 = vshll.u32 %v7195, 16
      %v7344 = vrot.slane %v7342, 5
      %v7345 = vsel %vm1282, %v7340, %v7344
      %v7347 = vshrl.u32 %v7196, 16
      %v7349 = vrot.slane %v7347, 4
      %v7350 = vshll.u32 %v7196, 16
      %v7352 = vrot.slane %v7350, 5
      %v7353 = vor.u32 %v7349, %v7352
      %v7354 = vrot.slane %v7353, 4
      %v7356 = vshll.u32 %v7197, 16
      %v7358 = vrot.slane %v7356, 5
      %v7359 = vsel %vm1282, %v7354, %v7358
      %v7360 = vshrl.u32 %v7197, 16
      %v7362 = vrot.slane %v7360, 4
      %v7363 = vor.u32 %v7362, %v7358
      %v7364 = vrot.slane %v7363, 4
      %v7366 = vshll.u32 %v7198, 16
      %v7368 = vrot.slane %v7366, 5
      %v7369 = vsel %vm1282, %v7364, %v7368
      %v7371 = vshrl.u32 %v7199, 16
      %v7373 = vrot.slane %v7371, 4
      %v7374 = vshll.u32 %v7199, 16
      %v7376 = vrot.slane %v7374, 5
      %v7377 = vor.u32 %v7373, %v7376
      %v7378 = vrot.slane %v7377, 4
      %v7380 = vshll.u32 %v7200, 16
      %v7382 = vrot.slane %v7380, 5
      %v7383 = vsel %vm1282, %v7378, %v7382
      %v7384 = vshrl.u32 %v7200, 16
      %v7386 = vrot.slane %v7384, 4
      %v7387 = vor.u32 %v7386, %v7382
      %v7388 = vrot.slane %v7387, 4
      %v7390 = vshll.u32 %v7201, 16
      %v7392 = vrot.slane %v7390, 5
      %v7393 = vsel %vm1282, %v7388, %v7392
      %s7394 = scalar_lea.vmem %s2, 16
      %v7395 = vld [vmem:[%s7394] sm:$0x3]
      %v7396 = vunpack.c.l.b16 %v7215
      %v7397 = vunpack.c.l.b16 %v7225
      %v7398 = vunpack.c.l.b16 %v7239
      %v7399 = vunpack.c.l.b16 %v7249
      %v7400 = vunpack.c.l.b16 %v7263
      %v7401 = vunpack.c.l.b16 %v7273
      %v7402 = vunpack.c.l.b16 %v7287
      %v7403 = vunpack.c.l.b16 %v7297
      %v7404 = vunpack.c.l.b16 %v7311
      %v7405 = vunpack.c.l.b16 %v7321
      %v7406 = vunpack.c.l.b16 %v7335
      %v7407 = vunpack.c.l.b16 %v7345
      %v7408 = vunpack.c.l.b16 %v7359
      %v7409 = vunpack.c.l.b16 %v7369
      %v7410 = vunpack.c.l.b16 %v7383
      %v7411 = vunpack.c.l.b16 %v7393
      %v7412 = vpack.c.b16 %v7397, %v7396
      %v7413 = vpack.c.b16 %v7399, %v7398
      %v7414 = vpack.c.b16 %v7401, %v7400
      %v7415 = vpack.c.b16 %v7403, %v7402
      %v7416 = vpack.c.b16 %v7405, %v7404
      %v7417 = vpack.c.b16 %v7407, %v7406
      %v7418 = vpack.c.b16 %v7409, %v7408
      %v7419 = vpack.c.b16 %v7411, %v7410
      %v7421 = vsel %vm804, %v7412, 0
      %v7424 = vsel %vm804, %v7413, 0
      %v7427 = vsel %vm804, %v7414, 0
      %v7430 = vsel %vm804, %v7415, 0
      %v7433 = vsel %vm804, %v7416, 0
      %v7436 = vsel %vm804, %v7417, 0
      %v7439 = vsel %vm804, %v7418, 0
      %v7442 = vsel %vm804, %v7419, 0
      %v7445 = vsel %vm835, %v7395, 0
      %7447 = vmatprep.subr.bf16.mxu0 0
      %7448 = vmatpush1.bf16.msra.mxu0 0
      %7449 = vmatprep.subr.bf16.mxu0 0
      %7450 = vmatpush1.bf16.msra.mxu0 0
      %7451 = vmatprep.subr.bf16.mxu0 0
      %7452 = vmatpush1.bf16.msra.mxu0 0
      %7453 = vmatprep.subr.bf16.mxu0 0
      %7454 = vmatpush1.bf16.msra.mxu0 0
      %7455 = vmatprep.subr.bf16.mxu0 0
      %7456 = vmatpush1.bf16.msra.mxu0 0
      %7457 = vmatprep.subr.bf16.mxu0 0
      %7458 = vmatpush1.bf16.msra.mxu0 0
      %7459 = vmatprep.subr.bf16.mxu0 0
      %7460 = vmatpush1.bf16.msra.mxu0 0
      %7461 = vmatprep.subr.bf16.mxu0 0
      %7462 = vmatpush1.bf16.msra.mxu0 %v7445
      %7463 = vmatprep.subr.bf16.mxu0 0
      %7464 = vmatpush2.bf16.msra.mxu0 0
      %7465 = vmatprep.subr.bf16.mxu0 0
      %7466 = vmatpush2.bf16.msra.mxu0 0
      %7467 = vmatprep.subr.bf16.mxu0 0
      %7468 = vmatpush2.bf16.msra.mxu0 0
      %7469 = vmatprep.subr.bf16.mxu0 0
      %7470 = vmatpush2.bf16.msra.mxu0 0
      %7471 = vmatprep.subr.bf16.mxu0 0
      %7472 = vmatpush2.bf16.msra.mxu0 0
      %7473 = vmatprep.subr.bf16.mxu0 0
      %7474 = vmatpush2.bf16.msra.mxu0 0
      %7475 = vmatprep.subr.bf16.mxu0 0
      %7476 = vmatpush2.bf16.msra.mxu0 0
      %7477 = vmatprep.subr.bf16.mxu0 0
      %7478 = vmatpush2.bf16.msra.mxu0 0
      %7479 = vmatprep.mubr.bf16.mxu0 0
      %7480 = vmatmul.mubr.bf16.gmra.mxu0 %v7421
      %v7481 = vpop.f32.mrf.mxu0
      %v7482 = vadd.f32 0.0, %v7481
      %v7483 = vpop.f32.mrf.mxu0
      %v7484 = vpop.f32.mrf.mxu0
      %v7485 = vadd.f32 0.0, %v7484
      %v7486 = vpop.f32.mrf.mxu0
      %7487 = vmatprep.mubr.bf16.mxu0 0
      %7488 = vmatmul.mubr.bf16.gmra.mxu0 %v7424
      %v7489 = vpop.f32.mrf.mxu0
      %v7490 = vadd.f32 0.0, %v7489
      %v7491 = vpop.f32.mrf.mxu0
      %v7492 = vpop.f32.mrf.mxu0
      %v7493 = vadd.f32 0.0, %v7492
      %v7494 = vpop.f32.mrf.mxu0
      %7495 = vmatprep.mubr.bf16.mxu0 0
      %7496 = vmatmul.mubr.bf16.gmra.mxu0 %v7427
      %v7497 = vpop.f32.mrf.mxu0
      %v7498 = vadd.f32 0.0, %v7497
      %v7499 = vpop.f32.mrf.mxu0
      %v7500 = vpop.f32.mrf.mxu0
      %v7501 = vadd.f32 0.0, %v7500
      %v7502 = vpop.f32.mrf.mxu0
      %7503 = vmatprep.mubr.bf16.mxu0 0
      %7504 = vmatmul.mubr.bf16.gmra.mxu0 %v7430
      %v7505 = vpop.f32.mrf.mxu0
      %v7506 = vadd.f32 0.0, %v7505
      %v7507 = vpop.f32.mrf.mxu0
      %v7508 = vpop.f32.mrf.mxu0
      %v7509 = vadd.f32 0.0, %v7508
      %v7510 = vpop.f32.mrf.mxu0
      %7511 = vmatprep.mubr.bf16.mxu0 0
      %7512 = vmatmul.mubr.bf16.gmra.mxu0 %v7433
      %v7513 = vpop.f32.mrf.mxu0
      %v7514 = vadd.f32 0.0, %v7513
      %v7515 = vpop.f32.mrf.mxu0
      %v7516 = vpop.f32.mrf.mxu0
      %v7517 = vadd.f32 0.0, %v7516
      %v7518 = vpop.f32.mrf.mxu0
      %7519 = vmatprep.mubr.bf16.mxu0 0
      %7520 = vmatmul.mubr.bf16.gmra.mxu0 %v7436
      %v7521 = vpop.f32.mrf.mxu0
      %v7522 = vadd.f32 0.0, %v7521
      %v7523 = vpop.f32.mrf.mxu0
      %v7524 = vpop.f32.mrf.mxu0
      %v7525 = vadd.f32 0.0, %v7524
      %v7526 = vpop.f32.mrf.mxu0
      %7527 = vmatprep.mubr.bf16.mxu0 0
      %7528 = vmatmul.mubr.bf16.gmra.mxu0 %v7439
      %v7529 = vpop.f32.mrf.mxu0
      %v7530 = vadd.f32 0.0, %v7529
      %v7531 = vpop.f32.mrf.mxu0
      %v7532 = vpop.f32.mrf.mxu0
      %v7533 = vadd.f32 0.0, %v7532
      %v7534 = vpop.f32.mrf.mxu0
      %7535 = vmatprep.mubr.bf16.mxu0 0
      %7536 = vmatmul.mubr.bf16.gmra.mxu0 %v7442
      %v7537 = vpop.f32.mrf.mxu0
      %v7538 = vadd.f32 0.0, %v7537
      %v7539 = vpop.f32.mrf.mxu0
      %v7540 = vpop.f32.mrf.mxu0
      %v7541 = vadd.f32 0.0, %v7540
      %v7542 = vpop.f32.mrf.mxu0
      %7543 = vdwg.mxu0
      %v7544 = vld [vmem:[#allocation5] sm:$0xff]
      %v7545 = vld [vmem:[#allocation5 + $0x8] sm:$0xff]
      %v7546 = vld [vmem:[#allocation5 + $0x10] sm:$0xff]
      %v7547 = vld [vmem:[#allocation5 + $0x18] sm:$0xff]
      %v7548 = vld [vmem:[#allocation5 + $0x20] sm:$0xff]
      %v7549 = vld [vmem:[#allocation5 + $0x28] sm:$0xff]
      %v7550 = vld [vmem:[#allocation5 + $0x30] sm:$0xff]
      %v7551 = vld [vmem:[#allocation5 + $0x38] sm:$0xff]
      %v7552 = vld [vmem:[#allocation5 + $0x40] sm:$0xff]
      %v7553 = vld [vmem:[#allocation5 + $0x48] sm:$0xff]
      %v7554 = vld [vmem:[#allocation5 + $0x50] sm:$0xff]
      %v7555 = vld [vmem:[#allocation5 + $0x58] sm:$0xff]
      %v7556 = vld [vmem:[#allocation5 + $0x60] sm:$0xff]
      %v7557 = vld [vmem:[#allocation5 + $0x68] sm:$0xff]
      %v7558 = vld [vmem:[#allocation5 + $0x70] sm:$0xff]
      %v7559 = vld [vmem:[#allocation5 + $0x78] sm:$0xff]
      %v7560 = vadd.f32 %v7544, %v7482
      %v7561 = vadd.f32 %v7545, %v7485
      %v7562 = vadd.f32 %v7546, %v7490
      %v7563 = vadd.f32 %v7547, %v7493
      %v7564 = vadd.f32 %v7548, %v7498
      %v7565 = vadd.f32 %v7549, %v7501
      %v7566 = vadd.f32 %v7550, %v7506
      %v7567 = vadd.f32 %v7551, %v7509
      %v7568 = vadd.f32 %v7552, %v7514
      %v7569 = vadd.f32 %v7553, %v7517
      %v7570 = vadd.f32 %v7554, %v7522
      %v7571 = vadd.f32 %v7555, %v7525
      %v7572 = vadd.f32 %v7556, %v7530
      %v7573 = vadd.f32 %v7557, %v7533
      %v7574 = vadd.f32 %v7558, %v7538
      %v7575 = vadd.f32 %v7559, %v7541
      %7576 = vst.msk [vmem:[#allocation5] sm:$0xff] %vm804, %v7560
      %7577 = vst.msk [vmem:[#allocation5 + $0x8] sm:$0xff] %vm804, %v7561
      %7578 = vst.msk [vmem:[#allocation5 + $0x10] sm:$0xff] %vm804, %v7562
      %7579 = vst.msk [vmem:[#allocation5 + $0x18] sm:$0xff] %vm804, %v7563
      %7580 = vst.msk [vmem:[#allocation5 + $0x20] sm:$0xff] %vm804, %v7564
      %7581 = vst.msk [vmem:[#allocation5 + $0x28] sm:$0xff] %vm804, %v7565
      %7582 = vst.msk [vmem:[#allocation5 + $0x30] sm:$0xff] %vm804, %v7566
      %7583 = vst.msk [vmem:[#allocation5 + $0x38] sm:$0xff] %vm804, %v7567
      %7584 = vst.msk [vmem:[#allocation5 + $0x40] sm:$0xff] %vm804, %v7568
      %7585 = vst.msk [vmem:[#allocation5 + $0x48] sm:$0xff] %vm804, %v7569
      %7586 = vst.msk [vmem:[#allocation5 + $0x50] sm:$0xff] %vm804, %v7570
      %7587 = vst.msk [vmem:[#allocation5 + $0x58] sm:$0xff] %vm804, %v7571
      %7588 = vst.msk [vmem:[#allocation5 + $0x60] sm:$0xff] %vm804, %v7572
      %7589 = vst.msk [vmem:[#allocation5 + $0x68] sm:$0xff] %vm804, %v7573
      %7590 = vst.msk [vmem:[#allocation5 + $0x70] sm:$0xff] %vm804, %v7574
      %7591 = vst.msk [vmem:[#allocation5 + $0x78] sm:$0xff] %vm804, %v7575
      %s7592 = smul.u32 %s249, 16
      %s7593 = scalar_lea.vmem %s237, %s7592
      %v7594 = vld [vmem:[%s7593] sm:$0xff]
      %v7595 = vld [vmem:[%s7593 + $0x8] sm:$0xff]
      %v7596 = vld [vmem:[%s7593 + $0x10] sm:$0xff]
      %v7597 = vld [vmem:[%s7593 + $0x18] sm:$0xff]
      %v7598 = vld [vmem:[%s7593 + $0x20] sm:$0xff]
      %v7599 = vld [vmem:[%s7593 + $0x28] sm:$0xff]
      %v7600 = vld [vmem:[%s7593 + $0x30] sm:$0xff]
      %v7601 = vld [vmem:[%s7593 + $0x38] sm:$0xff]
      %v7602 = vld [vmem:[%s7593 + $0x40] sm:$0xff]
      %v7603 = vld [vmem:[%s7593 + $0x48] sm:$0xff]
      %v7604 = vld [vmem:[%s7593 + $0x50] sm:$0xff]
      %v7605 = vld [vmem:[%s7593 + $0x58] sm:$0xff]
      %v7606 = vld [vmem:[%s7593 + $0x60] sm:$0xff]
      %v7607 = vld [vmem:[%s7593 + $0x68] sm:$0xff]
      %v7608 = vld [vmem:[%s7593 + $0x70] sm:$0xff]
      %v7609 = vld [vmem:[%s7593 + $0x78] sm:$0xff]
      %v7610 = vld [vmem:[#allocation5] sm:$0xff]
      %v7611 = vld [vmem:[#allocation5 + $0x8] sm:$0xff]
      %v7612 = vld [vmem:[#allocation5 + $0x10] sm:$0xff]
      %v7613 = vld [vmem:[#allocation5 + $0x18] sm:$0xff]
      %v7614 = vld [vmem:[#allocation5 + $0x20] sm:$0xff]
      %v7615 = vld [vmem:[#allocation5 + $0x28] sm:$0xff]
      %v7616 = vld [vmem:[#allocation5 + $0x30] sm:$0xff]
      %v7617 = vld [vmem:[#allocation5 + $0x38] sm:$0xff]
      %v7618 = vld [vmem:[#allocation5 + $0x40] sm:$0xff]
      %v7619 = vld [vmem:[#allocation5 + $0x48] sm:$0xff]
      %v7620 = vld [vmem:[#allocation5 + $0x50] sm:$0xff]
      %v7621 = vld [vmem:[#allocation5 + $0x58] sm:$0xff]
      %v7622 = vld [vmem:[#allocation5 + $0x60] sm:$0xff]
      %v7623 = vld [vmem:[#allocation5 + $0x68] sm:$0xff]
      %v7624 = vld [vmem:[#allocation5 + $0x70] sm:$0xff]
      %v7625 = vld [vmem:[#allocation5 + $0x78] sm:$0xff]
      %v7626 = vld [vmem:[%s4] sm:$0x1]
      %v7628 = vlaneseq
      %v7629 = vshrl.u32 %v7628, 7
      %v7630 = vsub.s32 0, %v7629
      %v7631 = vrot.slane %v7626, %v7630
      %v7633 = vadd.f32 %v7610, %v7631
      %v7634 = vadd.f32 %v7611, %v7631
      %v7635 = vadd.f32 %v7612, %v7631
      %v7636 = vadd.f32 %v7613, %v7631
      %v7637 = vadd.f32 %v7614, %v7631
      %v7638 = vadd.f32 %v7615, %v7631
      %v7639 = vadd.f32 %v7616, %v7631
      %v7640 = vadd.f32 %v7617, %v7631
      %v7641 = vadd.f32 %v7618, %v7631
      %v7642 = vadd.f32 %v7619, %v7631
      %v7643 = vadd.f32 %v7620, %v7631
      %v7644 = vadd.f32 %v7621, %v7631
      %v7645 = vadd.f32 %v7622, %v7631
      %v7646 = vadd.f32 %v7623, %v7631
      %v7647 = vadd.f32 %v7624, %v7631
      %v7648 = vadd.f32 %v7625, %v7631
      %v7649 = vadd.f32 %v7633, %v7594
      %v7650 = vadd.f32 %v7634, %v7595
      %v7651 = vadd.f32 %v7635, %v7596
      %v7652 = vadd.f32 %v7636, %v7597
      %v7653 = vadd.f32 %v7637, %v7598
      %v7654 = vadd.f32 %v7638, %v7599
      %v7655 = vadd.f32 %v7639, %v7600
      %v7656 = vadd.f32 %v7640, %v7601
      %v7657 = vadd.f32 %v7641, %v7602
      %v7658 = vadd.f32 %v7642, %v7603
      %v7659 = vadd.f32 %v7643, %v7604
      %v7660 = vadd.f32 %v7644, %v7605
      %v7661 = vadd.f32 %v7645, %v7606
      %v7662 = vadd.f32 %v7646, %v7607
      %v7663 = vadd.f32 %v7647, %v7608
      %v7664 = vadd.f32 %v7648, %v7609
      %v7665 = vmax.f32 %v7649, 0.0
      %v7666 = vmax.f32 %v7650, 0.0
      %v7667 = vmax.f32 %v7651, 0.0
      %v7668 = vmax.f32 %v7652, 0.0
      %v7669 = vmax.f32 %v7653, 0.0
      %v7670 = vmax.f32 %v7654, 0.0
      %v7671 = vmax.f32 %v7655, 0.0
      %v7672 = vmax.f32 %v7656, 0.0
      %v7673 = vmax.f32 %v7657, 0.0
      %v7674 = vmax.f32 %v7658, 0.0
      %v7675 = vmax.f32 %v7659, 0.0
      %v7676 = vmax.f32 %v7660, 0.0
      %v7677 = vmax.f32 %v7661, 0.0
      %v7678 = vmax.f32 %v7662, 0.0
      %v7679 = vmax.f32 %v7663, 0.0
      %v7680 = vmax.f32 %v7664, 0.0
      %7681 = vst.msk [vmem:[%s246] sm:$0xff] %vm804, %v7665
      %7682 = vst.msk [vmem:[%s246 + $0x8] sm:$0xff] %vm804, %v7666
      %7683 = vst.msk [vmem:[%s246 + $0x10] sm:$0xff] %vm804, %v7667
      %7684 = vst.msk [vmem:[%s246 + $0x18] sm:$0xff] %vm804, %v7668
      %7685 = vst.msk [vmem:[%s246 + $0x20] sm:$0xff] %vm804, %v7669
      %7686 = vst.msk [vmem:[%s246 + $0x28] sm:$0xff] %vm804, %v7670
      %7687 = vst.msk [vmem:[%s246 + $0x30] sm:$0xff] %vm804, %v7671
      %7688 = vst.msk [vmem:[%s246 + $0x38] sm:$0xff] %vm804, %v7672
      %7689 = vst.msk [vmem:[%s246 + $0x40] sm:$0xff] %vm804, %v7673
      %7690 = vst.msk [vmem:[%s246 + $0x48] sm:$0xff] %vm804, %v7674
      %7691 = vst.msk [vmem:[%s246 + $0x50] sm:$0xff] %vm804, %v7675
      %7692 = vst.msk [vmem:[%s246 + $0x58] sm:$0xff] %vm804, %v7676
      %7693 = vst.msk [vmem:[%s246 + $0x60] sm:$0xff] %vm804, %v7677
      %7694 = vst.msk [vmem:[%s246 + $0x68] sm:$0xff] %vm804, %v7678
      %7695 = vst.msk [vmem:[%s246 + $0x70] sm:$0xff] %vm804, %v7679
      %7696 = vst.msk [vmem:[%s246 + $0x78] sm:$0xff] %vm804, %v7680
      %s7697 = smul.u32 16, %s21
      %p7698 = scmp.lt.s32.totalorder %s20, 1
      %s7699 = scalar_select %p7698, %s20, 1
      %p7700 = scmp.lt.s32.totalorder %s7697, 31
      %s7701 = scalar_select %p7700, %s7697, 31
      %s7702 = smul.addr %s7699, 32
      %s7703 = sadd.s32 %s7701, %s7702
      %s7704 = smul.addr %s7703, 8
      %s7705 = scalar_lea.vmem %s5, %s7704
      // Predicated region
      $region53: #{tpu_custom_call.1} parent=39 // pred_check
        %p7706 = pneg %p158
      $region54: #{tpu_custom_call.1} parent=39 // pred_check_branch
        %7708 = sbr.rel (%p7706) target = $region56
      $region55: #{tpu_custom_call.1} parent=39 // pred_region
        %s7709 = smul.u32 16, %s21
      $region56: #{tpu_custom_call.1} parent=39 // pred_fallthru
        _
    $region40: #{tpu_custom_call.1} parent=5 // pred_fallthru
      _
    %p7710 = scmp.le.s32.totalorder 2, %s11
    // Predicated region
    $region57: #{tpu_custom_call.1} parent=5 // pred_check
      %p7711 = pneg %p7710
    $region58: #{tpu_custom_call.1} parent=5 // pred_check_branch
      %7713 = sbr.rel (%p7711) target = $region60
    $region59: #{tpu_custom_call.1} parent=5 // pred_region
      %s7714 = ssub.s32 %s11, 2
      // Predicated region
      $region61: #{tpu_custom_call.1} parent=59 // pred_check
        %p7715 = pneg %p164
      $region62: #{tpu_custom_call.1} parent=59 // pred_check_branch
        %7717 = sbr.rel (%p7715) target = $region64
      $region63: #{tpu_custom_call.1} parent=59 // pred_region
        %s7718 = smul.u32 16, %s23
        %p7719 = scmp.lt.s32.totalorder %s22, 1
        %s7720 = scalar_select %p7719, %s22, 1
        %p7721 = scmp.lt.s32.totalorder %s7718, 31
        %s7722 = scalar_select %p7721, %s7718, 31
        %s7723 = smul.addr %s7720, 32
        %s7724 = sadd.s32 %s7722, %s7723
        %s7725 = smul.addr %s7724, 8
        %s7726 = scalar_lea.vmem %s5, %s7725
      $region64: #{tpu_custom_call.1} parent=59 // pred_fallthru
        _
    $region60: #{tpu_custom_call.1} parent=5 // pred_fallthru
      _
  $region6: #{tpu_custom_call.1} parent=0 // loop_footer
    %s15 = sadd.s32 1, %s11
  $region7: #{tpu_custom_call.1} parent=0 // loop_footer_branch
    %10 = sbr.rel target = $region3
  $region8: #{tpu_custom_call.1} parent=0 // loop_exit
    _

</llo_original>
